<compile_context>
chip_gen: v5e
topology: v5e:2x2
jax: 0.10.0
libtpu: 0.0.40
codegen_flags: <defaults>
</compile_context>

<pallas_src>
import jax
import jax.numpy as jnp
from jax.experimental import pallas as pl
from jax.experimental.pallas import tpu as pltpu

HIDDEN = 32                     # backbone output channels
NUM_POS_FEATS = HIDDEN // 2     # sine-embedding feats per axis
TEMPERATURE = 10000.0
Z_POS_OFFSET = 5000.0
LANE = 128                      # TPU lane width (conv output padded to this)


def _round_up(v, m):
    return ((v + m - 1) // m) * m


# ----------------------------------------------------------------------------
# Kernel 1: Conv2d(Cin, HIDDEN, k=3, s=2, p=1) + ReLU with in-kernel im2col.
# Grid = (B,); per step the parity-reorganized padded image stays resident in
# VMEM and we accumulate 9 shifted (Wf, Cin) x (Cin, 128) bf16 MXU dots per
# output row (f32 accumulation), add bias, ReLU, lane-dense store.
# ----------------------------------------------------------------------------
def _make_conv_kernel(hf, wf, cin, npad):
    def conv_kernel(x_ref, w_ref, b_ref, o_ref):
        # x_ref: (1, hf+1, 2, wf+1, 2*cin) bf16   (parity-reorganized, padded)
        # w_ref: (9*cin, npad) bf16    b_ref: (1, npad) f32
        # o_ref: (1, hf, wf, npad) feat dtype
        bias = b_ref[...]                                    # (1, npad) f32
        for i in range(hf):                                  # output rows
            acc = jnp.zeros((wf, npad), jnp.float32)
            for dy in range(3):
                row = i + dy // 2
                rpar = dy % 2
                for dx in range(3):
                    cq = dx // 2
                    cpar = dx % 2
                    # (wf, cin) slice == xp[2i+dy, 2j+dx, :] for j = 0..wf-1
                    sub = x_ref[0, row, rpar, cq:cq + wf,
                                cpar * cin:(cpar + 1) * cin]
                    wk = w_ref[(dy * 3 + dx) * cin:(dy * 3 + dx + 1) * cin, :]
                    acc = acc + jnp.dot(sub, wk,
                                        preferred_element_type=jnp.float32)
            acc = jnp.maximum(acc + bias, 0.0)
            o_ref[0, i] = acc.astype(o_ref.dtype)
    return conv_kernel


def conv3x3_s2_relu(x, w_kn, b_n):
    """Conv2d(Cin, Cout, k=3, s=2, p=1) + ReLU for one branch (NHWC)."""
    B, H, W, Cin = x.shape
    Hf, Wf = (H + 1) // 2, (W + 1) // 2          # correct for odd H/W too
    Hq, Wq = Hf + 1, Wf + 1
    N = w_kn.shape[1]
    NP = _round_up(N, LANE)

    # pad 1 on top/left (conv padding) and enough on bottom/right to reach
    # (2*Hf+2, 2*Wf+2); then a FREE row-major reshape into parity layout.
    xp = jnp.pad(x, ((0, 0), (1, 2 * Hf + 1 - H), (1, 2 * Wf + 1 - W), (0, 0)))
    xq = xp.reshape(B, Hq, 2, Wq, 2 * Cin).astype(jnp.bfloat16)

    w_p = jnp.pad(w_kn, ((0, 0), (0, NP - N))).astype(jnp.bfloat16)
    b_p = jnp.pad(b_n, (0, NP - N)).reshape(1, NP).astype(jnp.float32)

    flops = 2 * B * Hf * Wf * 9 * Cin * NP
    bytes_accessed = int(xq.size * 2 + w_p.size * 2 + b_p.size * 4
                         + B * Hf * Wf * NP * x.dtype.itemsize)

    out = pl.pallas_call(
        _make_conv_kernel(Hf, Wf, Cin, NP),
        grid=(B,),
        in_specs=[
            pl.BlockSpec((1, Hq, 2, Wq, 2 * Cin), lambda b: (b, 0, 0, 0, 0)),
            pl.BlockSpec((9 * Cin, NP), lambda b: (0, 0)),   # resident weights
            pl.BlockSpec((1, NP), lambda b: (0, 0)),         # resident bias
        ],
        out_specs=pl.BlockSpec((1, Hf, Wf, NP), lambda b: (b, 0, 0, 0)),
        out_shape=jax.ShapeDtypeStruct((B, Hf, Wf, NP), x.dtype),
        compiler_params=pltpu.CompilerParams(
            dimension_semantics=("parallel",)),
        cost_estimate=pl.CostEstimate(flops=flops, transcendentals=0,
                                      bytes_accessed=bytes_accessed),
    )(xq, w_p, b_p)

    # single channel-dim slice (spatial dims are already exact, no M padding)
    return out[..., :N]


# ----------------------------------------------------------------------------
# Kernel 2: DETR sine position encoding (per branch, native size).
#   y_embed = cumsum_H(~mask) + offset, x_embed = cumsum_W(~mask) + offset,
# both computed directly in flattened (1, M=Hf*Wf) lane-dense form via MXU
# matmuls against precomputed resident cumsum matrices.  One sin + one cos per
# (kh, M) block; kernel output is channel-blocked (C, M); the wrapper applies
# the static sin/cos channel interleave and NHWC transpose.
# ----------------------------------------------------------------------------
def _make_pos_kernel(kh, pos_offset):
    def pos_kernel(nm_ref, ay_ref, ax_ref, invdt_ref, o_ref):
        nm = nm_ref[0]                                       # (1, M) bf16
        # NOTE: offset is added to BOTH y and x embeds (matches previous impl;
        # the reference module is generic over `position_encoding`).
        y = jnp.dot(nm, ay_ref[...],
                    preferred_element_type=jnp.float32) + pos_offset  # (1, M)
        x = jnp.dot(nm, ax_ref[...],
                    preferred_element_type=jnp.float32) + pos_offset  # (1, M)
        inv = invdt_ref[...]                                 # (kh, 1) f32
        py = inv * y                                         # (kh, M)
        px = inv * x                                         # (kh, M)
        dt = o_ref.dtype
        o_ref[0, 0 * kh:1 * kh, :] = jnp.sin(py).astype(dt)
        o_ref[0, 1 * kh:2 * kh, :] = jnp.cos(py).astype(dt)
        o_ref[0, 2 * kh:3 * kh, :] = jnp.sin(px).astype(dt)
        o_ref[0, 3 * kh:4 * kh, :] = jnp.cos(px).astype(dt)
    return pos_kernel


def sine_pos_encoding(feat_mask_bool, pos_offset, out_dtype):
    B, Hf, Wf = feat_mask_bool.shape
    M = Hf * Wf
    npf = NUM_POS_FEATS
    kh = npf // 2
    C = 2 * npf

    # not-mask, flattened to the lane dim (free XLA reshape), bf16 MXU input.
    nm = (1.0 - feat_mask_bool.astype(jnp.float32)).reshape(B, 1, M)
    nm = nm.astype(jnp.bfloat16)

    # resident cumsum matrices (0/1 -> exact in bf16 with f32 accumulation).
    ii = jnp.arange(M, dtype=jnp.int32) // Wf
    jj = jnp.arange(M, dtype=jnp.int32) % Wf
    a_y = ((jj[:, None] == jj[None, :]) &
           (ii[:, None] <= ii[None, :])).astype(jnp.bfloat16)   # cumsum over H
    a_x = ((ii[:, None] == ii[None, :]) &
           (jj[:, None] <= jj[None, :])).astype(jnp.bfloat16)   # cumsum over W

    # dim_t[2k] == dim_t[2k+1]; precompute reciprocal so the kernel only does a
    # VPU multiply and half the EUP work.
    inv_dt = (TEMPERATURE ** (-2.0 * jnp.arange(kh, dtype=jnp.float32) / npf))
    inv_dt = inv_dt.reshape(kh, 1)

    flops = int(B * (2 * 2 * M * M + 4 * kh * M))
    trans = int(B * 4 * kh * M)
    bytes_accessed = int(nm.size * 2 + a_y.size * 2 + a_x.size * 2
                         + inv_dt.size * 4
                         + B * C * M * jnp.dtype(out_dtype).itemsize)

    raw = pl.pallas_call(
        _make_pos_kernel(kh, float(pos_offset)),
        grid=(B,),
        in_specs=[
            pl.BlockSpec((1, 1, M), lambda b: (b, 0, 0)),
            pl.BlockSpec((M, M), lambda b: (0, 0)),          # resident
            pl.BlockSpec((M, M), lambda b: (0, 0)),          # resident
            pl.BlockSpec((kh, 1), lambda b: (0, 0)),         # resident
        ],
        out_specs=pl.BlockSpec((1, C, M), lambda b: (b, 0, 0)),
        out_shape=jax.ShapeDtypeStruct((B, C, M), out_dtype),
        compiler_params=pltpu.CompilerParams(
            dimension_semantics=("parallel",)),
        cost_estimate=pl.CostEstimate(flops=flops, transcendentals=trans,
                                      bytes_accessed=bytes_accessed),
    )(nm, a_y, a_x, inv_dt)

    # channel-blocked [sin_y | cos_y | sin_x | cos_x] -> reference interleaved
    # order [sin_y f0, cos_y f0, sin_y f1, ..., sin_x f0, cos_x f0, ...]
    k = jnp.arange(kh)
    inter = jnp.stack([k, k + kh], axis=1).reshape(-1)
    perm = jnp.concatenate([inter, inter + 2 * kh])
    pos = raw[:, perm, :].reshape(B, C, Hf, Wf)
    return jnp.transpose(pos, (0, 2, 3, 1))                  # (B, Hf, Wf, C)


# ----------------------------------------------------------------------------
# Glue: F.interpolate(mask.unsqueeze(1).float(), size=feat_hw) nearest + bool.
# TODO(synk): tiny gather, not worth a dedicated Pallas launch.
# ----------------------------------------------------------------------------
def interpolate_mask_nearest(mask_bool, out_hw):
    B, H, W = mask_bool.shape
    Hf, Wf = out_hw
    ih = (jnp.arange(Hf) * (H / Hf)).astype(jnp.int32)   # PyTorch legacy nearest
    iw = (jnp.arange(Wf) * (W / Wf)).astype(jnp.int32)
    return mask_bool[:, ih][:, :, iw]


# ----------------------------------------------------------------------------
# Pipeline forward (mirrors DeformDETRTrackBackbonePipeline.forward)
# ----------------------------------------------------------------------------
def pipeline_forward(params, x, x_mask, z, z_mask):
    # backbone on both branches (each at its native spatial size)
    x_feat = conv3x3_s2_relu(x, params["w"], params["b"])
    z_feat = conv3x3_s2_relu(z, params["w"], params["b"])

    # mask resize to each feature resolution (glue)
    x_fmask = interpolate_mask_nearest(x_mask, x_feat.shape[1:3])
    z_fmask = interpolate_mask_nearest(z_mask, z_feat.shape[1:3])

    # position encodings, written directly in the feature dtype
    x_pos = sine_pos_encoding(x_fmask, 0.0, x_feat.dtype)
    z_pos = sine_pos_encoding(z_fmask, Z_POS_OFFSET, z_feat.dtype)

    return (x_feat, x_fmask, x_pos, z_feat, z_fmask, z_pos)


if __name__ == "__main__":
    key = jax.random.PRNGKey(0)
    kx, kz, kw, kb = jax.random.split(key, 4)

    B, Cin = 2, 4
    Hx, Wx = 16, 16          # search image
    Hz, Wz = 8, 8            # template image

    # inputs (layout: NHWC)
    x = jax.random.normal(kx, (B, Hx, Wx, Cin), jnp.float32)
    z = jax.random.normal(kz, (B, Hz, Wz, Cin), jnp.float32)
    # masks: True == padded region (right quarter of each image)
    x_mask = jnp.broadcast_to(jnp.arange(Wx) >= (3 * Wx) // 4, (B, Hx, Wx))
    z_mask = jnp.broadcast_to(jnp.arange(Wz) >= (3 * Wz) // 4, (B, Hz, Wz))

    # deterministic synthetic backbone params: im2col weight (9*Cin, HIDDEN),
    # row order (dy*3 + dx)*Cin + c.
    w = jax.random.normal(kw, (9 * Cin, HIDDEN), jnp.float32) * 0.1
    b = jax.random.normal(kb, (HIDDEN,), jnp.float32) * 0.1
    params = {"w": w, "b": b}

    fwd = jax.jit(pipeline_forward)
    outs = fwd(params, x, x_mask, z, z_mask)
    jax.block_until_ready(outs)

    x_feat, x_feat_mask, x_feat_pos, z_feat, z_feat_mask, z_feat_pos = outs
    assert x_feat.shape == (B, Hx // 2, Wx // 2, HIDDEN)
    assert x_feat_mask.shape == (B, Hx // 2, Wx // 2)
    assert x_feat_pos.shape == (B, Hx // 2, Wx // 2, HIDDEN)
    assert z_feat.shape == (B, Hz // 2, Wz // 2, HIDDEN)
    assert z_feat_mask.shape == (B, Hz // 2, Wz // 2)
    assert z_feat_pos.shape == (B, Hz // 2, Wz // 2, HIDDEN)
    assert x_feat_mask.dtype == jnp.bool_ and z_feat_mask.dtype == jnp.bool_
    assert x_feat_pos.dtype == x_feat.dtype and z_feat_pos.dtype == z_feat.dtype

    print("KERNEL_OK")
</pallas_src>

<mosaic_0001>
module attributes {stable_mosaic.version = 11 : i64} {
  func.func @conv_kernel(%arg0: i32, %arg1: memref<1x9x2x9x8xbf16, #tpu.memory_space<vmem>>, %arg2: memref<36x128xbf16, #tpu.memory_space<vmem>>, %arg3: memref<1x128xf32, #tpu.memory_space<vmem>>, %arg4: memref<1x8x8x128xf32, #tpu.memory_space<vmem>>) attributes {dimension_semantics = [#tpu.dimension_semantics<parallel>], iteration_bounds = array<i64: 2>, scalar_prefetch = 0 : i64, scratch_operands = 0 : i64, tpu.core_type = #tpu.core_type<tc>, window_params = [{transform_indices = @transform_0, window_bounds = array<i64: 1, 9, 2, 9, 8>}, {pipeline_mode = #tpu.pipeline_mode<synchronous>, transform_indices = @transform_1, window_bounds = array<i64: 36, 128>}, {pipeline_mode = #tpu.pipeline_mode<synchronous>, transform_indices = @transform_2, window_bounds = array<i64: 1, 128>}, {transform_indices = @transform_3, window_bounds = array<i64: 1, 8, 8, 128>}]} {
    %c0 = arith.constant 0 : index
    %c0_0 = arith.constant 0 : index
    %0 = vector.load %arg3[%c0, %c0_0] : memref<1x128xf32, #tpu.memory_space<vmem>>, vector<1x128xf32>
    %cst = arith.constant 0.000000e+00 : f32
    %1 = vector.broadcast %cst : f32 to vector<8x128xf32>
    %c0_1 = arith.constant 0 : index
    %c0_2 = arith.constant 0 : index
    %c0_3 = arith.constant 0 : index
    %c0_4 = arith.constant 0 : index
    %c0_5 = arith.constant 0 : index
    %2 = vector.load %arg1[%c0_1, %c0_2, %c0_3, %c0_4, %c0_5] : memref<1x9x2x9x8xbf16, #tpu.memory_space<vmem>>, vector<1x1x1x8x4xbf16>
    %3 = vector.shape_cast %2 : vector<1x1x1x8x4xbf16> to vector<8x4xbf16>
    %c0_6 = arith.constant 0 : index
    %c0_7 = arith.constant 0 : index
    %4 = vector.load %arg2[%c0_6, %c0_7] : memref<36x128xbf16, #tpu.memory_space<vmem>>, vector<4x128xbf16>
    %cst_8 = arith.constant dense<0.000000e+00> : vector<8x128xf32>
    %5 = tpu.matmul %3, %4, %cst_8 {dimension_numbers = #tpu.dot_dimension_numbers<[1], [0], [0], [1], [0, 0, 1, 1], [], []>} : vector<8x4xbf16>, vector<4x128xbf16>, vector<8x128xf32> -> vector<8x128xf32>
    %6 = arith.addf %1, %5 : vector<8x128xf32>
    %c0_9 = arith.constant 0 : index
    %c0_10 = arith.constant 0 : index
    %c0_11 = arith.constant 0 : index
    %c0_12 = arith.constant 0 : index
    %c4 = arith.constant 4 : index
    %7 = vector.load %arg1[%c0_9, %c0_10, %c0_11, %c0_12, %c4] : memref<1x9x2x9x8xbf16, #tpu.memory_space<vmem>>, vector<1x1x1x8x4xbf16>
    %8 = vector.shape_cast %7 : vector<1x1x1x8x4xbf16> to vector<8x4xbf16>
    %c4_13 = arith.constant 4 : index
    %c0_14 = arith.constant 0 : index
    %9 = vector.load %arg2[%c4_13, %c0_14] : memref<36x128xbf16, #tpu.memory_space<vmem>>, vector<4x128xbf16>
    %cst_15 = arith.constant dense<0.000000e+00> : vector<8x128xf32>
    %10 = tpu.matmul %8, %9, %cst_15 {dimension_numbers = #tpu.dot_dimension_numbers<[1], [0], [0], [1], [0, 0, 1, 1], [], []>} : vector<8x4xbf16>, vector<4x128xbf16>, vector<8x128xf32> -> vector<8x128xf32>
    %11 = arith.addf %6, %10 : vector<8x128xf32>
    %c0_16 = arith.constant 0 : index
    %c0_17 = arith.constant 0 : index
    %c0_18 = arith.constant 0 : index
    %c1 = arith.constant 1 : index
    %c0_19 = arith.constant 0 : index
    %12 = vector.load %arg1[%c0_16, %c0_17, %c0_18, %c1, %c0_19] : memref<1x9x2x9x8xbf16, #tpu.memory_space<vmem>>, vector<1x1x1x8x4xbf16>
    %13 = vector.shape_cast %12 : vector<1x1x1x8x4xbf16> to vector<8x4xbf16>
    %c8 = arith.constant 8 : index
    %c0_20 = arith.constant 0 : index
    %14 = vector.load %arg2[%c8, %c0_20] : memref<36x128xbf16, #tpu.memory_space<vmem>>, vector<4x128xbf16>
    %cst_21 = arith.constant dense<0.000000e+00> : vector<8x128xf32>
    %15 = tpu.matmul %13, %14, %cst_21 {dimension_numbers = #tpu.dot_dimension_numbers<[1], [0], [0], [1], [0, 0, 1, 1], [], []>} : vector<8x4xbf16>, vector<4x128xbf16>, vector<8x128xf32> -> vector<8x128xf32>
    %16 = arith.addf %11, %15 : vector<8x128xf32>
    %c0_22 = arith.constant 0 : index
    %c0_23 = arith.constant 0 : index
    %c1_24 = arith.constant 1 : index
    %c0_25 = arith.constant 0 : index
    %c0_26 = arith.constant 0 : index
    %17 = vector.load %arg1[%c0_22, %c0_23, %c1_24, %c0_25, %c0_26] : memref<1x9x2x9x8xbf16, #tpu.memory_space<vmem>>, vector<1x1x1x8x4xbf16>
    %18 = vector.shape_cast %17 : vector<1x1x1x8x4xbf16> to vector<8x4xbf16>
    %c12 = arith.constant 12 : index
    %c0_27 = arith.constant 0 : index
    %19 = vector.load %arg2[%c12, %c0_27] : memref<36x128xbf16, #tpu.memory_space<vmem>>, vector<4x128xbf16>
    %cst_28 = arith.constant dense<0.000000e+00> : vector<8x128xf32>
    %20 = tpu.matmul %18, %19, %cst_28 {dimension_numbers = #tpu.dot_dimension_numbers<[1], [0], [0], [1], [0, 0, 1, 1], [], []>} : vector<8x4xbf16>, vector<4x128xbf16>, vector<8x128xf32> -> vector<8x128xf32>
    %21 = arith.addf %16, %20 : vector<8x128xf32>
    %c0_29 = arith.constant 0 : index
    %c0_30 = arith.constant 0 : index
    %c1_31 = arith.constant 1 : index
    %c0_32 = arith.constant 0 : index
    %c4_33 = arith.constant 4 : index
    %22 = vector.load %arg1[%c0_29, %c0_30, %c1_31, %c0_32, %c4_33] : memref<1x9x2x9x8xbf16, #tpu.memory_space<vmem>>, vector<1x1x1x8x4xbf16>
    %23 = vector.shape_cast %22 : vector<1x1x1x8x4xbf16> to vector<8x4xbf16>
    %c16 = arith.constant 16 : index
    %c0_34 = arith.constant 0 : index
    %24 = vector.load %arg2[%c16, %c0_34] : memref<36x128xbf16, #tpu.memory_space<vmem>>, vector<4x128xbf16>
    %cst_35 = arith.constant dense<0.000000e+00> : vector<8x128xf32>
    %25 = tpu.matmul %23, %24, %cst_35 {dimension_numbers = #tpu.dot_dimension_numbers<[1], [0], [0], [1], [0, 0, 1, 1], [], []>} : vector<8x4xbf16>, vector<4x128xbf16>, vector<8x128xf32> -> vector<8x128xf32>
    %26 = arith.addf %21, %25 : vector<8x128xf32>
    %c0_36 = arith.constant 0 : index
    %c0_37 = arith.constant 0 : index
    %c1_38 = arith.constant 1 : index
    %c1_39 = arith.constant 1 : index
    %c0_40 = arith.constant 0 : index
    %27 = vector.load %arg1[%c0_36, %c0_37, %c1_38, %c1_39, %c0_40] : memref<1x9x2x9x8xbf16, #tpu.memory_space<vmem>>, vector<1x1x1x8x4xbf16>
    %28 = vector.shape_cast %27 : vector<1x1x1x8x4xbf16> to vector<8x4xbf16>
    %c20 = arith.constant 20 : index
    %c0_41 = arith.constant 0 : index
    %29 = vector.load %arg2[%c20, %c0_41] : memref<36x128xbf16, #tpu.memory_space<vmem>>, vector<4x128xbf16>
    %cst_42 = arith.constant dense<0.000000e+00> : vector<8x128xf32>
    %30 = tpu.matmul %28, %29, %cst_42 {dimension_numbers = #tpu.dot_dimension_numbers<[1], [0], [0], [1], [0, 0, 1, 1], [], []>} : vector<8x4xbf16>, vector<4x128xbf16>, vector<8x128xf32> -> vector<8x128xf32>
    %31 = arith.addf %26, %30 : vector<8x128xf32>
    %c0_43 = arith.constant 0 : index
    %c1_44 = arith.constant 1 : index
    %c0_45 = arith.constant 0 : index
    %c0_46 = arith.constant 0 : index
    %c0_47 = arith.constant 0 : index
    %32 = vector.load %arg1[%c0_43, %c1_44, %c0_45, %c0_46, %c0_47] : memref<1x9x2x9x8xbf16, #tpu.memory_space<vmem>>, vector<1x1x1x8x4xbf16>
    %33 = vector.shape_cast %32 : vector<1x1x1x8x4xbf16> to vector<8x4xbf16>
    %c24 = arith.constant 24 : index
    %c0_48 = arith.constant 0 : index
    %34 = vector.load %arg2[%c24, %c0_48] : memref<36x128xbf16, #tpu.memory_space<vmem>>, vector<4x128xbf16>
    %cst_49 = arith.constant dense<0.000000e+00> : vector<8x128xf32>
    %35 = tpu.matmul %33, %34, %cst_49 {dimension_numbers = #tpu.dot_dimension_numbers<[1], [0], [0], [1], [0, 0, 1, 1], [], []>} : vector<8x4xbf16>, vector<4x128xbf16>, vector<8x128xf32> -> vector<8x128xf32>
    %36 = arith.addf %31, %35 : vector<8x128xf32>
    %c0_50 = arith.constant 0 : index
    %c1_51 = arith.constant 1 : index
    %c0_52 = arith.constant 0 : index
    %c0_53 = arith.constant 0 : index
    %c4_54 = arith.constant 4 : index
    %37 = vector.load %arg1[%c0_50, %c1_51, %c0_52, %c0_53, %c4_54] : memref<1x9x2x9x8xbf16, #tpu.memory_space<vmem>>, vector<1x1x1x8x4xbf16>
    %38 = vector.shape_cast %37 : vector<1x1x1x8x4xbf16> to vector<8x4xbf16>
    %c28 = arith.constant 28 : index
    %c0_55 = arith.constant 0 : index
    %39 = vector.load %arg2[%c28, %c0_55] : memref<36x128xbf16, #tpu.memory_space<vmem>>, vector<4x128xbf16>
    %cst_56 = arith.constant dense<0.000000e+00> : vector<8x128xf32>
    %40 = tpu.matmul %38, %39, %cst_56 {dimension_numbers = #tpu.dot_dimension_numbers<[1], [0], [0], [1], [0, 0, 1, 1], [], []>} : vector<8x4xbf16>, vector<4x128xbf16>, vector<8x128xf32> -> vector<8x128xf32>
    %41 = arith.addf %36, %40 : vector<8x128xf32>
    %c0_57 = arith.constant 0 : index
    %c1_58 = arith.constant 1 : index
    %c0_59 = arith.constant 0 : index
    %c1_60 = arith.constant 1 : index
    %c0_61 = arith.constant 0 : index
    %42 = vector.load %arg1[%c0_57, %c1_58, %c0_59, %c1_60, %c0_61] : memref<1x9x2x9x8xbf16, #tpu.memory_space<vmem>>, vector<1x1x1x8x4xbf16>
    %43 = vector.shape_cast %42 : vector<1x1x1x8x4xbf16> to vector<8x4xbf16>
    %c32 = arith.constant 32 : index
    %c0_62 = arith.constant 0 : index
    %44 = vector.load %arg2[%c32, %c0_62] : memref<36x128xbf16, #tpu.memory_space<vmem>>, vector<4x128xbf16>
    %cst_63 = arith.constant dense<0.000000e+00> : vector<8x128xf32>
    %45 = tpu.matmul %43, %44, %cst_63 {dimension_numbers = #tpu.dot_dimension_numbers<[1], [0], [0], [1], [0, 0, 1, 1], [], []>} : vector<8x4xbf16>, vector<4x128xbf16>, vector<8x128xf32> -> vector<8x128xf32>
    %46 = arith.addf %41, %45 : vector<8x128xf32>
    %47 = vector.broadcast %0 : vector<1x128xf32> to vector<8x128xf32>
    %48 = arith.addf %46, %47 : vector<8x128xf32>
    %cst_64 = arith.constant 0.000000e+00 : f32
    %49 = vector.broadcast %cst_64 : f32 to vector<8x128xf32>
    %50 = arith.maximumf %48, %49 : vector<8x128xf32>
    %c0_65 = arith.constant 0 : index
    %c0_66 = arith.constant 0 : index
    %c0_67 = arith.constant 0 : index
    %c0_68 = arith.constant 0 : index
    %51 = vector.load %arg4[%c0_65, %c0_66, %c0_67, %c0_68] : memref<1x8x8x128xf32, #tpu.memory_space<vmem>>, vector<1x1x8x128xf32>
    %52 = vector.shape_cast %51 : vector<1x1x8x128xf32> to vector<8x128xf32>
    %53 = vector.shape_cast %50 : vector<8x128xf32> to vector<1x1x8x128xf32>
    tpu.vector_store %arg4[%c0_65, %c0_66, %c0_67, %c0_68], %53 {strides = array<i32>} : memref<1x8x8x128xf32, #tpu.memory_space<vmem>>, vector<1x1x8x128xf32>,
    %cst_69 = arith.constant 0.000000e+00 : f32
    %54 = vector.broadcast %cst_69 : f32 to vector<8x128xf32>
    %c0_70 = arith.constant 0 : index
    %c1_71 = arith.constant 1 : index
    %c0_72 = arith.constant 0 : index
    %c0_73 = arith.constant 0 : index
    %c0_74 = arith.constant 0 : index
    %55 = vector.load %arg1[%c0_70, %c1_71, %c0_72, %c0_73, %c0_74] : memref<1x9x2x9x8xbf16, #tpu.memory_space<vmem>>, vector<1x1x1x8x4xbf16>
    %56 = vector.shape_cast %55 : vector<1x1x1x8x4xbf16> to vector<8x4xbf16>
    %c0_75 = arith.constant 0 : index
    %c0_76 = arith.constant 0 : index
    %57 = vector.load %arg2[%c0_75, %c0_76] : memref<36x128xbf16, #tpu.memory_space<vmem>>, vector<4x128xbf16>
    %cst_77 = arith.constant dense<0.000000e+00> : vector<8x128xf32>
    %58 = tpu.matmul %56, %57, %cst_77 {dimension_numbers = #tpu.dot_dimension_numbers<[1], [0], [0], [1], [0, 0, 1, 1], [], []>} : vector<8x4xbf16>, vector<4x128xbf16>, vector<8x128xf32> -> vector<8x128xf32>
    %59 = arith.addf %54, %58 : vector<8x128xf32>
    %c0_78 = arith.constant 0 : index
    %c1_79 = arith.constant 1 : index
    %c0_80 = arith.constant 0 : index
    %c0_81 = arith.constant 0 : index
    %c4_82 = arith.constant 4 : index
    %60 = vector.load %arg1[%c0_78, %c1_79, %c0_80, %c0_81, %c4_82] : memref<1x9x2x9x8xbf16, #tpu.memory_space<vmem>>, vector<1x1x1x8x4xbf16>
    %61 = vector.shape_cast %60 : vector<1x1x1x8x4xbf16> to vector<8x4xbf16>
    %c4_83 = arith.constant 4 : index
    %c0_84 = arith.constant 0 : index
    %62 = vector.load %arg2[%c4_83, %c0_84] : memref<36x128xbf16, #tpu.memory_space<vmem>>, vector<4x128xbf16>
    %cst_85 = arith.constant dense<0.000000e+00> : vector<8x128xf32>
    %63 = tpu.matmul %61, %62, %cst_85 {dimension_numbers = #tpu.dot_dimension_numbers<[1], [0], [0], [1], [0, 0, 1, 1], [], []>} : vector<8x4xbf16>, vector<4x128xbf16>, vector<8x128xf32> -> vector<8x128xf32>
    %64 = arith.addf %59, %63 : vector<8x128xf32>
    %c0_86 = arith.constant 0 : index
    %c1_87 = arith.constant 1 : index
    %c0_88 = arith.constant 0 : index
    %c1_89 = arith.constant 1 : index
    %c0_90 = arith.constant 0 : index
    %65 = vector.load %arg1[%c0_86, %c1_87, %c0_88, %c1_89, %c0_90] : memref<1x9x2x9x8xbf16, #tpu.memory_space<vmem>>, vector<1x1x1x8x4xbf16>
    %66 = vector.shape_cast %65 : vector<1x1x1x8x4xbf16> to vector<8x4xbf16>
    %c8_91 = arith.constant 8 : index
    %c0_92 = arith.constant 0 : index
    %67 = vector.load %arg2[%c8_91, %c0_92] : memref<36x128xbf16, #tpu.memory_space<vmem>>, vector<4x128xbf16>
    %cst_93 = arith.constant dense<0.000000e+00> : vector<8x128xf32>
    %68 = tpu.matmul %66, %67, %cst_93 {dimension_numbers = #tpu.dot_dimension_numbers<[1], [0], [0], [1], [0, 0, 1, 1], [], []>} : vector<8x4xbf16>, vector<4x128xbf16>, vector<8x128xf32> -> vector<8x128xf32>
    %69 = arith.addf %64, %68 : vector<8x128xf32>
    %c0_94 = arith.constant 0 : index
    %c1_95 = arith.constant 1 : index
    %c1_96 = arith.constant 1 : index
    %c0_97 = arith.constant 0 : index
    %c0_98 = arith.constant 0 : index
    %70 = vector.load %arg1[%c0_94, %c1_95, %c1_96, %c0_97, %c0_98] : memref<1x9x2x9x8xbf16, #tpu.memory_space<vmem>>, vector<1x1x1x8x4xbf16>
    %71 = vector.shape_cast %70 : vector<1x1x1x8x4xbf16> to vector<8x4xbf16>
    %c12_99 = arith.constant 12 : index
    %c0_100 = arith.constant 0 : index
    %72 = vector.load %arg2[%c12_99, %c0_100] : memref<36x128xbf16, #tpu.memory_space<vmem>>, vector<4x128xbf16>
    %cst_101 = arith.constant dense<0.000000e+00> : vector<8x128xf32>
    %73 = tpu.matmul %71, %72, %cst_101 {dimension_numbers = #tpu.dot_dimension_numbers<[1], [0], [0], [1], [0, 0, 1, 1], [], []>} : vector<8x4xbf16>, vector<4x128xbf16>, vector<8x128xf32> -> vector<8x128xf32>
    %74 = arith.addf %69, %73 : vector<8x128xf32>
    %c0_102 = arith.constant 0 : index
    %c1_103 = arith.constant 1 : index
    %c1_104 = arith.constant 1 : index
    %c0_105 = arith.constant 0 : index
    %c4_106 = arith.constant 4 : index
    %75 = vector.load %arg1[%c0_102, %c1_103, %c1_104, %c0_105, %c4_106] : memref<1x9x2x9x8xbf16, #tpu.memory_space<vmem>>, vector<1x1x1x8x4xbf16>
    %76 = vector.shape_cast %75 : vector<1x1x1x8x4xbf16> to vector<8x4xbf16>
    %c16_107 = arith.constant 16 : index
    %c0_108 = arith.constant 0 : index
    %77 = vector.load %arg2[%c16_107, %c0_108] : memref<36x128xbf16, #tpu.memory_space<vmem>>, vector<4x128xbf16>
    %cst_109 = arith.constant dense<0.000000e+00> : vector<8x128xf32>
    %78 = tpu.matmul %76, %77, %cst_109 {dimension_numbers = #tpu.dot_dimension_numbers<[1], [0], [0], [1], [0, 0, 1, 1], [], []>} : vector<8x4xbf16>, vector<4x128xbf16>, vector<8x128xf32> -> vector<8x128xf32>
    %79 = arith.addf %74, %78 : vector<8x128xf32>
    %c0_110 = arith.constant 0 : index
    %c1_111 = arith.constant 1 : index
    %c1_112 = arith.constant 1 : index
    %c1_113 = arith.constant 1 : index
    %c0_114 = arith.constant 0 : index
    %80 = vector.load %arg1[%c0_110, %c1_111, %c1_112, %c1_113, %c0_114] : memref<1x9x2x9x8xbf16, #tpu.memory_space<vmem>>, vector<1x1x1x8x4xbf16>
    %81 = vector.shape_cast %80 : vector<1x1x1x8x4xbf16> to vector<8x4xbf16>
    %c20_115 = arith.constant 20 : index
    %c0_116 = arith.constant 0 : index
    %82 = vector.load %arg2[%c20_115, %c0_116] : memref<36x128xbf16, #tpu.memory_space<vmem>>, vector<4x128xbf16>
    %cst_117 = arith.constant dense<0.000000e+00> : vector<8x128xf32>
    %83 = tpu.matmul %81, %82, %cst_117 {dimension_numbers = #tpu.dot_dimension_numbers<[1], [0], [0], [1], [0, 0, 1, 1], [], []>} : vector<8x4xbf16>, vector<4x128xbf16>, vector<8x128xf32> -> vector<8x128xf32>
    %84 = arith.addf %79, %83 : vector<8x128xf32>
    %c0_118 = arith.constant 0 : index
    %c2 = arith.constant 2 : index
    %c0_119 = arith.constant 0 : index
    %c0_120 = arith.constant 0 : index
    %c0_121 = arith.constant 0 : index
    %85 = vector.load %arg1[%c0_118, %c2, %c0_119, %c0_120, %c0_121] : memref<1x9x2x9x8xbf16, #tpu.memory_space<vmem>>, vector<1x1x1x8x4xbf16>
    %86 = vector.shape_cast %85 : vector<1x1x1x8x4xbf16> to vector<8x4xbf16>
    %c24_122 = arith.constant 24 : index
    %c0_123 = arith.constant 0 : index
    %87 = vector.load %arg2[%c24_122, %c0_123] : memref<36x128xbf16, #tpu.memory_space<vmem>>, vector<4x128xbf16>
    %cst_124 = arith.constant dense<0.000000e+00> : vector<8x128xf32>
    %88 = tpu.matmul %86, %87, %cst_124 {dimension_numbers = #tpu.dot_dimension_numbers<[1], [0], [0], [1], [0, 0, 1, 1], [], []>} : vector<8x4xbf16>, vector<4x128xbf16>, vector<8x128xf32> -> vector<8x128xf32>
    %89 = arith.addf %84, %88 : vector<8x128xf32>
    %c0_125 = arith.constant 0 : index
    %c2_126 = arith.constant 2 : index
    %c0_127 = arith.constant 0 : index
    %c0_128 = arith.constant 0 : index
    %c4_129 = arith.constant 4 : index
    %90 = vector.load %arg1[%c0_125, %c2_126, %c0_127, %c0_128, %c4_129] : memref<1x9x2x9x8xbf16, #tpu.memory_space<vmem>>, vector<1x1x1x8x4xbf16>
    %91 = vector.shape_cast %90 : vector<1x1x1x8x4xbf16> to vector<8x4xbf16>
    %c28_130 = arith.constant 28 : index
    %c0_131 = arith.constant 0 : index
    %92 = vector.load %arg2[%c28_130, %c0_131] : memref<36x128xbf16, #tpu.memory_space<vmem>>, vector<4x128xbf16>
    %cst_132 = arith.constant dense<0.000000e+00> : vector<8x128xf32>
    %93 = tpu.matmul %91, %92, %cst_132 {dimension_numbers = #tpu.dot_dimension_numbers<[1], [0], [0], [1], [0, 0, 1, 1], [], []>} : vector<8x4xbf16>, vector<4x128xbf16>, vector<8x128xf32> -> vector<8x128xf32>
    %94 = arith.addf %89, %93 : vector<8x128xf32>
    %c0_133 = arith.constant 0 : index
    %c2_134 = arith.constant 2 : index
    %c0_135 = arith.constant 0 : index
    %c1_136 = arith.constant 1 : index
    %c0_137 = arith.constant 0 : index
    %95 = vector.load %arg1[%c0_133, %c2_134, %c0_135, %c1_136, %c0_137] : memref<1x9x2x9x8xbf16, #tpu.memory_space<vmem>>, vector<1x1x1x8x4xbf16>
    %96 = vector.shape_cast %95 : vector<1x1x1x8x4xbf16> to vector<8x4xbf16>
    %c32_138 = arith.constant 32 : index
    %c0_139 = arith.constant 0 : index
    %97 = vector.load %arg2[%c32_138, %c0_139] : memref<36x128xbf16, #tpu.memory_space<vmem>>, vector<4x128xbf16>
    %cst_140 = arith.constant dense<0.000000e+00> : vector<8x128xf32>
    %98 = tpu.matmul %96, %97, %cst_140 {dimension_numbers = #tpu.dot_dimension_numbers<[1], [0], [0], [1], [0, 0, 1, 1], [], []>} : vector<8x4xbf16>, vector<4x128xbf16>, vector<8x128xf32> -> vector<8x128xf32>
    %99 = arith.addf %94, %98 : vector<8x128xf32>
    %100 = vector.broadcast %0 : vector<1x128xf32> to vector<8x128xf32>
    %101 = arith.addf %99, %100 : vector<8x128xf32>
    %cst_141 = arith.constant 0.000000e+00 : f32
    %102 = vector.broadcast %cst_141 : f32 to vector<8x128xf32>
    %103 = arith.maximumf %101, %102 : vector<8x128xf32>
    %c0_142 = arith.constant 0 : index
    %c1_143 = arith.constant 1 : index
    %c0_144 = arith.constant 0 : index
    %c0_145 = arith.constant 0 : index
    %104 = vector.load %arg4[%c0_142, %c1_143, %c0_144, %c0_145] : memref<1x8x8x128xf32, #tpu.memory_space<vmem>>, vector<1x1x8x128xf32>
    %105 = vector.shape_cast %104 : vector<1x1x8x128xf32> to vector<8x128xf32>
    %106 = vector.shape_cast %103 : vector<8x128xf32> to vector<1x1x8x128xf32>
    tpu.vector_store %arg4[%c0_142, %c1_143, %c0_144, %c0_145], %106 {strides = array<i32>} : memref<1x8x8x128xf32, #tpu.memory_space<vmem>>, vector<1x1x8x128xf32>,
    %cst_146 = arith.constant 0.000000e+00 : f32
    %107 = vector.broadcast %cst_146 : f32 to vector<8x128xf32>
    %c0_147 = arith.constant 0 : index
    %c2_148 = arith.constant 2 : index
    %c0_149 = arith.constant 0 : index
    %c0_150 = arith.constant 0 : index
    %c0_151 = arith.constant 0 : index
    %108 = vector.load %arg1[%c0_147, %c2_148, %c0_149, %c0_150, %c0_151] : memref<1x9x2x9x8xbf16, #tpu.memory_space<vmem>>, vector<1x1x1x8x4xbf16>
    %109 = vector.shape_cast %108 : vector<1x1x1x8x4xbf16> to vector<8x4xbf16>
    %c0_152 = arith.constant 0 : index
    %c0_153 = arith.constant 0 : index
    %110 = vector.load %arg2[%c0_152, %c0_153] : memref<36x128xbf16, #tpu.memory_space<vmem>>, vector<4x128xbf16>
    %cst_154 = arith.constant dense<0.000000e+00> : vector<8x128xf32>
    %111 = tpu.matmul %109, %110, %cst_154 {dimension_numbers = #tpu.dot_dimension_numbers<[1], [0], [0], [1], [0, 0, 1, 1], [], []>} : vector<8x4xbf16>, vector<4x128xbf16>, vector<8x128xf32> -> vector<8x128xf32>
    %112 = arith.addf %107, %111 : vector<8x128xf32>
    %c0_155 = arith.constant 0 : index
    %c2_156 = arith.constant 2 : index
    %c0_157 = arith.constant 0 : index
    %c0_158 = arith.constant 0 : index
    %c4_159 = arith.constant 4 : index
    %113 = vector.load %arg1[%c0_155, %c2_156, %c0_157, %c0_158, %c4_159] : memref<1x9x2x9x8xbf16, #tpu.memory_space<vmem>>, vector<1x1x1x8x4xbf16>
    %114 = vector.shape_cast %113 : vector<1x1x1x8x4xbf16> to vector<8x4xbf16>
    %c4_160 = arith.constant 4 : index
    %c0_161 = arith.constant 0 : index
    %115 = vector.load %arg2[%c4_160, %c0_161] : memref<36x128xbf16, #tpu.memory_space<vmem>>, vector<4x128xbf16>
    %cst_162 = arith.constant dense<0.000000e+00> : vector<8x128xf32>
    %116 = tpu.matmul %114, %115, %cst_162 {dimension_numbers = #tpu.dot_dimension_numbers<[1], [0], [0], [1], [0, 0, 1, 1], [], []>} : vector<8x4xbf16>, vector<4x128xbf16>, vector<8x128xf32> -> vector<8x128xf32>
    %117 = arith.addf %112, %116 : vector<8x128xf32>
    %c0_163 = arith.constant 0 : index
    %c2_164 = arith.constant 2 : index
    %c0_165 = arith.constant 0 : index
    %c1_166 = arith.constant 1 : index
    %c0_167 = arith.constant 0 : index
    %118 = vector.load %arg1[%c0_163, %c2_164, %c0_165, %c1_166, %c0_167] : memref<1x9x2x9x8xbf16, #tpu.memory_space<vmem>>, vector<1x1x1x8x4xbf16>
    %119 = vector.shape_cast %118 : vector<1x1x1x8x4xbf16> to vector<8x4xbf16>
    %c8_168 = arith.constant 8 : index
    %c0_169 = arith.constant 0 : index
    %120 = vector.load %arg2[%c8_168, %c0_169] : memref<36x128xbf16, #tpu.memory_space<vmem>>, vector<4x128xbf16>
    %cst_170 = arith.constant dense<0.000000e+00> : vector<8x128xf32>
    %121 = tpu.matmul %119, %120, %cst_170 {dimension_numbers = #tpu.dot_dimension_numbers<[1], [0], [0], [1], [0, 0, 1, 1], [], []>} : vector<8x4xbf16>, vector<4x128xbf16>, vector<8x128xf32> -> vector<8x128xf32>
    %122 = arith.addf %117, %121 : vector<8x128xf32>
    %c0_171 = arith.constant 0 : index
    %c2_172 = arith.constant 2 : index
    %c1_173 = arith.constant 1 : index
    %c0_174 = arith.constant 0 : index
    %c0_175 = arith.constant 0 : index
    %123 = vector.load %arg1[%c0_171, %c2_172, %c1_173, %c0_174, %c0_175] : memref<1x9x2x9x8xbf16, #tpu.memory_space<vmem>>, vector<1x1x1x8x4xbf16>
    %124 = vector.shape_cast %123 : vector<1x1x1x8x4xbf16> to vector<8x4xbf16>
    %c12_176 = arith.constant 12 : index
    %c0_177 = arith.constant 0 : index
    %125 = vector.load %arg2[%c12_176, %c0_177] : memref<36x128xbf16, #tpu.memory_space<vmem>>, vector<4x128xbf16>
    %cst_178 = arith.constant dense<0.000000e+00> : vector<8x128xf32>
    %126 = tpu.matmul %124, %125, %cst_178 {dimension_numbers = #tpu.dot_dimension_numbers<[1], [0], [0], [1], [0, 0, 1, 1], [], []>} : vector<8x4xbf16>, vector<4x128xbf16>, vector<8x128xf32> -> vector<8x128xf32>
    %127 = arith.addf %122, %126 : vector<8x128xf32>
    %c0_179 = arith.constant 0 : index
    %c2_180 = arith.constant 2 : index
    %c1_181 = arith.constant 1 : index
    %c0_182 = arith.constant 0 : index
    %c4_183 = arith.constant 4 : index
    %128 = vector.load %arg1[%c0_179, %c2_180, %c1_181, %c0_182, %c4_183] : memref<1x9x2x9x8xbf16, #tpu.memory_space<vmem>>, vector<1x1x1x8x4xbf16>
    %129 = vector.shape_cast %128 : vector<1x1x1x8x4xbf16> to vector<8x4xbf16>
    %c16_184 = arith.constant 16 : index
    %c0_185 = arith.constant 0 : index
    %130 = vector.load %arg2[%c16_184, %c0_185] : memref<36x128xbf16, #tpu.memory_space<vmem>>, vector<4x128xbf16>
    %cst_186 = arith.constant dense<0.000000e+00> : vector<8x128xf32>
    %131 = tpu.matmul %129, %130, %cst_186 {dimension_numbers = #tpu.dot_dimension_numbers<[1], [0], [0], [1], [0, 0, 1, 1], [], []>} : vector<8x4xbf16>, vector<4x128xbf16>, vector<8x128xf32> -> vector<8x128xf32>
    %132 = arith.addf %127, %131 : vector<8x128xf32>
    %c0_187 = arith.constant 0 : index
    %c2_188 = arith.constant 2 : index
    %c1_189 = arith.constant 1 : index
    %c1_190 = arith.constant 1 : index
    %c0_191 = arith.constant 0 : index
    %133 = vector.load %arg1[%c0_187, %c2_188, %c1_189, %c1_190, %c0_191] : memref<1x9x2x9x8xbf16, #tpu.memory_space<vmem>>, vector<1x1x1x8x4xbf16>
    %134 = vector.shape_cast %133 : vector<1x1x1x8x4xbf16> to vector<8x4xbf16>
    %c20_192 = arith.constant 20 : index
    %c0_193 = arith.constant 0 : index
    %135 = vector.load %arg2[%c20_192, %c0_193] : memref<36x128xbf16, #tpu.memory_space<vmem>>, vector<4x128xbf16>
    %cst_194 = arith.constant dense<0.000000e+00> : vector<8x128xf32>
    %136 = tpu.matmul %134, %135, %cst_194 {dimension_numbers = #tpu.dot_dimension_numbers<[1], [0], [0], [1], [0, 0, 1, 1], [], []>} : vector<8x4xbf16>, vector<4x128xbf16>, vector<8x128xf32> -> vector<8x128xf32>
    %137 = arith.addf %132, %136 : vector<8x128xf32>
    %c0_195 = arith.constant 0 : index
    %c3 = arith.constant 3 : index
    %c0_196 = arith.constant 0 : index
    %c0_197 = arith.constant 0 : index
    %c0_198 = arith.constant 0 : index
    %138 = vector.load %arg1[%c0_195, %c3, %c0_196, %c0_197, %c0_198] : memref<1x9x2x9x8xbf16, #tpu.memory_space<vmem>>, vector<1x1x1x8x4xbf16>
    %139 = vector.shape_cast %138 : vector<1x1x1x8x4xbf16> to vector<8x4xbf16>
    %c24_199 = arith.constant 24 : index
    %c0_200 = arith.constant 0 : index
    %140 = vector.load %arg2[%c24_199, %c0_200] : memref<36x128xbf16, #tpu.memory_space<vmem>>, vector<4x128xbf16>
    %cst_201 = arith.constant dense<0.000000e+00> : vector<8x128xf32>
    %141 = tpu.matmul %139, %140, %cst_201 {dimension_numbers = #tpu.dot_dimension_numbers<[1], [0], [0], [1], [0, 0, 1, 1], [], []>} : vector<8x4xbf16>, vector<4x128xbf16>, vector<8x128xf32> -> vector<8x128xf32>
    %142 = arith.addf %137, %141 : vector<8x128xf32>
    %c0_202 = arith.constant 0 : index
    %c3_203 = arith.constant 3 : index
    %c0_204 = arith.constant 0 : index
    %c0_205 = arith.constant 0 : index
    %c4_206 = arith.constant 4 : index
    %143 = vector.load %arg1[%c0_202, %c3_203, %c0_204, %c0_205, %c4_206] : memref<1x9x2x9x8xbf16, #tpu.memory_space<vmem>>, vector<1x1x1x8x4xbf16>
    %144 = vector.shape_cast %143 : vector<1x1x1x8x4xbf16> to vector<8x4xbf16>
    %c28_207 = arith.constant 28 : index
    %c0_208 = arith.constant 0 : index
    %145 = vector.load %arg2[%c28_207, %c0_208] : memref<36x128xbf16, #tpu.memory_space<vmem>>, vector<4x128xbf16>
    %cst_209 = arith.constant dense<0.000000e+00> : vector<8x128xf32>
    %146 = tpu.matmul %144, %145, %cst_209 {dimension_numbers = #tpu.dot_dimension_numbers<[1], [0], [0], [1], [0, 0, 1, 1], [], []>} : vector<8x4xbf16>, vector<4x128xbf16>, vector<8x128xf32> -> vector<8x128xf32>
    %147 = arith.addf %142, %146 : vector<8x128xf32>
    %c0_210 = arith.constant 0 : index
    %c3_211 = arith.constant 3 : index
    %c0_212 = arith.constant 0 : index
    %c1_213 = arith.constant 1 : index
    %c0_214 = arith.constant 0 : index
    %148 = vector.load %arg1[%c0_210, %c3_211, %c0_212, %c1_213, %c0_214] : memref<1x9x2x9x8xbf16, #tpu.memory_space<vmem>>, vector<1x1x1x8x4xbf16>
    %149 = vector.shape_cast %148 : vector<1x1x1x8x4xbf16> to vector<8x4xbf16>
    %c32_215 = arith.constant 32 : index
    %c0_216 = arith.constant 0 : index
    %150 = vector.load %arg2[%c32_215, %c0_216] : memref<36x128xbf16, #tpu.memory_space<vmem>>, vector<4x128xbf16>
    %cst_217 = arith.constant dense<0.000000e+00> : vector<8x128xf32>
    %151 = tpu.matmul %149, %150, %cst_217 {dimension_numbers = #tpu.dot_dimension_numbers<[1], [0], [0], [1], [0, 0, 1, 1], [], []>} : vector<8x4xbf16>, vector<4x128xbf16>, vector<8x128xf32> -> vector<8x128xf32>
    %152 = arith.addf %147, %151 : vector<8x128xf32>
    %153 = vector.broadcast %0 : vector<1x128xf32> to vector<8x128xf32>
    %154 = arith.addf %152, %153 : vector<8x128xf32>
    %cst_218 = arith.constant 0.000000e+00 : f32
    %155 = vector.broadcast %cst_218 : f32 to vector<8x128xf32>
    %156 = arith.maximumf %154, %155 : vector<8x128xf32>
    %c0_219 = arith.constant 0 : index
    %c2_220 = arith.constant 2 : index
    %c0_221 = arith.constant 0 : index
    %c0_222 = arith.constant 0 : index
    %157 = vector.load %arg4[%c0_219, %c2_220, %c0_221, %c0_222] : memref<1x8x8x128xf32, #tpu.memory_space<vmem>>, vector<1x1x8x128xf32>
    %158 = vector.shape_cast %157 : vector<1x1x8x128xf32> to vector<8x128xf32>
    %159 = vector.shape_cast %156 : vector<8x128xf32> to vector<1x1x8x128xf32>
    tpu.vector_store %arg4[%c0_219, %c2_220, %c0_221, %c0_222], %159 {strides = array<i32>} : memref<1x8x8x128xf32, #tpu.memory_space<vmem>>, vector<1x1x8x128xf32>,
    %cst_223 = arith.constant 0.000000e+00 : f32
    %160 = vector.broadcast %cst_223 : f32 to vector<8x128xf32>
    %c0_224 = arith.constant 0 : index
    %c3_225 = arith.constant 3 : index
    %c0_226 = arith.constant 0 : index
    %c0_227 = arith.constant 0 : index
    %c0_228 = arith.constant 0 : index
    %161 = vector.load %arg1[%c0_224, %c3_225, %c0_226, %c0_227, %c0_228] : memref<1x9x2x9x8xbf16, #tpu.memory_space<vmem>>, vector<1x1x1x8x4xbf16>
    %162 = vector.shape_cast %161 : vector<1x1x1x8x4xbf16> to vector<8x4xbf16>
    %c0_229 = arith.constant 0 : index
    %c0_230 = arith.constant 0 : index
    %163 = vector.load %arg2[%c0_229, %c0_230] : memref<36x128xbf16, #tpu.memory_space<vmem>>, vector<4x128xbf16>
    %cst_231 = arith.constant dense<0.000000e+00> : vector<8x128xf32>
    %164 = tpu.matmul %162, %163, %cst_231 {dimension_numbers = #tpu.dot_dimension_numbers<[1], [0], [0], [1], [0, 0, 1, 1], [], []>} : vector<8x4xbf16>, vector<4x128xbf16>, vector<8x128xf32> -> vector<8x128xf32>
    %165 = arith.addf %160, %164 : vector<8x128xf32>
    %c0_232 = arith.constant 0 : index
    %c3_233 = arith.constant 3 : index
    %c0_234 = arith.constant 0 : index
    %c0_235 = arith.constant 0 : index
    %c4_236 = arith.constant 4 : index
    %166 = vector.load %arg1[%c0_232, %c3_233, %c0_234, %c0_235, %c4_236] : memref<1x9x2x9x8xbf16, #tpu.memory_space<vmem>>, vector<1x1x1x8x4xbf16>
    %167 = vector.shape_cast %166 : vector<1x1x1x8x4xbf16> to vector<8x4xbf16>
    %c4_237 = arith.constant 4 : index
    %c0_238 = arith.constant 0 : index
    %168 = vector.load %arg2[%c4_237, %c0_238] : memref<36x128xbf16, #tpu.memory_space<vmem>>, vector<4x128xbf16>
    %cst_239 = arith.constant dense<0.000000e+00> : vector<8x128xf32>
    %169 = tpu.matmul %167, %168, %cst_239 {dimension_numbers = #tpu.dot_dimension_numbers<[1], [0], [0], [1], [0, 0, 1, 1], [], []>} : vector<8x4xbf16>, vector<4x128xbf16>, vector<8x128xf32> -> vector<8x128xf32>
    %170 = arith.addf %165, %169 : vector<8x128xf32>
    %c0_240 = arith.constant 0 : index
    %c3_241 = arith.constant 3 : index
    %c0_242 = arith.constant 0 : index
    %c1_243 = arith.constant 1 : index
    %c0_244 = arith.constant 0 : index
    %171 = vector.load %arg1[%c0_240, %c3_241, %c0_242, %c1_243, %c0_244] : memref<1x9x2x9x8xbf16, #tpu.memory_space<vmem>>, vector<1x1x1x8x4xbf16>
    %172 = vector.shape_cast %171 : vector<1x1x1x8x4xbf16> to vector<8x4xbf16>
    %c8_245 = arith.constant 8 : index
    %c0_246 = arith.constant 0 : index
    %173 = vector.load %arg2[%c8_245, %c0_246] : memref<36x128xbf16, #tpu.memory_space<vmem>>, vector<4x128xbf16>
    %cst_247 = arith.constant dense<0.000000e+00> : vector<8x128xf32>
    %174 = tpu.matmul %172, %173, %cst_247 {dimension_numbers = #tpu.dot_dimension_numbers<[1], [0], [0], [1], [0, 0, 1, 1], [], []>} : vector<8x4xbf16>, vector<4x128xbf16>, vector<8x128xf32> -> vector<8x128xf32>
    %175 = arith.addf %170, %174 : vector<8x128xf32>
    %c0_248 = arith.constant 0 : index
    %c3_249 = arith.constant 3 : index
    %c1_250 = arith.constant 1 : index
    %c0_251 = arith.constant 0 : index
    %c0_252 = arith.constant 0 : index
    %176 = vector.load %arg1[%c0_248, %c3_249, %c1_250, %c0_251, %c0_252] : memref<1x9x2x9x8xbf16, #tpu.memory_space<vmem>>, vector<1x1x1x8x4xbf16>
    %177 = vector.shape_cast %176 : vector<1x1x1x8x4xbf16> to vector<8x4xbf16>
    %c12_253 = arith.constant 12 : index
    %c0_254 = arith.constant 0 : index
    %178 = vector.load %arg2[%c12_253, %c0_254] : memref<36x128xbf16, #tpu.memory_space<vmem>>, vector<4x128xbf16>
    %cst_255 = arith.constant dense<0.000000e+00> : vector<8x128xf32>
    %179 = tpu.matmul %177, %178, %cst_255 {dimension_numbers = #tpu.dot_dimension_numbers<[1], [0], [0], [1], [0, 0, 1, 1], [], []>} : vector<8x4xbf16>, vector<4x128xbf16>, vector<8x128xf32> -> vector<8x128xf32>
    %180 = arith.addf %175, %179 : vector<8x128xf32>
    %c0_256 = arith.constant 0 : index
    %c3_257 = arith.constant 3 : index
    %c1_258 = arith.constant 1 : index
    %c0_259 = arith.constant 0 : index
    %c4_260 = arith.constant 4 : index
    %181 = vector.load %arg1[%c0_256, %c3_257, %c1_258, %c0_259, %c4_260] : memref<1x9x2x9x8xbf16, #tpu.memory_space<vmem>>, vector<1x1x1x8x4xbf16>
    %182 = vector.shape_cast %181 : vector<1x1x1x8x4xbf16> to vector<8x4xbf16>
    %c16_261 = arith.constant 16 : index
    %c0_262 = arith.constant 0 : index
    %183 = vector.load %arg2[%c16_261, %c0_262] : memref<36x128xbf16, #tpu.memory_space<vmem>>, vector<4x128xbf16>
    %cst_263 = arith.constant dense<0.000000e+00> : vector<8x128xf32>
    %184 = tpu.matmul %182, %183, %cst_263 {dimension_numbers = #tpu.dot_dimension_numbers<[1], [0], [0], [1], [0, 0, 1, 1], [], []>} : vector<8x4xbf16>, vector<4x128xbf16>, vector<8x128xf32> -> vector<8x128xf32>
    %185 = arith.addf %180, %184 : vector<8x128xf32>
    %c0_264 = arith.constant 0 : index
    %c3_265 = arith.constant 3 : index
    %c1_266 = arith.constant 1 : index
    %c1_267 = arith.constant 1 : index
    %c0_268 = arith.constant 0 : index
    %186 = vector.load %arg1[%c0_264, %c3_265, %c1_266, %c1_267, %c0_268] : memref<1x9x2x9x8xbf16, #tpu.memory_space<vmem>>, vector<1x1x1x8x4xbf16>
    %187 = vector.shape_cast %186 : vector<1x1x1x8x4xbf16> to vector<8x4xbf16>
    %c20_269 = arith.constant 20 : index
    %c0_270 = arith.constant 0 : index
    %188 = vector.load %arg2[%c20_269, %c0_270] : memref<36x128xbf16, #tpu.memory_space<vmem>>, vector<4x128xbf16>
    %cst_271 = arith.constant dense<0.000000e+00> : vector<8x128xf32>
    %189 = tpu.matmul %187, %188, %cst_271 {dimension_numbers = #tpu.dot_dimension_numbers<[1], [0], [0], [1], [0, 0, 1, 1], [], []>} : vector<8x4xbf16>, vector<4x128xbf16>, vector<8x128xf32> -> vector<8x128xf32>
    %190 = arith.addf %185, %189 : vector<8x128xf32>
    %c0_272 = arith.constant 0 : index
    %c4_273 = arith.constant 4 : index
    %c0_274 = arith.constant 0 : index
    %c0_275 = arith.constant 0 : index
    %c0_276 = arith.constant 0 : index
    %191 = vector.load %arg1[%c0_272, %c4_273, %c0_274, %c0_275, %c0_276] : memref<1x9x2x9x8xbf16, #tpu.memory_space<vmem>>, vector<1x1x1x8x4xbf16>
    %192 = vector.shape_cast %191 : vector<1x1x1x8x4xbf16> to vector<8x4xbf16>
    %c24_277 = arith.constant 24 : index
    %c0_278 = arith.constant 0 : index
    %193 = vector.load %arg2[%c24_277, %c0_278] : memref<36x128xbf16, #tpu.memory_space<vmem>>, vector<4x128xbf16>
    %cst_279 = arith.constant dense<0.000000e+00> : vector<8x128xf32>
    %194 = tpu.matmul %192, %193, %cst_279 {dimension_numbers = #tpu.dot_dimension_numbers<[1], [0], [0], [1], [0, 0, 1, 1], [], []>} : vector<8x4xbf16>, vector<4x128xbf16>, vector<8x128xf32> -> vector<8x128xf32>
    %195 = arith.addf %190, %194 : vector<8x128xf32>
    %c0_280 = arith.constant 0 : index
    %c4_281 = arith.constant 4 : index
    %c0_282 = arith.constant 0 : index
    %c0_283 = arith.constant 0 : index
    %c4_284 = arith.constant 4 : index
    %196 = vector.load %arg1[%c0_280, %c4_281, %c0_282, %c0_283, %c4_284] : memref<1x9x2x9x8xbf16, #tpu.memory_space<vmem>>, vector<1x1x1x8x4xbf16>
    %197 = vector.shape_cast %196 : vector<1x1x1x8x4xbf16> to vector<8x4xbf16>
    %c28_285 = arith.constant 28 : index
    %c0_286 = arith.constant 0 : index
    %198 = vector.load %arg2[%c28_285, %c0_286] : memref<36x128xbf16, #tpu.memory_space<vmem>>, vector<4x128xbf16>
    %cst_287 = arith.constant dense<0.000000e+00> : vector<8x128xf32>
    %199 = tpu.matmul %197, %198, %cst_287 {dimension_numbers = #tpu.dot_dimension_numbers<[1], [0], [0], [1], [0, 0, 1, 1], [], []>} : vector<8x4xbf16>, vector<4x128xbf16>, vector<8x128xf32> -> vector<8x128xf32>
    %200 = arith.addf %195, %199 : vector<8x128xf32>
    %c0_288 = arith.constant 0 : index
    %c4_289 = arith.constant 4 : index
    %c0_290 = arith.constant 0 : index
    %c1_291 = arith.constant 1 : index
    %c0_292 = arith.constant 0 : index
    %201 = vector.load %arg1[%c0_288, %c4_289, %c0_290, %c1_291, %c0_292] : memref<1x9x2x9x8xbf16, #tpu.memory_space<vmem>>, vector<1x1x1x8x4xbf16>
    %202 = vector.shape_cast %201 : vector<1x1x1x8x4xbf16> to vector<8x4xbf16>
    %c32_293 = arith.constant 32 : index
    %c0_294 = arith.constant 0 : index
    %203 = vector.load %arg2[%c32_293, %c0_294] : memref<36x128xbf16, #tpu.memory_space<vmem>>, vector<4x128xbf16>
    %cst_295 = arith.constant dense<0.000000e+00> : vector<8x128xf32>
    %204 = tpu.matmul %202, %203, %cst_295 {dimension_numbers = #tpu.dot_dimension_numbers<[1], [0], [0], [1], [0, 0, 1, 1], [], []>} : vector<8x4xbf16>, vector<4x128xbf16>, vector<8x128xf32> -> vector<8x128xf32>
    %205 = arith.addf %200, %204 : vector<8x128xf32>
    %206 = vector.broadcast %0 : vector<1x128xf32> to vector<8x128xf32>
    %207 = arith.addf %205, %206 : vector<8x128xf32>
    %cst_296 = arith.constant 0.000000e+00 : f32
    %208 = vector.broadcast %cst_296 : f32 to vector<8x128xf32>
    %209 = arith.maximumf %207, %208 : vector<8x128xf32>
    %c0_297 = arith.constant 0 : index
    %c3_298 = arith.constant 3 : index
    %c0_299 = arith.constant 0 : index
    %c0_300 = arith.constant 0 : index
    %210 = vector.load %arg4[%c0_297, %c3_298, %c0_299, %c0_300] : memref<1x8x8x128xf32, #tpu.memory_space<vmem>>, vector<1x1x8x128xf32>
    %211 = vector.shape_cast %210 : vector<1x1x8x128xf32> to vector<8x128xf32>
    %212 = vector.shape_cast %209 : vector<8x128xf32> to vector<1x1x8x128xf32>
    tpu.vector_store %arg4[%c0_297, %c3_298, %c0_299, %c0_300], %212 {strides = array<i32>} : memref<1x8x8x128xf32, #tpu.memory_space<vmem>>, vector<1x1x8x128xf32>,
    %cst_301 = arith.constant 0.000000e+00 : f32
    %213 = vector.broadcast %cst_301 : f32 to vector<8x128xf32>
    %c0_302 = arith.constant 0 : index
    %c4_303 = arith.constant 4 : index
    %c0_304 = arith.constant 0 : index
    %c0_305 = arith.constant 0 : index
    %c0_306 = arith.constant 0 : index
    %214 = vector.load %arg1[%c0_302, %c4_303, %c0_304, %c0_305, %c0_306] : memref<1x9x2x9x8xbf16, #tpu.memory_space<vmem>>, vector<1x1x1x8x4xbf16>
    %215 = vector.shape_cast %214 : vector<1x1x1x8x4xbf16> to vector<8x4xbf16>
    %c0_307 = arith.constant 0 : index
    %c0_308 = arith.constant 0 : index
    %216 = vector.load %arg2[%c0_307, %c0_308] : memref<36x128xbf16, #tpu.memory_space<vmem>>, vector<4x128xbf16>
    %cst_309 = arith.constant dense<0.000000e+00> : vector<8x128xf32>
    %217 = tpu.matmul %215, %216, %cst_309 {dimension_numbers = #tpu.dot_dimension_numbers<[1], [0], [0], [1], [0, 0, 1, 1], [], []>} : vector<8x4xbf16>, vector<4x128xbf16>, vector<8x128xf32> -> vector<8x128xf32>
    %218 = arith.addf %213, %217 : vector<8x128xf32>
    %c0_310 = arith.constant 0 : index
    %c4_311 = arith.constant 4 : index
    %c0_312 = arith.constant 0 : index
    %c0_313 = arith.constant 0 : index
    %c4_314 = arith.constant 4 : index
    %219 = vector.load %arg1[%c0_310, %c4_311, %c0_312, %c0_313, %c4_314] : memref<1x9x2x9x8xbf16, #tpu.memory_space<vmem>>, vector<1x1x1x8x4xbf16>
    %220 = vector.shape_cast %219 : vector<1x1x1x8x4xbf16> to vector<8x4xbf16>
    %c4_315 = arith.constant 4 : index
    %c0_316 = arith.constant 0 : index
    %221 = vector.load %arg2[%c4_315, %c0_316] : memref<36x128xbf16, #tpu.memory_space<vmem>>, vector<4x128xbf16>
    %cst_317 = arith.constant dense<0.000000e+00> : vector<8x128xf32>
    %222 = tpu.matmul %220, %221, %cst_317 {dimension_numbers = #tpu.dot_dimension_numbers<[1], [0], [0], [1], [0, 0, 1, 1], [], []>} : vector<8x4xbf16>, vector<4x128xbf16>, vector<8x128xf32> -> vector<8x128xf32>
    %223 = arith.addf %218, %222 : vector<8x128xf32>
    %c0_318 = arith.constant 0 : index
    %c4_319 = arith.constant 4 : index
    %c0_320 = arith.constant 0 : index
    %c1_321 = arith.constant 1 : index
    %c0_322 = arith.constant 0 : index
    %224 = vector.load %arg1[%c0_318, %c4_319, %c0_320, %c1_321, %c0_322] : memref<1x9x2x9x8xbf16, #tpu.memory_space<vmem>>, vector<1x1x1x8x4xbf16>
    %225 = vector.shape_cast %224 : vector<1x1x1x8x4xbf16> to vector<8x4xbf16>
    %c8_323 = arith.constant 8 : index
    %c0_324 = arith.constant 0 : index
    %226 = vector.load %arg2[%c8_323, %c0_324] : memref<36x128xbf16, #tpu.memory_space<vmem>>, vector<4x128xbf16>
    %cst_325 = arith.constant dense<0.000000e+00> : vector<8x128xf32>
    %227 = tpu.matmul %225, %226, %cst_325 {dimension_numbers = #tpu.dot_dimension_numbers<[1], [0], [0], [1], [0, 0, 1, 1], [], []>} : vector<8x4xbf16>, vector<4x128xbf16>, vector<8x128xf32> -> vector<8x128xf32>
    %228 = arith.addf %223, %227 : vector<8x128xf32>
    %c0_326 = arith.constant 0 : index
    %c4_327 = arith.constant 4 : index
    %c1_328 = arith.constant 1 : index
    %c0_329 = arith.constant 0 : index
    %c0_330 = arith.constant 0 : index
    %229 = vector.load %arg1[%c0_326, %c4_327, %c1_328, %c0_329, %c0_330] : memref<1x9x2x9x8xbf16, #tpu.memory_space<vmem>>, vector<1x1x1x8x4xbf16>
    %230 = vector.shape_cast %229 : vector<1x1x1x8x4xbf16> to vector<8x4xbf16>
    %c12_331 = arith.constant 12 : index
    %c0_332 = arith.constant 0 : index
    %231 = vector.load %arg2[%c12_331, %c0_332] : memref<36x128xbf16, #tpu.memory_space<vmem>>, vector<4x128xbf16>
    %cst_333 = arith.constant dense<0.000000e+00> : vector<8x128xf32>
    %232 = tpu.matmul %230, %231, %cst_333 {dimension_numbers = #tpu.dot_dimension_numbers<[1], [0], [0], [1], [0, 0, 1, 1], [], []>} : vector<8x4xbf16>, vector<4x128xbf16>, vector<8x128xf32> -> vector<8x128xf32>
    %233 = arith.addf %228, %232 : vector<8x128xf32>
    %c0_334 = arith.constant 0 : index
    %c4_335 = arith.constant 4 : index
    %c1_336 = arith.constant 1 : index
    %c0_337 = arith.constant 0 : index
    %c4_338 = arith.constant 4 : index
    %234 = vector.load %arg1[%c0_334, %c4_335, %c1_336, %c0_337, %c4_338] : memref<1x9x2x9x8xbf16, #tpu.memory_space<vmem>>, vector<1x1x1x8x4xbf16>
    %235 = vector.shape_cast %234 : vector<1x1x1x8x4xbf16> to vector<8x4xbf16>
    %c16_339 = arith.constant 16 : index
    %c0_340 = arith.constant 0 : index
    %236 = vector.load %arg2[%c16_339, %c0_340] : memref<36x128xbf16, #tpu.memory_space<vmem>>, vector<4x128xbf16>
    %cst_341 = arith.constant dense<0.000000e+00> : vector<8x128xf32>
    %237 = tpu.matmul %235, %236, %cst_341 {dimension_numbers = #tpu.dot_dimension_numbers<[1], [0], [0], [1], [0, 0, 1, 1], [], []>} : vector<8x4xbf16>, vector<4x128xbf16>, vector<8x128xf32> -> vector<8x128xf32>
    %238 = arith.addf %233, %237 : vector<8x128xf32>
    %c0_342 = arith.constant 0 : index
    %c4_343 = arith.constant 4 : index
    %c1_344 = arith.constant 1 : index
    %c1_345 = arith.constant 1 : index
    %c0_346 = arith.constant 0 : index
    %239 = vector.load %arg1[%c0_342, %c4_343, %c1_344, %c1_345, %c0_346] : memref<1x9x2x9x8xbf16, #tpu.memory_space<vmem>>, vector<1x1x1x8x4xbf16>
    %240 = vector.shape_cast %239 : vector<1x1x1x8x4xbf16> to vector<8x4xbf16>
    %c20_347 = arith.constant 20 : index
    %c0_348 = arith.constant 0 : index
    %241 = vector.load %arg2[%c20_347, %c0_348] : memref<36x128xbf16, #tpu.memory_space<vmem>>, vector<4x128xbf16>
    %cst_349 = arith.constant dense<0.000000e+00> : vector<8x128xf32>
    %242 = tpu.matmul %240, %241, %cst_349 {dimension_numbers = #tpu.dot_dimension_numbers<[1], [0], [0], [1], [0, 0, 1, 1], [], []>} : vector<8x4xbf16>, vector<4x128xbf16>, vector<8x128xf32> -> vector<8x128xf32>
    %243 = arith.addf %238, %242 : vector<8x128xf32>
    %c0_350 = arith.constant 0 : index
    %c5 = arith.constant 5 : index
    %c0_351 = arith.constant 0 : index
    %c0_352 = arith.constant 0 : index
    %c0_353 = arith.constant 0 : index
    %244 = vector.load %arg1[%c0_350, %c5, %c0_351, %c0_352, %c0_353] : memref<1x9x2x9x8xbf16, #tpu.memory_space<vmem>>, vector<1x1x1x8x4xbf16>
    %245 = vector.shape_cast %244 : vector<1x1x1x8x4xbf16> to vector<8x4xbf16>
    %c24_354 = arith.constant 24 : index
    %c0_355 = arith.constant 0 : index
    %246 = vector.load %arg2[%c24_354, %c0_355] : memref<36x128xbf16, #tpu.memory_space<vmem>>, vector<4x128xbf16>
    %cst_356 = arith.constant dense<0.000000e+00> : vector<8x128xf32>
    %247 = tpu.matmul %245, %246, %cst_356 {dimension_numbers = #tpu.dot_dimension_numbers<[1], [0], [0], [1], [0, 0, 1, 1], [], []>} : vector<8x4xbf16>, vector<4x128xbf16>, vector<8x128xf32> -> vector<8x128xf32>
    %248 = arith.addf %243, %247 : vector<8x128xf32>
    %c0_357 = arith.constant 0 : index
    %c5_358 = arith.constant 5 : index
    %c0_359 = arith.constant 0 : index
    %c0_360 = arith.constant 0 : index
    %c4_361 = arith.constant 4 : index
    %249 = vector.load %arg1[%c0_357, %c5_358, %c0_359, %c0_360, %c4_361] : memref<1x9x2x9x8xbf16, #tpu.memory_space<vmem>>, vector<1x1x1x8x4xbf16>
    %250 = vector.shape_cast %249 : vector<1x1x1x8x4xbf16> to vector<8x4xbf16>
    %c28_362 = arith.constant 28 : index
    %c0_363 = arith.constant 0 : index
    %251 = vector.load %arg2[%c28_362, %c0_363] : memref<36x128xbf16, #tpu.memory_space<vmem>>, vector<4x128xbf16>
    %cst_364 = arith.constant dense<0.000000e+00> : vector<8x128xf32>
    %252 = tpu.matmul %250, %251, %cst_364 {dimension_numbers = #tpu.dot_dimension_numbers<[1], [0], [0], [1], [0, 0, 1, 1], [], []>} : vector<8x4xbf16>, vector<4x128xbf16>, vector<8x128xf32> -> vector<8x128xf32>
    %253 = arith.addf %248, %252 : vector<8x128xf32>
    %c0_365 = arith.constant 0 : index
    %c5_366 = arith.constant 5 : index
    %c0_367 = arith.constant 0 : index
    %c1_368 = arith.constant 1 : index
    %c0_369 = arith.constant 0 : index
    %254 = vector.load %arg1[%c0_365, %c5_366, %c0_367, %c1_368, %c0_369] : memref<1x9x2x9x8xbf16, #tpu.memory_space<vmem>>, vector<1x1x1x8x4xbf16>
    %255 = vector.shape_cast %254 : vector<1x1x1x8x4xbf16> to vector<8x4xbf16>
    %c32_370 = arith.constant 32 : index
    %c0_371 = arith.constant 0 : index
    %256 = vector.load %arg2[%c32_370, %c0_371] : memref<36x128xbf16, #tpu.memory_space<vmem>>, vector<4x128xbf16>
    %cst_372 = arith.constant dense<0.000000e+00> : vector<8x128xf32>
    %257 = tpu.matmul %255, %256, %cst_372 {dimension_numbers = #tpu.dot_dimension_numbers<[1], [0], [0], [1], [0, 0, 1, 1], [], []>} : vector<8x4xbf16>, vector<4x128xbf16>, vector<8x128xf32> -> vector<8x128xf32>
    %258 = arith.addf %253, %257 : vector<8x128xf32>
    %259 = vector.broadcast %0 : vector<1x128xf32> to vector<8x128xf32>
    %260 = arith.addf %258, %259 : vector<8x128xf32>
    %cst_373 = arith.constant 0.000000e+00 : f32
    %261 = vector.broadcast %cst_373 : f32 to vector<8x128xf32>
    %262 = arith.maximumf %260, %261 : vector<8x128xf32>
    %c0_374 = arith.constant 0 : index
    %c4_375 = arith.constant 4 : index
    %c0_376 = arith.constant 0 : index
    %c0_377 = arith.constant 0 : index
    %263 = vector.load %arg4[%c0_374, %c4_375, %c0_376, %c0_377] : memref<1x8x8x128xf32, #tpu.memory_space<vmem>>, vector<1x1x8x128xf32>
    %264 = vector.shape_cast %263 : vector<1x1x8x128xf32> to vector<8x128xf32>
    %265 = vector.shape_cast %262 : vector<8x128xf32> to vector<1x1x8x128xf32>
    tpu.vector_store %arg4[%c0_374, %c4_375, %c0_376, %c0_377], %265 {strides = array<i32>} : memref<1x8x8x128xf32, #tpu.memory_space<vmem>>, vector<1x1x8x128xf32>,
    %cst_378 = arith.constant 0.000000e+00 : f32
    %266 = vector.broadcast %cst_378 : f32 to vector<8x128xf32>
    %c0_379 = arith.constant 0 : index
    %c5_380 = arith.constant 5 : index
    %c0_381 = arith.constant 0 : index
    %c0_382 = arith.constant 0 : index
    %c0_383 = arith.constant 0 : index
    %267 = vector.load %arg1[%c0_379, %c5_380, %c0_381, %c0_382, %c0_383] : memref<1x9x2x9x8xbf16, #tpu.memory_space<vmem>>, vector<1x1x1x8x4xbf16>
    %268 = vector.shape_cast %267 : vector<1x1x1x8x4xbf16> to vector<8x4xbf16>
    %c0_384 = arith.constant 0 : index
    %c0_385 = arith.constant 0 : index
    %269 = vector.load %arg2[%c0_384, %c0_385] : memref<36x128xbf16, #tpu.memory_space<vmem>>, vector<4x128xbf16>
    %cst_386 = arith.constant dense<0.000000e+00> : vector<8x128xf32>
    %270 = tpu.matmul %268, %269, %cst_386 {dimension_numbers = #tpu.dot_dimension_numbers<[1], [0], [0], [1], [0, 0, 1, 1], [], []>} : vector<8x4xbf16>, vector<4x128xbf16>, vector<8x128xf32> -> vector<8x128xf32>
    %271 = arith.addf %266, %270 : vector<8x128xf32>
    %c0_387 = arith.constant 0 : index
    %c5_388 = arith.constant 5 : index
    %c0_389 = arith.constant 0 : index
    %c0_390 = arith.constant 0 : index
    %c4_391 = arith.constant 4 : index
    %272 = vector.load %arg1[%c0_387, %c5_388, %c0_389, %c0_390, %c4_391] : memref<1x9x2x9x8xbf16, #tpu.memory_space<vmem>>, vector<1x1x1x8x4xbf16>
    %273 = vector.shape_cast %272 : vector<1x1x1x8x4xbf16> to vector<8x4xbf16>
    %c4_392 = arith.constant 4 : index
    %c0_393 = arith.constant 0 : index
    %274 = vector.load %arg2[%c4_392, %c0_393] : memref<36x128xbf16, #tpu.memory_space<vmem>>, vector<4x128xbf16>
    %cst_394 = arith.constant dense<0.000000e+00> : vector<8x128xf32>
    %275 = tpu.matmul %273, %274, %cst_394 {dimension_numbers = #tpu.dot_dimension_numbers<[1], [0], [0], [1], [0, 0, 1, 1], [], []>} : vector<8x4xbf16>, vector<4x128xbf16>, vector<8x128xf32> -> vector<8x128xf32>
    %276 = arith.addf %271, %275 : vector<8x128xf32>
    %c0_395 = arith.constant 0 : index
    %c5_396 = arith.constant 5 : index
    %c0_397 = arith.constant 0 : index
    %c1_398 = arith.constant 1 : index
    %c0_399 = arith.constant 0 : index
    %277 = vector.load %arg1[%c0_395, %c5_396, %c0_397, %c1_398, %c0_399] : memref<1x9x2x9x8xbf16, #tpu.memory_space<vmem>>, vector<1x1x1x8x4xbf16>
    %278 = vector.shape_cast %277 : vector<1x1x1x8x4xbf16> to vector<8x4xbf16>
    %c8_400 = arith.constant 8 : index
    %c0_401 = arith.constant 0 : index
    %279 = vector.load %arg2[%c8_400, %c0_401] : memref<36x128xbf16, #tpu.memory_space<vmem>>, vector<4x128xbf16>
    %cst_402 = arith.constant dense<0.000000e+00> : vector<8x128xf32>
    %280 = tpu.matmul %278, %279, %cst_402 {dimension_numbers = #tpu.dot_dimension_numbers<[1], [0], [0], [1], [0, 0, 1, 1], [], []>} : vector<8x4xbf16>, vector<4x128xbf16>, vector<8x128xf32> -> vector<8x128xf32>
    %281 = arith.addf %276, %280 : vector<8x128xf32>
    %c0_403 = arith.constant 0 : index
    %c5_404 = arith.constant 5 : index
    %c1_405 = arith.constant 1 : index
    %c0_406 = arith.constant 0 : index
    %c0_407 = arith.constant 0 : index
    %282 = vector.load %arg1[%c0_403, %c5_404, %c1_405, %c0_406, %c0_407] : memref<1x9x2x9x8xbf16, #tpu.memory_space<vmem>>, vector<1x1x1x8x4xbf16>
    %283 = vector.shape_cast %282 : vector<1x1x1x8x4xbf16> to vector<8x4xbf16>
    %c12_408 = arith.constant 12 : index
    %c0_409 = arith.constant 0 : index
    %284 = vector.load %arg2[%c12_408, %c0_409] : memref<36x128xbf16, #tpu.memory_space<vmem>>, vector<4x128xbf16>
    %cst_410 = arith.constant dense<0.000000e+00> : vector<8x128xf32>
    %285 = tpu.matmul %283, %284, %cst_410 {dimension_numbers = #tpu.dot_dimension_numbers<[1], [0], [0], [1], [0, 0, 1, 1], [], []>} : vector<8x4xbf16>, vector<4x128xbf16>, vector<8x128xf32> -> vector<8x128xf32>
    %286 = arith.addf %281, %285 : vector<8x128xf32>
    %c0_411 = arith.constant 0 : index
    %c5_412 = arith.constant 5 : index
    %c1_413 = arith.constant 1 : index
    %c0_414 = arith.constant 0 : index
    %c4_415 = arith.constant 4 : index
    %287 = vector.load %arg1[%c0_411, %c5_412, %c1_413, %c0_414, %c4_415] : memref<1x9x2x9x8xbf16, #tpu.memory_space<vmem>>, vector<1x1x1x8x4xbf16>
    %288 = vector.shape_cast %287 : vector<1x1x1x8x4xbf16> to vector<8x4xbf16>
    %c16_416 = arith.constant 16 : index
    %c0_417 = arith.constant 0 : index
    %289 = vector.load %arg2[%c16_416, %c0_417] : memref<36x128xbf16, #tpu.memory_space<vmem>>, vector<4x128xbf16>
    %cst_418 = arith.constant dense<0.000000e+00> : vector<8x128xf32>
    %290 = tpu.matmul %288, %289, %cst_418 {dimension_numbers = #tpu.dot_dimension_numbers<[1], [0], [0], [1], [0, 0, 1, 1], [], []>} : vector<8x4xbf16>, vector<4x128xbf16>, vector<8x128xf32> -> vector<8x128xf32>
    %291 = arith.addf %286, %290 : vector<8x128xf32>
    %c0_419 = arith.constant 0 : index
    %c5_420 = arith.constant 5 : index
    %c1_421 = arith.constant 1 : index
    %c1_422 = arith.constant 1 : index
    %c0_423 = arith.constant 0 : index
    %292 = vector.load %arg1[%c0_419, %c5_420, %c1_421, %c1_422, %c0_423] : memref<1x9x2x9x8xbf16, #tpu.memory_space<vmem>>, vector<1x1x1x8x4xbf16>
    %293 = vector.shape_cast %292 : vector<1x1x1x8x4xbf16> to vector<8x4xbf16>
    %c20_424 = arith.constant 20 : index
    %c0_425 = arith.constant 0 : index
    %294 = vector.load %arg2[%c20_424, %c0_425] : memref<36x128xbf16, #tpu.memory_space<vmem>>, vector<4x128xbf16>
    %cst_426 = arith.constant dense<0.000000e+00> : vector<8x128xf32>
    %295 = tpu.matmul %293, %294, %cst_426 {dimension_numbers = #tpu.dot_dimension_numbers<[1], [0], [0], [1], [0, 0, 1, 1], [], []>} : vector<8x4xbf16>, vector<4x128xbf16>, vector<8x128xf32> -> vector<8x128xf32>
    %296 = arith.addf %291, %295 : vector<8x128xf32>
    %c0_427 = arith.constant 0 : index
    %c6 = arith.constant 6 : index
    %c0_428 = arith.constant 0 : index
    %c0_429 = arith.constant 0 : index
    %c0_430 = arith.constant 0 : index
    %297 = vector.load %arg1[%c0_427, %c6, %c0_428, %c0_429, %c0_430] : memref<1x9x2x9x8xbf16, #tpu.memory_space<vmem>>, vector<1x1x1x8x4xbf16>
    %298 = vector.shape_cast %297 : vector<1x1x1x8x4xbf16> to vector<8x4xbf16>
    %c24_431 = arith.constant 24 : index
    %c0_432 = arith.constant 0 : index
    %299 = vector.load %arg2[%c24_431, %c0_432] : memref<36x128xbf16, #tpu.memory_space<vmem>>, vector<4x128xbf16>
    %cst_433 = arith.constant dense<0.000000e+00> : vector<8x128xf32>
    %300 = tpu.matmul %298, %299, %cst_433 {dimension_numbers = #tpu.dot_dimension_numbers<[1], [0], [0], [1], [0, 0, 1, 1], [], []>} : vector<8x4xbf16>, vector<4x128xbf16>, vector<8x128xf32> -> vector<8x128xf32>
    %301 = arith.addf %296, %300 : vector<8x128xf32>
    %c0_434 = arith.constant 0 : index
    %c6_435 = arith.constant 6 : index
    %c0_436 = arith.constant 0 : index
    %c0_437 = arith.constant 0 : index
    %c4_438 = arith.constant 4 : index
    %302 = vector.load %arg1[%c0_434, %c6_435, %c0_436, %c0_437, %c4_438] : memref<1x9x2x9x8xbf16, #tpu.memory_space<vmem>>, vector<1x1x1x8x4xbf16>
    %303 = vector.shape_cast %302 : vector<1x1x1x8x4xbf16> to vector<8x4xbf16>
    %c28_439 = arith.constant 28 : index
    %c0_440 = arith.constant 0 : index
    %304 = vector.load %arg2[%c28_439, %c0_440] : memref<36x128xbf16, #tpu.memory_space<vmem>>, vector<4x128xbf16>
    %cst_441 = arith.constant dense<0.000000e+00> : vector<8x128xf32>
    %305 = tpu.matmul %303, %304, %cst_441 {dimension_numbers = #tpu.dot_dimension_numbers<[1], [0], [0], [1], [0, 0, 1, 1], [], []>} : vector<8x4xbf16>, vector<4x128xbf16>, vector<8x128xf32> -> vector<8x128xf32>
    %306 = arith.addf %301, %305 : vector<8x128xf32>
    %c0_442 = arith.constant 0 : index
    %c6_443 = arith.constant 6 : index
    %c0_444 = arith.constant 0 : index
    %c1_445 = arith.constant 1 : index
    %c0_446 = arith.constant 0 : index
    %307 = vector.load %arg1[%c0_442, %c6_443, %c0_444, %c1_445, %c0_446] : memref<1x9x2x9x8xbf16, #tpu.memory_space<vmem>>, vector<1x1x1x8x4xbf16>
    %308 = vector.shape_cast %307 : vector<1x1x1x8x4xbf16> to vector<8x4xbf16>
    %c32_447 = arith.constant 32 : index
    %c0_448 = arith.constant 0 : index
    %309 = vector.load %arg2[%c32_447, %c0_448] : memref<36x128xbf16, #tpu.memory_space<vmem>>, vector<4x128xbf16>
    %cst_449 = arith.constant dense<0.000000e+00> : vector<8x128xf32>
    %310 = tpu.matmul %308, %309, %cst_449 {dimension_numbers = #tpu.dot_dimension_numbers<[1], [0], [0], [1], [0, 0, 1, 1], [], []>} : vector<8x4xbf16>, vector<4x128xbf16>, vector<8x128xf32> -> vector<8x128xf32>
    %311 = arith.addf %306, %310 : vector<8x128xf32>
    %312 = vector.broadcast %0 : vector<1x128xf32> to vector<8x128xf32>
    %313 = arith.addf %311, %312 : vector<8x128xf32>
    %cst_450 = arith.constant 0.000000e+00 : f32
    %314 = vector.broadcast %cst_450 : f32 to vector<8x128xf32>
    %315 = arith.maximumf %313, %314 : vector<8x128xf32>
    %c0_451 = arith.constant 0 : index
    %c5_452 = arith.constant 5 : index
    %c0_453 = arith.constant 0 : index
    %c0_454 = arith.constant 0 : index
    %316 = vector.load %arg4[%c0_451, %c5_452, %c0_453, %c0_454] : memref<1x8x8x128xf32, #tpu.memory_space<vmem>>, vector<1x1x8x128xf32>
    %317 = vector.shape_cast %316 : vector<1x1x8x128xf32> to vector<8x128xf32>
    %318 = vector.shape_cast %315 : vector<8x128xf32> to vector<1x1x8x128xf32>
    tpu.vector_store %arg4[%c0_451, %c5_452, %c0_453, %c0_454], %318 {strides = array<i32>} : memref<1x8x8x128xf32, #tpu.memory_space<vmem>>, vector<1x1x8x128xf32>,
    %cst_455 = arith.constant 0.000000e+00 : f32
    %319 = vector.broadcast %cst_455 : f32 to vector<8x128xf32>
    %c0_456 = arith.constant 0 : index
    %c6_457 = arith.constant 6 : index
    %c0_458 = arith.constant 0 : index
    %c0_459 = arith.constant 0 : index
    %c0_460 = arith.constant 0 : index
    %320 = vector.load %arg1[%c0_456, %c6_457, %c0_458, %c0_459, %c0_460] : memref<1x9x2x9x8xbf16, #tpu.memory_space<vmem>>, vector<1x1x1x8x4xbf16>
    %321 = vector.shape_cast %320 : vector<1x1x1x8x4xbf16> to vector<8x4xbf16>
    %c0_461 = arith.constant 0 : index
    %c0_462 = arith.constant 0 : index
    %322 = vector.load %arg2[%c0_461, %c0_462] : memref<36x128xbf16, #tpu.memory_space<vmem>>, vector<4x128xbf16>
    %cst_463 = arith.constant dense<0.000000e+00> : vector<8x128xf32>
    %323 = tpu.matmul %321, %322, %cst_463 {dimension_numbers = #tpu.dot_dimension_numbers<[1], [0], [0], [1], [0, 0, 1, 1], [], []>} : vector<8x4xbf16>, vector<4x128xbf16>, vector<8x128xf32> -> vector<8x128xf32>
    %324 = arith.addf %319, %323 : vector<8x128xf32>
    %c0_464 = arith.constant 0 : index
    %c6_465 = arith.constant 6 : index
    %c0_466 = arith.constant 0 : index
    %c0_467 = arith.constant 0 : index
    %c4_468 = arith.constant 4 : index
    %325 = vector.load %arg1[%c0_464, %c6_465, %c0_466, %c0_467, %c4_468] : memref<1x9x2x9x8xbf16, #tpu.memory_space<vmem>>, vector<1x1x1x8x4xbf16>
    %326 = vector.shape_cast %325 : vector<1x1x1x8x4xbf16> to vector<8x4xbf16>
    %c4_469 = arith.constant 4 : index
    %c0_470 = arith.constant 0 : index
    %327 = vector.load %arg2[%c4_469, %c0_470] : memref<36x128xbf16, #tpu.memory_space<vmem>>, vector<4x128xbf16>
    %cst_471 = arith.constant dense<0.000000e+00> : vector<8x128xf32>
    %328 = tpu.matmul %326, %327, %cst_471 {dimension_numbers = #tpu.dot_dimension_numbers<[1], [0], [0], [1], [0, 0, 1, 1], [], []>} : vector<8x4xbf16>, vector<4x128xbf16>, vector<8x128xf32> -> vector<8x128xf32>
    %329 = arith.addf %324, %328 : vector<8x128xf32>
    %c0_472 = arith.constant 0 : index
    %c6_473 = arith.constant 6 : index
    %c0_474 = arith.constant 0 : index
    %c1_475 = arith.constant 1 : index
    %c0_476 = arith.constant 0 : index
    %330 = vector.load %arg1[%c0_472, %c6_473, %c0_474, %c1_475, %c0_476] : memref<1x9x2x9x8xbf16, #tpu.memory_space<vmem>>, vector<1x1x1x8x4xbf16>
    %331 = vector.shape_cast %330 : vector<1x1x1x8x4xbf16> to vector<8x4xbf16>
    %c8_477 = arith.constant 8 : index
    %c0_478 = arith.constant 0 : index
    %332 = vector.load %arg2[%c8_477, %c0_478] : memref<36x128xbf16, #tpu.memory_space<vmem>>, vector<4x128xbf16>
    %cst_479 = arith.constant dense<0.000000e+00> : vector<8x128xf32>
    %333 = tpu.matmul %331, %332, %cst_479 {dimension_numbers = #tpu.dot_dimension_numbers<[1], [0], [0], [1], [0, 0, 1, 1], [], []>} : vector<8x4xbf16>, vector<4x128xbf16>, vector<8x128xf32> -> vector<8x128xf32>
    %334 = arith.addf %329, %333 : vector<8x128xf32>
    %c0_480 = arith.constant 0 : index
    %c6_481 = arith.constant 6 : index
    %c1_482 = arith.constant 1 : index
    %c0_483 = arith.constant 0 : index
    %c0_484 = arith.constant 0 : index
    %335 = vector.load %arg1[%c0_480, %c6_481, %c1_482, %c0_483, %c0_484] : memref<1x9x2x9x8xbf16, #tpu.memory_space<vmem>>, vector<1x1x1x8x4xbf16>
    %336 = vector.shape_cast %335 : vector<1x1x1x8x4xbf16> to vector<8x4xbf16>
    %c12_485 = arith.constant 12 : index
    %c0_486 = arith.constant 0 : index
    %337 = vector.load %arg2[%c12_485, %c0_486] : memref<36x128xbf16, #tpu.memory_space<vmem>>, vector<4x128xbf16>
    %cst_487 = arith.constant dense<0.000000e+00> : vector<8x128xf32>
    %338 = tpu.matmul %336, %337, %cst_487 {dimension_numbers = #tpu.dot_dimension_numbers<[1], [0], [0], [1], [0, 0, 1, 1], [], []>} : vector<8x4xbf16>, vector<4x128xbf16>, vector<8x128xf32> -> vector<8x128xf32>
    %339 = arith.addf %334, %338 : vector<8x128xf32>
    %c0_488 = arith.constant 0 : index
    %c6_489 = arith.constant 6 : index
    %c1_490 = arith.constant 1 : index
    %c0_491 = arith.constant 0 : index
    %c4_492 = arith.constant 4 : index
    %340 = vector.load %arg1[%c0_488, %c6_489, %c1_490, %c0_491, %c4_492] : memref<1x9x2x9x8xbf16, #tpu.memory_space<vmem>>, vector<1x1x1x8x4xbf16>
    %341 = vector.shape_cast %340 : vector<1x1x1x8x4xbf16> to vector<8x4xbf16>
    %c16_493 = arith.constant 16 : index
    %c0_494 = arith.constant 0 : index
    %342 = vector.load %arg2[%c16_493, %c0_494] : memref<36x128xbf16, #tpu.memory_space<vmem>>, vector<4x128xbf16>
    %cst_495 = arith.constant dense<0.000000e+00> : vector<8x128xf32>
    %343 = tpu.matmul %341, %342, %cst_495 {dimension_numbers = #tpu.dot_dimension_numbers<[1], [0], [0], [1], [0, 0, 1, 1], [], []>} : vector<8x4xbf16>, vector<4x128xbf16>, vector<8x128xf32> -> vector<8x128xf32>
    %344 = arith.addf %339, %343 : vector<8x128xf32>
    %c0_496 = arith.constant 0 : index
    %c6_497 = arith.constant 6 : index
    %c1_498 = arith.constant 1 : index
    %c1_499 = arith.constant 1 : index
    %c0_500 = arith.constant 0 : index
    %345 = vector.load %arg1[%c0_496, %c6_497, %c1_498, %c1_499, %c0_500] : memref<1x9x2x9x8xbf16, #tpu.memory_space<vmem>>, vector<1x1x1x8x4xbf16>
    %346 = vector.shape_cast %345 : vector<1x1x1x8x4xbf16> to vector<8x4xbf16>
    %c20_501 = arith.constant 20 : index
    %c0_502 = arith.constant 0 : index
    %347 = vector.load %arg2[%c20_501, %c0_502] : memref<36x128xbf16, #tpu.memory_space<vmem>>, vector<4x128xbf16>
    %cst_503 = arith.constant dense<0.000000e+00> : vector<8x128xf32>
    %348 = tpu.matmul %346, %347, %cst_503 {dimension_numbers = #tpu.dot_dimension_numbers<[1], [0], [0], [1], [0, 0, 1, 1], [], []>} : vector<8x4xbf16>, vector<4x128xbf16>, vector<8x128xf32> -> vector<8x128xf32>
    %349 = arith.addf %344, %348 : vector<8x128xf32>
    %c0_504 = arith.constant 0 : index
    %c7 = arith.constant 7 : index
    %c0_505 = arith.constant 0 : index
    %c0_506 = arith.constant 0 : index
    %c0_507 = arith.constant 0 : index
    %350 = vector.load %arg1[%c0_504, %c7, %c0_505, %c0_506, %c0_507] : memref<1x9x2x9x8xbf16, #tpu.memory_space<vmem>>, vector<1x1x1x8x4xbf16>
    %351 = vector.shape_cast %350 : vector<1x1x1x8x4xbf16> to vector<8x4xbf16>
    %c24_508 = arith.constant 24 : index
    %c0_509 = arith.constant 0 : index
    %352 = vector.load %arg2[%c24_508, %c0_509] : memref<36x128xbf16, #tpu.memory_space<vmem>>, vector<4x128xbf16>
    %cst_510 = arith.constant dense<0.000000e+00> : vector<8x128xf32>
    %353 = tpu.matmul %351, %352, %cst_510 {dimension_numbers = #tpu.dot_dimension_numbers<[1], [0], [0], [1], [0, 0, 1, 1], [], []>} : vector<8x4xbf16>, vector<4x128xbf16>, vector<8x128xf32> -> vector<8x128xf32>
    %354 = arith.addf %349, %353 : vector<8x128xf32>
    %c0_511 = arith.constant 0 : index
    %c7_512 = arith.constant 7 : index
    %c0_513 = arith.constant 0 : index
    %c0_514 = arith.constant 0 : index
    %c4_515 = arith.constant 4 : index
    %355 = vector.load %arg1[%c0_511, %c7_512, %c0_513, %c0_514, %c4_515] : memref<1x9x2x9x8xbf16, #tpu.memory_space<vmem>>, vector<1x1x1x8x4xbf16>
    %356 = vector.shape_cast %355 : vector<1x1x1x8x4xbf16> to vector<8x4xbf16>
    %c28_516 = arith.constant 28 : index
    %c0_517 = arith.constant 0 : index
    %357 = vector.load %arg2[%c28_516, %c0_517] : memref<36x128xbf16, #tpu.memory_space<vmem>>, vector<4x128xbf16>
    %cst_518 = arith.constant dense<0.000000e+00> : vector<8x128xf32>
    %358 = tpu.matmul %356, %357, %cst_518 {dimension_numbers = #tpu.dot_dimension_numbers<[1], [0], [0], [1], [0, 0, 1, 1], [], []>} : vector<8x4xbf16>, vector<4x128xbf16>, vector<8x128xf32> -> vector<8x128xf32>
    %359 = arith.addf %354, %358 : vector<8x128xf32>
    %c0_519 = arith.constant 0 : index
    %c7_520 = arith.constant 7 : index
    %c0_521 = arith.constant 0 : index
    %c1_522 = arith.constant 1 : index
    %c0_523 = arith.constant 0 : index
    %360 = vector.load %arg1[%c0_519, %c7_520, %c0_521, %c1_522, %c0_523] : memref<1x9x2x9x8xbf16, #tpu.memory_space<vmem>>, vector<1x1x1x8x4xbf16>
    %361 = vector.shape_cast %360 : vector<1x1x1x8x4xbf16> to vector<8x4xbf16>
    %c32_524 = arith.constant 32 : index
    %c0_525 = arith.constant 0 : index
    %362 = vector.load %arg2[%c32_524, %c0_525] : memref<36x128xbf16, #tpu.memory_space<vmem>>, vector<4x128xbf16>
    %cst_526 = arith.constant dense<0.000000e+00> : vector<8x128xf32>
    %363 = tpu.matmul %361, %362, %cst_526 {dimension_numbers = #tpu.dot_dimension_numbers<[1], [0], [0], [1], [0, 0, 1, 1], [], []>} : vector<8x4xbf16>, vector<4x128xbf16>, vector<8x128xf32> -> vector<8x128xf32>
    %364 = arith.addf %359, %363 : vector<8x128xf32>
    %365 = vector.broadcast %0 : vector<1x128xf32> to vector<8x128xf32>
    %366 = arith.addf %364, %365 : vector<8x128xf32>
    %cst_527 = arith.constant 0.000000e+00 : f32
    %367 = vector.broadcast %cst_527 : f32 to vector<8x128xf32>
    %368 = arith.maximumf %366, %367 : vector<8x128xf32>
    %c0_528 = arith.constant 0 : index
    %c6_529 = arith.constant 6 : index
    %c0_530 = arith.constant 0 : index
    %c0_531 = arith.constant 0 : index
    %369 = vector.load %arg4[%c0_528, %c6_529, %c0_530, %c0_531] : memref<1x8x8x128xf32, #tpu.memory_space<vmem>>, vector<1x1x8x128xf32>
    %370 = vector.shape_cast %369 : vector<1x1x8x128xf32> to vector<8x128xf32>
    %371 = vector.shape_cast %368 : vector<8x128xf32> to vector<1x1x8x128xf32>
    tpu.vector_store %arg4[%c0_528, %c6_529, %c0_530, %c0_531], %371 {strides = array<i32>} : memref<1x8x8x128xf32, #tpu.memory_space<vmem>>, vector<1x1x8x128xf32>,
    %cst_532 = arith.constant 0.000000e+00 : f32
    %372 = vector.broadcast %cst_532 : f32 to vector<8x128xf32>
    %c0_533 = arith.constant 0 : index
    %c7_534 = arith.constant 7 : index
    %c0_535 = arith.constant 0 : index
    %c0_536 = arith.constant 0 : index
    %c0_537 = arith.constant 0 : index
    %373 = vector.load %arg1[%c0_533, %c7_534, %c0_535, %c0_536, %c0_537] : memref<1x9x2x9x8xbf16, #tpu.memory_space<vmem>>, vector<1x1x1x8x4xbf16>
    %374 = vector.shape_cast %373 : vector<1x1x1x8x4xbf16> to vector<8x4xbf16>
    %c0_538 = arith.constant 0 : index
    %c0_539 = arith.constant 0 : index
    %375 = vector.load %arg2[%c0_538, %c0_539] : memref<36x128xbf16, #tpu.memory_space<vmem>>, vector<4x128xbf16>
    %cst_540 = arith.constant dense<0.000000e+00> : vector<8x128xf32>
    %376 = tpu.matmul %374, %375, %cst_540 {dimension_numbers = #tpu.dot_dimension_numbers<[1], [0], [0], [1], [0, 0, 1, 1], [], []>} : vector<8x4xbf16>, vector<4x128xbf16>, vector<8x128xf32> -> vector<8x128xf32>
    %377 = arith.addf %372, %376 : vector<8x128xf32>
    %c0_541 = arith.constant 0 : index
    %c7_542 = arith.constant 7 : index
    %c0_543 = arith.constant 0 : index
    %c0_544 = arith.constant 0 : index
    %c4_545 = arith.constant 4 : index
    %378 = vector.load %arg1[%c0_541, %c7_542, %c0_543, %c0_544, %c4_545] : memref<1x9x2x9x8xbf16, #tpu.memory_space<vmem>>, vector<1x1x1x8x4xbf16>
    %379 = vector.shape_cast %378 : vector<1x1x1x8x4xbf16> to vector<8x4xbf16>
    %c4_546 = arith.constant 4 : index
    %c0_547 = arith.constant 0 : index
    %380 = vector.load %arg2[%c4_546, %c0_547] : memref<36x128xbf16, #tpu.memory_space<vmem>>, vector<4x128xbf16>
    %cst_548 = arith.constant dense<0.000000e+00> : vector<8x128xf32>
    %381 = tpu.matmul %379, %380, %cst_548 {dimension_numbers = #tpu.dot_dimension_numbers<[1], [0], [0], [1], [0, 0, 1, 1], [], []>} : vector<8x4xbf16>, vector<4x128xbf16>, vector<8x128xf32> -> vector<8x128xf32>
    %382 = arith.addf %377, %381 : vector<8x128xf32>
    %c0_549 = arith.constant 0 : index
    %c7_550 = arith.constant 7 : index
    %c0_551 = arith.constant 0 : index
    %c1_552 = arith.constant 1 : index
    %c0_553 = arith.constant 0 : index
    %383 = vector.load %arg1[%c0_549, %c7_550, %c0_551, %c1_552, %c0_553] : memref<1x9x2x9x8xbf16, #tpu.memory_space<vmem>>, vector<1x1x1x8x4xbf16>
    %384 = vector.shape_cast %383 : vector<1x1x1x8x4xbf16> to vector<8x4xbf16>
    %c8_554 = arith.constant 8 : index
    %c0_555 = arith.constant 0 : index
    %385 = vector.load %arg2[%c8_554, %c0_555] : memref<36x128xbf16, #tpu.memory_space<vmem>>, vector<4x128xbf16>
    %cst_556 = arith.constant dense<0.000000e+00> : vector<8x128xf32>
    %386 = tpu.matmul %384, %385, %cst_556 {dimension_numbers = #tpu.dot_dimension_numbers<[1], [0], [0], [1], [0, 0, 1, 1], [], []>} : vector<8x4xbf16>, vector<4x128xbf16>, vector<8x128xf32> -> vector<8x128xf32>
    %387 = arith.addf %382, %386 : vector<8x128xf32>
    %c0_557 = arith.constant 0 : index
    %c7_558 = arith.constant 7 : index
    %c1_559 = arith.constant 1 : index
    %c0_560 = arith.constant 0 : index
    %c0_561 = arith.constant 0 : index
    %388 = vector.load %arg1[%c0_557, %c7_558, %c1_559, %c0_560, %c0_561] : memref<1x9x2x9x8xbf16, #tpu.memory_space<vmem>>, vector<1x1x1x8x4xbf16>
    %389 = vector.shape_cast %388 : vector<1x1x1x8x4xbf16> to vector<8x4xbf16>
    %c12_562 = arith.constant 12 : index
    %c0_563 = arith.constant 0 : index
    %390 = vector.load %arg2[%c12_562, %c0_563] : memref<36x128xbf16, #tpu.memory_space<vmem>>, vector<4x128xbf16>
    %cst_564 = arith.constant dense<0.000000e+00> : vector<8x128xf32>
    %391 = tpu.matmul %389, %390, %cst_564 {dimension_numbers = #tpu.dot_dimension_numbers<[1], [0], [0], [1], [0, 0, 1, 1], [], []>} : vector<8x4xbf16>, vector<4x128xbf16>, vector<8x128xf32> -> vector<8x128xf32>
    %392 = arith.addf %387, %391 : vector<8x128xf32>
    %c0_565 = arith.constant 0 : index
    %c7_566 = arith.constant 7 : index
    %c1_567 = arith.constant 1 : index
    %c0_568 = arith.constant 0 : index
    %c4_569 = arith.constant 4 : index
    %393 = vector.load %arg1[%c0_565, %c7_566, %c1_567, %c0_568, %c4_569] : memref<1x9x2x9x8xbf16, #tpu.memory_space<vmem>>, vector<1x1x1x8x4xbf16>
    %394 = vector.shape_cast %393 : vector<1x1x1x8x4xbf16> to vector<8x4xbf16>
    %c16_570 = arith.constant 16 : index
    %c0_571 = arith.constant 0 : index
    %395 = vector.load %arg2[%c16_570, %c0_571] : memref<36x128xbf16, #tpu.memory_space<vmem>>, vector<4x128xbf16>
    %cst_572 = arith.constant dense<0.000000e+00> : vector<8x128xf32>
    %396 = tpu.matmul %394, %395, %cst_572 {dimension_numbers = #tpu.dot_dimension_numbers<[1], [0], [0], [1], [0, 0, 1, 1], [], []>} : vector<8x4xbf16>, vector<4x128xbf16>, vector<8x128xf32> -> vector<8x128xf32>
    %397 = arith.addf %392, %396 : vector<8x128xf32>
    %c0_573 = arith.constant 0 : index
    %c7_574 = arith.constant 7 : index
    %c1_575 = arith.constant 1 : index
    %c1_576 = arith.constant 1 : index
    %c0_577 = arith.constant 0 : index
    %398 = vector.load %arg1[%c0_573, %c7_574, %c1_575, %c1_576, %c0_577] : memref<1x9x2x9x8xbf16, #tpu.memory_space<vmem>>, vector<1x1x1x8x4xbf16>
    %399 = vector.shape_cast %398 : vector<1x1x1x8x4xbf16> to vector<8x4xbf16>
    %c20_578 = arith.constant 20 : index
    %c0_579 = arith.constant 0 : index
    %400 = vector.load %arg2[%c20_578, %c0_579] : memref<36x128xbf16, #tpu.memory_space<vmem>>, vector<4x128xbf16>
    %cst_580 = arith.constant dense<0.000000e+00> : vector<8x128xf32>
    %401 = tpu.matmul %399, %400, %cst_580 {dimension_numbers = #tpu.dot_dimension_numbers<[1], [0], [0], [1], [0, 0, 1, 1], [], []>} : vector<8x4xbf16>, vector<4x128xbf16>, vector<8x128xf32> -> vector<8x128xf32>
    %402 = arith.addf %397, %401 : vector<8x128xf32>
    %c0_581 = arith.constant 0 : index
    %c8_582 = arith.constant 8 : index
    %c0_583 = arith.constant 0 : index
    %c0_584 = arith.constant 0 : index
    %c0_585 = arith.constant 0 : index
    %403 = vector.load %arg1[%c0_581, %c8_582, %c0_583, %c0_584, %c0_585] : memref<1x9x2x9x8xbf16, #tpu.memory_space<vmem>>, vector<1x1x1x8x4xbf16>
    %404 = vector.shape_cast %403 : vector<1x1x1x8x4xbf16> to vector<8x4xbf16>
    %c24_586 = arith.constant 24 : index
    %c0_587 = arith.constant 0 : index
    %405 = vector.load %arg2[%c24_586, %c0_587] : memref<36x128xbf16, #tpu.memory_space<vmem>>, vector<4x128xbf16>
    %cst_588 = arith.constant dense<0.000000e+00> : vector<8x128xf32>
    %406 = tpu.matmul %404, %405, %cst_588 {dimension_numbers = #tpu.dot_dimension_numbers<[1], [0], [0], [1], [0, 0, 1, 1], [], []>} : vector<8x4xbf16>, vector<4x128xbf16>, vector<8x128xf32> -> vector<8x128xf32>
    %407 = arith.addf %402, %406 : vector<8x128xf32>
    %c0_589 = arith.constant 0 : index
    %c8_590 = arith.constant 8 : index
    %c0_591 = arith.constant 0 : index
    %c0_592 = arith.constant 0 : index
    %c4_593 = arith.constant 4 : index
    %408 = vector.load %arg1[%c0_589, %c8_590, %c0_591, %c0_592, %c4_593] : memref<1x9x2x9x8xbf16, #tpu.memory_space<vmem>>, vector<1x1x1x8x4xbf16>
    %409 = vector.shape_cast %408 : vector<1x1x1x8x4xbf16> to vector<8x4xbf16>
    %c28_594 = arith.constant 28 : index
    %c0_595 = arith.constant 0 : index
    %410 = vector.load %arg2[%c28_594, %c0_595] : memref<36x128xbf16, #tpu.memory_space<vmem>>, vector<4x128xbf16>
    %cst_596 = arith.constant dense<0.000000e+00> : vector<8x128xf32>
    %411 = tpu.matmul %409, %410, %cst_596 {dimension_numbers = #tpu.dot_dimension_numbers<[1], [0], [0], [1], [0, 0, 1, 1], [], []>} : vector<8x4xbf16>, vector<4x128xbf16>, vector<8x128xf32> -> vector<8x128xf32>
    %412 = arith.addf %407, %411 : vector<8x128xf32>
    %c0_597 = arith.constant 0 : index
    %c8_598 = arith.constant 8 : index
    %c0_599 = arith.constant 0 : index
    %c1_600 = arith.constant 1 : index
    %c0_601 = arith.constant 0 : index
    %413 = vector.load %arg1[%c0_597, %c8_598, %c0_599, %c1_600, %c0_601] : memref<1x9x2x9x8xbf16, #tpu.memory_space<vmem>>, vector<1x1x1x8x4xbf16>
    %414 = vector.shape_cast %413 : vector<1x1x1x8x4xbf16> to vector<8x4xbf16>
    %c32_602 = arith.constant 32 : index
    %c0_603 = arith.constant 0 : index
    %415 = vector.load %arg2[%c32_602, %c0_603] : memref<36x128xbf16, #tpu.memory_space<vmem>>, vector<4x128xbf16>
    %cst_604 = arith.constant dense<0.000000e+00> : vector<8x128xf32>
    %416 = tpu.matmul %414, %415, %cst_604 {dimension_numbers = #tpu.dot_dimension_numbers<[1], [0], [0], [1], [0, 0, 1, 1], [], []>} : vector<8x4xbf16>, vector<4x128xbf16>, vector<8x128xf32> -> vector<8x128xf32>
    %417 = arith.addf %412, %416 : vector<8x128xf32>
    %418 = vector.broadcast %0 : vector<1x128xf32> to vector<8x128xf32>
    %419 = arith.addf %417, %418 : vector<8x128xf32>
    %cst_605 = arith.constant 0.000000e+00 : f32
    %420 = vector.broadcast %cst_605 : f32 to vector<8x128xf32>
    %421 = arith.maximumf %419, %420 : vector<8x128xf32>
    %c0_606 = arith.constant 0 : index
    %c7_607 = arith.constant 7 : index
    %c0_608 = arith.constant 0 : index
    %c0_609 = arith.constant 0 : index
    %422 = vector.load %arg4[%c0_606, %c7_607, %c0_608, %c0_609] : memref<1x8x8x128xf32, #tpu.memory_space<vmem>>, vector<1x1x8x128xf32>
    %423 = vector.shape_cast %422 : vector<1x1x8x128xf32> to vector<8x128xf32>
    %424 = vector.shape_cast %421 : vector<8x128xf32> to vector<1x1x8x128xf32>
    tpu.vector_store %arg4[%c0_606, %c7_607, %c0_608, %c0_609], %424 {strides = array<i32>} : memref<1x8x8x128xf32, #tpu.memory_space<vmem>>, vector<1x1x8x128xf32>,
    return
  }
  func.func @transform_0(%arg0: i32) -> (i32, i32, i32, i32, i32) {
    %c0_i32 = arith.constant 0 : i32
    %c0_i32_0 = arith.constant 0 : i32
    %c0_i32_1 = arith.constant 0 : i32
    %c0_i32_2 = arith.constant 0 : i32
    %c0_i32_3 = arith.constant 0 : i32
    return %arg0, %c0_i32, %c0_i32_0, %c0_i32_1, %c0_i32_2 : i32, i32, i32, i32, i32
  }
  func.func @transform_1(%arg0: i32) -> (i32, i32) {
    %c0_i32 = arith.constant 0 : i32
    %c0_i32_0 = arith.constant 0 : i32
    %c0_i32_1 = arith.constant 0 : i32
    return %c0_i32, %c0_i32_0 : i32, i32
  }
  func.func @transform_2(%arg0: i32) -> (i32, i32) {
    %c0_i32 = arith.constant 0 : i32
    %c0_i32_0 = arith.constant 0 : i32
    %c0_i32_1 = arith.constant 0 : i32
    return %c0_i32, %c0_i32_0 : i32, i32
  }
  func.func @transform_3(%arg0: i32) -> (i32, i32, i32, i32) {
    %c0_i32 = arith.constant 0 : i32
    %c0_i32_0 = arith.constant 0 : i32
    %c0_i32_1 = arith.constant 0 : i32
    %c0_i32_2 = arith.constant 0 : i32
    return %arg0, %c0_i32, %c0_i32_0, %c0_i32_1 : i32, i32, i32, i32
  }
}

module attributes {stable_mosaic.version = 11 : i64} {
  func.func @pos_kernel(%arg0: i32, %arg1: memref<1x1x64xbf16, #tpu.memory_space<vmem>>, %arg2: memref<64x64xbf16, #tpu.memory_space<vmem>>, %arg3: memref<64x64xbf16, #tpu.memory_space<vmem>>, %arg4: memref<8x1xf32, #tpu.memory_space<vmem>>, %arg5: memref<1x32x64xf32, #tpu.memory_space<vmem>>) attributes {dimension_semantics = [#tpu.dimension_semantics<parallel>], iteration_bounds = array<i64: 2>, scalar_prefetch = 0 : i64, scratch_operands = 0 : i64, tpu.core_type = #tpu.core_type<tc>, window_params = [{transform_indices = @transform_0, window_bounds = array<i64: 1, 1, 64>}, {pipeline_mode = #tpu.pipeline_mode<synchronous>, transform_indices = @transform_1, window_bounds = array<i64: 64, 64>}, {pipeline_mode = #tpu.pipeline_mode<synchronous>, transform_indices = @transform_2, window_bounds = array<i64: 64, 64>}, {pipeline_mode = #tpu.pipeline_mode<synchronous>, transform_indices = @transform_3, window_bounds = array<i64: 8, 1>}, {transform_indices = @transform_4, window_bounds = array<i64: 1, 32, 64>}]} {
    %c0 = arith.constant 0 : index
    %c0_0 = arith.constant 0 : index
    %c0_1 = arith.constant 0 : index
    %0 = vector.load %arg1[%c0, %c0_0, %c0_1] : memref<1x1x64xbf16, #tpu.memory_space<vmem>>, vector<1x1x64xbf16>
    %1 = vector.shape_cast %0 : vector<1x1x64xbf16> to vector<1x64xbf16>
    %c0_2 = arith.constant 0 : index
    %c0_3 = arith.constant 0 : index
    %2 = vector.load %arg2[%c0_2, %c0_3] : memref<64x64xbf16, #tpu.memory_space<vmem>>, vector<64x64xbf16>
    %cst = arith.constant dense<0.000000e+00> : vector<1x64xf32>
    %3 = tpu.matmul %1, %2, %cst {dimension_numbers = #tpu.dot_dimension_numbers<[1], [0], [0], [1], [0, 0, 1, 1], [], []>} : vector<1x64xbf16>, vector<64x64xbf16>, vector<1x64xf32> -> vector<1x64xf32>
    %cst_4 = arith.constant 0.000000e+00 : f32
    %4 = vector.broadcast %cst_4 : f32 to vector<1x64xf32>
    %5 = arith.addf %3, %4 : vector<1x64xf32>
    %c0_5 = arith.constant 0 : index
    %c0_6 = arith.constant 0 : index
    %6 = vector.load %arg3[%c0_5, %c0_6] : memref<64x64xbf16, #tpu.memory_space<vmem>>, vector<64x64xbf16>
    %cst_7 = arith.constant dense<0.000000e+00> : vector<1x64xf32>
    %7 = tpu.matmul %1, %6, %cst_7 {dimension_numbers = #tpu.dot_dimension_numbers<[1], [0], [0], [1], [0, 0, 1, 1], [], []>} : vector<1x64xbf16>, vector<64x64xbf16>, vector<1x64xf32> -> vector<1x64xf32>
    %cst_8 = arith.constant 0.000000e+00 : f32
    %8 = vector.broadcast %cst_8 : f32 to vector<1x64xf32>
    %9 = arith.addf %7, %8 : vector<1x64xf32>
    %c0_9 = arith.constant 0 : index
    %c0_10 = arith.constant 0 : index
    %10 = vector.load %arg4[%c0_9, %c0_10] : memref<8x1xf32, #tpu.memory_space<vmem>>, vector<8x1xf32>
    %11 = vector.broadcast %10 : vector<8x1xf32> to vector<8x64xf32>
    %12 = vector.broadcast %5 : vector<1x64xf32> to vector<8x64xf32>
    %13 = arith.mulf %11, %12 : vector<8x64xf32>
    %14 = vector.broadcast %10 : vector<8x1xf32> to vector<8x64xf32>
    %15 = vector.broadcast %9 : vector<1x64xf32> to vector<8x64xf32>
    %16 = arith.mulf %14, %15 : vector<8x64xf32>
    %17 = math.sin %13 : vector<8x64xf32>
    %c0_11 = arith.constant 0 : index
    %c0_12 = arith.constant 0 : index
    %c0_13 = arith.constant 0 : index
    %18 = vector.load %arg5[%c0_11, %c0_12, %c0_13] : memref<1x32x64xf32, #tpu.memory_space<vmem>>, vector<1x8x64xf32>
    %19 = vector.shape_cast %18 : vector<1x8x64xf32> to vector<8x64xf32>
    %20 = vector.shape_cast %17 : vector<8x64xf32> to vector<1x8x64xf32>
    tpu.vector_store %arg5[%c0_11, %c0_12, %c0_13], %20 {strides = array<i32>} : memref<1x32x64xf32, #tpu.memory_space<vmem>>, vector<1x8x64xf32>,
    %21 = math.cos %13 : vector<8x64xf32>
    %c0_14 = arith.constant 0 : index
    %c8 = arith.constant 8 : index
    %c0_15 = arith.constant 0 : index
    %22 = vector.load %arg5[%c0_14, %c8, %c0_15] : memref<1x32x64xf32, #tpu.memory_space<vmem>>, vector<1x8x64xf32>
    %23 = vector.shape_cast %22 : vector<1x8x64xf32> to vector<8x64xf32>
    %24 = vector.shape_cast %21 : vector<8x64xf32> to vector<1x8x64xf32>
    tpu.vector_store %arg5[%c0_14, %c8, %c0_15], %24 {strides = array<i32>} : memref<1x32x64xf32, #tpu.memory_space<vmem>>, vector<1x8x64xf32>,
    %25 = math.sin %16 : vector<8x64xf32>
    %c0_16 = arith.constant 0 : index
    %c16 = arith.constant 16 : index
    %c0_17 = arith.constant 0 : index
    %26 = vector.load %arg5[%c0_16, %c16, %c0_17] : memref<1x32x64xf32, #tpu.memory_space<vmem>>, vector<1x8x64xf32>
    %27 = vector.shape_cast %26 : vector<1x8x64xf32> to vector<8x64xf32>
    %28 = vector.shape_cast %25 : vector<8x64xf32> to vector<1x8x64xf32>
    tpu.vector_store %arg5[%c0_16, %c16, %c0_17], %28 {strides = array<i32>} : memref<1x32x64xf32, #tpu.memory_space<vmem>>, vector<1x8x64xf32>,
    %29 = math.cos %16 : vector<8x64xf32>
    %c0_18 = arith.constant 0 : index
    %c24 = arith.constant 24 : index
    %c0_19 = arith.constant 0 : index
    %30 = vector.load %arg5[%c0_18, %c24, %c0_19] : memref<1x32x64xf32, #tpu.memory_space<vmem>>, vector<1x8x64xf32>
    %31 = vector.shape_cast %30 : vector<1x8x64xf32> to vector<8x64xf32>
    %32 = vector.shape_cast %29 : vector<8x64xf32> to vector<1x8x64xf32>
    tpu.vector_store %arg5[%c0_18, %c24, %c0_19], %32 {strides = array<i32>} : memref<1x32x64xf32, #tpu.memory_space<vmem>>, vector<1x8x64xf32>,
    return
  }
  func.func @transform_0(%arg0: i32) -> (i32, i32, i32) {
    %c0_i32 = arith.constant 0 : i32
    %c0_i32_0 = arith.constant 0 : i32
    %c0_i32_1 = arith.constant 0 : i32
    return %arg0, %c0_i32, %c0_i32_0 : i32, i32, i32
  }
  func.func @transform_1(%arg0: i32) -> (i32, i32) {
    %c0_i32 = arith.constant 0 : i32
    %c0_i32_0 = arith.constant 0 : i32
    %c0_i32_1 = arith.constant 0 : i32
    return %c0_i32, %c0_i32_0 : i32, i32
  }
  func.func @transform_2(%arg0: i32) -> (i32, i32) {
    %c0_i32 = arith.constant 0 : i32
    %c0_i32_0 = arith.constant 0 : i32
    %c0_i32_1 = arith.constant 0 : i32
    return %c0_i32, %c0_i32_0 : i32, i32
  }
  func.func @transform_3(%arg0: i32) -> (i32, i32) {
    %c0_i32 = arith.constant 0 : i32
    %c0_i32_0 = arith.constant 0 : i32
    %c0_i32_1 = arith.constant 0 : i32
    return %c0_i32, %c0_i32_0 : i32, i32
  }
  func.func @transform_4(%arg0: i32) -> (i32, i32, i32) {
    %c0_i32 = arith.constant 0 : i32
    %c0_i32_0 = arith.constant 0 : i32
    %c0_i32_1 = arith.constant 0 : i32
    return %arg0, %c0_i32, %c0_i32_0 : i32, i32, i32
  }
}

module attributes {stable_mosaic.version = 11 : i64} {
  func.func @conv_kernel(%arg0: i32, %arg1: memref<1x5x2x5x8xbf16, #tpu.memory_space<vmem>>, %arg2: memref<36x128xbf16, #tpu.memory_space<vmem>>, %arg3: memref<1x128xf32, #tpu.memory_space<vmem>>, %arg4: memref<1x4x4x128xf32, #tpu.memory_space<vmem>>) attributes {dimension_semantics = [#tpu.dimension_semantics<parallel>], iteration_bounds = array<i64: 2>, scalar_prefetch = 0 : i64, scratch_operands = 0 : i64, tpu.core_type = #tpu.core_type<tc>, window_params = [{transform_indices = @transform_0, window_bounds = array<i64: 1, 5, 2, 5, 8>}, {pipeline_mode = #tpu.pipeline_mode<synchronous>, transform_indices = @transform_1, window_bounds = array<i64: 36, 128>}, {pipeline_mode = #tpu.pipeline_mode<synchronous>, transform_indices = @transform_2, window_bounds = array<i64: 1, 128>}, {transform_indices = @transform_3, window_bounds = array<i64: 1, 4, 4, 128>}]} {
    %c0 = arith.constant 0 : index
    %c0_0 = arith.constant 0 : index
    %0 = vector.load %arg3[%c0, %c0_0] : memref<1x128xf32, #tpu.memory_space<vmem>>, vector<1x128xf32>
    %cst = arith.constant 0.000000e+00 : f32
    %1 = vector.broadcast %cst : f32 to vector<4x128xf32>
    %c0_1 = arith.constant 0 : index
    %c0_2 = arith.constant 0 : index
    %c0_3 = arith.constant 0 : index
    %c0_4 = arith.constant 0 : index
    %c0_5 = arith.constant 0 : index
    %2 = vector.load %arg1[%c0_1, %c0_2, %c0_3, %c0_4, %c0_5] : memref<1x5x2x5x8xbf16, #tpu.memory_space<vmem>>, vector<1x1x1x4x4xbf16>
    %3 = vector.shape_cast %2 : vector<1x1x1x4x4xbf16> to vector<4x4xbf16>
    %c0_6 = arith.constant 0 : index
    %c0_7 = arith.constant 0 : index
    %4 = vector.load %arg2[%c0_6, %c0_7] : memref<36x128xbf16, #tpu.memory_space<vmem>>, vector<4x128xbf16>
    %cst_8 = arith.constant dense<0.000000e+00> : vector<4x128xf32>
    %5 = tpu.matmul %3, %4, %cst_8 {dimension_numbers = #tpu.dot_dimension_numbers<[1], [0], [0], [1], [0, 0, 1, 1], [], []>} : vector<4x4xbf16>, vector<4x128xbf16>, vector<4x128xf32> -> vector<4x128xf32>
    %6 = arith.addf %1, %5 : vector<4x128xf32>
    %c0_9 = arith.constant 0 : index
    %c0_10 = arith.constant 0 : index
    %c0_11 = arith.constant 0 : index
    %c0_12 = arith.constant 0 : index
    %c4 = arith.constant 4 : index
    %7 = vector.load %arg1[%c0_9, %c0_10, %c0_11, %c0_12, %c4] : memref<1x5x2x5x8xbf16, #tpu.memory_space<vmem>>, vector<1x1x1x4x4xbf16>
    %8 = vector.shape_cast %7 : vector<1x1x1x4x4xbf16> to vector<4x4xbf16>
    %c4_13 = arith.constant 4 : index
    %c0_14 = arith.constant 0 : index
    %9 = vector.load %arg2[%c4_13, %c0_14] : memref<36x128xbf16, #tpu.memory_space<vmem>>, vector<4x128xbf16>
    %cst_15 = arith.constant dense<0.000000e+00> : vector<4x128xf32>
    %10 = tpu.matmul %8, %9, %cst_15 {dimension_numbers = #tpu.dot_dimension_numbers<[1], [0], [0], [1], [0, 0, 1, 1], [], []>} : vector<4x4xbf16>, vector<4x128xbf16>, vector<4x128xf32> -> vector<4x128xf32>
    %11 = arith.addf %6, %10 : vector<4x128xf32>
    %c0_16 = arith.constant 0 : index
    %c0_17 = arith.constant 0 : index
    %c0_18 = arith.constant 0 : index
    %c1 = arith.constant 1 : index
    %c0_19 = arith.constant 0 : index
    %12 = vector.load %arg1[%c0_16, %c0_17, %c0_18, %c1, %c0_19] : memref<1x5x2x5x8xbf16, #tpu.memory_space<vmem>>, vector<1x1x1x4x4xbf16>
    %13 = vector.shape_cast %12 : vector<1x1x1x4x4xbf16> to vector<4x4xbf16>
    %c8 = arith.constant 8 : index
    %c0_20 = arith.constant 0 : index
    %14 = vector.load %arg2[%c8, %c0_20] : memref<36x128xbf16, #tpu.memory_space<vmem>>, vector<4x128xbf16>
    %cst_21 = arith.constant dense<0.000000e+00> : vector<4x128xf32>
    %15 = tpu.matmul %13, %14, %cst_21 {dimension_numbers = #tpu.dot_dimension_numbers<[1], [0], [0], [1], [0, 0, 1, 1], [], []>} : vector<4x4xbf16>, vector<4x128xbf16>, vector<4x128xf32> -> vector<4x128xf32>
    %16 = arith.addf %11, %15 : vector<4x128xf32>
    %c0_22 = arith.constant 0 : index
    %c0_23 = arith.constant 0 : index
    %c1_24 = arith.constant 1 : index
    %c0_25 = arith.constant 0 : index
    %c0_26 = arith.constant 0 : index
    %17 = vector.load %arg1[%c0_22, %c0_23, %c1_24, %c0_25, %c0_26] : memref<1x5x2x5x8xbf16, #tpu.memory_space<vmem>>, vector<1x1x1x4x4xbf16>
    %18 = vector.shape_cast %17 : vector<1x1x1x4x4xbf16> to vector<4x4xbf16>
    %c12 = arith.constant 12 : index
    %c0_27 = arith.constant 0 : index
    %19 = vector.load %arg2[%c12, %c0_27] : memref<36x128xbf16, #tpu.memory_space<vmem>>, vector<4x128xbf16>
    %cst_28 = arith.constant dense<0.000000e+00> : vector<4x128xf32>
    %20 = tpu.matmul %18, %19, %cst_28 {dimension_numbers = #tpu.dot_dimension_numbers<[1], [0], [0], [1], [0, 0, 1, 1], [], []>} : vector<4x4xbf16>, vector<4x128xbf16>, vector<4x128xf32> -> vector<4x128xf32>
    %21 = arith.addf %16, %20 : vector<4x128xf32>
    %c0_29 = arith.constant 0 : index
    %c0_30 = arith.constant 0 : index
    %c1_31 = arith.constant 1 : index
    %c0_32 = arith.constant 0 : index
    %c4_33 = arith.constant 4 : index
    %22 = vector.load %arg1[%c0_29, %c0_30, %c1_31, %c0_32, %c4_33] : memref<1x5x2x5x8xbf16, #tpu.memory_space<vmem>>, vector<1x1x1x4x4xbf16>
    %23 = vector.shape_cast %22 : vector<1x1x1x4x4xbf16> to vector<4x4xbf16>
    %c16 = arith.constant 16 : index
    %c0_34 = arith.constant 0 : index
    %24 = vector.load %arg2[%c16, %c0_34] : memref<36x128xbf16, #tpu.memory_space<vmem>>, vector<4x128xbf16>
    %cst_35 = arith.constant dense<0.000000e+00> : vector<4x128xf32>
    %25 = tpu.matmul %23, %24, %cst_35 {dimension_numbers = #tpu.dot_dimension_numbers<[1], [0], [0], [1], [0, 0, 1, 1], [], []>} : vector<4x4xbf16>, vector<4x128xbf16>, vector<4x128xf32> -> vector<4x128xf32>
    %26 = arith.addf %21, %25 : vector<4x128xf32>
    %c0_36 = arith.constant 0 : index
    %c0_37 = arith.constant 0 : index
    %c1_38 = arith.constant 1 : index
    %c1_39 = arith.constant 1 : index
    %c0_40 = arith.constant 0 : index
    %27 = vector.load %arg1[%c0_36, %c0_37, %c1_38, %c1_39, %c0_40] : memref<1x5x2x5x8xbf16, #tpu.memory_space<vmem>>, vector<1x1x1x4x4xbf16>
    %28 = vector.shape_cast %27 : vector<1x1x1x4x4xbf16> to vector<4x4xbf16>
    %c20 = arith.constant 20 : index
    %c0_41 = arith.constant 0 : index
    %29 = vector.load %arg2[%c20, %c0_41] : memref<36x128xbf16, #tpu.memory_space<vmem>>, vector<4x128xbf16>
    %cst_42 = arith.constant dense<0.000000e+00> : vector<4x128xf32>
    %30 = tpu.matmul %28, %29, %cst_42 {dimension_numbers = #tpu.dot_dimension_numbers<[1], [0], [0], [1], [0, 0, 1, 1], [], []>} : vector<4x4xbf16>, vector<4x128xbf16>, vector<4x128xf32> -> vector<4x128xf32>
    %31 = arith.addf %26, %30 : vector<4x128xf32>
    %c0_43 = arith.constant 0 : index
    %c1_44 = arith.constant 1 : index
    %c0_45 = arith.constant 0 : index
    %c0_46 = arith.constant 0 : index
    %c0_47 = arith.constant 0 : index
    %32 = vector.load %arg1[%c0_43, %c1_44, %c0_45, %c0_46, %c0_47] : memref<1x5x2x5x8xbf16, #tpu.memory_space<vmem>>, vector<1x1x1x4x4xbf16>
    %33 = vector.shape_cast %32 : vector<1x1x1x4x4xbf16> to vector<4x4xbf16>
    %c24 = arith.constant 24 : index
    %c0_48 = arith.constant 0 : index
    %34 = vector.load %arg2[%c24, %c0_48] : memref<36x128xbf16, #tpu.memory_space<vmem>>, vector<4x128xbf16>
    %cst_49 = arith.constant dense<0.000000e+00> : vector<4x128xf32>
    %35 = tpu.matmul %33, %34, %cst_49 {dimension_numbers = #tpu.dot_dimension_numbers<[1], [0], [0], [1], [0, 0, 1, 1], [], []>} : vector<4x4xbf16>, vector<4x128xbf16>, vector<4x128xf32> -> vector<4x128xf32>
    %36 = arith.addf %31, %35 : vector<4x128xf32>
    %c0_50 = arith.constant 0 : index
    %c1_51 = arith.constant 1 : index
    %c0_52 = arith.constant 0 : index
    %c0_53 = arith.constant 0 : index
    %c4_54 = arith.constant 4 : index
    %37 = vector.load %arg1[%c0_50, %c1_51, %c0_52, %c0_53, %c4_54] : memref<1x5x2x5x8xbf16, #tpu.memory_space<vmem>>, vector<1x1x1x4x4xbf16>
    %38 = vector.shape_cast %37 : vector<1x1x1x4x4xbf16> to vector<4x4xbf16>
    %c28 = arith.constant 28 : index
    %c0_55 = arith.constant 0 : index
    %39 = vector.load %arg2[%c28, %c0_55] : memref<36x128xbf16, #tpu.memory_space<vmem>>, vector<4x128xbf16>
    %cst_56 = arith.constant dense<0.000000e+00> : vector<4x128xf32>
    %40 = tpu.matmul %38, %39, %cst_56 {dimension_numbers = #tpu.dot_dimension_numbers<[1], [0], [0], [1], [0, 0, 1, 1], [], []>} : vector<4x4xbf16>, vector<4x128xbf16>, vector<4x128xf32> -> vector<4x128xf32>
    %41 = arith.addf %36, %40 : vector<4x128xf32>
    %c0_57 = arith.constant 0 : index
    %c1_58 = arith.constant 1 : index
    %c0_59 = arith.constant 0 : index
    %c1_60 = arith.constant 1 : index
    %c0_61 = arith.constant 0 : index
    %42 = vector.load %arg1[%c0_57, %c1_58, %c0_59, %c1_60, %c0_61] : memref<1x5x2x5x8xbf16, #tpu.memory_space<vmem>>, vector<1x1x1x4x4xbf16>
    %43 = vector.shape_cast %42 : vector<1x1x1x4x4xbf16> to vector<4x4xbf16>
    %c32 = arith.constant 32 : index
    %c0_62 = arith.constant 0 : index
    %44 = vector.load %arg2[%c32, %c0_62] : memref<36x128xbf16, #tpu.memory_space<vmem>>, vector<4x128xbf16>
    %cst_63 = arith.constant dense<0.000000e+00> : vector<4x128xf32>
    %45 = tpu.matmul %43, %44, %cst_63 {dimension_numbers = #tpu.dot_dimension_numbers<[1], [0], [0], [1], [0, 0, 1, 1], [], []>} : vector<4x4xbf16>, vector<4x128xbf16>, vector<4x128xf32> -> vector<4x128xf32>
    %46 = arith.addf %41, %45 : vector<4x128xf32>
    %47 = vector.broadcast %0 : vector<1x128xf32> to vector<4x128xf32>
    %48 = arith.addf %46, %47 : vector<4x128xf32>
    %cst_64 = arith.constant 0.000000e+00 : f32
    %49 = vector.broadcast %cst_64 : f32 to vector<4x128xf32>
    %50 = arith.maximumf %48, %49 : vector<4x128xf32>
    %c0_65 = arith.constant 0 : index
    %c0_66 = arith.constant 0 : index
    %c0_67 = arith.constant 0 : index
    %c0_68 = arith.constant 0 : index
    %51 = vector.load %arg4[%c0_65, %c0_66, %c0_67, %c0_68] : memref<1x4x4x128xf32, #tpu.memory_space<vmem>>, vector<1x1x4x128xf32>
    %52 = vector.shape_cast %51 : vector<1x1x4x128xf32> to vector<4x128xf32>
    %53 = vector.shape_cast %50 : vector<4x128xf32> to vector<1x1x4x128xf32>
    tpu.vector_store %arg4[%c0_65, %c0_66, %c0_67, %c0_68], %53 {strides = array<i32>} : memref<1x4x4x128xf32, #tpu.memory_space<vmem>>, vector<1x1x4x128xf32>,
    %cst_69 = arith.constant 0.000000e+00 : f32
    %54 = vector.broadcast %cst_69 : f32 to vector<4x128xf32>
    %c0_70 = arith.constant 0 : index
    %c1_71 = arith.constant 1 : index
    %c0_72 = arith.constant 0 : index
    %c0_73 = arith.constant 0 : index
    %c0_74 = arith.constant 0 : index
    %55 = vector.load %arg1[%c0_70, %c1_71, %c0_72, %c0_73, %c0_74] : memref<1x5x2x5x8xbf16, #tpu.memory_space<vmem>>, vector<1x1x1x4x4xbf16>
    %56 = vector.shape_cast %55 : vector<1x1x1x4x4xbf16> to vector<4x4xbf16>
    %c0_75 = arith.constant 0 : index
    %c0_76 = arith.constant 0 : index
    %57 = vector.load %arg2[%c0_75, %c0_76] : memref<36x128xbf16, #tpu.memory_space<vmem>>, vector<4x128xbf16>
    %cst_77 = arith.constant dense<0.000000e+00> : vector<4x128xf32>
    %58 = tpu.matmul %56, %57, %cst_77 {dimension_numbers = #tpu.dot_dimension_numbers<[1], [0], [0], [1], [0, 0, 1, 1], [], []>} : vector<4x4xbf16>, vector<4x128xbf16>, vector<4x128xf32> -> vector<4x128xf32>
    %59 = arith.addf %54, %58 : vector<4x128xf32>
    %c0_78 = arith.constant 0 : index
    %c1_79 = arith.constant 1 : index
    %c0_80 = arith.constant 0 : index
    %c0_81 = arith.constant 0 : index
    %c4_82 = arith.constant 4 : index
    %60 = vector.load %arg1[%c0_78, %c1_79, %c0_80, %c0_81, %c4_82] : memref<1x5x2x5x8xbf16, #tpu.memory_space<vmem>>, vector<1x1x1x4x4xbf16>
    %61 = vector.shape_cast %60 : vector<1x1x1x4x4xbf16> to vector<4x4xbf16>
    %c4_83 = arith.constant 4 : index
    %c0_84 = arith.constant 0 : index
    %62 = vector.load %arg2[%c4_83, %c0_84] : memref<36x128xbf16, #tpu.memory_space<vmem>>, vector<4x128xbf16>
    %cst_85 = arith.constant dense<0.000000e+00> : vector<4x128xf32>
    %63 = tpu.matmul %61, %62, %cst_85 {dimension_numbers = #tpu.dot_dimension_numbers<[1], [0], [0], [1], [0, 0, 1, 1], [], []>} : vector<4x4xbf16>, vector<4x128xbf16>, vector<4x128xf32> -> vector<4x128xf32>
    %64 = arith.addf %59, %63 : vector<4x128xf32>
    %c0_86 = arith.constant 0 : index
    %c1_87 = arith.constant 1 : index
    %c0_88 = arith.constant 0 : index
    %c1_89 = arith.constant 1 : index
    %c0_90 = arith.constant 0 : index
    %65 = vector.load %arg1[%c0_86, %c1_87, %c0_88, %c1_89, %c0_90] : memref<1x5x2x5x8xbf16, #tpu.memory_space<vmem>>, vector<1x1x1x4x4xbf16>
    %66 = vector.shape_cast %65 : vector<1x1x1x4x4xbf16> to vector<4x4xbf16>
    %c8_91 = arith.constant 8 : index
    %c0_92 = arith.constant 0 : index
    %67 = vector.load %arg2[%c8_91, %c0_92] : memref<36x128xbf16, #tpu.memory_space<vmem>>, vector<4x128xbf16>
    %cst_93 = arith.constant dense<0.000000e+00> : vector<4x128xf32>
    %68 = tpu.matmul %66, %67, %cst_93 {dimension_numbers = #tpu.dot_dimension_numbers<[1], [0], [0], [1], [0, 0, 1, 1], [], []>} : vector<4x4xbf16>, vector<4x128xbf16>, vector<4x128xf32> -> vector<4x128xf32>
    %69 = arith.addf %64, %68 : vector<4x128xf32>
    %c0_94 = arith.constant 0 : index
    %c1_95 = arith.constant 1 : index
    %c1_96 = arith.constant 1 : index
    %c0_97 = arith.constant 0 : index
    %c0_98 = arith.constant 0 : index
    %70 = vector.load %arg1[%c0_94, %c1_95, %c1_96, %c0_97, %c0_98] : memref<1x5x2x5x8xbf16, #tpu.memory_space<vmem>>, vector<1x1x1x4x4xbf16>
    %71 = vector.shape_cast %70 : vector<1x1x1x4x4xbf16> to vector<4x4xbf16>
    %c12_99 = arith.constant 12 : index
    %c0_100 = arith.constant 0 : index
    %72 = vector.load %arg2[%c12_99, %c0_100] : memref<36x128xbf16, #tpu.memory_space<vmem>>, vector<4x128xbf16>
    %cst_101 = arith.constant dense<0.000000e+00> : vector<4x128xf32>
    %73 = tpu.matmul %71, %72, %cst_101 {dimension_numbers = #tpu.dot_dimension_numbers<[1], [0], [0], [1], [0, 0, 1, 1], [], []>} : vector<4x4xbf16>, vector<4x128xbf16>, vector<4x128xf32> -> vector<4x128xf32>
    %74 = arith.addf %69, %73 : vector<4x128xf32>
    %c0_102 = arith.constant 0 : index
    %c1_103 = arith.constant 1 : index
    %c1_104 = arith.constant 1 : index
    %c0_105 = arith.constant 0 : index
    %c4_106 = arith.constant 4 : index
    %75 = vector.load %arg1[%c0_102, %c1_103, %c1_104, %c0_105, %c4_106] : memref<1x5x2x5x8xbf16, #tpu.memory_space<vmem>>, vector<1x1x1x4x4xbf16>
    %76 = vector.shape_cast %75 : vector<1x1x1x4x4xbf16> to vector<4x4xbf16>
    %c16_107 = arith.constant 16 : index
    %c0_108 = arith.constant 0 : index
    %77 = vector.load %arg2[%c16_107, %c0_108] : memref<36x128xbf16, #tpu.memory_space<vmem>>, vector<4x128xbf16>
    %cst_109 = arith.constant dense<0.000000e+00> : vector<4x128xf32>
    %78 = tpu.matmul %76, %77, %cst_109 {dimension_numbers = #tpu.dot_dimension_numbers<[1], [0], [0], [1], [0, 0, 1, 1], [], []>} : vector<4x4xbf16>, vector<4x128xbf16>, vector<4x128xf32> -> vector<4x128xf32>
    %79 = arith.addf %74, %78 : vector<4x128xf32>
    %c0_110 = arith.constant 0 : index
    %c1_111 = arith.constant 1 : index
    %c1_112 = arith.constant 1 : index
    %c1_113 = arith.constant 1 : index
    %c0_114 = arith.constant 0 : index
    %80 = vector.load %arg1[%c0_110, %c1_111, %c1_112, %c1_113, %c0_114] : memref<1x5x2x5x8xbf16, #tpu.memory_space<vmem>>, vector<1x1x1x4x4xbf16>
    %81 = vector.shape_cast %80 : vector<1x1x1x4x4xbf16> to vector<4x4xbf16>
    %c20_115 = arith.constant 20 : index
    %c0_116 = arith.constant 0 : index
    %82 = vector.load %arg2[%c20_115, %c0_116] : memref<36x128xbf16, #tpu.memory_space<vmem>>, vector<4x128xbf16>
    %cst_117 = arith.constant dense<0.000000e+00> : vector<4x128xf32>
    %83 = tpu.matmul %81, %82, %cst_117 {dimension_numbers = #tpu.dot_dimension_numbers<[1], [0], [0], [1], [0, 0, 1, 1], [], []>} : vector<4x4xbf16>, vector<4x128xbf16>, vector<4x128xf32> -> vector<4x128xf32>
    %84 = arith.addf %79, %83 : vector<4x128xf32>
    %c0_118 = arith.constant 0 : index
    %c2 = arith.constant 2 : index
    %c0_119 = arith.constant 0 : index
    %c0_120 = arith.constant 0 : index
    %c0_121 = arith.constant 0 : index
    %85 = vector.load %arg1[%c0_118, %c2, %c0_119, %c0_120, %c0_121] : memref<1x5x2x5x8xbf16, #tpu.memory_space<vmem>>, vector<1x1x1x4x4xbf16>
    %86 = vector.shape_cast %85 : vector<1x1x1x4x4xbf16> to vector<4x4xbf16>
    %c24_122 = arith.constant 24 : index
    %c0_123 = arith.constant 0 : index
    %87 = vector.load %arg2[%c24_122, %c0_123] : memref<36x128xbf16, #tpu.memory_space<vmem>>, vector<4x128xbf16>
    %cst_124 = arith.constant dense<0.000000e+00> : vector<4x128xf32>
    %88 = tpu.matmul %86, %87, %cst_124 {dimension_numbers = #tpu.dot_dimension_numbers<[1], [0], [0], [1], [0, 0, 1, 1], [], []>} : vector<4x4xbf16>, vector<4x128xbf16>, vector<4x128xf32> -> vector<4x128xf32>
    %89 = arith.addf %84, %88 : vector<4x128xf32>
    %c0_125 = arith.constant 0 : index
    %c2_126 = arith.constant 2 : index
    %c0_127 = arith.constant 0 : index
    %c0_128 = arith.constant 0 : index
    %c4_129 = arith.constant 4 : index
    %90 = vector.load %arg1[%c0_125, %c2_126, %c0_127, %c0_128, %c4_129] : memref<1x5x2x5x8xbf16, #tpu.memory_space<vmem>>, vector<1x1x1x4x4xbf16>
    %91 = vector.shape_cast %90 : vector<1x1x1x4x4xbf16> to vector<4x4xbf16>
    %c28_130 = arith.constant 28 : index
    %c0_131 = arith.constant 0 : index
    %92 = vector.load %arg2[%c28_130, %c0_131] : memref<36x128xbf16, #tpu.memory_space<vmem>>, vector<4x128xbf16>
    %cst_132 = arith.constant dense<0.000000e+00> : vector<4x128xf32>
    %93 = tpu.matmul %91, %92, %cst_132 {dimension_numbers = #tpu.dot_dimension_numbers<[1], [0], [0], [1], [0, 0, 1, 1], [], []>} : vector<4x4xbf16>, vector<4x128xbf16>, vector<4x128xf32> -> vector<4x128xf32>
    %94 = arith.addf %89, %93 : vector<4x128xf32>
    %c0_133 = arith.constant 0 : index
    %c2_134 = arith.constant 2 : index
    %c0_135 = arith.constant 0 : index
    %c1_136 = arith.constant 1 : index
    %c0_137 = arith.constant 0 : index
    %95 = vector.load %arg1[%c0_133, %c2_134, %c0_135, %c1_136, %c0_137] : memref<1x5x2x5x8xbf16, #tpu.memory_space<vmem>>, vector<1x1x1x4x4xbf16>
    %96 = vector.shape_cast %95 : vector<1x1x1x4x4xbf16> to vector<4x4xbf16>
    %c32_138 = arith.constant 32 : index
    %c0_139 = arith.constant 0 : index
    %97 = vector.load %arg2[%c32_138, %c0_139] : memref<36x128xbf16, #tpu.memory_space<vmem>>, vector<4x128xbf16>
    %cst_140 = arith.constant dense<0.000000e+00> : vector<4x128xf32>
    %98 = tpu.matmul %96, %97, %cst_140 {dimension_numbers = #tpu.dot_dimension_numbers<[1], [0], [0], [1], [0, 0, 1, 1], [], []>} : vector<4x4xbf16>, vector<4x128xbf16>, vector<4x128xf32> -> vector<4x128xf32>
    %99 = arith.addf %94, %98 : vector<4x128xf32>
    %100 = vector.broadcast %0 : vector<1x128xf32> to vector<4x128xf32>
    %101 = arith.addf %99, %100 : vector<4x128xf32>
    %cst_141 = arith.constant 0.000000e+00 : f32
    %102 = vector.broadcast %cst_141 : f32 to vector<4x128xf32>
    %103 = arith.maximumf %101, %102 : vector<4x128xf32>
    %c0_142 = arith.constant 0 : index
    %c1_143 = arith.constant 1 : index
    %c0_144 = arith.constant 0 : index
    %c0_145 = arith.constant 0 : index
    %104 = vector.load %arg4[%c0_142, %c1_143, %c0_144, %c0_145] : memref<1x4x4x128xf32, #tpu.memory_space<vmem>>, vector<1x1x4x128xf32>
    %105 = vector.shape_cast %104 : vector<1x1x4x128xf32> to vector<4x128xf32>
    %106 = vector.shape_cast %103 : vector<4x128xf32> to vector<1x1x4x128xf32>
    tpu.vector_store %arg4[%c0_142, %c1_143, %c0_144, %c0_145], %106 {strides = array<i32>} : memref<1x4x4x128xf32, #tpu.memory_space<vmem>>, vector<1x1x4x128xf32>,
    %cst_146 = arith.constant 0.000000e+00 : f32
    %107 = vector.broadcast %cst_146 : f32 to vector<4x128xf32>
    %c0_147 = arith.constant 0 : index
    %c2_148 = arith.constant 2 : index
    %c0_149 = arith.constant 0 : index
    %c0_150 = arith.constant 0 : index
    %c0_151 = arith.constant 0 : index
    %108 = vector.load %arg1[%c0_147, %c2_148, %c0_149, %c0_150, %c0_151] : memref<1x5x2x5x8xbf16, #tpu.memory_space<vmem>>, vector<1x1x1x4x4xbf16>
    %109 = vector.shape_cast %108 : vector<1x1x1x4x4xbf16> to vector<4x4xbf16>
    %c0_152 = arith.constant 0 : index
    %c0_153 = arith.constant 0 : index
    %110 = vector.load %arg2[%c0_152, %c0_153] : memref<36x128xbf16, #tpu.memory_space<vmem>>, vector<4x128xbf16>
    %cst_154 = arith.constant dense<0.000000e+00> : vector<4x128xf32>
    %111 = tpu.matmul %109, %110, %cst_154 {dimension_numbers = #tpu.dot_dimension_numbers<[1], [0], [0], [1], [0, 0, 1, 1], [], []>} : vector<4x4xbf16>, vector<4x128xbf16>, vector<4x128xf32> -> vector<4x128xf32>
    %112 = arith.addf %107, %111 : vector<4x128xf32>
    %c0_155 = arith.constant 0 : index
    %c2_156 = arith.constant 2 : index
    %c0_157 = arith.constant 0 : index
    %c0_158 = arith.constant 0 : index
    %c4_159 = arith.constant 4 : index
    %113 = vector.load %arg1[%c0_155, %c2_156, %c0_157, %c0_158, %c4_159] : memref<1x5x2x5x8xbf16, #tpu.memory_space<vmem>>, vector<1x1x1x4x4xbf16>
    %114 = vector.shape_cast %113 : vector<1x1x1x4x4xbf16> to vector<4x4xbf16>
    %c4_160 = arith.constant 4 : index
    %c0_161 = arith.constant 0 : index
    %115 = vector.load %arg2[%c4_160, %c0_161] : memref<36x128xbf16, #tpu.memory_space<vmem>>, vector<4x128xbf16>
    %cst_162 = arith.constant dense<0.000000e+00> : vector<4x128xf32>
    %116 = tpu.matmul %114, %115, %cst_162 {dimension_numbers = #tpu.dot_dimension_numbers<[1], [0], [0], [1], [0, 0, 1, 1], [], []>} : vector<4x4xbf16>, vector<4x128xbf16>, vector<4x128xf32> -> vector<4x128xf32>
    %117 = arith.addf %112, %116 : vector<4x128xf32>
    %c0_163 = arith.constant 0 : index
    %c2_164 = arith.constant 2 : index
    %c0_165 = arith.constant 0 : index
    %c1_166 = arith.constant 1 : index
    %c0_167 = arith.constant 0 : index
    %118 = vector.load %arg1[%c0_163, %c2_164, %c0_165, %c1_166, %c0_167] : memref<1x5x2x5x8xbf16, #tpu.memory_space<vmem>>, vector<1x1x1x4x4xbf16>
    %119 = vector.shape_cast %118 : vector<1x1x1x4x4xbf16> to vector<4x4xbf16>
    %c8_168 = arith.constant 8 : index
    %c0_169 = arith.constant 0 : index
    %120 = vector.load %arg2[%c8_168, %c0_169] : memref<36x128xbf16, #tpu.memory_space<vmem>>, vector<4x128xbf16>
    %cst_170 = arith.constant dense<0.000000e+00> : vector<4x128xf32>
    %121 = tpu.matmul %119, %120, %cst_170 {dimension_numbers = #tpu.dot_dimension_numbers<[1], [0], [0], [1], [0, 0, 1, 1], [], []>} : vector<4x4xbf16>, vector<4x128xbf16>, vector<4x128xf32> -> vector<4x128xf32>
    %122 = arith.addf %117, %121 : vector<4x128xf32>
    %c0_171 = arith.constant 0 : index
    %c2_172 = arith.constant 2 : index
    %c1_173 = arith.constant 1 : index
    %c0_174 = arith.constant 0 : index
    %c0_175 = arith.constant 0 : index
    %123 = vector.load %arg1[%c0_171, %c2_172, %c1_173, %c0_174, %c0_175] : memref<1x5x2x5x8xbf16, #tpu.memory_space<vmem>>, vector<1x1x1x4x4xbf16>
    %124 = vector.shape_cast %123 : vector<1x1x1x4x4xbf16> to vector<4x4xbf16>
    %c12_176 = arith.constant 12 : index
    %c0_177 = arith.constant 0 : index
    %125 = vector.load %arg2[%c12_176, %c0_177] : memref<36x128xbf16, #tpu.memory_space<vmem>>, vector<4x128xbf16>
    %cst_178 = arith.constant dense<0.000000e+00> : vector<4x128xf32>
    %126 = tpu.matmul %124, %125, %cst_178 {dimension_numbers = #tpu.dot_dimension_numbers<[1], [0], [0], [1], [0, 0, 1, 1], [], []>} : vector<4x4xbf16>, vector<4x128xbf16>, vector<4x128xf32> -> vector<4x128xf32>
    %127 = arith.addf %122, %126 : vector<4x128xf32>
    %c0_179 = arith.constant 0 : index
    %c2_180 = arith.constant 2 : index
    %c1_181 = arith.constant 1 : index
    %c0_182 = arith.constant 0 : index
    %c4_183 = arith.constant 4 : index
    %128 = vector.load %arg1[%c0_179, %c2_180, %c1_181, %c0_182, %c4_183] : memref<1x5x2x5x8xbf16, #tpu.memory_space<vmem>>, vector<1x1x1x4x4xbf16>
    %129 = vector.shape_cast %128 : vector<1x1x1x4x4xbf16> to vector<4x4xbf16>
    %c16_184 = arith.constant 16 : index
    %c0_185 = arith.constant 0 : index
    %130 = vector.load %arg2[%c16_184, %c0_185] : memref<36x128xbf16, #tpu.memory_space<vmem>>, vector<4x128xbf16>
    %cst_186 = arith.constant dense<0.000000e+00> : vector<4x128xf32>
    %131 = tpu.matmul %129, %130, %cst_186 {dimension_numbers = #tpu.dot_dimension_numbers<[1], [0], [0], [1], [0, 0, 1, 1], [], []>} : vector<4x4xbf16>, vector<4x128xbf16>, vector<4x128xf32> -> vector<4x128xf32>
    %132 = arith.addf %127, %131 : vector<4x128xf32>
    %c0_187 = arith.constant 0 : index
    %c2_188 = arith.constant 2 : index
    %c1_189 = arith.constant 1 : index
    %c1_190 = arith.constant 1 : index
    %c0_191 = arith.constant 0 : index
    %133 = vector.load %arg1[%c0_187, %c2_188, %c1_189, %c1_190, %c0_191] : memref<1x5x2x5x8xbf16, #tpu.memory_space<vmem>>, vector<1x1x1x4x4xbf16>
    %134 = vector.shape_cast %133 : vector<1x1x1x4x4xbf16> to vector<4x4xbf16>
    %c20_192 = arith.constant 20 : index
    %c0_193 = arith.constant 0 : index
    %135 = vector.load %arg2[%c20_192, %c0_193] : memref<36x128xbf16, #tpu.memory_space<vmem>>, vector<4x128xbf16>
    %cst_194 = arith.constant dense<0.000000e+00> : vector<4x128xf32>
    %136 = tpu.matmul %134, %135, %cst_194 {dimension_numbers = #tpu.dot_dimension_numbers<[1], [0], [0], [1], [0, 0, 1, 1], [], []>} : vector<4x4xbf16>, vector<4x128xbf16>, vector<4x128xf32> -> vector<4x128xf32>
    %137 = arith.addf %132, %136 : vector<4x128xf32>
    %c0_195 = arith.constant 0 : index
    %c3 = arith.constant 3 : index
    %c0_196 = arith.constant 0 : index
    %c0_197 = arith.constant 0 : index
    %c0_198 = arith.constant 0 : index
    %138 = vector.load %arg1[%c0_195, %c3, %c0_196, %c0_197, %c0_198] : memref<1x5x2x5x8xbf16, #tpu.memory_space<vmem>>, vector<1x1x1x4x4xbf16>
    %139 = vector.shape_cast %138 : vector<1x1x1x4x4xbf16> to vector<4x4xbf16>
    %c24_199 = arith.constant 24 : index
    %c0_200 = arith.constant 0 : index
    %140 = vector.load %arg2[%c24_199, %c0_200] : memref<36x128xbf16, #tpu.memory_space<vmem>>, vector<4x128xbf16>
    %cst_201 = arith.constant dense<0.000000e+00> : vector<4x128xf32>
    %141 = tpu.matmul %139, %140, %cst_201 {dimension_numbers = #tpu.dot_dimension_numbers<[1], [0], [0], [1], [0, 0, 1, 1], [], []>} : vector<4x4xbf16>, vector<4x128xbf16>, vector<4x128xf32> -> vector<4x128xf32>
    %142 = arith.addf %137, %141 : vector<4x128xf32>
    %c0_202 = arith.constant 0 : index
    %c3_203 = arith.constant 3 : index
    %c0_204 = arith.constant 0 : index
    %c0_205 = arith.constant 0 : index
    %c4_206 = arith.constant 4 : index
    %143 = vector.load %arg1[%c0_202, %c3_203, %c0_204, %c0_205, %c4_206] : memref<1x5x2x5x8xbf16, #tpu.memory_space<vmem>>, vector<1x1x1x4x4xbf16>
    %144 = vector.shape_cast %143 : vector<1x1x1x4x4xbf16> to vector<4x4xbf16>
    %c28_207 = arith.constant 28 : index
    %c0_208 = arith.constant 0 : index
    %145 = vector.load %arg2[%c28_207, %c0_208] : memref<36x128xbf16, #tpu.memory_space<vmem>>, vector<4x128xbf16>
    %cst_209 = arith.constant dense<0.000000e+00> : vector<4x128xf32>
    %146 = tpu.matmul %144, %145, %cst_209 {dimension_numbers = #tpu.dot_dimension_numbers<[1], [0], [0], [1], [0, 0, 1, 1], [], []>} : vector<4x4xbf16>, vector<4x128xbf16>, vector<4x128xf32> -> vector<4x128xf32>
    %147 = arith.addf %142, %146 : vector<4x128xf32>
    %c0_210 = arith.constant 0 : index
    %c3_211 = arith.constant 3 : index
    %c0_212 = arith.constant 0 : index
    %c1_213 = arith.constant 1 : index
    %c0_214 = arith.constant 0 : index
    %148 = vector.load %arg1[%c0_210, %c3_211, %c0_212, %c1_213, %c0_214] : memref<1x5x2x5x8xbf16, #tpu.memory_space<vmem>>, vector<1x1x1x4x4xbf16>
    %149 = vector.shape_cast %148 : vector<1x1x1x4x4xbf16> to vector<4x4xbf16>
    %c32_215 = arith.constant 32 : index
    %c0_216 = arith.constant 0 : index
    %150 = vector.load %arg2[%c32_215, %c0_216] : memref<36x128xbf16, #tpu.memory_space<vmem>>, vector<4x128xbf16>
    %cst_217 = arith.constant dense<0.000000e+00> : vector<4x128xf32>
    %151 = tpu.matmul %149, %150, %cst_217 {dimension_numbers = #tpu.dot_dimension_numbers<[1], [0], [0], [1], [0, 0, 1, 1], [], []>} : vector<4x4xbf16>, vector<4x128xbf16>, vector<4x128xf32> -> vector<4x128xf32>
    %152 = arith.addf %147, %151 : vector<4x128xf32>
    %153 = vector.broadcast %0 : vector<1x128xf32> to vector<4x128xf32>
    %154 = arith.addf %152, %153 : vector<4x128xf32>
    %cst_218 = arith.constant 0.000000e+00 : f32
    %155 = vector.broadcast %cst_218 : f32 to vector<4x128xf32>
    %156 = arith.maximumf %154, %155 : vector<4x128xf32>
    %c0_219 = arith.constant 0 : index
    %c2_220 = arith.constant 2 : index
    %c0_221 = arith.constant 0 : index
    %c0_222 = arith.constant 0 : index
    %157 = vector.load %arg4[%c0_219, %c2_220, %c0_221, %c0_222] : memref<1x4x4x128xf32, #tpu.memory_space<vmem>>, vector<1x1x4x128xf32>
    %158 = vector.shape_cast %157 : vector<1x1x4x128xf32> to vector<4x128xf32>
    %159 = vector.shape_cast %156 : vector<4x128xf32> to vector<1x1x4x128xf32>
    tpu.vector_store %arg4[%c0_219, %c2_220, %c0_221, %c0_222], %159 {strides = array<i32>} : memref<1x4x4x128xf32, #tpu.memory_space<vmem>>, vector<1x1x4x128xf32>,
    %cst_223 = arith.constant 0.000000e+00 : f32
    %160 = vector.broadcast %cst_223 : f32 to vector<4x128xf32>
    %c0_224 = arith.constant 0 : index
    %c3_225 = arith.constant 3 : index
    %c0_226 = arith.constant 0 : index
    %c0_227 = arith.constant 0 : index
    %c0_228 = arith.constant 0 : index
    %161 = vector.load %arg1[%c0_224, %c3_225, %c0_226, %c0_227, %c0_228] : memref<1x5x2x5x8xbf16, #tpu.memory_space<vmem>>, vector<1x1x1x4x4xbf16>
    %162 = vector.shape_cast %161 : vector<1x1x1x4x4xbf16> to vector<4x4xbf16>
    %c0_229 = arith.constant 0 : index
    %c0_230 = arith.constant 0 : index
    %163 = vector.load %arg2[%c0_229, %c0_230] : memref<36x128xbf16, #tpu.memory_space<vmem>>, vector<4x128xbf16>
    %cst_231 = arith.constant dense<0.000000e+00> : vector<4x128xf32>
    %164 = tpu.matmul %162, %163, %cst_231 {dimension_numbers = #tpu.dot_dimension_numbers<[1], [0], [0], [1], [0, 0, 1, 1], [], []>} : vector<4x4xbf16>, vector<4x128xbf16>, vector<4x128xf32> -> vector<4x128xf32>
    %165 = arith.addf %160, %164 : vector<4x128xf32>
    %c0_232 = arith.constant 0 : index
    %c3_233 = arith.constant 3 : index
    %c0_234 = arith.constant 0 : index
    %c0_235 = arith.constant 0 : index
    %c4_236 = arith.constant 4 : index
    %166 = vector.load %arg1[%c0_232, %c3_233, %c0_234, %c0_235, %c4_236] : memref<1x5x2x5x8xbf16, #tpu.memory_space<vmem>>, vector<1x1x1x4x4xbf16>
    %167 = vector.shape_cast %166 : vector<1x1x1x4x4xbf16> to vector<4x4xbf16>
    %c4_237 = arith.constant 4 : index
    %c0_238 = arith.constant 0 : index
    %168 = vector.load %arg2[%c4_237, %c0_238] : memref<36x128xbf16, #tpu.memory_space<vmem>>, vector<4x128xbf16>
    %cst_239 = arith.constant dense<0.000000e+00> : vector<4x128xf32>
    %169 = tpu.matmul %167, %168, %cst_239 {dimension_numbers = #tpu.dot_dimension_numbers<[1], [0], [0], [1], [0, 0, 1, 1], [], []>} : vector<4x4xbf16>, vector<4x128xbf16>, vector<4x128xf32> -> vector<4x128xf32>
    %170 = arith.addf %165, %169 : vector<4x128xf32>
    %c0_240 = arith.constant 0 : index
    %c3_241 = arith.constant 3 : index
    %c0_242 = arith.constant 0 : index
    %c1_243 = arith.constant 1 : index
    %c0_244 = arith.constant 0 : index
    %171 = vector.load %arg1[%c0_240, %c3_241, %c0_242, %c1_243, %c0_244] : memref<1x5x2x5x8xbf16, #tpu.memory_space<vmem>>, vector<1x1x1x4x4xbf16>
    %172 = vector.shape_cast %171 : vector<1x1x1x4x4xbf16> to vector<4x4xbf16>
    %c8_245 = arith.constant 8 : index
    %c0_246 = arith.constant 0 : index
    %173 = vector.load %arg2[%c8_245, %c0_246] : memref<36x128xbf16, #tpu.memory_space<vmem>>, vector<4x128xbf16>
    %cst_247 = arith.constant dense<0.000000e+00> : vector<4x128xf32>
    %174 = tpu.matmul %172, %173, %cst_247 {dimension_numbers = #tpu.dot_dimension_numbers<[1], [0], [0], [1], [0, 0, 1, 1], [], []>} : vector<4x4xbf16>, vector<4x128xbf16>, vector<4x128xf32> -> vector<4x128xf32>
    %175 = arith.addf %170, %174 : vector<4x128xf32>
    %c0_248 = arith.constant 0 : index
    %c3_249 = arith.constant 3 : index
    %c1_250 = arith.constant 1 : index
    %c0_251 = arith.constant 0 : index
    %c0_252 = arith.constant 0 : index
    %176 = vector.load %arg1[%c0_248, %c3_249, %c1_250, %c0_251, %c0_252] : memref<1x5x2x5x8xbf16, #tpu.memory_space<vmem>>, vector<1x1x1x4x4xbf16>
    %177 = vector.shape_cast %176 : vector<1x1x1x4x4xbf16> to vector<4x4xbf16>
    %c12_253 = arith.constant 12 : index
    %c0_254 = arith.constant 0 : index
    %178 = vector.load %arg2[%c12_253, %c0_254] : memref<36x128xbf16, #tpu.memory_space<vmem>>, vector<4x128xbf16>
    %cst_255 = arith.constant dense<0.000000e+00> : vector<4x128xf32>
    %179 = tpu.matmul %177, %178, %cst_255 {dimension_numbers = #tpu.dot_dimension_numbers<[1], [0], [0], [1], [0, 0, 1, 1], [], []>} : vector<4x4xbf16>, vector<4x128xbf16>, vector<4x128xf32> -> vector<4x128xf32>
    %180 = arith.addf %175, %179 : vector<4x128xf32>
    %c0_256 = arith.constant 0 : index
    %c3_257 = arith.constant 3 : index
    %c1_258 = arith.constant 1 : index
    %c0_259 = arith.constant 0 : index
    %c4_260 = arith.constant 4 : index
    %181 = vector.load %arg1[%c0_256, %c3_257, %c1_258, %c0_259, %c4_260] : memref<1x5x2x5x8xbf16, #tpu.memory_space<vmem>>, vector<1x1x1x4x4xbf16>
    %182 = vector.shape_cast %181 : vector<1x1x1x4x4xbf16> to vector<4x4xbf16>
    %c16_261 = arith.constant 16 : index
    %c0_262 = arith.constant 0 : index
    %183 = vector.load %arg2[%c16_261, %c0_262] : memref<36x128xbf16, #tpu.memory_space<vmem>>, vector<4x128xbf16>
    %cst_263 = arith.constant dense<0.000000e+00> : vector<4x128xf32>
    %184 = tpu.matmul %182, %183, %cst_263 {dimension_numbers = #tpu.dot_dimension_numbers<[1], [0], [0], [1], [0, 0, 1, 1], [], []>} : vector<4x4xbf16>, vector<4x128xbf16>, vector<4x128xf32> -> vector<4x128xf32>
    %185 = arith.addf %180, %184 : vector<4x128xf32>
    %c0_264 = arith.constant 0 : index
    %c3_265 = arith.constant 3 : index
    %c1_266 = arith.constant 1 : index
    %c1_267 = arith.constant 1 : index
    %c0_268 = arith.constant 0 : index
    %186 = vector.load %arg1[%c0_264, %c3_265, %c1_266, %c1_267, %c0_268] : memref<1x5x2x5x8xbf16, #tpu.memory_space<vmem>>, vector<1x1x1x4x4xbf16>
    %187 = vector.shape_cast %186 : vector<1x1x1x4x4xbf16> to vector<4x4xbf16>
    %c20_269 = arith.constant 20 : index
    %c0_270 = arith.constant 0 : index
    %188 = vector.load %arg2[%c20_269, %c0_270] : memref<36x128xbf16, #tpu.memory_space<vmem>>, vector<4x128xbf16>
    %cst_271 = arith.constant dense<0.000000e+00> : vector<4x128xf32>
    %189 = tpu.matmul %187, %188, %cst_271 {dimension_numbers = #tpu.dot_dimension_numbers<[1], [0], [0], [1], [0, 0, 1, 1], [], []>} : vector<4x4xbf16>, vector<4x128xbf16>, vector<4x128xf32> -> vector<4x128xf32>
    %190 = arith.addf %185, %189 : vector<4x128xf32>
    %c0_272 = arith.constant 0 : index
    %c4_273 = arith.constant 4 : index
    %c0_274 = arith.constant 0 : index
    %c0_275 = arith.constant 0 : index
    %c0_276 = arith.constant 0 : index
    %191 = vector.load %arg1[%c0_272, %c4_273, %c0_274, %c0_275, %c0_276] : memref<1x5x2x5x8xbf16, #tpu.memory_space<vmem>>, vector<1x1x1x4x4xbf16>
    %192 = vector.shape_cast %191 : vector<1x1x1x4x4xbf16> to vector<4x4xbf16>
    %c24_277 = arith.constant 24 : index
    %c0_278 = arith.constant 0 : index
    %193 = vector.load %arg2[%c24_277, %c0_278] : memref<36x128xbf16, #tpu.memory_space<vmem>>, vector<4x128xbf16>
    %cst_279 = arith.constant dense<0.000000e+00> : vector<4x128xf32>
    %194 = tpu.matmul %192, %193, %cst_279 {dimension_numbers = #tpu.dot_dimension_numbers<[1], [0], [0], [1], [0, 0, 1, 1], [], []>} : vector<4x4xbf16>, vector<4x128xbf16>, vector<4x128xf32> -> vector<4x128xf32>
    %195 = arith.addf %190, %194 : vector<4x128xf32>
    %c0_280 = arith.constant 0 : index
    %c4_281 = arith.constant 4 : index
    %c0_282 = arith.constant 0 : index
    %c0_283 = arith.constant 0 : index
    %c4_284 = arith.constant 4 : index
    %196 = vector.load %arg1[%c0_280, %c4_281, %c0_282, %c0_283, %c4_284] : memref<1x5x2x5x8xbf16, #tpu.memory_space<vmem>>, vector<1x1x1x4x4xbf16>
    %197 = vector.shape_cast %196 : vector<1x1x1x4x4xbf16> to vector<4x4xbf16>
    %c28_285 = arith.constant 28 : index
    %c0_286 = arith.constant 0 : index
    %198 = vector.load %arg2[%c28_285, %c0_286] : memref<36x128xbf16, #tpu.memory_space<vmem>>, vector<4x128xbf16>
    %cst_287 = arith.constant dense<0.000000e+00> : vector<4x128xf32>
    %199 = tpu.matmul %197, %198, %cst_287 {dimension_numbers = #tpu.dot_dimension_numbers<[1], [0], [0], [1], [0, 0, 1, 1], [], []>} : vector<4x4xbf16>, vector<4x128xbf16>, vector<4x128xf32> -> vector<4x128xf32>
    %200 = arith.addf %195, %199 : vector<4x128xf32>
    %c0_288 = arith.constant 0 : index
    %c4_289 = arith.constant 4 : index
    %c0_290 = arith.constant 0 : index
    %c1_291 = arith.constant 1 : index
    %c0_292 = arith.constant 0 : index
    %201 = vector.load %arg1[%c0_288, %c4_289, %c0_290, %c1_291, %c0_292] : memref<1x5x2x5x8xbf16, #tpu.memory_space<vmem>>, vector<1x1x1x4x4xbf16>
    %202 = vector.shape_cast %201 : vector<1x1x1x4x4xbf16> to vector<4x4xbf16>
    %c32_293 = arith.constant 32 : index
    %c0_294 = arith.constant 0 : index
    %203 = vector.load %arg2[%c32_293, %c0_294] : memref<36x128xbf16, #tpu.memory_space<vmem>>, vector<4x128xbf16>
    %cst_295 = arith.constant dense<0.000000e+00> : vector<4x128xf32>
    %204 = tpu.matmul %202, %203, %cst_295 {dimension_numbers = #tpu.dot_dimension_numbers<[1], [0], [0], [1], [0, 0, 1, 1], [], []>} : vector<4x4xbf16>, vector<4x128xbf16>, vector<4x128xf32> -> vector<4x128xf32>
    %205 = arith.addf %200, %204 : vector<4x128xf32>
    %206 = vector.broadcast %0 : vector<1x128xf32> to vector<4x128xf32>
    %207 = arith.addf %205, %206 : vector<4x128xf32>
    %cst_296 = arith.constant 0.000000e+00 : f32
    %208 = vector.broadcast %cst_296 : f32 to vector<4x128xf32>
    %209 = arith.maximumf %207, %208 : vector<4x128xf32>
    %c0_297 = arith.constant 0 : index
    %c3_298 = arith.constant 3 : index
    %c0_299 = arith.constant 0 : index
    %c0_300 = arith.constant 0 : index
    %210 = vector.load %arg4[%c0_297, %c3_298, %c0_299, %c0_300] : memref<1x4x4x128xf32, #tpu.memory_space<vmem>>, vector<1x1x4x128xf32>
    %211 = vector.shape_cast %210 : vector<1x1x4x128xf32> to vector<4x128xf32>
    %212 = vector.shape_cast %209 : vector<4x128xf32> to vector<1x1x4x128xf32>
    tpu.vector_store %arg4[%c0_297, %c3_298, %c0_299, %c0_300], %212 {strides = array<i32>} : memref<1x4x4x128xf32, #tpu.memory_space<vmem>>, vector<1x1x4x128xf32>,
    return
  }
  func.func @transform_0(%arg0: i32) -> (i32, i32, i32, i32, i32) {
    %c0_i32 = arith.constant 0 : i32
    %c0_i32_0 = arith.constant 0 : i32
    %c0_i32_1 = arith.constant 0 : i32
    %c0_i32_2 = arith.constant 0 : i32
    %c0_i32_3 = arith.constant 0 : i32
    return %arg0, %c0_i32, %c0_i32_0, %c0_i32_1, %c0_i32_2 : i32, i32, i32, i32, i32
  }
  func.func @transform_1(%arg0: i32) -> (i32, i32) {
    %c0_i32 = arith.constant 0 : i32
    %c0_i32_0 = arith.constant 0 : i32
    %c0_i32_1 = arith.constant 0 : i32
    return %c0_i32, %c0_i32_0 : i32, i32
  }
  func.func @transform_2(%arg0: i32) -> (i32, i32) {
    %c0_i32 = arith.constant 0 : i32
    %c0_i32_0 = arith.constant 0 : i32
    %c0_i32_1 = arith.constant 0 : i32
    return %c0_i32, %c0_i32_0 : i32, i32
  }
  func.func @transform_3(%arg0: i32) -> (i32, i32, i32, i32) {
    %c0_i32 = arith.constant 0 : i32
    %c0_i32_0 = arith.constant 0 : i32
    %c0_i32_1 = arith.constant 0 : i32
    %c0_i32_2 = arith.constant 0 : i32
    return %arg0, %c0_i32, %c0_i32_0, %c0_i32_1 : i32, i32, i32, i32
  }
}

module attributes {stable_mosaic.version = 11 : i64} {
  func.func @pos_kernel(%arg0: i32, %arg1: memref<1x1x16xbf16, #tpu.memory_space<vmem>>, %arg2: memref<16x16xbf16, #tpu.memory_space<vmem>>, %arg3: memref<16x16xbf16, #tpu.memory_space<vmem>>, %arg4: memref<8x1xf32, #tpu.memory_space<vmem>>, %arg5: memref<1x32x16xf32, #tpu.memory_space<vmem>>) attributes {dimension_semantics = [#tpu.dimension_semantics<parallel>], iteration_bounds = array<i64: 2>, scalar_prefetch = 0 : i64, scratch_operands = 0 : i64, tpu.core_type = #tpu.core_type<tc>, window_params = [{transform_indices = @transform_0, window_bounds = array<i64: 1, 1, 16>}, {pipeline_mode = #tpu.pipeline_mode<synchronous>, transform_indices = @transform_1, window_bounds = array<i64: 16, 16>}, {pipeline_mode = #tpu.pipeline_mode<synchronous>, transform_indices = @transform_2, window_bounds = array<i64: 16, 16>}, {pipeline_mode = #tpu.pipeline_mode<synchronous>, transform_indices = @transform_3, window_bounds = array<i64: 8, 1>}, {transform_indices = @transform_4, window_bounds = array<i64: 1, 32, 16>}]} {
    %c0 = arith.constant 0 : index
    %c0_0 = arith.constant 0 : index
    %c0_1 = arith.constant 0 : index
    %0 = vector.load %arg1[%c0, %c0_0, %c0_1] : memref<1x1x16xbf16, #tpu.memory_space<vmem>>, vector<1x1x16xbf16>
    %1 = vector.shape_cast %0 : vector<1x1x16xbf16> to vector<1x16xbf16>
    %c0_2 = arith.constant 0 : index
    %c0_3 = arith.constant 0 : index
    %2 = vector.load %arg2[%c0_2, %c0_3] : memref<16x16xbf16, #tpu.memory_space<vmem>>, vector<16x16xbf16>
    %cst = arith.constant dense<0.000000e+00> : vector<1x16xf32>
    %3 = tpu.matmul %1, %2, %cst {dimension_numbers = #tpu.dot_dimension_numbers<[1], [0], [0], [1], [0, 0, 1, 1], [], []>} : vector<1x16xbf16>, vector<16x16xbf16>, vector<1x16xf32> -> vector<1x16xf32>
    %cst_4 = arith.constant 5.000000e+03 : f32
    %4 = vector.broadcast %cst_4 : f32 to vector<1x16xf32>
    %5 = arith.addf %3, %4 : vector<1x16xf32>
    %c0_5 = arith.constant 0 : index
    %c0_6 = arith.constant 0 : index
    %6 = vector.load %arg3[%c0_5, %c0_6] : memref<16x16xbf16, #tpu.memory_space<vmem>>, vector<16x16xbf16>
    %cst_7 = arith.constant dense<0.000000e+00> : vector<1x16xf32>
    %7 = tpu.matmul %1, %6, %cst_7 {dimension_numbers = #tpu.dot_dimension_numbers<[1], [0], [0], [1], [0, 0, 1, 1], [], []>} : vector<1x16xbf16>, vector<16x16xbf16>, vector<1x16xf32> -> vector<1x16xf32>
    %cst_8 = arith.constant 5.000000e+03 : f32
    %8 = vector.broadcast %cst_8 : f32 to vector<1x16xf32>
    %9 = arith.addf %7, %8 : vector<1x16xf32>
    %c0_9 = arith.constant 0 : index
    %c0_10 = arith.constant 0 : index
    %10 = vector.load %arg4[%c0_9, %c0_10] : memref<8x1xf32, #tpu.memory_space<vmem>>, vector<8x1xf32>
    %11 = vector.broadcast %10 : vector<8x1xf32> to vector<8x16xf32>
    %12 = vector.broadcast %5 : vector<1x16xf32> to vector<8x16xf32>
    %13 = arith.mulf %11, %12 : vector<8x16xf32>
    %14 = vector.broadcast %10 : vector<8x1xf32> to vector<8x16xf32>
    %15 = vector.broadcast %9 : vector<1x16xf32> to vector<8x16xf32>
    %16 = arith.mulf %14, %15 : vector<8x16xf32>
    %17 = math.sin %13 : vector<8x16xf32>
    %c0_11 = arith.constant 0 : index
    %c0_12 = arith.constant 0 : index
    %c0_13 = arith.constant 0 : index
    %18 = vector.load %arg5[%c0_11, %c0_12, %c0_13] : memref<1x32x16xf32, #tpu.memory_space<vmem>>, vector<1x8x16xf32>
    %19 = vector.shape_cast %18 : vector<1x8x16xf32> to vector<8x16xf32>
    %20 = vector.shape_cast %17 : vector<8x16xf32> to vector<1x8x16xf32>
    tpu.vector_store %arg5[%c0_11, %c0_12, %c0_13], %20 {strides = array<i32>} : memref<1x32x16xf32, #tpu.memory_space<vmem>>, vector<1x8x16xf32>,
    %21 = math.cos %13 : vector<8x16xf32>
    %c0_14 = arith.constant 0 : index
    %c8 = arith.constant 8 : index
    %c0_15 = arith.constant 0 : index
    %22 = vector.load %arg5[%c0_14, %c8, %c0_15] : memref<1x32x16xf32, #tpu.memory_space<vmem>>, vector<1x8x16xf32>
    %23 = vector.shape_cast %22 : vector<1x8x16xf32> to vector<8x16xf32>
    %24 = vector.shape_cast %21 : vector<8x16xf32> to vector<1x8x16xf32>
    tpu.vector_store %arg5[%c0_14, %c8, %c0_15], %24 {strides = array<i32>} : memref<1x32x16xf32, #tpu.memory_space<vmem>>, vector<1x8x16xf32>,
    %25 = math.sin %16 : vector<8x16xf32>
    %c0_16 = arith.constant 0 : index
    %c16 = arith.constant 16 : index
    %c0_17 = arith.constant 0 : index
    %26 = vector.load %arg5[%c0_16, %c16, %c0_17] : memref<1x32x16xf32, #tpu.memory_space<vmem>>, vector<1x8x16xf32>
    %27 = vector.shape_cast %26 : vector<1x8x16xf32> to vector<8x16xf32>
    %28 = vector.shape_cast %25 : vector<8x16xf32> to vector<1x8x16xf32>
    tpu.vector_store %arg5[%c0_16, %c16, %c0_17], %28 {strides = array<i32>} : memref<1x32x16xf32, #tpu.memory_space<vmem>>, vector<1x8x16xf32>,
    %29 = math.cos %16 : vector<8x16xf32>
    %c0_18 = arith.constant 0 : index
    %c24 = arith.constant 24 : index
    %c0_19 = arith.constant 0 : index
    %30 = vector.load %arg5[%c0_18, %c24, %c0_19] : memref<1x32x16xf32, #tpu.memory_space<vmem>>, vector<1x8x16xf32>
    %31 = vector.shape_cast %30 : vector<1x8x16xf32> to vector<8x16xf32>
    %32 = vector.shape_cast %29 : vector<8x16xf32> to vector<1x8x16xf32>
    tpu.vector_store %arg5[%c0_18, %c24, %c0_19], %32 {strides = array<i32>} : memref<1x32x16xf32, #tpu.memory_space<vmem>>, vector<1x8x16xf32>,
    return
  }
  func.func @transform_0(%arg0: i32) -> (i32, i32, i32) {
    %c0_i32 = arith.constant 0 : i32
    %c0_i32_0 = arith.constant 0 : i32
    %c0_i32_1 = arith.constant 0 : i32
    return %arg0, %c0_i32, %c0_i32_0 : i32, i32, i32
  }
  func.func @transform_1(%arg0: i32) -> (i32, i32) {
    %c0_i32 = arith.constant 0 : i32
    %c0_i32_0 = arith.constant 0 : i32
    %c0_i32_1 = arith.constant 0 : i32
    return %c0_i32, %c0_i32_0 : i32, i32
  }
  func.func @transform_2(%arg0: i32) -> (i32, i32) {
    %c0_i32 = arith.constant 0 : i32
    %c0_i32_0 = arith.constant 0 : i32
    %c0_i32_1 = arith.constant 0 : i32
    return %c0_i32, %c0_i32_0 : i32, i32
  }
  func.func @transform_3(%arg0: i32) -> (i32, i32) {
    %c0_i32 = arith.constant 0 : i32
    %c0_i32_0 = arith.constant 0 : i32
    %c0_i32_1 = arith.constant 0 : i32
    return %c0_i32, %c0_i32_0 : i32, i32
  }
  func.func @transform_4(%arg0: i32) -> (i32, i32, i32) {
    %c0_i32 = arith.constant 0 : i32
    %c0_i32_0 = arith.constant 0 : i32
    %c0_i32_1 = arith.constant 0 : i32
    return %arg0, %c0_i32, %c0_i32_0 : i32, i32, i32
  }
}

</mosaic_0001>

<llo_original>
// kernel: pipeline_forward.6
$region0: #{pipeline_forward.6}
  #allocation0 [shape = 'u32[]', space=smem, size = 0x4, offset = 0x4, fixed_abs, tag = 'smem constant byte address 0x4 - core index']
  #allocation1 [shape = 'u32[72,128]{1,0:T(1,128)}', space=vmem, size = 0x9000, scoped, tag = 'internal scratch']
  %s0 = inlined_call_operand.vmem [shape: bf16[2,1,64], index: 0, kind: input, shape index: {}]
  %s1 = inlined_call_operand.vmem [shape: bf16[64,64], index: 1, kind: input, shape index: {}]
  %s2 = inlined_call_operand.vmem [shape: bf16[64,64], index: 2, kind: input, shape index: {}]
  %s3 = inlined_call_operand.vmem [shape: f32[8,1], index: 3, kind: input, shape index: {}]
  %s4 = inlined_call_operand.vmem [shape: f32[2,32,64], index: 4, kind: output, shape index: {}]
  %s5 = sld [smem:[#allocation0]]
  $region49: #{pipeline_forward.6} parent=0
    _
  %s7 = ssub.s32 1, %s5
  %s8 = scalar_select 0, %s7, %s5
  loop: start=0, step=1, limit=4
  $region2: #{pipeline_forward.6} parent=0 // loop_pre_header
    _
  $region3: #{pipeline_forward.6} parent=0 // loop_header
    %s10 = sphi 0, %s14
    %p11 = scmp.ge.s32.totalorder %s10, 4
    %s20 = sphi 0, %s22
    %s23 = sphi 0, %s20
    %s24 = sphi 0, %s23
    %s40 = sphi 0, %s24
    %s44 = sphi 0, %s44
    %s46 = sphi 0, %s44
    %s47 = sphi 0, %s46
    %s61 = sphi 0, %s47
    %s65 = sphi 0, %s65
    %s67 = sphi 0, %s65
    %s68 = sphi 0, %s67
    %s82 = sphi 0, %s68
    %s86 = sphi 0, %s86
    %s88 = sphi 0, %s86
    %s89 = sphi 0, %s88
    %s103 = sphi 0, %s89
    %s109 = sphi 0, %s111
    %s112 = sphi 0, %s109
    %s113 = sphi 0, %s112
    %s129 = sphi 0, %s113
  $region4: #{pipeline_forward.6} parent=0 // loop_header_branch
    %13 = sbr.rel (%p11) target = $region8
  $region5: #{pipeline_forward.6} parent=0 // loop_body
    %s15 = ssub.s32 %s10, 1
    %s16 = ssub.s32 %s10, 2
    %s17 = sadd.s32 %s10, 1
    %s18 = ssub.s32 %s10, %s17
    %p19 = scmp.eq.s32.totalorder %s18, 0
    %s21 = sadd.s32 %s20, 1
    %s22 = scalar_select %p19, %s20, %s21
    %p25 = pneg %p19
    %p26 = scmp.eq.s32.totalorder %s10, 1
    %p27 = por %p25, %p26
    %p28 = scmp.ne.s32.totalorder %s20, %s23
    %p29 = scmp.eq.s32.totalorder %s10, 0
    %p30 = por %p28, %p29
    %p31 = scmp.ne.s32.totalorder %s20, %s23
    %p32 = scmp.eq.s32.totalorder %s15, 1
    %p33 = por %p31, %p32
    %p34 = scmp.ne.s32.totalorder %s23, %s24
    %p35 = scmp.eq.s32.totalorder %s15, 0
    %p36 = por %p34, %p35
    %p37 = scmp.ne.s32.totalorder %s23, %s24
    %p38 = scmp.eq.s32.totalorder %s16, 1
    %p39 = por %p37, %p38
    %p41 = scmp.ne.s32.totalorder %s24, %s40
    %p42 = scmp.eq.s32.totalorder %s16, 0
    %p43 = por %p41, %p42
    %s45 = sadd.s32 %s44, 1
    %p48 = scmp.eq.s32.totalorder %s10, 1
    %p49 = scmp.ne.s32.totalorder %s44, %s46
    %p50 = scmp.eq.s32.totalorder %s10, 0
    %p51 = por %p49, %p50
    %p52 = scmp.ne.s32.totalorder %s44, %s46
    %p53 = scmp.eq.s32.totalorder %s15, 1
    %p54 = por %p52, %p53
    %p55 = scmp.ne.s32.totalorder %s46, %s47
    %p56 = scmp.eq.s32.totalorder %s15, 0
    %p57 = por %p55, %p56
    %p58 = scmp.ne.s32.totalorder %s46, %s47
    %p59 = scmp.eq.s32.totalorder %s16, 1
    %p60 = por %p58, %p59
    %p62 = scmp.ne.s32.totalorder %s47, %s61
    %p63 = scmp.eq.s32.totalorder %s16, 0
    %p64 = por %p62, %p63
    %s66 = sadd.s32 %s65, 1
    %p69 = scmp.eq.s32.totalorder %s10, 1
    %p70 = scmp.ne.s32.totalorder %s65, %s67
    %p71 = scmp.eq.s32.totalorder %s10, 0
    %p72 = por %p70, %p71
    %p73 = scmp.ne.s32.totalorder %s65, %s67
    %p74 = scmp.eq.s32.totalorder %s15, 1
    %p75 = por %p73, %p74
    %p76 = scmp.ne.s32.totalorder %s67, %s68
    %p77 = scmp.eq.s32.totalorder %s15, 0
    %p78 = por %p76, %p77
    %p79 = scmp.ne.s32.totalorder %s67, %s68
    %p80 = scmp.eq.s32.totalorder %s16, 1
    %p81 = por %p79, %p80
    %p83 = scmp.ne.s32.totalorder %s68, %s82
    %p84 = scmp.eq.s32.totalorder %s16, 0
    %p85 = por %p83, %p84
    %s87 = sadd.s32 %s86, 1
    %p90 = scmp.eq.s32.totalorder %s10, 1
    %p91 = scmp.ne.s32.totalorder %s86, %s88
    %p92 = scmp.eq.s32.totalorder %s10, 0
    %p93 = por %p91, %p92
    %p94 = scmp.ne.s32.totalorder %s86, %s88
    %p95 = scmp.eq.s32.totalorder %s15, 1
    %p96 = por %p94, %p95
    %p97 = scmp.ne.s32.totalorder %s88, %s89
    %p98 = scmp.eq.s32.totalorder %s15, 0
    %p99 = por %p97, %p98
    %p100 = scmp.ne.s32.totalorder %s88, %s89
    %p101 = scmp.eq.s32.totalorder %s16, 1
    %p102 = por %p100, %p101
    %p104 = scmp.ne.s32.totalorder %s89, %s103
    %p105 = scmp.eq.s32.totalorder %s16, 0
    %p106 = por %p104, %p105
    %s107 = ssub.s32 %s10, %s17
    %p108 = scmp.eq.s32.totalorder %s107, 0
    %s110 = sadd.s32 %s109, 1
    %s111 = scalar_select %p108, %s109, %s110
    %p114 = pneg %p108
    %p115 = scmp.eq.s32.totalorder %s10, 1
    %p116 = por %p114, %p115
    %p117 = scmp.ne.s32.totalorder %s109, %s112
    %p118 = scmp.eq.s32.totalorder %s10, 0
    %p119 = por %p117, %p118
    %p120 = scmp.ne.s32.totalorder %s109, %s112
    %p121 = scmp.eq.s32.totalorder %s15, 1
    %p122 = por %p120, %p121
    %p123 = scmp.ne.s32.totalorder %s112, %s113
    %p124 = scmp.eq.s32.totalorder %s15, 0
    %p125 = por %p123, %p124
    %p126 = scmp.ne.s32.totalorder %s112, %s113
    %p127 = scmp.eq.s32.totalorder %s16, 1
    %p128 = por %p126, %p127
    %p130 = scmp.ne.s32.totalorder %s113, %s129
    %p131 = scmp.eq.s32.totalorder %s16, 0
    %p132 = por %p130, %p131
    %p133 = scmp.le.s32.totalorder 1, %s10
    %p134 = scmp.lt.s32.totalorder %s10, 3
    %p135 = pnand %p133, %p134
    %p136 = pneg %p135
    // Predicated region
    $region9: #{pipeline_forward.6} parent=5 // pred_check
      _
    $region10: #{pipeline_forward.6} parent=5 // pred_check_branch
      %138 = sbr.rel (%p135) target = $region12
    $region11: #{pipeline_forward.6} parent=5 // pred_region
      %s139 = ssub.s32 %s10, 1
      // Predicated region
      $region13: #{pipeline_forward.6} parent=11 // pred_check
        %p140 = pneg %p57
      $region14: #{pipeline_forward.6} parent=11 // pred_check_branch
        %142 = sbr.rel (%p140) target = $region16
      $region15: #{pipeline_forward.6} parent=11 // pred_region
        _
      $region16: #{pipeline_forward.6} parent=11 // pred_fallthru
        _
      // Predicated region
      $region17: #{pipeline_forward.6} parent=11 // pred_check
        %p143 = pneg %p78
      $region18: #{pipeline_forward.6} parent=11 // pred_check_branch
        %145 = sbr.rel (%p143) target = $region20
      $region19: #{pipeline_forward.6} parent=11 // pred_region
        _
      $region20: #{pipeline_forward.6} parent=11 // pred_fallthru
        _
      // Predicated region
      $region21: #{pipeline_forward.6} parent=11 // pred_check
        %p146 = pneg %p99
      $region22: #{pipeline_forward.6} parent=11 // pred_check_branch
        %148 = sbr.rel (%p146) target = $region24
      $region23: #{pipeline_forward.6} parent=11 // pred_region
        _
      $region24: #{pipeline_forward.6} parent=11 // pred_fallthru
        _
    $region12: #{pipeline_forward.6} parent=5 // pred_fallthru
      _
    %p149 = scmp.lt.s32.totalorder %s10, 2
    // Predicated region
    $region25: #{pipeline_forward.6} parent=5 // pred_check
      %p150 = pneg %p149
    $region26: #{pipeline_forward.6} parent=5 // pred_check_branch
      %152 = sbr.rel (%p150) target = $region28
    $region27: #{pipeline_forward.6} parent=5 // pred_region
      // Predicated region
      $region29: #{pipeline_forward.6} parent=27 // pred_check
        %p153 = pneg %p30
      $region30: #{pipeline_forward.6} parent=27 // pred_check_branch
        %155 = sbr.rel (%p153) target = $region32
      $region31: #{pipeline_forward.6} parent=27 // pred_region
        %p156 = scmp.lt.s32.totalorder %s10, 1
        %s157 = scalar_select %p156, %s10, 1
        %s158 = scalar_lea.vmem %s0, %s157
      $region32: #{pipeline_forward.6} parent=27 // pred_fallthru
        _
    $region28: #{pipeline_forward.6} parent=5 // pred_fallthru
      _
    %p159 = scmp.le.s32.totalorder 1, %s10
    %p160 = scmp.lt.s32.totalorder %s10, 3
    %p161 = pnand %p159, %p160
    %p162 = pneg %p161
    // Predicated region
    $region33: #{pipeline_forward.6} parent=5 // pred_check
      _
    $region34: #{pipeline_forward.6} parent=5 // pred_check_branch
      %164 = sbr.rel (%p161) target = $region36
    $region35: #{pipeline_forward.6} parent=5 // pred_region
      %s165 = ssub.s32 %s10, 1
      %p166 = scmp.lt.s32.totalorder %s15, 1
      %s167 = scalar_select %p166, %s15, 1
      %s168 = scalar_lea.vmem %s0, %s167
      %p169 = pneg %p36
      %p170 = pneg %p33
      %p171 = pneg %p57
      %p172 = pneg %p54
      %p173 = pneg %p78
      %p174 = pneg %p75
      %p175 = pneg %p99
      %p176 = pneg %p96
      %p177 = pneg %p125
      %p178 = pneg %p122
      %p179 = scmp.lt.s32.totalorder %s15, 1
      %s180 = scalar_select %p179, %s15, 1
      %s181 = smul.addr %s180, 4
      %s182 = smul.addr %s181, 8
      %s183 = scalar_lea.vmem %s4, %s182
      %p184 = scmp.lt.s32.totalorder %s15, 1
      %s185 = scalar_select %p184, %s15, 1
      %s186 = scalar_lea.vmem %s0, %s185
      %p187 = scmp.lt.s32.totalorder %s15, 1
      %s188 = scalar_select %p187, %s15, 1
      %s189 = smul.addr %s188, 4
      %s190 = smul.addr %s189, 8
      %s191 = scalar_lea.vmem %s4, %s190
      %v193 = vld [vmem:[%s186] sm:$0x1]
      %v194 = vld [vmem:[%s1] sm:$0xf]
      %v195 = vld [vmem:[%s1 + $0x4] sm:$0xf]
      %v196 = vld [vmem:[%s1 + $0x8] sm:$0xf]
      %v197 = vld [vmem:[%s1 + $0xc] sm:$0xf]
      %v198 = vld [vmem:[%s1 + $0x10] sm:$0xf]
      %v199 = vld [vmem:[%s1 + $0x14] sm:$0xf]
      %v200 = vld [vmem:[%s1 + $0x18] sm:$0xf]
      %v201 = vld [vmem:[%s1 + $0x1c] sm:$0xf]
      %v210 = vunpack.c.l.b16 %v194
      %v211 = vunpack.c.l.b16 %v195
      %v212 = vunpack.c.l.b16 %v196
      %v213 = vunpack.c.l.b16 %v197
      %v214 = vunpack.c.l.b16 %v198
      %v215 = vunpack.c.l.b16 %v199
      %v216 = vunpack.c.l.b16 %v200
      %v217 = vunpack.c.l.b16 %v201
      %v218 = vpack.c.b16 %v211, %v210
      %v219 = vpack.c.b16 %v213, %v212
      %v220 = vpack.c.b16 %v215, %v214
      %v221 = vpack.c.b16 %v217, %v216
      %vm226 = vcmask 523264
      %v228 = vsel %vm226, %v193, 0
      %230 = vmatpush.bf16.msra.mxu0 0
      %231 = vmatpush.bf16.msra.mxu0 0
      %232 = vmatpush.bf16.msra.mxu0 0
      %233 = vmatpush.bf16.msra.mxu0 0
      %234 = vmatpush.bf16.msra.mxu0 %v221
      %235 = vmatpush.bf16.msra.mxu0 %v220
      %236 = vmatpush.bf16.msra.mxu0 %v219
      %237 = vmatpush.bf16.msra.mxu0 %v218
      %238 = vmatmul.bf16.gmra.mxu0 %v228
      %v239 = vpop.f32.mrf.mxu0
      %v240 = vadd.f32 0.0, %v239
      %v241 = vpop.f32.mrf.mxu0
      %242 = vdwg.mxu0
      %v243 = vld [vmem:[%s2] sm:$0xf]
      %v244 = vld [vmem:[%s2 + $0x4] sm:$0xf]
      %v245 = vld [vmem:[%s2 + $0x8] sm:$0xf]
      %v246 = vld [vmem:[%s2 + $0xc] sm:$0xf]
      %v247 = vld [vmem:[%s2 + $0x10] sm:$0xf]
      %v248 = vld [vmem:[%s2 + $0x14] sm:$0xf]
      %v249 = vld [vmem:[%s2 + $0x18] sm:$0xf]
      %v250 = vld [vmem:[%s2 + $0x1c] sm:$0xf]
      %v259 = vunpack.c.l.b16 %v243
      %v260 = vunpack.c.l.b16 %v244
      %v261 = vunpack.c.l.b16 %v245
      %v262 = vunpack.c.l.b16 %v246
      %v263 = vunpack.c.l.b16 %v247
      %v264 = vunpack.c.l.b16 %v248
      %v265 = vunpack.c.l.b16 %v249
      %v266 = vunpack.c.l.b16 %v250
      %v267 = vpack.c.b16 %v260, %v259
      %v268 = vpack.c.b16 %v262, %v261
      %v269 = vpack.c.b16 %v264, %v263
      %v270 = vpack.c.b16 %v266, %v265
      %275 = vmatpush.bf16.msra.mxu0 0
      %276 = vmatpush.bf16.msra.mxu0 0
      %277 = vmatpush.bf16.msra.mxu0 0
      %278 = vmatpush.bf16.msra.mxu0 0
      %279 = vmatpush.bf16.msra.mxu0 %v270
      %280 = vmatpush.bf16.msra.mxu0 %v269
      %281 = vmatpush.bf16.msra.mxu0 %v268
      %282 = vmatpush.bf16.msra.mxu0 %v267
      %283 = vmatmul.bf16.gmra.mxu0 %v228
      %v284 = vpop.f32.mrf.mxu0
      %v285 = vadd.f32 0.0, %v284
      %v286 = vpop.f32.mrf.mxu0
      %287 = vdwg.mxu0
      %v288 = vld [vmem:[%s3] sm:$0xff]
      %290 = vset.pattern.permute.xlu0 0
      %291 = vperm.xlu0 %290, %v288
      %v292 = vpop.permute.xlu0 %291
      %v294 = vperm.slane %v240, 0
      %v295 = vmul.f32 %v292, %v294
      %v296 = vperm.slane %v285, 0
      %v297 = vmul.f32 %v292, %v296
      %v298 = vand.u32 2147483647, %v295
      %vm299 = vcmp.le.f32.partialorder %v298, 0.7853982
      %vm300 = vcmp.lt.s32.totalorder %v295, 0
      %v301 = vand.u32 %v295, 2139095040
      %v302 = vshrl.u32 %v301, 23
      %v303 = vsub.s32 %v302, 127
      %v304 = vand.u32 2147483647, %v295
      %v305 = vand.u32 %v304, 8388607
      %v306 = vor.u32 %v305, 8388608
      %v307 = vsub.s32 0, %v306
      %v308 = vadd.s32 %v303, 1
      %vm309 = vcmp.gt.s32.totalorder %v308, 0
      %v310 = vsel %vm309, %v308, 0
      %v311 = vshrl.u32 %v310, 5
      %v312 = vand.u32 %v310, 31
      %v313 = vsub.s32 32, %v312
      %v314 = vshrl.u32 683565275, %v313
      %v315 = vshll.u32 683565275, %v312
      %v316 = vshrl.u32 2475754826, %v313
      %v317 = vor.u32 %v315, %v316
      %v318 = vshll.u32 2475754826, %v312
      %v319 = vshrl.u32 2131351028, %v313
      %v320 = vor.u32 %v318, %v319
      %v321 = vshll.u32 2131351028, %v312
      %v322 = vshrl.u32 2102212464, %v313
      %v323 = vor.u32 %v321, %v322
      %v324 = vshll.u32 2102212464, %v312
      %v325 = vshrl.u32 920167782, %v313
      %v326 = vor.u32 %v324, %v325
      %v327 = vshll.u32 920167782, %v312
      %v328 = vshrl.u32 1326507024, %v313
      %v329 = vor.u32 %v327, %v328
      %vm330 = vcmp.lt.s32.totalorder %v311, 1
      %vm331 = vcmp.lt.s32.totalorder %v311, 2
      %vm332 = vcmp.lt.s32.totalorder %v311, 3
      %vm333 = vcmp.lt.s32.totalorder %v311, 4
      %v334 = vsel %vm330, %v314, %v317
      %v335 = vsel %vm333, %v323, 2102212464
      %v336 = vsel %vm332, %v320, %v335
      %v337 = vsel %vm331, %v334, %v336
      %v338 = vsel %vm330, %v317, %v320
      %v339 = vsel %vm333, %v326, 920167782
      %v340 = vsel %vm332, %v323, %v339
      %v341 = vsel %vm331, %v338, %v340
      %v342 = vsel %vm330, %v320, %v323
      %v343 = vsel %vm333, %v329, 1326507024
      %v344 = vsel %vm332, %v326, %v343
      %v345 = vsel %vm331, %v342, %v344
      %v346 = vshll.u32 %v306, 8
      %v347 = vand.u32 %v346, 65535
      %v348 = vshrl.u32 %v346, 16
      %v349 = vand.u32 %v345, 65535
      %v350 = vshrl.u32 %v345, 16
      %v351 = vmul.u32 %v347, %v349
      %v352 = vmul.u32 %v347, %v350
      %v353 = vmul.u32 %v348, %v349
      %v354 = vmul.u32 %v348, %v350
      %v355 = vshll.u32 %v352, 16
      %v356 = vshrl.u32 %v352, 16
      %v357 = vshll.u32 %v353, 16
      %v358 = vshrl.u32 %v353, 16
      %vm359 = vc.u32 %v351, %v355
      %v360 = vsel %vm359, 1, 0
      %v361 = vadd.s32 %v351, %v355
      %v362 = vadd.s32 %v354, %v360
      %vm363 = vc.u32 %v361, %v357
      %v364 = vsel %vm363, 1, 0
      %v365 = vadd.s32 %v361, %v357
      %v366 = vadd.s32 %v362, %v364
      %v367 = vadd.s32 %v366, %v356
      %v368 = vadd.s32 %v367, %v358
      %v369 = vand.u32 %v346, 65535
      %v370 = vshrl.u32 %v346, 16
      %v371 = vand.u32 %v341, 65535
      %v372 = vshrl.u32 %v341, 16
      %v373 = vmul.u32 %v369, %v371
      %v374 = vmul.u32 %v369, %v372
      %v375 = vmul.u32 %v370, %v371
      %v376 = vmul.u32 %v370, %v372
      %v377 = vshll.u32 %v374, 16
      %v378 = vshrl.u32 %v374, 16
      %v379 = vshll.u32 %v375, 16
      %v380 = vshrl.u32 %v375, 16
      %vm381 = vc.u32 %v373, %v377
      %v382 = vsel %vm381, 1, 0
      %v383 = vadd.s32 %v373, %v377
      %v384 = vadd.s32 %v376, %v382
      %vm385 = vc.u32 %v383, %v379
      %v386 = vsel %vm385, 1, 0
      %v387 = vadd.s32 %v383, %v379
      %v388 = vadd.s32 %v384, %v386
      %v389 = vadd.s32 %v388, %v378
      %v390 = vadd.s32 %v389, %v380
      %v391 = vmul.u32 %v346, %v337
      %v392 = vadd.s32 %v368, %v387
      %vm393 = vc.u32 %v368, %v387
      %v394 = vadd.s32 %v390, 1
      %v395 = vsel %vm393, %v394, %v390
      %v396 = vadd.s32 %v391, %v395
      %v397 = vadd.s32 %v396, 536870912
      %v398 = vshrl.u32 %v397, 30
      %v399 = vshll.u32 %v398, 30
      %v400 = vsub.s32 %v396, %v399
      %vm401 = vcmp.lt.s32.totalorder %v400, 0
      %v402 = vsub.s32 0, %v400
      %v403 = vsel %vm401, %v402, %v400
      %v404 = vclz %v403
      %v405 = vsub.s32 %v404, 2
      %vm406 = vcmp.gt.s32.totalorder 0, %v405
      %v407 = vsel %vm406, 0, %v405
      %v408 = vsub.s32 32, %v407
      %v409 = vshll.u32 %v400, %v407
      %v410 = vshrl.u32 %v392, %v408
      %v411 = vor.u32 %v409, %v410
      %v412 = vsub.s32 4294967266, %v407
      %v413 = vadd.s32 %v412, 127
      %v414 = vshll.u32 %v413, 23
      %v415 = vor.u32 4788187, %v414
      %v416 = vand.u32 2147483647, %v415
      %v418 = vcvt.s32.f32 %v411
      %v419 = vmul.f32 %v418, %v416
      %v420 = vxor.u32 %v419, 2147483648
      %v421 = vsel %vm300, %v420, %v419
      %v422 = vsub.s32 4, %v398
      %v423 = vsel %vm300, %v422, %v398
      %v424 = vsel %vm299, %v295, %v421
      %v425 = vsel %vm299, 0, %v423
      %v426 = vmul.f32 %v424, %v424
      %v427 = vmul.f32 %v426, -0.001358992
      %v428 = vadd.f32 %v427, 0.041655596
      %v429 = vmul.f32 %v426, %v428
      %v430 = vadd.f32 %v429, -0.4999988
      %v431 = vmul.f32 %v426, %v430
      %v432 = vadd.f32 1.0, %v431
      %v433 = vmul.f32 %v424, %v424
      %v434 = vmul.f32 %v433, -0.00019511016
      %v435 = vadd.f32 %v434, 0.008332121
      %v436 = vmul.f32 %v433, %v435
      %v437 = vadd.f32 %v436, -0.16666654
      %v438 = vmul.f32 %v433, %v437
      %v439 = vadd.f32 %v438, 1.0
      %v440 = vmul.f32 %v439, %v424
      %vm441 = vweird.f32 %v295
      %v442 = vadd.s32 %v425, 3
      %v443 = vand.u32 %v442, 3
      %vm444 = vcmp.lt.s32.totalorder %v443, 2
      %vm445 = vcmp.eq.s32.totalorder %v443, 0
      %v446 = vxor.u32 %v440, 2147483648
      %v447 = vsel %vm445, %v432, %v446
      %vm448 = vcmp.eq.s32.totalorder %v443, 2
      %v449 = vxor.u32 %v432, 2147483648
      %v450 = vsel %vm448, %v449, %v440
      %v451 = vsel %vm444, %v447, %v450
      %v452 = vsel %vm441, nan, %v451
      %453 = vst.msk [vmem:[%s191] sm:$0xff] %vm226, %v452
      %v454 = vand.u32 2147483647, %v295
      %vm455 = vcmp.le.f32.partialorder %v454, 0.7853982
      %vm456 = vcmp.lt.s32.totalorder %v295, 0
      %v457 = vand.u32 %v295, 2139095040
      %v458 = vshrl.u32 %v457, 23
      %v459 = vsub.s32 %v458, 127
      %v460 = vand.u32 2147483647, %v295
      %v461 = vand.u32 %v460, 8388607
      %v462 = vor.u32 %v461, 8388608
      %v463 = vsub.s32 0, %v462
      %v464 = vadd.s32 %v459, 1
      %vm465 = vcmp.gt.s32.totalorder %v464, 0
      %v466 = vsel %vm465, %v464, 0
      %v467 = vshrl.u32 %v466, 5
      %v468 = vand.u32 %v466, 31
      %v469 = vsub.s32 32, %v468
      %v470 = vshrl.u32 683565275, %v469
      %v471 = vshll.u32 683565275, %v468
      %v472 = vshrl.u32 2475754826, %v469
      %v473 = vor.u32 %v471, %v472
      %v474 = vshll.u32 2475754826, %v468
      %v475 = vshrl.u32 2131351028, %v469
      %v476 = vor.u32 %v474, %v475
      %v477 = vshll.u32 2131351028, %v468
      %v478 = vshrl.u32 2102212464, %v469
      %v479 = vor.u32 %v477, %v478
      %v480 = vshll.u32 2102212464, %v468
      %v481 = vshrl.u32 920167782, %v469
      %v482 = vor.u32 %v480, %v481
      %v483 = vshll.u32 920167782, %v468
      %v484 = vshrl.u32 1326507024, %v469
      %v485 = vor.u32 %v483, %v484
      %vm486 = vcmp.lt.s32.totalorder %v467, 1
      %vm487 = vcmp.lt.s32.totalorder %v467, 2
      %vm488 = vcmp.lt.s32.totalorder %v467, 3
      %vm489 = vcmp.lt.s32.totalorder %v467, 4
      %v490 = vsel %vm486, %v470, %v473
      %v491 = vsel %vm489, %v479, 2102212464
      %v492 = vsel %vm488, %v476, %v491
      %v493 = vsel %vm487, %v490, %v492
      %v494 = vsel %vm486, %v473, %v476
      %v495 = vsel %vm489, %v482, 920167782
      %v496 = vsel %vm488, %v479, %v495
      %v497 = vsel %vm487, %v494, %v496
      %v498 = vsel %vm486, %v476, %v479
      %v499 = vsel %vm489, %v485, 1326507024
      %v500 = vsel %vm488, %v482, %v499
      %v501 = vsel %vm487, %v498, %v500
      %v502 = vshll.u32 %v462, 8
      %v503 = vand.u32 %v502, 65535
      %v504 = vshrl.u32 %v502, 16
      %v505 = vand.u32 %v501, 65535
      %v506 = vshrl.u32 %v501, 16
      %v507 = vmul.u32 %v503, %v505
      %v508 = vmul.u32 %v503, %v506
      %v509 = vmul.u32 %v504, %v505
      %v510 = vmul.u32 %v504, %v506
      %v511 = vshll.u32 %v508, 16
      %v512 = vshrl.u32 %v508, 16
      %v513 = vshll.u32 %v509, 16
      %v514 = vshrl.u32 %v509, 16
      %vm515 = vc.u32 %v507, %v511
      %v516 = vsel %vm515, 1, 0
      %v517 = vadd.s32 %v507, %v511
      %v518 = vadd.s32 %v510, %v516
      %vm519 = vc.u32 %v517, %v513
      %v520 = vsel %vm519, 1, 0
      %v521 = vadd.s32 %v517, %v513
      %v522 = vadd.s32 %v518, %v520
      %v523 = vadd.s32 %v522, %v512
      %v524 = vadd.s32 %v523, %v514
      %v525 = vand.u32 %v502, 65535
      %v526 = vshrl.u32 %v502, 16
      %v527 = vand.u32 %v497, 65535
      %v528 = vshrl.u32 %v497, 16
      %v529 = vmul.u32 %v525, %v527
      %v530 = vmul.u32 %v525, %v528
      %v531 = vmul.u32 %v526, %v527
      %v532 = vmul.u32 %v526, %v528
      %v533 = vshll.u32 %v530, 16
      %v534 = vshrl.u32 %v530, 16
      %v535 = vshll.u32 %v531, 16
      %v536 = vshrl.u32 %v531, 16
      %vm537 = vc.u32 %v529, %v533
      %v538 = vsel %vm537, 1, 0
      %v539 = vadd.s32 %v529, %v533
      %v540 = vadd.s32 %v532, %v538
      %vm541 = vc.u32 %v539, %v535
      %v542 = vsel %vm541, 1, 0
      %v543 = vadd.s32 %v539, %v535
      %v544 = vadd.s32 %v540, %v542
      %v545 = vadd.s32 %v544, %v534
      %v546 = vadd.s32 %v545, %v536
      %v547 = vmul.u32 %v502, %v493
      %v548 = vadd.s32 %v524, %v543
      %vm549 = vc.u32 %v524, %v543
      %v550 = vadd.s32 %v546, 1
      %v551 = vsel %vm549, %v550, %v546
      %v552 = vadd.s32 %v547, %v551
      %v553 = vadd.s32 %v552, 536870912
      %v554 = vshrl.u32 %v553, 30
      %v555 = vshll.u32 %v554, 30
      %v556 = vsub.s32 %v552, %v555
      %vm557 = vcmp.lt.s32.totalorder %v556, 0
      %v558 = vsub.s32 0, %v556
      %v559 = vsel %vm557, %v558, %v556
      %v560 = vclz %v559
      %v561 = vsub.s32 %v560, 2
      %vm562 = vcmp.gt.s32.totalorder 0, %v561
      %v563 = vsel %vm562, 0, %v561
      %v564 = vsub.s32 32, %v563
      %v565 = vshll.u32 %v556, %v563
      %v566 = vshrl.u32 %v548, %v564
      %v567 = vor.u32 %v565, %v566
      %v568 = vsub.s32 4294967266, %v563
      %v569 = vadd.s32 %v568, 127
      %v570 = vshll.u32 %v569, 23
      %v571 = vor.u32 4788187, %v570
      %v572 = vand.u32 2147483647, %v571
      %v574 = vcvt.s32.f32 %v567
      %v575 = vmul.f32 %v574, %v572
      %v576 = vxor.u32 %v575, 2147483648
      %v577 = vsel %vm456, %v576, %v575
      %v578 = vsub.s32 4, %v554
      %v579 = vsel %vm456, %v578, %v554
      %v580 = vsel %vm455, %v295, %v577
      %v581 = vsel %vm455, 0, %v579
      %v582 = vmul.f32 %v580, %v580
      %v583 = vmul.f32 %v582, -0.001358992
      %v584 = vadd.f32 %v583, 0.041655596
      %v585 = vmul.f32 %v582, %v584
      %v586 = vadd.f32 %v585, -0.4999988
      %v587 = vmul.f32 %v582, %v586
      %v588 = vadd.f32 1.0, %v587
      %v589 = vmul.f32 %v580, %v580
      %v590 = vmul.f32 %v589, -0.00019511016
      %v591 = vadd.f32 %v590, 0.008332121
      %v592 = vmul.f32 %v589, %v591
      %v593 = vadd.f32 %v592, -0.16666654
      %v594 = vmul.f32 %v589, %v593
      %v595 = vadd.f32 %v594, 1.0
      %v596 = vmul.f32 %v595, %v580
      %vm597 = vweird.f32 %v295
      %v598 = vand.u32 %v581, 3
      %vm599 = vcmp.lt.s32.totalorder %v598, 2
      %vm600 = vcmp.eq.s32.totalorder %v598, 0
      %v601 = vxor.u32 %v596, 2147483648
      %v602 = vsel %vm600, %v588, %v601
      %vm603 = vcmp.eq.s32.totalorder %v598, 2
      %v604 = vxor.u32 %v588, 2147483648
      %v605 = vsel %vm603, %v604, %v596
      %v606 = vsel %vm599, %v602, %v605
      %v607 = vsel %vm597, nan, %v606
      %608 = vst.msk [vmem:[%s191 + $0x8] sm:$0xff] %vm226, %v607
      %v609 = vand.u32 2147483647, %v297
      %vm610 = vcmp.le.f32.partialorder %v609, 0.7853982
      %vm611 = vcmp.lt.s32.totalorder %v297, 0
      %v612 = vand.u32 %v297, 2139095040
      %v613 = vshrl.u32 %v612, 23
      %v614 = vsub.s32 %v613, 127
      %v615 = vand.u32 2147483647, %v297
      %v616 = vand.u32 %v615, 8388607
      %v617 = vor.u32 %v616, 8388608
      %v618 = vsub.s32 0, %v617
      %v619 = vadd.s32 %v614, 1
      %vm620 = vcmp.gt.s32.totalorder %v619, 0
      %v621 = vsel %vm620, %v619, 0
      %v622 = vshrl.u32 %v621, 5
      %v623 = vand.u32 %v621, 31
      %v624 = vsub.s32 32, %v623
      %v625 = vshrl.u32 683565275, %v624
      %v626 = vshll.u32 683565275, %v623
      %v627 = vshrl.u32 2475754826, %v624
      %v628 = vor.u32 %v626, %v627
      %v629 = vshll.u32 2475754826, %v623
      %v630 = vshrl.u32 2131351028, %v624
      %v631 = vor.u32 %v629, %v630
      %v632 = vshll.u32 2131351028, %v623
      %v633 = vshrl.u32 2102212464, %v624
      %v634 = vor.u32 %v632, %v633
      %v635 = vshll.u32 2102212464, %v623
      %v636 = vshrl.u32 920167782, %v624
      %v637 = vor.u32 %v635, %v636
      %v638 = vshll.u32 920167782, %v623
      %v639 = vshrl.u32 1326507024, %v624
      %v640 = vor.u32 %v638, %v639
      %vm641 = vcmp.lt.s32.totalorder %v622, 1
      %vm642 = vcmp.lt.s32.totalorder %v622, 2
      %vm643 = vcmp.lt.s32.totalorder %v622, 3
      %vm644 = vcmp.lt.s32.totalorder %v622, 4
      %v645 = vsel %vm641, %v625, %v628
      %v646 = vsel %vm644, %v634, 2102212464
      %v647 = vsel %vm643, %v631, %v646
      %v648 = vsel %vm642, %v645, %v647
      %v649 = vsel %vm641, %v628, %v631
      %v650 = vsel %vm644, %v637, 920167782
      %v651 = vsel %vm643, %v634, %v650
      %v652 = vsel %vm642, %v649, %v651
      %v653 = vsel %vm641, %v631, %v634
      %v654 = vsel %vm644, %v640, 1326507024
      %v655 = vsel %vm643, %v637, %v654
      %v656 = vsel %vm642, %v653, %v655
      %v657 = vshll.u32 %v617, 8
      %v658 = vand.u32 %v657, 65535
      %v659 = vshrl.u32 %v657, 16
      %v660 = vand.u32 %v656, 65535
      %v661 = vshrl.u32 %v656, 16
      %v662 = vmul.u32 %v658, %v660
      %v663 = vmul.u32 %v658, %v661
      %v664 = vmul.u32 %v659, %v660
      %v665 = vmul.u32 %v659, %v661
      %v666 = vshll.u32 %v663, 16
      %v667 = vshrl.u32 %v663, 16
      %v668 = vshll.u32 %v664, 16
      %v669 = vshrl.u32 %v664, 16
      %vm670 = vc.u32 %v662, %v666
      %v671 = vsel %vm670, 1, 0
      %v672 = vadd.s32 %v662, %v666
      %v673 = vadd.s32 %v665, %v671
      %vm674 = vc.u32 %v672, %v668
      %v675 = vsel %vm674, 1, 0
      %v676 = vadd.s32 %v672, %v668
      %v677 = vadd.s32 %v673, %v675
      %v678 = vadd.s32 %v677, %v667
      %v679 = vadd.s32 %v678, %v669
      %v680 = vand.u32 %v657, 65535
      %v681 = vshrl.u32 %v657, 16
      %v682 = vand.u32 %v652, 65535
      %v683 = vshrl.u32 %v652, 16
      %v684 = vmul.u32 %v680, %v682
      %v685 = vmul.u32 %v680, %v683
      %v686 = vmul.u32 %v681, %v682
      %v687 = vmul.u32 %v681, %v683
      %v688 = vshll.u32 %v685, 16
      %v689 = vshrl.u32 %v685, 16
      %v690 = vshll.u32 %v686, 16
      %v691 = vshrl.u32 %v686, 16
      %vm692 = vc.u32 %v684, %v688
      %v693 = vsel %vm692, 1, 0
      %v694 = vadd.s32 %v684, %v688
      %v695 = vadd.s32 %v687, %v693
      %vm696 = vc.u32 %v694, %v690
      %v697 = vsel %vm696, 1, 0
      %v698 = vadd.s32 %v694, %v690
      %v699 = vadd.s32 %v695, %v697
      %v700 = vadd.s32 %v699, %v689
      %v701 = vadd.s32 %v700, %v691
      %v702 = vmul.u32 %v657, %v648
      %v703 = vadd.s32 %v679, %v698
      %vm704 = vc.u32 %v679, %v698
      %v705 = vadd.s32 %v701, 1
      %v706 = vsel %vm704, %v705, %v701
      %v707 = vadd.s32 %v702, %v706
      %v708 = vadd.s32 %v707, 536870912
      %v709 = vshrl.u32 %v708, 30
      %v710 = vshll.u32 %v709, 30
      %v711 = vsub.s32 %v707, %v710
      %vm712 = vcmp.lt.s32.totalorder %v711, 0
      %v713 = vsub.s32 0, %v711
      %v714 = vsel %vm712, %v713, %v711
      %v715 = vclz %v714
      %v716 = vsub.s32 %v715, 2
      %vm717 = vcmp.gt.s32.totalorder 0, %v716
      %v718 = vsel %vm717, 0, %v716
      %v719 = vsub.s32 32, %v718
      %v720 = vshll.u32 %v711, %v718
      %v721 = vshrl.u32 %v703, %v719
      %v722 = vor.u32 %v720, %v721
      %v723 = vsub.s32 4294967266, %v718
      %v724 = vadd.s32 %v723, 127
      %v725 = vshll.u32 %v724, 23
      %v726 = vor.u32 4788187, %v725
      %v727 = vand.u32 2147483647, %v726
      %v729 = vcvt.s32.f32 %v722
      %v730 = vmul.f32 %v729, %v727
      %v731 = vxor.u32 %v730, 2147483648
      %v732 = vsel %vm611, %v731, %v730
      %v733 = vsub.s32 4, %v709
      %v734 = vsel %vm611, %v733, %v709
      %v735 = vsel %vm610, %v297, %v732
      %v736 = vsel %vm610, 0, %v734
      %v737 = vmul.f32 %v735, %v735
      %v738 = vmul.f32 %v737, -0.001358992
      %v739 = vadd.f32 %v738, 0.041655596
      %v740 = vmul.f32 %v737, %v739
      %v741 = vadd.f32 %v740, -0.4999988
      %v742 = vmul.f32 %v737, %v741
      %v743 = vadd.f32 1.0, %v742
      %v744 = vmul.f32 %v735, %v735
      %v745 = vmul.f32 %v744, -0.00019511016
      %v746 = vadd.f32 %v745, 0.008332121
      %v747 = vmul.f32 %v744, %v746
      %v748 = vadd.f32 %v747, -0.16666654
      %v749 = vmul.f32 %v744, %v748
      %v750 = vadd.f32 %v749, 1.0
      %v751 = vmul.f32 %v750, %v735
      %vm752 = vweird.f32 %v297
      %v753 = vadd.s32 %v736, 3
      %v754 = vand.u32 %v753, 3
      %vm755 = vcmp.lt.s32.totalorder %v754, 2
      %vm756 = vcmp.eq.s32.totalorder %v754, 0
      %v757 = vxor.u32 %v751, 2147483648
      %v758 = vsel %vm756, %v743, %v757
      %vm759 = vcmp.eq.s32.totalorder %v754, 2
      %v760 = vxor.u32 %v743, 2147483648
      %v761 = vsel %vm759, %v760, %v751
      %v762 = vsel %vm755, %v758, %v761
      %v763 = vsel %vm752, nan, %v762
      %764 = vst.msk [vmem:[%s191 + $0x10] sm:$0xff] %vm226, %v763
      %v765 = vand.u32 2147483647, %v297
      %vm766 = vcmp.le.f32.partialorder %v765, 0.7853982
      %vm767 = vcmp.lt.s32.totalorder %v297, 0
      %v768 = vand.u32 %v297, 2139095040
      %v769 = vshrl.u32 %v768, 23
      %v770 = vsub.s32 %v769, 127
      %v771 = vand.u32 2147483647, %v297
      %v772 = vand.u32 %v771, 8388607
      %v773 = vor.u32 %v772, 8388608
      %v774 = vsub.s32 0, %v773
      %v775 = vadd.s32 %v770, 1
      %vm776 = vcmp.gt.s32.totalorder %v775, 0
      %v777 = vsel %vm776, %v775, 0
      %v778 = vshrl.u32 %v777, 5
      %v779 = vand.u32 %v777, 31
      %v780 = vsub.s32 32, %v779
      %v781 = vshrl.u32 683565275, %v780
      %v782 = vshll.u32 683565275, %v779
      %v783 = vshrl.u32 2475754826, %v780
      %v784 = vor.u32 %v782, %v783
      %v785 = vshll.u32 2475754826, %v779
      %v786 = vshrl.u32 2131351028, %v780
      %v787 = vor.u32 %v785, %v786
      %v788 = vshll.u32 2131351028, %v779
      %v789 = vshrl.u32 2102212464, %v780
      %v790 = vor.u32 %v788, %v789
      %v791 = vshll.u32 2102212464, %v779
      %v792 = vshrl.u32 920167782, %v780
      %v793 = vor.u32 %v791, %v792
      %v794 = vshll.u32 920167782, %v779
      %v795 = vshrl.u32 1326507024, %v780
      %v796 = vor.u32 %v794, %v795
      %vm797 = vcmp.lt.s32.totalorder %v778, 1
      %vm798 = vcmp.lt.s32.totalorder %v778, 2
      %vm799 = vcmp.lt.s32.totalorder %v778, 3
      %vm800 = vcmp.lt.s32.totalorder %v778, 4
      %v801 = vsel %vm797, %v781, %v784
      %v802 = vsel %vm800, %v790, 2102212464
      %v803 = vsel %vm799, %v787, %v802
      %v804 = vsel %vm798, %v801, %v803
      %v805 = vsel %vm797, %v784, %v787
      %v806 = vsel %vm800, %v793, 920167782
      %v807 = vsel %vm799, %v790, %v806
      %v808 = vsel %vm798, %v805, %v807
      %v809 = vsel %vm797, %v787, %v790
      %v810 = vsel %vm800, %v796, 1326507024
      %v811 = vsel %vm799, %v793, %v810
      %v812 = vsel %vm798, %v809, %v811
      %v813 = vshll.u32 %v773, 8
      %v814 = vand.u32 %v813, 65535
      %v815 = vshrl.u32 %v813, 16
      %v816 = vand.u32 %v812, 65535
      %v817 = vshrl.u32 %v812, 16
      %v818 = vmul.u32 %v814, %v816
      %v819 = vmul.u32 %v814, %v817
      %v820 = vmul.u32 %v815, %v816
      %v821 = vmul.u32 %v815, %v817
      %v822 = vshll.u32 %v819, 16
      %v823 = vshrl.u32 %v819, 16
      %v824 = vshll.u32 %v820, 16
      %v825 = vshrl.u32 %v820, 16
      %vm826 = vc.u32 %v818, %v822
      %v827 = vsel %vm826, 1, 0
      %v828 = vadd.s32 %v818, %v822
      %v829 = vadd.s32 %v821, %v827
      %vm830 = vc.u32 %v828, %v824
      %v831 = vsel %vm830, 1, 0
      %v832 = vadd.s32 %v828, %v824
      %v833 = vadd.s32 %v829, %v831
      %v834 = vadd.s32 %v833, %v823
      %v835 = vadd.s32 %v834, %v825
      %v836 = vand.u32 %v813, 65535
      %v837 = vshrl.u32 %v813, 16
      %v838 = vand.u32 %v808, 65535
      %v839 = vshrl.u32 %v808, 16
      %v840 = vmul.u32 %v836, %v838
      %v841 = vmul.u32 %v836, %v839
      %v842 = vmul.u32 %v837, %v838
      %v843 = vmul.u32 %v837, %v839
      %v844 = vshll.u32 %v841, 16
      %v845 = vshrl.u32 %v841, 16
      %v846 = vshll.u32 %v842, 16
      %v847 = vshrl.u32 %v842, 16
      %vm848 = vc.u32 %v840, %v844
      %v849 = vsel %vm848, 1, 0
      %v850 = vadd.s32 %v840, %v844
      %v851 = vadd.s32 %v843, %v849
      %vm852 = vc.u32 %v850, %v846
      %v853 = vsel %vm852, 1, 0
      %v854 = vadd.s32 %v850, %v846
      %v855 = vadd.s32 %v851, %v853
      %v856 = vadd.s32 %v855, %v845
      %v857 = vadd.s32 %v856, %v847
      %v858 = vmul.u32 %v813, %v804
      %v859 = vadd.s32 %v835, %v854
      %vm860 = vc.u32 %v835, %v854
      %v861 = vadd.s32 %v857, 1
      %v862 = vsel %vm860, %v861, %v857
      %v863 = vadd.s32 %v858, %v862
      %v864 = vadd.s32 %v863, 536870912
      %v865 = vshrl.u32 %v864, 30
      %v866 = vshll.u32 %v865, 30
      %v867 = vsub.s32 %v863, %v866
      %vm868 = vcmp.lt.s32.totalorder %v867, 0
      %v869 = vsub.s32 0, %v867
      %v870 = vsel %vm868, %v869, %v867
      %v871 = vclz %v870
      %v872 = vsub.s32 %v871, 2
      %vm873 = vcmp.gt.s32.totalorder 0, %v872
      %v874 = vsel %vm873, 0, %v872
      %v875 = vsub.s32 32, %v874
      %v876 = vshll.u32 %v867, %v874
      %v877 = vshrl.u32 %v859, %v875
      %v878 = vor.u32 %v876, %v877
      %v879 = vsub.s32 4294967266, %v874
      %v880 = vadd.s32 %v879, 127
      %v881 = vshll.u32 %v880, 23
      %v882 = vor.u32 4788187, %v881
      %v883 = vand.u32 2147483647, %v882
      %v885 = vcvt.s32.f32 %v878
      %v886 = vmul.f32 %v885, %v883
      %v887 = vxor.u32 %v886, 2147483648
      %v888 = vsel %vm767, %v887, %v886
      %v889 = vsub.s32 4, %v865
      %v890 = vsel %vm767, %v889, %v865
      %v891 = vsel %vm766, %v297, %v888
      %v892 = vsel %vm766, 0, %v890
      %v893 = vmul.f32 %v891, %v891
      %v894 = vmul.f32 %v893, -0.001358992
      %v895 = vadd.f32 %v894, 0.041655596
      %v896 = vmul.f32 %v893, %v895
      %v897 = vadd.f32 %v896, -0.4999988
      %v898 = vmul.f32 %v893, %v897
      %v899 = vadd.f32 1.0, %v898
      %v900 = vmul.f32 %v891, %v891
      %v901 = vmul.f32 %v900, -0.00019511016
      %v902 = vadd.f32 %v901, 0.008332121
      %v903 = vmul.f32 %v900, %v902
      %v904 = vadd.f32 %v903, -0.16666654
      %v905 = vmul.f32 %v900, %v904
      %v906 = vadd.f32 %v905, 1.0
      %v907 = vmul.f32 %v906, %v891
      %vm908 = vweird.f32 %v297
      %v909 = vand.u32 %v892, 3
      %vm910 = vcmp.lt.s32.totalorder %v909, 2
      %vm911 = vcmp.eq.s32.totalorder %v909, 0
      %v912 = vxor.u32 %v907, 2147483648
      %v913 = vsel %vm911, %v899, %v912
      %vm914 = vcmp.eq.s32.totalorder %v909, 2
      %v915 = vxor.u32 %v899, 2147483648
      %v916 = vsel %vm914, %v915, %v907
      %v917 = vsel %vm910, %v913, %v916
      %v918 = vsel %vm908, nan, %v917
      %919 = vst.msk [vmem:[%s191 + $0x18] sm:$0xff] %vm226, %v918
      %p920 = scmp.lt.s32.totalorder %s15, 1
      %s921 = scalar_select %p920, %s15, 1
      %s922 = smul.addr %s921, 4
      %s923 = smul.addr %s922, 8
      %s924 = scalar_lea.vmem %s4, %s923
      // Predicated region
      $region37: #{pipeline_forward.6} parent=35 // pred_check
        %p925 = pneg %p122
      $region38: #{pipeline_forward.6} parent=35 // pred_check_branch
        %927 = sbr.rel (%p925) target = $region40
      $region39: #{pipeline_forward.6} parent=35 // pred_region
        _
      $region40: #{pipeline_forward.6} parent=35 // pred_fallthru
        _
    $region36: #{pipeline_forward.6} parent=5 // pred_fallthru
      _
    %p928 = scmp.le.s32.totalorder 2, %s10
    // Predicated region
    $region41: #{pipeline_forward.6} parent=5 // pred_check
      %p929 = pneg %p928
    $region42: #{pipeline_forward.6} parent=5 // pred_check_branch
      %931 = sbr.rel (%p929) target = $region44
    $region43: #{pipeline_forward.6} parent=5 // pred_region
      %s932 = ssub.s32 %s10, 2
      // Predicated region
      $region45: #{pipeline_forward.6} parent=43 // pred_check
        %p933 = pneg %p128
      $region46: #{pipeline_forward.6} parent=43 // pred_check_branch
        %935 = sbr.rel (%p933) target = $region48
      $region47: #{pipeline_forward.6} parent=43 // pred_region
        %p936 = scmp.lt.s32.totalorder %s16, 1
        %s937 = scalar_select %p936, %s16, 1
        %s938 = smul.addr %s937, 4
        %s939 = smul.addr %s938, 8
        %s940 = scalar_lea.vmem %s4, %s939
      $region48: #{pipeline_forward.6} parent=43 // pred_fallthru
        _
    $region44: #{pipeline_forward.6} parent=5 // pred_fallthru
      _
  $region6: #{pipeline_forward.6} parent=0 // loop_footer
    %s14 = sadd.s32 1, %s10
  $region7: #{pipeline_forward.6} parent=0 // loop_footer_branch
    %9 = sbr.rel target = $region3
  $region8: #{pipeline_forward.6} parent=0 // loop_exit
    _

// kernel: pipeline_forward.4
$region0: #{pipeline_forward.4}
  #allocation0 [shape = 'u32[]', space=smem, size = 0x4, offset = 0x4, fixed_abs, tag = 'smem constant byte address 0x4 - core index']
  #allocation1 [shape = 'u32[72,128]{1,0:T(1,128)}', space=vmem, size = 0x9000, scoped, tag = 'internal scratch']
  %s0 = inlined_call_operand.vmem [shape: bf16[2,9,2,9,8], index: 0, kind: input, shape index: {}]
  %s1 = inlined_call_operand.vmem [shape: bf16[36,128], index: 1, kind: input, shape index: {}]
  %s2 = inlined_call_operand.vmem [shape: f32[1,128], index: 2, kind: input, shape index: {}]
  %s3 = inlined_call_operand.hbm [shape: f32[2,8,8,128], index: 3, kind: output, shape index: {}]
  %s4 = sld [smem:[#allocation0]]
  $region45: #{pipeline_forward.4} parent=0
    _
  %s6 = ssub.s32 1, %s4
  %s7 = scalar_select 0, %s6, %s4
  $region1: #{pipeline_forward.4} parent=0
    #allocation2 [shape = 'u8[65536]{0}', space=vmem, size = 0x10000, scoped, tag = 'output window, operand 0']
    #allocation3 [shape = 's32[2]{0}', space=sflag, size = 0x8, scoped, tag = 'scoped memory for pipeline_forward.4']
    %8 = vsyncpa [#allocation3], 0
    %s9 = scalar_lea.sflag [#allocation3], 1
    %10 = vsyncpa %s9, 0
    loop: start=0, step=1, limit=4
    $region2: #{pipeline_forward.4} parent=1 // loop_pre_header
      _
    $region3: #{pipeline_forward.4} parent=1 // loop_header
      %s12 = sphi 0, %s16
      %p13 = scmp.ge.s32.totalorder %s12, 4
      %s22 = sphi 0, %s24
      %s25 = sphi 0, %s22
      %s26 = sphi 0, %s25
      %s42 = sphi 0, %s26
      %s46 = sphi 0, %s46
      %s48 = sphi 0, %s46
      %s49 = sphi 0, %s48
      %s63 = sphi 0, %s49
      %s67 = sphi 0, %s67
      %s69 = sphi 0, %s67
      %s70 = sphi 0, %s69
      %s84 = sphi 0, %s70
      %s90 = sphi 0, %s92
      %s93 = sphi 0, %s90
      %s94 = sphi 0, %s93
      %s110 = sphi 0, %s94
    $region4: #{pipeline_forward.4} parent=1 // loop_header_branch
      %15 = sbr.rel (%p13) target = $region8
    $region5: #{pipeline_forward.4} parent=1 // loop_body
      %s17 = ssub.s32 %s12, 1
      %s18 = ssub.s32 %s12, 2
      %s19 = sadd.s32 %s12, 1
      %s20 = ssub.s32 %s12, %s19
      %p21 = scmp.eq.s32.totalorder %s20, 0
      %s23 = sadd.s32 %s22, 1
      %s24 = scalar_select %p21, %s22, %s23
      %p27 = pneg %p21
      %p28 = scmp.eq.s32.totalorder %s12, 1
      %p29 = por %p27, %p28
      %p30 = scmp.ne.s32.totalorder %s22, %s25
      %p31 = scmp.eq.s32.totalorder %s12, 0
      %p32 = por %p30, %p31
      %p33 = scmp.ne.s32.totalorder %s22, %s25
      %p34 = scmp.eq.s32.totalorder %s17, 1
      %p35 = por %p33, %p34
      %p36 = scmp.ne.s32.totalorder %s25, %s26
      %p37 = scmp.eq.s32.totalorder %s17, 0
      %p38 = por %p36, %p37
      %p39 = scmp.ne.s32.totalorder %s25, %s26
      %p40 = scmp.eq.s32.totalorder %s18, 1
      %p41 = por %p39, %p40
      %p43 = scmp.ne.s32.totalorder %s26, %s42
      %p44 = scmp.eq.s32.totalorder %s18, 0
      %p45 = por %p43, %p44
      %s47 = sadd.s32 %s46, 1
      %p50 = scmp.eq.s32.totalorder %s12, 1
      %p51 = scmp.ne.s32.totalorder %s46, %s48
      %p52 = scmp.eq.s32.totalorder %s12, 0
      %p53 = por %p51, %p52
      %p54 = scmp.ne.s32.totalorder %s46, %s48
      %p55 = scmp.eq.s32.totalorder %s17, 1
      %p56 = por %p54, %p55
      %p57 = scmp.ne.s32.totalorder %s48, %s49
      %p58 = scmp.eq.s32.totalorder %s17, 0
      %p59 = por %p57, %p58
      %p60 = scmp.ne.s32.totalorder %s48, %s49
      %p61 = scmp.eq.s32.totalorder %s18, 1
      %p62 = por %p60, %p61
      %p64 = scmp.ne.s32.totalorder %s49, %s63
      %p65 = scmp.eq.s32.totalorder %s18, 0
      %p66 = por %p64, %p65
      %s68 = sadd.s32 %s67, 1
      %p71 = scmp.eq.s32.totalorder %s12, 1
      %p72 = scmp.ne.s32.totalorder %s67, %s69
      %p73 = scmp.eq.s32.totalorder %s12, 0
      %p74 = por %p72, %p73
      %p75 = scmp.ne.s32.totalorder %s67, %s69
      %p76 = scmp.eq.s32.totalorder %s17, 1
      %p77 = por %p75, %p76
      %p78 = scmp.ne.s32.totalorder %s69, %s70
      %p79 = scmp.eq.s32.totalorder %s17, 0
      %p80 = por %p78, %p79
      %p81 = scmp.ne.s32.totalorder %s69, %s70
      %p82 = scmp.eq.s32.totalorder %s18, 1
      %p83 = por %p81, %p82
      %p85 = scmp.ne.s32.totalorder %s70, %s84
      %p86 = scmp.eq.s32.totalorder %s18, 0
      %p87 = por %p85, %p86
      %s88 = ssub.s32 %s12, %s19
      %p89 = scmp.eq.s32.totalorder %s88, 0
      %s91 = sadd.s32 %s90, 1
      %s92 = scalar_select %p89, %s90, %s91
      %p95 = pneg %p89
      %p96 = scmp.eq.s32.totalorder %s12, 1
      %p97 = por %p95, %p96
      %p98 = scmp.ne.s32.totalorder %s90, %s93
      %p99 = scmp.eq.s32.totalorder %s12, 0
      %p100 = por %p98, %p99
      %p101 = scmp.ne.s32.totalorder %s90, %s93
      %p102 = scmp.eq.s32.totalorder %s17, 1
      %p103 = por %p101, %p102
      %p104 = scmp.ne.s32.totalorder %s93, %s94
      %p105 = scmp.eq.s32.totalorder %s17, 0
      %p106 = por %p104, %p105
      %p107 = scmp.ne.s32.totalorder %s93, %s94
      %p108 = scmp.eq.s32.totalorder %s18, 1
      %p109 = por %p107, %p108
      %p111 = scmp.ne.s32.totalorder %s94, %s110
      %p112 = scmp.eq.s32.totalorder %s18, 0
      %p113 = por %p111, %p112
      %p114 = scmp.le.s32.totalorder 1, %s12
      %p115 = scmp.lt.s32.totalorder %s12, 3
      %p116 = pnand %p114, %p115
      %p117 = pneg %p116
      // Predicated region
      $region9: #{pipeline_forward.4} parent=5 // pred_check
        _
      $region10: #{pipeline_forward.4} parent=5 // pred_check_branch
        %119 = sbr.rel (%p116) target = $region12
      $region11: #{pipeline_forward.4} parent=5 // pred_region
        %s120 = ssub.s32 %s12, 1
        // Predicated region
        $region13: #{pipeline_forward.4} parent=11 // pred_check
          %p121 = pneg %p59
        $region14: #{pipeline_forward.4} parent=11 // pred_check_branch
          %123 = sbr.rel (%p121) target = $region16
        $region15: #{pipeline_forward.4} parent=11 // pred_region
          _
        $region16: #{pipeline_forward.4} parent=11 // pred_fallthru
          _
        // Predicated region
        $region17: #{pipeline_forward.4} parent=11 // pred_check
          %p124 = pneg %p80
        $region18: #{pipeline_forward.4} parent=11 // pred_check_branch
          %126 = sbr.rel (%p124) target = $region20
        $region19: #{pipeline_forward.4} parent=11 // pred_region
          _
        $region20: #{pipeline_forward.4} parent=11 // pred_fallthru
          _
      $region12: #{pipeline_forward.4} parent=5 // pred_fallthru
        _
      %p127 = scmp.lt.s32.totalorder %s12, 2
      // Predicated region
      $region21: #{pipeline_forward.4} parent=5 // pred_check
        %p128 = pneg %p127
      $region22: #{pipeline_forward.4} parent=5 // pred_check_branch
        %130 = sbr.rel (%p128) target = $region24
      $region23: #{pipeline_forward.4} parent=5 // pred_region
        // Predicated region
        $region25: #{pipeline_forward.4} parent=23 // pred_check
          %p131 = pneg %p32
        $region26: #{pipeline_forward.4} parent=23 // pred_check_branch
          %133 = sbr.rel (%p131) target = $region28
        $region27: #{pipeline_forward.4} parent=23 // pred_region
          %p134 = scmp.lt.s32.totalorder %s12, 1
          %s135 = scalar_select %p134, %s12, 1
          %s136 = smul.addr %s135, 36
          %s137 = smul.addr %s136, 4
          %s138 = scalar_lea.vmem %s0, %s137
        $region28: #{pipeline_forward.4} parent=23 // pred_fallthru
          _
      $region24: #{pipeline_forward.4} parent=5 // pred_fallthru
        _
      %p139 = scmp.le.s32.totalorder 1, %s12
      %p140 = scmp.lt.s32.totalorder %s12, 3
      %p141 = pnand %p139, %p140
      %p142 = pneg %p141
      // Predicated region
      $region29: #{pipeline_forward.4} parent=5 // pred_check
        _
      $region30: #{pipeline_forward.4} parent=5 // pred_check_branch
        %144 = sbr.rel (%p141) target = $region32
      $region31: #{pipeline_forward.4} parent=5 // pred_region
        %s145 = ssub.s32 %s12, 1
        %p146 = scmp.lt.s32.totalorder %s17, 1
        %s147 = scalar_select %p146, %s17, 1
        %s148 = smul.addr %s147, 36
        %s149 = smul.addr %s148, 4
        %s150 = scalar_lea.vmem %s0, %s149
        %p151 = pneg %p38
        %p152 = pneg %p35
        %p153 = pneg %p59
        %p154 = pneg %p56
        %p155 = pneg %p80
        %p156 = pneg %p77
        %p157 = pneg %p106
        %p158 = pneg %p103
        %s159 = sand.u32 %s93, 1
        %s160 = scalar_lea.sflag [#allocation3], %s159
        %s161 = sand.u32 %s93, 1
        %s162 = smul.addr %s161, 64
        %s163 = scalar_lea.vmem [#allocation2], %s162
        %p164 = scmp.lt.s32.totalorder %s17, 1
        %s165 = scalar_select %p164, %s17, 1
        %s166 = smul.addr %s165, 36
        %s167 = smul.addr %s166, 4
        %s168 = scalar_lea.vmem %s0, %s167
        %v170 = vld [vmem:[%s2] sm:$0x1]
        %v171 = vld [vmem:[%s168] sm:$0xf]
        %v172 = vld [vmem:[%s1] sm:$0x3]
        %v173 = vld [vmem:[%s1] sm:$0xc]
        %v175 = vunpack.c.l.b16 %v171
        %v176 = vpack.c.b16 %v175, %v175
        %177 = vrot.lane.b32.xlu0 %v176, 124
        %v178 = vpop.permute.xlu0 %177
        %v180 = vunpack.c.l.b16 %v173
        %v181 = vpack.c.b16 %v180, %v180
        %v182 = vrot.slane %v181, 2
        %vm183 = vcmask 31744
        %v185 = vsel %vm183, %v178, 0
        %vm187 = vcmask 1041408
        %v189 = vsel %vm187, %v182, 0
        %191 = vmatpush.bf16.msra.mxu0 0
        %192 = vmatpush.bf16.msra.mxu0 0
        %193 = vmatpush.bf16.msra.mxu0 0
        %194 = vmatpush.bf16.msra.mxu0 0
        %195 = vmatpush.bf16.msra.mxu0 0
        %196 = vmatpush.bf16.msra.mxu0 0
        %197 = vmatpush.bf16.msra.mxu0 0
        %198 = vmatpush.bf16.msra.mxu0 %v189
        %199 = vmatmul.bf16.gmra.mxu0 %v185
        %v200 = vpop.f32.mrf.mxu0
        %v201 = vadd.f32 0.0, %v200
        %v202 = vpop.f32.mrf.mxu0
        %203 = vdwg.mxu0
        %v205 = vsel %vm183, %v171, 0
        %v208 = vsel %vm187, %v172, 0
        %210 = vmatpush.bf16.msra.mxu0 0
        %211 = vmatpush.bf16.msra.mxu0 0
        %212 = vmatpush.bf16.msra.mxu0 0
        %213 = vmatpush.bf16.msra.mxu0 0
        %214 = vmatpush.bf16.msra.mxu0 0
        %215 = vmatpush.bf16.msra.mxu0 0
        %216 = vmatpush.bf16.msra.mxu0 0
        %217 = vmatpush.bf16.msra.mxu0 %v208
        %218 = vmatmul.bf16.gmra.mxu0 %v205
        %v219 = vpop.f32.mrf.mxu0
        %v220 = vadd.f32 %v201, %v219
        %v221 = vpop.f32.mrf.mxu0
        %222 = vdwg.mxu0
        %v223 = vld [vmem:[%s168] sm:$0xf]
        %v224 = vld [vmem:[%s168 + $0x4] sm:$0x1]
        %v225 = vld [vmem:[%s1 + $0x4] sm:$0x3]
        %v228 = vunpack.c.l.b16 %v223
        %v229 = vunpack.c.l.b16 %v224
        %v230 = vpack.c.b16 %v229, %v228
        %v232 = vshrl.u32 %v230, 16
        %v234 = vshll.u32 %v230, 16
        %v236 = vrot.slane %v234, 1
        %v237 = vor.u32 %v232, %v236
        %v239 = vsel %vm183, %v237, 0
        %v242 = vsel %vm187, %v225, 0
        %244 = vmatpush.bf16.msra.mxu0 0
        %245 = vmatpush.bf16.msra.mxu0 0
        %246 = vmatpush.bf16.msra.mxu0 0
        %247 = vmatpush.bf16.msra.mxu0 0
        %248 = vmatpush.bf16.msra.mxu0 0
        %249 = vmatpush.bf16.msra.mxu0 0
        %250 = vmatpush.bf16.msra.mxu0 0
        %251 = vmatpush.bf16.msra.mxu0 %v242
        %252 = vmatmul.bf16.gmra.mxu0 %v239
        %v253 = vpop.f32.mrf.mxu0
        %v254 = vadd.f32 0.0, %v253
        %v255 = vpop.f32.mrf.mxu0
        %256 = vdwg.mxu0
        %v257 = vadd.f32 %v220, %v254
        %s258 = scalar_lea.vmem %s168, 8
        %v259 = vld [vmem:[%s258] sm:$0xf]
        %v260 = vld [vmem:[%s1 + $0x4] sm:$0xc]
        %v262 = vunpack.c.l.b16 %v260
        %v263 = vpack.c.b16 %v262, %v262
        %v264 = vrot.slane %v263, 2
        %v266 = vsel %vm183, %v259, 0
        %v269 = vsel %vm187, %v264, 0
        %271 = vmatpush.bf16.msra.mxu0 0
        %272 = vmatpush.bf16.msra.mxu0 0
        %273 = vmatpush.bf16.msra.mxu0 0
        %274 = vmatpush.bf16.msra.mxu0 0
        %275 = vmatpush.bf16.msra.mxu0 0
        %276 = vmatpush.bf16.msra.mxu0 0
        %277 = vmatpush.bf16.msra.mxu0 0
        %278 = vmatpush.bf16.msra.mxu0 %v269
        %279 = vmatmul.bf16.gmra.mxu0 %v266
        %v280 = vpop.f32.mrf.mxu0
        %v281 = vadd.f32 0.0, %v280
        %v282 = vpop.f32.mrf.mxu0
        %283 = vdwg.mxu0
        %v284 = vadd.f32 %v257, %v281
        %v285 = vld [vmem:[%s1 + $0x8] sm:$0x3]
        %v287 = vunpack.c.l.b16 %v259
        %v288 = vpack.c.b16 %v287, %v287
        %289 = vrot.lane.b32.xlu0 %v288, 124
        %v290 = vpop.permute.xlu0 %289
        %v292 = vsel %vm183, %v290, 0
        %v295 = vsel %vm187, %v285, 0
        %297 = vmatpush.bf16.msra.mxu0 0
        %298 = vmatpush.bf16.msra.mxu0 0
        %299 = vmatpush.bf16.msra.mxu0 0
        %300 = vmatpush.bf16.msra.mxu0 0
        %301 = vmatpush.bf16.msra.mxu0 0
        %302 = vmatpush.bf16.msra.mxu0 0
        %303 = vmatpush.bf16.msra.mxu0 0
        %304 = vmatpush.bf16.msra.mxu0 %v295
        %305 = vmatmul.bf16.gmra.mxu0 %v292
        %v306 = vpop.f32.mrf.mxu0
        %v307 = vadd.f32 0.0, %v306
        %v308 = vpop.f32.mrf.mxu0
        %309 = vdwg.mxu0
        %v310 = vadd.f32 %v284, %v307
        %v311 = vld [vmem:[%s258] sm:$0xf]
        %v312 = vld [vmem:[%s258 + $0x4] sm:$0x1]
        %v313 = vld [vmem:[%s1 + $0x8] sm:$0xc]
        %v316 = vunpack.c.l.b16 %v311
        %v317 = vunpack.c.l.b16 %v312
        %v318 = vpack.c.b16 %v317, %v316
        %v320 = vshrl.u32 %v318, 16
        %v322 = vshll.u32 %v318, 16
        %v324 = vrot.slane %v322, 1
        %v325 = vor.u32 %v320, %v324
        %v327 = vunpack.c.l.b16 %v313
        %v328 = vpack.c.b16 %v327, %v327
        %v329 = vrot.slane %v328, 2
        %v331 = vsel %vm183, %v325, 0
        %v334 = vsel %vm187, %v329, 0
        %336 = vmatpush.bf16.msra.mxu0 0
        %337 = vmatpush.bf16.msra.mxu0 0
        %338 = vmatpush.bf16.msra.mxu0 0
        %339 = vmatpush.bf16.msra.mxu0 0
        %340 = vmatpush.bf16.msra.mxu0 0
        %341 = vmatpush.bf16.msra.mxu0 0
        %342 = vmatpush.bf16.msra.mxu0 0
        %343 = vmatpush.bf16.msra.mxu0 %v334
        %344 = vmatmul.bf16.gmra.mxu0 %v331
        %v345 = vpop.f32.mrf.mxu0
        %v346 = vadd.f32 0.0, %v345
        %v347 = vpop.f32.mrf.mxu0
        %348 = vdwg.mxu0
        %v349 = vadd.f32 %v310, %v346
        %s350 = scalar_lea.vmem %s168, 16
        %v351 = vld [vmem:[%s350] sm:$0xf]
        %v352 = vld [vmem:[%s1 + $0xc] sm:$0x3]
        %v354 = vsel %vm183, %v351, 0
        %v357 = vsel %vm187, %v352, 0
        %359 = vmatpush.bf16.msra.mxu0 0
        %360 = vmatpush.bf16.msra.mxu0 0
        %361 = vmatpush.bf16.msra.mxu0 0
        %362 = vmatpush.bf16.msra.mxu0 0
        %363 = vmatpush.bf16.msra.mxu0 0
        %364 = vmatpush.bf16.msra.mxu0 0
        %365 = vmatpush.bf16.msra.mxu0 0
        %366 = vmatpush.bf16.msra.mxu0 %v357
        %367 = vmatmul.bf16.gmra.mxu0 %v354
        %v368 = vpop.f32.mrf.mxu0
        %v369 = vadd.f32 0.0, %v368
        %v370 = vpop.f32.mrf.mxu0
        %371 = vdwg.mxu0
        %v372 = vadd.f32 %v349, %v369
        %v373 = vld [vmem:[%s1 + $0xc] sm:$0xc]
        %v375 = vunpack.c.l.b16 %v351
        %v376 = vpack.c.b16 %v375, %v375
        %377 = vrot.lane.b32.xlu0 %v376, 124
        %v378 = vpop.permute.xlu0 %377
        %v380 = vunpack.c.l.b16 %v373
        %v381 = vpack.c.b16 %v380, %v380
        %v382 = vrot.slane %v381, 2
        %v384 = vsel %vm183, %v378, 0
        %v387 = vsel %vm187, %v382, 0
        %389 = vmatpush.bf16.msra.mxu0 0
        %390 = vmatpush.bf16.msra.mxu0 0
        %391 = vmatpush.bf16.msra.mxu0 0
        %392 = vmatpush.bf16.msra.mxu0 0
        %393 = vmatpush.bf16.msra.mxu0 0
        %394 = vmatpush.bf16.msra.mxu0 0
        %395 = vmatpush.bf16.msra.mxu0 0
        %396 = vmatpush.bf16.msra.mxu0 %v387
        %397 = vmatmul.bf16.gmra.mxu0 %v384
        %v398 = vpop.f32.mrf.mxu0
        %v399 = vadd.f32 0.0, %v398
        %v400 = vpop.f32.mrf.mxu0
        %401 = vdwg.mxu0
        %v402 = vadd.f32 %v372, %v399
        %v403 = vld [vmem:[%s350] sm:$0xf]
        %v404 = vld [vmem:[%s350 + $0x4] sm:$0x1]
        %v405 = vld [vmem:[%s1 + $0x10] sm:$0x3]
        %v408 = vunpack.c.l.b16 %v403
        %v409 = vunpack.c.l.b16 %v404
        %v410 = vpack.c.b16 %v409, %v408
        %v412 = vshrl.u32 %v410, 16
        %v414 = vshll.u32 %v410, 16
        %v416 = vrot.slane %v414, 1
        %v417 = vor.u32 %v412, %v416
        %v419 = vsel %vm183, %v417, 0
        %v422 = vsel %vm187, %v405, 0
        %424 = vmatpush.bf16.msra.mxu0 0
        %425 = vmatpush.bf16.msra.mxu0 0
        %426 = vmatpush.bf16.msra.mxu0 0
        %427 = vmatpush.bf16.msra.mxu0 0
        %428 = vmatpush.bf16.msra.mxu0 0
        %429 = vmatpush.bf16.msra.mxu0 0
        %430 = vmatpush.bf16.msra.mxu0 0
        %431 = vmatpush.bf16.msra.mxu0 %v422
        %432 = vmatmul.bf16.gmra.mxu0 %v419
        %v433 = vpop.f32.mrf.mxu0
        %v434 = vadd.f32 0.0, %v433
        %v435 = vpop.f32.mrf.mxu0
        %436 = vdwg.mxu0
        %v437 = vadd.f32 %v402, %v434
        %v439 = vperm.slane %v170, 0
        %v441 = vadd.f32 %v437, %v439
        %v442 = vmax.f32 %v441, 0.0
        %443 = vst [vmem:[%s163] sm:$0xff] %v442
        %v444 = vld [vmem:[%s350] sm:$0xf]
        %v445 = vld [vmem:[%s1] sm:$0x3]
        %v446 = vld [vmem:[%s1] sm:$0xc]
        %v448 = vunpack.c.l.b16 %v444
        %v449 = vpack.c.b16 %v448, %v448
        %450 = vrot.lane.b32.xlu0 %v449, 124
        %v451 = vpop.permute.xlu0 %450
        %v453 = vunpack.c.l.b16 %v446
        %v454 = vpack.c.b16 %v453, %v453
        %v455 = vrot.slane %v454, 2
        %v457 = vsel %vm183, %v451, 0
        %v460 = vsel %vm187, %v455, 0
        %462 = vmatpush.bf16.msra.mxu0 0
        %463 = vmatpush.bf16.msra.mxu0 0
        %464 = vmatpush.bf16.msra.mxu0 0
        %465 = vmatpush.bf16.msra.mxu0 0
        %466 = vmatpush.bf16.msra.mxu0 0
        %467 = vmatpush.bf16.msra.mxu0 0
        %468 = vmatpush.bf16.msra.mxu0 0
        %469 = vmatpush.bf16.msra.mxu0 %v460
        %470 = vmatmul.bf16.gmra.mxu0 %v457
        %v471 = vpop.f32.mrf.mxu0
        %v472 = vadd.f32 0.0, %v471
        %v473 = vpop.f32.mrf.mxu0
        %474 = vdwg.mxu0
        %v476 = vsel %vm183, %v444, 0
        %v479 = vsel %vm187, %v445, 0
        %481 = vmatpush.bf16.msra.mxu0 0
        %482 = vmatpush.bf16.msra.mxu0 0
        %483 = vmatpush.bf16.msra.mxu0 0
        %484 = vmatpush.bf16.msra.mxu0 0
        %485 = vmatpush.bf16.msra.mxu0 0
        %486 = vmatpush.bf16.msra.mxu0 0
        %487 = vmatpush.bf16.msra.mxu0 0
        %488 = vmatpush.bf16.msra.mxu0 %v479
        %489 = vmatmul.bf16.gmra.mxu0 %v476
        %v490 = vpop.f32.mrf.mxu0
        %v491 = vadd.f32 %v472, %v490
        %v492 = vpop.f32.mrf.mxu0
        %493 = vdwg.mxu0
        %v494 = vld [vmem:[%s350] sm:$0xf]
        %v495 = vld [vmem:[%s350 + $0x4] sm:$0x1]
        %v496 = vld [vmem:[%s1 + $0x4] sm:$0x3]
        %v499 = vunpack.c.l.b16 %v494
        %v500 = vunpack.c.l.b16 %v495
        %v501 = vpack.c.b16 %v500, %v499
        %v503 = vshrl.u32 %v501, 16
        %v505 = vshll.u32 %v501, 16
        %v507 = vrot.slane %v505, 1
        %v508 = vor.u32 %v503, %v507
        %v510 = vsel %vm183, %v508, 0
        %v513 = vsel %vm187, %v496, 0
        %515 = vmatpush.bf16.msra.mxu0 0
        %516 = vmatpush.bf16.msra.mxu0 0
        %517 = vmatpush.bf16.msra.mxu0 0
        %518 = vmatpush.bf16.msra.mxu0 0
        %519 = vmatpush.bf16.msra.mxu0 0
        %520 = vmatpush.bf16.msra.mxu0 0
        %521 = vmatpush.bf16.msra.mxu0 0
        %522 = vmatpush.bf16.msra.mxu0 %v513
        %523 = vmatmul.bf16.gmra.mxu0 %v510
        %v524 = vpop.f32.mrf.mxu0
        %v525 = vadd.f32 0.0, %v524
        %v526 = vpop.f32.mrf.mxu0
        %527 = vdwg.mxu0
        %v528 = vadd.f32 %v491, %v525
        %s529 = scalar_lea.vmem %s168, 24
        %v530 = vld [vmem:[%s529] sm:$0xf]
        %v531 = vld [vmem:[%s1 + $0x4] sm:$0xc]
        %v533 = vunpack.c.l.b16 %v531
        %v534 = vpack.c.b16 %v533, %v533
        %v535 = vrot.slane %v534, 2
        %v537 = vsel %vm183, %v530, 0
        %v540 = vsel %vm187, %v535, 0
        %542 = vmatpush.bf16.msra.mxu0 0
        %543 = vmatpush.bf16.msra.mxu0 0
        %544 = vmatpush.bf16.msra.mxu0 0
        %545 = vmatpush.bf16.msra.mxu0 0
        %546 = vmatpush.bf16.msra.mxu0 0
        %547 = vmatpush.bf16.msra.mxu0 0
        %548 = vmatpush.bf16.msra.mxu0 0
        %549 = vmatpush.bf16.msra.mxu0 %v540
        %550 = vmatmul.bf16.gmra.mxu0 %v537
        %v551 = vpop.f32.mrf.mxu0
        %v552 = vadd.f32 0.0, %v551
        %v553 = vpop.f32.mrf.mxu0
        %554 = vdwg.mxu0
        %v555 = vadd.f32 %v528, %v552
        %v556 = vld [vmem:[%s1 + $0x8] sm:$0x3]
        %v558 = vunpack.c.l.b16 %v530
        %v559 = vpack.c.b16 %v558, %v558
        %560 = vrot.lane.b32.xlu0 %v559, 124
        %v561 = vpop.permute.xlu0 %560
        %v563 = vsel %vm183, %v561, 0
        %v566 = vsel %vm187, %v556, 0
        %568 = vmatpush.bf16.msra.mxu0 0
        %569 = vmatpush.bf16.msra.mxu0 0
        %570 = vmatpush.bf16.msra.mxu0 0
        %571 = vmatpush.bf16.msra.mxu0 0
        %572 = vmatpush.bf16.msra.mxu0 0
        %573 = vmatpush.bf16.msra.mxu0 0
        %574 = vmatpush.bf16.msra.mxu0 0
        %575 = vmatpush.bf16.msra.mxu0 %v566
        %576 = vmatmul.bf16.gmra.mxu0 %v563
        %v577 = vpop.f32.mrf.mxu0
        %v578 = vadd.f32 0.0, %v577
        %v579 = vpop.f32.mrf.mxu0
        %580 = vdwg.mxu0
        %v581 = vadd.f32 %v555, %v578
        %v582 = vld [vmem:[%s529] sm:$0xf]
        %v583 = vld [vmem:[%s529 + $0x4] sm:$0x1]
        %v584 = vld [vmem:[%s1 + $0x8] sm:$0xc]
        %v587 = vunpack.c.l.b16 %v582
        %v588 = vunpack.c.l.b16 %v583
        %v589 = vpack.c.b16 %v588, %v587
        %v591 = vshrl.u32 %v589, 16
        %v593 = vshll.u32 %v589, 16
        %v595 = vrot.slane %v593, 1
        %v596 = vor.u32 %v591, %v595
        %v598 = vunpack.c.l.b16 %v584
        %v599 = vpack.c.b16 %v598, %v598
        %v600 = vrot.slane %v599, 2
        %v602 = vsel %vm183, %v596, 0
        %v605 = vsel %vm187, %v600, 0
        %607 = vmatpush.bf16.msra.mxu0 0
        %608 = vmatpush.bf16.msra.mxu0 0
        %609 = vmatpush.bf16.msra.mxu0 0
        %610 = vmatpush.bf16.msra.mxu0 0
        %611 = vmatpush.bf16.msra.mxu0 0
        %612 = vmatpush.bf16.msra.mxu0 0
        %613 = vmatpush.bf16.msra.mxu0 0
        %614 = vmatpush.bf16.msra.mxu0 %v605
        %615 = vmatmul.bf16.gmra.mxu0 %v602
        %v616 = vpop.f32.mrf.mxu0
        %v617 = vadd.f32 0.0, %v616
        %v618 = vpop.f32.mrf.mxu0
        %619 = vdwg.mxu0
        %v620 = vadd.f32 %v581, %v617
        %s621 = scalar_lea.vmem %s168, 32
        %v622 = vld [vmem:[%s621] sm:$0xf]
        %v623 = vld [vmem:[%s1 + $0xc] sm:$0x3]
        %v625 = vsel %vm183, %v622, 0
        %v628 = vsel %vm187, %v623, 0
        %630 = vmatpush.bf16.msra.mxu0 0
        %631 = vmatpush.bf16.msra.mxu0 0
        %632 = vmatpush.bf16.msra.mxu0 0
        %633 = vmatpush.bf16.msra.mxu0 0
        %634 = vmatpush.bf16.msra.mxu0 0
        %635 = vmatpush.bf16.msra.mxu0 0
        %636 = vmatpush.bf16.msra.mxu0 0
        %637 = vmatpush.bf16.msra.mxu0 %v628
        %638 = vmatmul.bf16.gmra.mxu0 %v625
        %v639 = vpop.f32.mrf.mxu0
        %v640 = vadd.f32 0.0, %v639
        %v641 = vpop.f32.mrf.mxu0
        %642 = vdwg.mxu0
        %v643 = vadd.f32 %v620, %v640
        %v644 = vld [vmem:[%s1 + $0xc] sm:$0xc]
        %v646 = vunpack.c.l.b16 %v622
        %v647 = vpack.c.b16 %v646, %v646
        %648 = vrot.lane.b32.xlu0 %v647, 124
        %v649 = vpop.permute.xlu0 %648
        %v651 = vunpack.c.l.b16 %v644
        %v652 = vpack.c.b16 %v651, %v651
        %v653 = vrot.slane %v652, 2
        %v655 = vsel %vm183, %v649, 0
        %v658 = vsel %vm187, %v653, 0
        %660 = vmatpush.bf16.msra.mxu0 0
        %661 = vmatpush.bf16.msra.mxu0 0
        %662 = vmatpush.bf16.msra.mxu0 0
        %663 = vmatpush.bf16.msra.mxu0 0
        %664 = vmatpush.bf16.msra.mxu0 0
        %665 = vmatpush.bf16.msra.mxu0 0
        %666 = vmatpush.bf16.msra.mxu0 0
        %667 = vmatpush.bf16.msra.mxu0 %v658
        %668 = vmatmul.bf16.gmra.mxu0 %v655
        %v669 = vpop.f32.mrf.mxu0
        %v670 = vadd.f32 0.0, %v669
        %v671 = vpop.f32.mrf.mxu0
        %672 = vdwg.mxu0
        %v673 = vadd.f32 %v643, %v670
        %v674 = vld [vmem:[%s621] sm:$0xf]
        %v675 = vld [vmem:[%s621 + $0x4] sm:$0x1]
        %v676 = vld [vmem:[%s1 + $0x10] sm:$0x3]
        %v679 = vunpack.c.l.b16 %v674
        %v680 = vunpack.c.l.b16 %v675
        %v681 = vpack.c.b16 %v680, %v679
        %v683 = vshrl.u32 %v681, 16
        %v685 = vshll.u32 %v681, 16
        %v687 = vrot.slane %v685, 1
        %v688 = vor.u32 %v683, %v687
        %v690 = vsel %vm183, %v688, 0
        %v693 = vsel %vm187, %v676, 0
        %695 = vmatpush.bf16.msra.mxu0 0
        %696 = vmatpush.bf16.msra.mxu0 0
        %697 = vmatpush.bf16.msra.mxu0 0
        %698 = vmatpush.bf16.msra.mxu0 0
        %699 = vmatpush.bf16.msra.mxu0 0
        %700 = vmatpush.bf16.msra.mxu0 0
        %701 = vmatpush.bf16.msra.mxu0 0
        %702 = vmatpush.bf16.msra.mxu0 %v693
        %703 = vmatmul.bf16.gmra.mxu0 %v690
        %v704 = vpop.f32.mrf.mxu0
        %v705 = vadd.f32 0.0, %v704
        %v706 = vpop.f32.mrf.mxu0
        %707 = vdwg.mxu0
        %v708 = vadd.f32 %v673, %v705
        %v709 = vadd.f32 %v708, %v439
        %v710 = vmax.f32 %v709, 0.0
        %s711 = scalar_lea.vmem %s163, 8 [#allocation2]
        %712 = vst [vmem:[%s711] sm:$0xff] %v710
        %v713 = vld [vmem:[%s621] sm:$0xf]
        %v714 = vld [vmem:[%s1] sm:$0x3]
        %v715 = vld [vmem:[%s1] sm:$0xc]
        %v717 = vunpack.c.l.b16 %v713
        %v718 = vpack.c.b16 %v717, %v717
        %719 = vrot.lane.b32.xlu0 %v718, 124
        %v720 = vpop.permute.xlu0 %719
        %v722 = vunpack.c.l.b16 %v715
        %v723 = vpack.c.b16 %v722, %v722
        %v724 = vrot.slane %v723, 2
        %v726 = vsel %vm183, %v720, 0
        %v729 = vsel %vm187, %v724, 0
        %731 = vmatpush.bf16.msra.mxu0 0
        %732 = vmatpush.bf16.msra.mxu0 0
        %733 = vmatpush.bf16.msra.mxu0 0
        %734 = vmatpush.bf16.msra.mxu0 0
        %735 = vmatpush.bf16.msra.mxu0 0
        %736 = vmatpush.bf16.msra.mxu0 0
        %737 = vmatpush.bf16.msra.mxu0 0
        %738 = vmatpush.bf16.msra.mxu0 %v729
        %739 = vmatmul.bf16.gmra.mxu0 %v726
        %v740 = vpop.f32.mrf.mxu0
        %v741 = vadd.f32 0.0, %v740
        %v742 = vpop.f32.mrf.mxu0
        %743 = vdwg.mxu0
        %v745 = vsel %vm183, %v713, 0
        %v748 = vsel %vm187, %v714, 0
        %750 = vmatpush.bf16.msra.mxu0 0
        %751 = vmatpush.bf16.msra.mxu0 0
        %752 = vmatpush.bf16.msra.mxu0 0
        %753 = vmatpush.bf16.msra.mxu0 0
        %754 = vmatpush.bf16.msra.mxu0 0
        %755 = vmatpush.bf16.msra.mxu0 0
        %756 = vmatpush.bf16.msra.mxu0 0
        %757 = vmatpush.bf16.msra.mxu0 %v748
        %758 = vmatmul.bf16.gmra.mxu0 %v745
        %v759 = vpop.f32.mrf.mxu0
        %v760 = vadd.f32 %v741, %v759
        %v761 = vpop.f32.mrf.mxu0
        %762 = vdwg.mxu0
        %v763 = vld [vmem:[%s621] sm:$0xf]
        %v764 = vld [vmem:[%s621 + $0x4] sm:$0x1]
        %v765 = vld [vmem:[%s1 + $0x4] sm:$0x3]
        %v768 = vunpack.c.l.b16 %v763
        %v769 = vunpack.c.l.b16 %v764
        %v770 = vpack.c.b16 %v769, %v768
        %v772 = vshrl.u32 %v770, 16
        %v774 = vshll.u32 %v770, 16
        %v776 = vrot.slane %v774, 1
        %v777 = vor.u32 %v772, %v776
        %v779 = vsel %vm183, %v777, 0
        %v782 = vsel %vm187, %v765, 0
        %784 = vmatpush.bf16.msra.mxu0 0
        %785 = vmatpush.bf16.msra.mxu0 0
        %786 = vmatpush.bf16.msra.mxu0 0
        %787 = vmatpush.bf16.msra.mxu0 0
        %788 = vmatpush.bf16.msra.mxu0 0
        %789 = vmatpush.bf16.msra.mxu0 0
        %790 = vmatpush.bf16.msra.mxu0 0
        %791 = vmatpush.bf16.msra.mxu0 %v782
        %792 = vmatmul.bf16.gmra.mxu0 %v779
        %v793 = vpop.f32.mrf.mxu0
        %v794 = vadd.f32 0.0, %v793
        %v795 = vpop.f32.mrf.mxu0
        %796 = vdwg.mxu0
        %v797 = vadd.f32 %v760, %v794
        %s798 = scalar_lea.vmem %s168, 40
        %v799 = vld [vmem:[%s798] sm:$0xf]
        %v800 = vld [vmem:[%s1 + $0x4] sm:$0xc]
        %v802 = vunpack.c.l.b16 %v800
        %v803 = vpack.c.b16 %v802, %v802
        %v804 = vrot.slane %v803, 2
        %v806 = vsel %vm183, %v799, 0
        %v809 = vsel %vm187, %v804, 0
        %811 = vmatpush.bf16.msra.mxu0 0
        %812 = vmatpush.bf16.msra.mxu0 0
        %813 = vmatpush.bf16.msra.mxu0 0
        %814 = vmatpush.bf16.msra.mxu0 0
        %815 = vmatpush.bf16.msra.mxu0 0
        %816 = vmatpush.bf16.msra.mxu0 0
        %817 = vmatpush.bf16.msra.mxu0 0
        %818 = vmatpush.bf16.msra.mxu0 %v809
        %819 = vmatmul.bf16.gmra.mxu0 %v806
        %v820 = vpop.f32.mrf.mxu0
        %v821 = vadd.f32 0.0, %v820
        %v822 = vpop.f32.mrf.mxu0
        %823 = vdwg.mxu0
        %v824 = vadd.f32 %v797, %v821
        %v825 = vld [vmem:[%s1 + $0x8] sm:$0x3]
        %v827 = vunpack.c.l.b16 %v799
        %v828 = vpack.c.b16 %v827, %v827
        %829 = vrot.lane.b32.xlu0 %v828, 124
        %v830 = vpop.permute.xlu0 %829
        %v832 = vsel %vm183, %v830, 0
        %v835 = vsel %vm187, %v825, 0
        %837 = vmatpush.bf16.msra.mxu0 0
        %838 = vmatpush.bf16.msra.mxu0 0
        %839 = vmatpush.bf16.msra.mxu0 0
        %840 = vmatpush.bf16.msra.mxu0 0
        %841 = vmatpush.bf16.msra.mxu0 0
        %842 = vmatpush.bf16.msra.mxu0 0
        %843 = vmatpush.bf16.msra.mxu0 0
        %844 = vmatpush.bf16.msra.mxu0 %v835
        %845 = vmatmul.bf16.gmra.mxu0 %v832
        %v846 = vpop.f32.mrf.mxu0
        %v847 = vadd.f32 0.0, %v846
        %v848 = vpop.f32.mrf.mxu0
        %849 = vdwg.mxu0
        %v850 = vadd.f32 %v824, %v847
        %v851 = vld [vmem:[%s798] sm:$0xf]
        %v852 = vld [vmem:[%s798 + $0x4] sm:$0x1]
        %v853 = vld [vmem:[%s1 + $0x8] sm:$0xc]
        %v856 = vunpack.c.l.b16 %v851
        %v857 = vunpack.c.l.b16 %v852
        %v858 = vpack.c.b16 %v857, %v856
        %v860 = vshrl.u32 %v858, 16
        %v862 = vshll.u32 %v858, 16
        %v864 = vrot.slane %v862, 1
        %v865 = vor.u32 %v860, %v864
        %v867 = vunpack.c.l.b16 %v853
        %v868 = vpack.c.b16 %v867, %v867
        %v869 = vrot.slane %v868, 2
        %v871 = vsel %vm183, %v865, 0
        %v874 = vsel %vm187, %v869, 0
        %876 = vmatpush.bf16.msra.mxu0 0
        %877 = vmatpush.bf16.msra.mxu0 0
        %878 = vmatpush.bf16.msra.mxu0 0
        %879 = vmatpush.bf16.msra.mxu0 0
        %880 = vmatpush.bf16.msra.mxu0 0
        %881 = vmatpush.bf16.msra.mxu0 0
        %882 = vmatpush.bf16.msra.mxu0 0
        %883 = vmatpush.bf16.msra.mxu0 %v874
        %884 = vmatmul.bf16.gmra.mxu0 %v871
        %v885 = vpop.f32.mrf.mxu0
        %v886 = vadd.f32 0.0, %v885
        %v887 = vpop.f32.mrf.mxu0
        %888 = vdwg.mxu0
        %v889 = vadd.f32 %v850, %v886
        %s890 = scalar_lea.vmem %s168, 48
        %v891 = vld [vmem:[%s890] sm:$0xf]
        %v892 = vld [vmem:[%s1 + $0xc] sm:$0x3]
        %v894 = vsel %vm183, %v891, 0
        %v897 = vsel %vm187, %v892, 0
        %899 = vmatpush.bf16.msra.mxu0 0
        %900 = vmatpush.bf16.msra.mxu0 0
        %901 = vmatpush.bf16.msra.mxu0 0
        %902 = vmatpush.bf16.msra.mxu0 0
        %903 = vmatpush.bf16.msra.mxu0 0
        %904 = vmatpush.bf16.msra.mxu0 0
        %905 = vmatpush.bf16.msra.mxu0 0
        %906 = vmatpush.bf16.msra.mxu0 %v897
        %907 = vmatmul.bf16.gmra.mxu0 %v894
        %v908 = vpop.f32.mrf.mxu0
        %v909 = vadd.f32 0.0, %v908
        %v910 = vpop.f32.mrf.mxu0
        %911 = vdwg.mxu0
        %v912 = vadd.f32 %v889, %v909
        %v913 = vld [vmem:[%s1 + $0xc] sm:$0xc]
        %v915 = vunpack.c.l.b16 %v891
        %v916 = vpack.c.b16 %v915, %v915
        %917 = vrot.lane.b32.xlu0 %v916, 124
        %v918 = vpop.permute.xlu0 %917
        %v920 = vunpack.c.l.b16 %v913
        %v921 = vpack.c.b16 %v920, %v920
        %v922 = vrot.slane %v921, 2
        %v924 = vsel %vm183, %v918, 0
        %v927 = vsel %vm187, %v922, 0
        %929 = vmatpush.bf16.msra.mxu0 0
        %930 = vmatpush.bf16.msra.mxu0 0
        %931 = vmatpush.bf16.msra.mxu0 0
        %932 = vmatpush.bf16.msra.mxu0 0
        %933 = vmatpush.bf16.msra.mxu0 0
        %934 = vmatpush.bf16.msra.mxu0 0
        %935 = vmatpush.bf16.msra.mxu0 0
        %936 = vmatpush.bf16.msra.mxu0 %v927
        %937 = vmatmul.bf16.gmra.mxu0 %v924
        %v938 = vpop.f32.mrf.mxu0
        %v939 = vadd.f32 0.0, %v938
        %v940 = vpop.f32.mrf.mxu0
        %941 = vdwg.mxu0
        %v942 = vadd.f32 %v912, %v939
        %v943 = vld [vmem:[%s890] sm:$0xf]
        %v944 = vld [vmem:[%s890 + $0x4] sm:$0x1]
        %v945 = vld [vmem:[%s1 + $0x10] sm:$0x3]
        %v948 = vunpack.c.l.b16 %v943
        %v949 = vunpack.c.l.b16 %v944
        %v950 = vpack.c.b16 %v949, %v948
        %v952 = vshrl.u32 %v950, 16
        %v954 = vshll.u32 %v950, 16
        %v956 = vrot.slane %v954, 1
        %v957 = vor.u32 %v952, %v956
        %v959 = vsel %vm183, %v957, 0
        %v962 = vsel %vm187, %v945, 0
        %964 = vmatpush.bf16.msra.mxu0 0
        %965 = vmatpush.bf16.msra.mxu0 0
        %966 = vmatpush.bf16.msra.mxu0 0
        %967 = vmatpush.bf16.msra.mxu0 0
        %968 = vmatpush.bf16.msra.mxu0 0
        %969 = vmatpush.bf16.msra.mxu0 0
        %970 = vmatpush.bf16.msra.mxu0 0
        %971 = vmatpush.bf16.msra.mxu0 %v962
        %972 = vmatmul.bf16.gmra.mxu0 %v959
        %v973 = vpop.f32.mrf.mxu0
        %v974 = vadd.f32 0.0, %v973
        %v975 = vpop.f32.mrf.mxu0
        %976 = vdwg.mxu0
        %v977 = vadd.f32 %v942, %v974
        %v978 = vadd.f32 %v977, %v439
        %v979 = vmax.f32 %v978, 0.0
        %s980 = scalar_lea.vmem %s163, 16 [#allocation2]
        %981 = vst [vmem:[%s980] sm:$0xff] %v979
        %v982 = vld [vmem:[%s890] sm:$0xf]
        %v983 = vld [vmem:[%s1] sm:$0x3]
        %v984 = vld [vmem:[%s1] sm:$0xc]
        %v986 = vunpack.c.l.b16 %v982
        %v987 = vpack.c.b16 %v986, %v986
        %988 = vrot.lane.b32.xlu0 %v987, 124
        %v989 = vpop.permute.xlu0 %988
        %v991 = vunpack.c.l.b16 %v984
        %v992 = vpack.c.b16 %v991, %v991
        %v993 = vrot.slane %v992, 2
        %v995 = vsel %vm183, %v989, 0
        %v998 = vsel %vm187, %v993, 0
        %1000 = vmatpush.bf16.msra.mxu0 0
        %1001 = vmatpush.bf16.msra.mxu0 0
        %1002 = vmatpush.bf16.msra.mxu0 0
        %1003 = vmatpush.bf16.msra.mxu0 0
        %1004 = vmatpush.bf16.msra.mxu0 0
        %1005 = vmatpush.bf16.msra.mxu0 0
        %1006 = vmatpush.bf16.msra.mxu0 0
        %1007 = vmatpush.bf16.msra.mxu0 %v998
        %1008 = vmatmul.bf16.gmra.mxu0 %v995
        %v1009 = vpop.f32.mrf.mxu0
        %v1010 = vadd.f32 0.0, %v1009
        %v1011 = vpop.f32.mrf.mxu0
        %1012 = vdwg.mxu0
        %v1014 = vsel %vm183, %v982, 0
        %v1017 = vsel %vm187, %v983, 0
        %1019 = vmatpush.bf16.msra.mxu0 0
        %1020 = vmatpush.bf16.msra.mxu0 0
        %1021 = vmatpush.bf16.msra.mxu0 0
        %1022 = vmatpush.bf16.msra.mxu0 0
        %1023 = vmatpush.bf16.msra.mxu0 0
        %1024 = vmatpush.bf16.msra.mxu0 0
        %1025 = vmatpush.bf16.msra.mxu0 0
        %1026 = vmatpush.bf16.msra.mxu0 %v1017
        %1027 = vmatmul.bf16.gmra.mxu0 %v1014
        %v1028 = vpop.f32.mrf.mxu0
        %v1029 = vadd.f32 %v1010, %v1028
        %v1030 = vpop.f32.mrf.mxu0
        %1031 = vdwg.mxu0
        %v1032 = vld [vmem:[%s890] sm:$0xf]
        %v1033 = vld [vmem:[%s890 + $0x4] sm:$0x1]
        %v1034 = vld [vmem:[%s1 + $0x4] sm:$0x3]
        %v1037 = vunpack.c.l.b16 %v1032
        %v1038 = vunpack.c.l.b16 %v1033
        %v1039 = vpack.c.b16 %v1038, %v1037
        %v1041 = vshrl.u32 %v1039, 16
        %v1043 = vshll.u32 %v1039, 16
        %v1045 = vrot.slane %v1043, 1
        %v1046 = vor.u32 %v1041, %v1045
        %v1048 = vsel %vm183, %v1046, 0
        %v1051 = vsel %vm187, %v1034, 0
        %1053 = vmatpush.bf16.msra.mxu0 0
        %1054 = vmatpush.bf16.msra.mxu0 0
        %1055 = vmatpush.bf16.msra.mxu0 0
        %1056 = vmatpush.bf16.msra.mxu0 0
        %1057 = vmatpush.bf16.msra.mxu0 0
        %1058 = vmatpush.bf16.msra.mxu0 0
        %1059 = vmatpush.bf16.msra.mxu0 0
        %1060 = vmatpush.bf16.msra.mxu0 %v1051
        %1061 = vmatmul.bf16.gmra.mxu0 %v1048
        %v1062 = vpop.f32.mrf.mxu0
        %v1063 = vadd.f32 0.0, %v1062
        %v1064 = vpop.f32.mrf.mxu0
        %1065 = vdwg.mxu0
        %v1066 = vadd.f32 %v1029, %v1063
        %s1067 = scalar_lea.vmem %s168, 56
        %v1068 = vld [vmem:[%s1067] sm:$0xf]
        %v1069 = vld [vmem:[%s1 + $0x4] sm:$0xc]
        %v1071 = vunpack.c.l.b16 %v1069
        %v1072 = vpack.c.b16 %v1071, %v1071
        %v1073 = vrot.slane %v1072, 2
        %v1075 = vsel %vm183, %v1068, 0
        %v1078 = vsel %vm187, %v1073, 0
        %1080 = vmatpush.bf16.msra.mxu0 0
        %1081 = vmatpush.bf16.msra.mxu0 0
        %1082 = vmatpush.bf16.msra.mxu0 0
        %1083 = vmatpush.bf16.msra.mxu0 0
        %1084 = vmatpush.bf16.msra.mxu0 0
        %1085 = vmatpush.bf16.msra.mxu0 0
        %1086 = vmatpush.bf16.msra.mxu0 0
        %1087 = vmatpush.bf16.msra.mxu0 %v1078
        %1088 = vmatmul.bf16.gmra.mxu0 %v1075
        %v1089 = vpop.f32.mrf.mxu0
        %v1090 = vadd.f32 0.0, %v1089
        %v1091 = vpop.f32.mrf.mxu0
        %1092 = vdwg.mxu0
        %v1093 = vadd.f32 %v1066, %v1090
        %v1094 = vld [vmem:[%s1 + $0x8] sm:$0x3]
        %v1096 = vunpack.c.l.b16 %v1068
        %v1097 = vpack.c.b16 %v1096, %v1096
        %1098 = vrot.lane.b32.xlu0 %v1097, 124
        %v1099 = vpop.permute.xlu0 %1098
        %v1101 = vsel %vm183, %v1099, 0
        %v1104 = vsel %vm187, %v1094, 0
        %1106 = vmatpush.bf16.msra.mxu0 0
        %1107 = vmatpush.bf16.msra.mxu0 0
        %1108 = vmatpush.bf16.msra.mxu0 0
        %1109 = vmatpush.bf16.msra.mxu0 0
        %1110 = vmatpush.bf16.msra.mxu0 0
        %1111 = vmatpush.bf16.msra.mxu0 0
        %1112 = vmatpush.bf16.msra.mxu0 0
        %1113 = vmatpush.bf16.msra.mxu0 %v1104
        %1114 = vmatmul.bf16.gmra.mxu0 %v1101
        %v1115 = vpop.f32.mrf.mxu0
        %v1116 = vadd.f32 0.0, %v1115
        %v1117 = vpop.f32.mrf.mxu0
        %1118 = vdwg.mxu0
        %v1119 = vadd.f32 %v1093, %v1116
        %v1120 = vld [vmem:[%s1067] sm:$0xf]
        %v1121 = vld [vmem:[%s1067 + $0x4] sm:$0x1]
        %v1122 = vld [vmem:[%s1 + $0x8] sm:$0xc]
        %v1125 = vunpack.c.l.b16 %v1120
        %v1126 = vunpack.c.l.b16 %v1121
        %v1127 = vpack.c.b16 %v1126, %v1125
        %v1129 = vshrl.u32 %v1127, 16
        %v1131 = vshll.u32 %v1127, 16
        %v1133 = vrot.slane %v1131, 1
        %v1134 = vor.u32 %v1129, %v1133
        %v1136 = vunpack.c.l.b16 %v1122
        %v1137 = vpack.c.b16 %v1136, %v1136
        %v1138 = vrot.slane %v1137, 2
        %v1140 = vsel %vm183, %v1134, 0
        %v1143 = vsel %vm187, %v1138, 0
        %1145 = vmatpush.bf16.msra.mxu0 0
        %1146 = vmatpush.bf16.msra.mxu0 0
        %1147 = vmatpush.bf16.msra.mxu0 0
        %1148 = vmatpush.bf16.msra.mxu0 0
        %1149 = vmatpush.bf16.msra.mxu0 0
        %1150 = vmatpush.bf16.msra.mxu0 0
        %1151 = vmatpush.bf16.msra.mxu0 0
        %1152 = vmatpush.bf16.msra.mxu0 %v1143
        %1153 = vmatmul.bf16.gmra.mxu0 %v1140
        %v1154 = vpop.f32.mrf.mxu0
        %v1155 = vadd.f32 0.0, %v1154
        %v1156 = vpop.f32.mrf.mxu0
        %1157 = vdwg.mxu0
        %v1158 = vadd.f32 %v1119, %v1155
        %s1159 = scalar_lea.vmem %s168, 64
        %v1160 = vld [vmem:[%s1159] sm:$0xf]
        %v1161 = vld [vmem:[%s1 + $0xc] sm:$0x3]
        %v1163 = vsel %vm183, %v1160, 0
        %v1166 = vsel %vm187, %v1161, 0
        %1168 = vmatpush.bf16.msra.mxu0 0
        %1169 = vmatpush.bf16.msra.mxu0 0
        %1170 = vmatpush.bf16.msra.mxu0 0
        %1171 = vmatpush.bf16.msra.mxu0 0
        %1172 = vmatpush.bf16.msra.mxu0 0
        %1173 = vmatpush.bf16.msra.mxu0 0
        %1174 = vmatpush.bf16.msra.mxu0 0
        %1175 = vmatpush.bf16.msra.mxu0 %v1166
        %1176 = vmatmul.bf16.gmra.mxu0 %v1163
        %v1177 = vpop.f32.mrf.mxu0
        %v1178 = vadd.f32 0.0, %v1177
        %v1179 = vpop.f32.mrf.mxu0
        %1180 = vdwg.mxu0
        %v1181 = vadd.f32 %v1158, %v1178
        %v1182 = vld [vmem:[%s1 + $0xc] sm:$0xc]
        %v1184 = vunpack.c.l.b16 %v1160
        %v1185 = vpack.c.b16 %v1184, %v1184
        %1186 = vrot.lane.b32.xlu0 %v1185, 124
        %v1187 = vpop.permute.xlu0 %1186
        %v1189 = vunpack.c.l.b16 %v1182
        %v1190 = vpack.c.b16 %v1189, %v1189
        %v1191 = vrot.slane %v1190, 2
        %v1193 = vsel %vm183, %v1187, 0
        %v1196 = vsel %vm187, %v1191, 0
        %1198 = vmatpush.bf16.msra.mxu0 0
        %1199 = vmatpush.bf16.msra.mxu0 0
        %1200 = vmatpush.bf16.msra.mxu0 0
        %1201 = vmatpush.bf16.msra.mxu0 0
        %1202 = vmatpush.bf16.msra.mxu0 0
        %1203 = vmatpush.bf16.msra.mxu0 0
        %1204 = vmatpush.bf16.msra.mxu0 0
        %1205 = vmatpush.bf16.msra.mxu0 %v1196
        %1206 = vmatmul.bf16.gmra.mxu0 %v1193
        %v1207 = vpop.f32.mrf.mxu0
        %v1208 = vadd.f32 0.0, %v1207
        %v1209 = vpop.f32.mrf.mxu0
        %1210 = vdwg.mxu0
        %v1211 = vadd.f32 %v1181, %v1208
        %v1212 = vld [vmem:[%s1159] sm:$0xf]
        %v1213 = vld [vmem:[%s1159 + $0x4] sm:$0x1]
        %v1214 = vld [vmem:[%s1 + $0x10] sm:$0x3]
        %v1217 = vunpack.c.l.b16 %v1212
        %v1218 = vunpack.c.l.b16 %v1213
        %v1219 = vpack.c.b16 %v1218, %v1217
        %v1221 = vshrl.u32 %v1219, 16
        %v1223 = vshll.u32 %v1219, 16
        %v1225 = vrot.slane %v1223, 1
        %v1226 = vor.u32 %v1221, %v1225
        %v1228 = vsel %vm183, %v1226, 0
        %v1231 = vsel %vm187, %v1214, 0
        %1233 = vmatpush.bf16.msra.mxu0 0
        %1234 = vmatpush.bf16.msra.mxu0 0
        %1235 = vmatpush.bf16.msra.mxu0 0
        %1236 = vmatpush.bf16.msra.mxu0 0
        %1237 = vmatpush.bf16.msra.mxu0 0
        %1238 = vmatpush.bf16.msra.mxu0 0
        %1239 = vmatpush.bf16.msra.mxu0 0
        %1240 = vmatpush.bf16.msra.mxu0 %v1231
        %1241 = vmatmul.bf16.gmra.mxu0 %v1228
        %v1242 = vpop.f32.mrf.mxu0
        %v1243 = vadd.f32 0.0, %v1242
        %v1244 = vpop.f32.mrf.mxu0
        %1245 = vdwg.mxu0
        %v1246 = vadd.f32 %v1211, %v1243
        %v1247 = vadd.f32 %v1246, %v439
        %v1248 = vmax.f32 %v1247, 0.0
        %s1249 = scalar_lea.vmem %s163, 24 [#allocation2]
        %1250 = vst [vmem:[%s1249] sm:$0xff] %v1248
        %v1251 = vld [vmem:[%s1159] sm:$0xf]
        %v1252 = vld [vmem:[%s1] sm:$0x3]
        %v1253 = vld [vmem:[%s1] sm:$0xc]
        %v1255 = vunpack.c.l.b16 %v1251
        %v1256 = vpack.c.b16 %v1255, %v1255
        %1257 = vrot.lane.b32.xlu0 %v1256, 124
        %v1258 = vpop.permute.xlu0 %1257
        %v1260 = vunpack.c.l.b16 %v1253
        %v1261 = vpack.c.b16 %v1260, %v1260
        %v1262 = vrot.slane %v1261, 2
        %v1264 = vsel %vm183, %v1258, 0
        %v1267 = vsel %vm187, %v1262, 0
        %1269 = vmatpush.bf16.msra.mxu0 0
        %1270 = vmatpush.bf16.msra.mxu0 0
        %1271 = vmatpush.bf16.msra.mxu0 0
        %1272 = vmatpush.bf16.msra.mxu0 0
        %1273 = vmatpush.bf16.msra.mxu0 0
        %1274 = vmatpush.bf16.msra.mxu0 0
        %1275 = vmatpush.bf16.msra.mxu0 0
        %1276 = vmatpush.bf16.msra.mxu0 %v1267
        %1277 = vmatmul.bf16.gmra.mxu0 %v1264
        %v1278 = vpop.f32.mrf.mxu0
        %v1279 = vadd.f32 0.0, %v1278
        %v1280 = vpop.f32.mrf.mxu0
        %1281 = vdwg.mxu0
        %v1283 = vsel %vm183, %v1251, 0
        %v1286 = vsel %vm187, %v1252, 0
        %1288 = vmatpush.bf16.msra.mxu0 0
        %1289 = vmatpush.bf16.msra.mxu0 0
        %1290 = vmatpush.bf16.msra.mxu0 0
        %1291 = vmatpush.bf16.msra.mxu0 0
        %1292 = vmatpush.bf16.msra.mxu0 0
        %1293 = vmatpush.bf16.msra.mxu0 0
        %1294 = vmatpush.bf16.msra.mxu0 0
        %1295 = vmatpush.bf16.msra.mxu0 %v1286
        %1296 = vmatmul.bf16.gmra.mxu0 %v1283
        %v1297 = vpop.f32.mrf.mxu0
        %v1298 = vadd.f32 %v1279, %v1297
        %v1299 = vpop.f32.mrf.mxu0
        %1300 = vdwg.mxu0
        %v1301 = vld [vmem:[%s1159] sm:$0xf]
        %v1302 = vld [vmem:[%s1159 + $0x4] sm:$0x1]
        %v1303 = vld [vmem:[%s1 + $0x4] sm:$0x3]
        %v1306 = vunpack.c.l.b16 %v1301
        %v1307 = vunpack.c.l.b16 %v1302
        %v1308 = vpack.c.b16 %v1307, %v1306
        %v1310 = vshrl.u32 %v1308, 16
        %v1312 = vshll.u32 %v1308, 16
        %v1314 = vrot.slane %v1312, 1
        %v1315 = vor.u32 %v1310, %v1314
        %v1317 = vsel %vm183, %v1315, 0
        %v1320 = vsel %vm187, %v1303, 0
        %1322 = vmatpush.bf16.msra.mxu0 0
        %1323 = vmatpush.bf16.msra.mxu0 0
        %1324 = vmatpush.bf16.msra.mxu0 0
        %1325 = vmatpush.bf16.msra.mxu0 0
        %1326 = vmatpush.bf16.msra.mxu0 0
        %1327 = vmatpush.bf16.msra.mxu0 0
        %1328 = vmatpush.bf16.msra.mxu0 0
        %1329 = vmatpush.bf16.msra.mxu0 %v1320
        %1330 = vmatmul.bf16.gmra.mxu0 %v1317
        %v1331 = vpop.f32.mrf.mxu0
        %v1332 = vadd.f32 0.0, %v1331
        %v1333 = vpop.f32.mrf.mxu0
        %1334 = vdwg.mxu0
        %v1335 = vadd.f32 %v1298, %v1332
        %s1336 = scalar_lea.vmem %s168, 72
        %v1337 = vld [vmem:[%s1336] sm:$0xf]
        %v1338 = vld [vmem:[%s1 + $0x4] sm:$0xc]
        %v1340 = vunpack.c.l.b16 %v1338
        %v1341 = vpack.c.b16 %v1340, %v1340
        %v1342 = vrot.slane %v1341, 2
        %v1344 = vsel %vm183, %v1337, 0
        %v1347 = vsel %vm187, %v1342, 0
        %1349 = vmatpush.bf16.msra.mxu0 0
        %1350 = vmatpush.bf16.msra.mxu0 0
        %1351 = vmatpush.bf16.msra.mxu0 0
        %1352 = vmatpush.bf16.msra.mxu0 0
        %1353 = vmatpush.bf16.msra.mxu0 0
        %1354 = vmatpush.bf16.msra.mxu0 0
        %1355 = vmatpush.bf16.msra.mxu0 0
        %1356 = vmatpush.bf16.msra.mxu0 %v1347
        %1357 = vmatmul.bf16.gmra.mxu0 %v1344
        %v1358 = vpop.f32.mrf.mxu0
        %v1359 = vadd.f32 0.0, %v1358
        %v1360 = vpop.f32.mrf.mxu0
        %1361 = vdwg.mxu0
        %v1362 = vadd.f32 %v1335, %v1359
        %v1363 = vld [vmem:[%s1 + $0x8] sm:$0x3]
        %v1365 = vunpack.c.l.b16 %v1337
        %v1366 = vpack.c.b16 %v1365, %v1365
        %1367 = vrot.lane.b32.xlu0 %v1366, 124
        %v1368 = vpop.permute.xlu0 %1367
        %v1370 = vsel %vm183, %v1368, 0
        %v1373 = vsel %vm187, %v1363, 0
        %1375 = vmatpush.bf16.msra.mxu0 0
        %1376 = vmatpush.bf16.msra.mxu0 0
        %1377 = vmatpush.bf16.msra.mxu0 0
        %1378 = vmatpush.bf16.msra.mxu0 0
        %1379 = vmatpush.bf16.msra.mxu0 0
        %1380 = vmatpush.bf16.msra.mxu0 0
        %1381 = vmatpush.bf16.msra.mxu0 0
        %1382 = vmatpush.bf16.msra.mxu0 %v1373
        %1383 = vmatmul.bf16.gmra.mxu0 %v1370
        %v1384 = vpop.f32.mrf.mxu0
        %v1385 = vadd.f32 0.0, %v1384
        %v1386 = vpop.f32.mrf.mxu0
        %1387 = vdwg.mxu0
        %v1388 = vadd.f32 %v1362, %v1385
        %v1389 = vld [vmem:[%s1336] sm:$0xf]
        %v1390 = vld [vmem:[%s1336 + $0x4] sm:$0x1]
        %v1391 = vld [vmem:[%s1 + $0x8] sm:$0xc]
        %v1394 = vunpack.c.l.b16 %v1389
        %v1395 = vunpack.c.l.b16 %v1390
        %v1396 = vpack.c.b16 %v1395, %v1394
        %v1398 = vshrl.u32 %v1396, 16
        %v1400 = vshll.u32 %v1396, 16
        %v1402 = vrot.slane %v1400, 1
        %v1403 = vor.u32 %v1398, %v1402
        %v1405 = vunpack.c.l.b16 %v1391
        %v1406 = vpack.c.b16 %v1405, %v1405
        %v1407 = vrot.slane %v1406, 2
        %v1409 = vsel %vm183, %v1403, 0
        %v1412 = vsel %vm187, %v1407, 0
        %1414 = vmatpush.bf16.msra.mxu0 0
        %1415 = vmatpush.bf16.msra.mxu0 0
        %1416 = vmatpush.bf16.msra.mxu0 0
        %1417 = vmatpush.bf16.msra.mxu0 0
        %1418 = vmatpush.bf16.msra.mxu0 0
        %1419 = vmatpush.bf16.msra.mxu0 0
        %1420 = vmatpush.bf16.msra.mxu0 0
        %1421 = vmatpush.bf16.msra.mxu0 %v1412
        %1422 = vmatmul.bf16.gmra.mxu0 %v1409
        %v1423 = vpop.f32.mrf.mxu0
        %v1424 = vadd.f32 0.0, %v1423
        %v1425 = vpop.f32.mrf.mxu0
        %1426 = vdwg.mxu0
        %v1427 = vadd.f32 %v1388, %v1424
        %s1428 = scalar_lea.vmem %s168, 80
        %v1429 = vld [vmem:[%s1428] sm:$0xf]
        %v1430 = vld [vmem:[%s1 + $0xc] sm:$0x3]
        %v1432 = vsel %vm183, %v1429, 0
        %v1435 = vsel %vm187, %v1430, 0
        %1437 = vmatpush.bf16.msra.mxu0 0
        %1438 = vmatpush.bf16.msra.mxu0 0
        %1439 = vmatpush.bf16.msra.mxu0 0
        %1440 = vmatpush.bf16.msra.mxu0 0
        %1441 = vmatpush.bf16.msra.mxu0 0
        %1442 = vmatpush.bf16.msra.mxu0 0
        %1443 = vmatpush.bf16.msra.mxu0 0
        %1444 = vmatpush.bf16.msra.mxu0 %v1435
        %1445 = vmatmul.bf16.gmra.mxu0 %v1432
        %v1446 = vpop.f32.mrf.mxu0
        %v1447 = vadd.f32 0.0, %v1446
        %v1448 = vpop.f32.mrf.mxu0
        %1449 = vdwg.mxu0
        %v1450 = vadd.f32 %v1427, %v1447
        %v1451 = vld [vmem:[%s1 + $0xc] sm:$0xc]
        %v1453 = vunpack.c.l.b16 %v1429
        %v1454 = vpack.c.b16 %v1453, %v1453
        %1455 = vrot.lane.b32.xlu0 %v1454, 124
        %v1456 = vpop.permute.xlu0 %1455
        %v1458 = vunpack.c.l.b16 %v1451
        %v1459 = vpack.c.b16 %v1458, %v1458
        %v1460 = vrot.slane %v1459, 2
        %v1462 = vsel %vm183, %v1456, 0
        %v1465 = vsel %vm187, %v1460, 0
        %1467 = vmatpush.bf16.msra.mxu0 0
        %1468 = vmatpush.bf16.msra.mxu0 0
        %1469 = vmatpush.bf16.msra.mxu0 0
        %1470 = vmatpush.bf16.msra.mxu0 0
        %1471 = vmatpush.bf16.msra.mxu0 0
        %1472 = vmatpush.bf16.msra.mxu0 0
        %1473 = vmatpush.bf16.msra.mxu0 0
        %1474 = vmatpush.bf16.msra.mxu0 %v1465
        %1475 = vmatmul.bf16.gmra.mxu0 %v1462
        %v1476 = vpop.f32.mrf.mxu0
        %v1477 = vadd.f32 0.0, %v1476
        %v1478 = vpop.f32.mrf.mxu0
        %1479 = vdwg.mxu0
        %v1480 = vadd.f32 %v1450, %v1477
        %v1481 = vld [vmem:[%s1428] sm:$0xf]
        %v1482 = vld [vmem:[%s1428 + $0x4] sm:$0x1]
        %v1483 = vld [vmem:[%s1 + $0x10] sm:$0x3]
        %v1486 = vunpack.c.l.b16 %v1481
        %v1487 = vunpack.c.l.b16 %v1482
        %v1488 = vpack.c.b16 %v1487, %v1486
        %v1490 = vshrl.u32 %v1488, 16
        %v1492 = vshll.u32 %v1488, 16
        %v1494 = vrot.slane %v1492, 1
        %v1495 = vor.u32 %v1490, %v1494
        %v1497 = vsel %vm183, %v1495, 0
        %v1500 = vsel %vm187, %v1483, 0
        %1502 = vmatpush.bf16.msra.mxu0 0
        %1503 = vmatpush.bf16.msra.mxu0 0
        %1504 = vmatpush.bf16.msra.mxu0 0
        %1505 = vmatpush.bf16.msra.mxu0 0
        %1506 = vmatpush.bf16.msra.mxu0 0
        %1507 = vmatpush.bf16.msra.mxu0 0
        %1508 = vmatpush.bf16.msra.mxu0 0
        %1509 = vmatpush.bf16.msra.mxu0 %v1500
        %1510 = vmatmul.bf16.gmra.mxu0 %v1497
        %v1511 = vpop.f32.mrf.mxu0
        %v1512 = vadd.f32 0.0, %v1511
        %v1513 = vpop.f32.mrf.mxu0
        %1514 = vdwg.mxu0
        %v1515 = vadd.f32 %v1480, %v1512
        %v1516 = vadd.f32 %v1515, %v439
        %v1517 = vmax.f32 %v1516, 0.0
        %s1518 = scalar_lea.vmem %s163, 32 [#allocation2]
        %1519 = vst [vmem:[%s1518] sm:$0xff] %v1517
        %v1520 = vld [vmem:[%s1428] sm:$0xf]
        %v1521 = vld [vmem:[%s1] sm:$0x3]
        %v1522 = vld [vmem:[%s1] sm:$0xc]
        %v1524 = vunpack.c.l.b16 %v1520
        %v1525 = vpack.c.b16 %v1524, %v1524
        %1526 = vrot.lane.b32.xlu0 %v1525, 124
        %v1527 = vpop.permute.xlu0 %1526
        %v1529 = vunpack.c.l.b16 %v1522
        %v1530 = vpack.c.b16 %v1529, %v1529
        %v1531 = vrot.slane %v1530, 2
        %v1533 = vsel %vm183, %v1527, 0
        %v1536 = vsel %vm187, %v1531, 0
        %1538 = vmatpush.bf16.msra.mxu0 0
        %1539 = vmatpush.bf16.msra.mxu0 0
        %1540 = vmatpush.bf16.msra.mxu0 0
        %1541 = vmatpush.bf16.msra.mxu0 0
        %1542 = vmatpush.bf16.msra.mxu0 0
        %1543 = vmatpush.bf16.msra.mxu0 0
        %1544 = vmatpush.bf16.msra.mxu0 0
        %1545 = vmatpush.bf16.msra.mxu0 %v1536
        %1546 = vmatmul.bf16.gmra.mxu0 %v1533
        %v1547 = vpop.f32.mrf.mxu0
        %v1548 = vadd.f32 0.0, %v1547
        %v1549 = vpop.f32.mrf.mxu0
        %1550 = vdwg.mxu0
        %v1552 = vsel %vm183, %v1520, 0
        %v1555 = vsel %vm187, %v1521, 0
        %1557 = vmatpush.bf16.msra.mxu0 0
        %1558 = vmatpush.bf16.msra.mxu0 0
        %1559 = vmatpush.bf16.msra.mxu0 0
        %1560 = vmatpush.bf16.msra.mxu0 0
        %1561 = vmatpush.bf16.msra.mxu0 0
        %1562 = vmatpush.bf16.msra.mxu0 0
        %1563 = vmatpush.bf16.msra.mxu0 0
        %1564 = vmatpush.bf16.msra.mxu0 %v1555
        %1565 = vmatmul.bf16.gmra.mxu0 %v1552
        %v1566 = vpop.f32.mrf.mxu0
        %v1567 = vadd.f32 %v1548, %v1566
        %v1568 = vpop.f32.mrf.mxu0
        %1569 = vdwg.mxu0
        %v1570 = vld [vmem:[%s1428] sm:$0xf]
        %v1571 = vld [vmem:[%s1428 + $0x4] sm:$0x1]
        %v1572 = vld [vmem:[%s1 + $0x4] sm:$0x3]
        %v1575 = vunpack.c.l.b16 %v1570
        %v1576 = vunpack.c.l.b16 %v1571
        %v1577 = vpack.c.b16 %v1576, %v1575
        %v1579 = vshrl.u32 %v1577, 16
        %v1581 = vshll.u32 %v1577, 16
        %v1583 = vrot.slane %v1581, 1
        %v1584 = vor.u32 %v1579, %v1583
        %v1586 = vsel %vm183, %v1584, 0
        %v1589 = vsel %vm187, %v1572, 0
        %1591 = vmatpush.bf16.msra.mxu0 0
        %1592 = vmatpush.bf16.msra.mxu0 0
        %1593 = vmatpush.bf16.msra.mxu0 0
        %1594 = vmatpush.bf16.msra.mxu0 0
        %1595 = vmatpush.bf16.msra.mxu0 0
        %1596 = vmatpush.bf16.msra.mxu0 0
        %1597 = vmatpush.bf16.msra.mxu0 0
        %1598 = vmatpush.bf16.msra.mxu0 %v1589
        %1599 = vmatmul.bf16.gmra.mxu0 %v1586
        %v1600 = vpop.f32.mrf.mxu0
        %v1601 = vadd.f32 0.0, %v1600
        %v1602 = vpop.f32.mrf.mxu0
        %1603 = vdwg.mxu0
        %v1604 = vadd.f32 %v1567, %v1601
        %s1605 = scalar_lea.vmem %s168, 88
        %v1606 = vld [vmem:[%s1605] sm:$0xf]
        %v1607 = vld [vmem:[%s1 + $0x4] sm:$0xc]
        %v1609 = vunpack.c.l.b16 %v1607
        %v1610 = vpack.c.b16 %v1609, %v1609
        %v1611 = vrot.slane %v1610, 2
        %v1613 = vsel %vm183, %v1606, 0
        %v1616 = vsel %vm187, %v1611, 0
        %1618 = vmatpush.bf16.msra.mxu0 0
        %1619 = vmatpush.bf16.msra.mxu0 0
        %1620 = vmatpush.bf16.msra.mxu0 0
        %1621 = vmatpush.bf16.msra.mxu0 0
        %1622 = vmatpush.bf16.msra.mxu0 0
        %1623 = vmatpush.bf16.msra.mxu0 0
        %1624 = vmatpush.bf16.msra.mxu0 0
        %1625 = vmatpush.bf16.msra.mxu0 %v1616
        %1626 = vmatmul.bf16.gmra.mxu0 %v1613
        %v1627 = vpop.f32.mrf.mxu0
        %v1628 = vadd.f32 0.0, %v1627
        %v1629 = vpop.f32.mrf.mxu0
        %1630 = vdwg.mxu0
        %v1631 = vadd.f32 %v1604, %v1628
        %v1632 = vld [vmem:[%s1 + $0x8] sm:$0x3]
        %v1634 = vunpack.c.l.b16 %v1606
        %v1635 = vpack.c.b16 %v1634, %v1634
        %1636 = vrot.lane.b32.xlu0 %v1635, 124
        %v1637 = vpop.permute.xlu0 %1636
        %v1639 = vsel %vm183, %v1637, 0
        %v1642 = vsel %vm187, %v1632, 0
        %1644 = vmatpush.bf16.msra.mxu0 0
        %1645 = vmatpush.bf16.msra.mxu0 0
        %1646 = vmatpush.bf16.msra.mxu0 0
        %1647 = vmatpush.bf16.msra.mxu0 0
        %1648 = vmatpush.bf16.msra.mxu0 0
        %1649 = vmatpush.bf16.msra.mxu0 0
        %1650 = vmatpush.bf16.msra.mxu0 0
        %1651 = vmatpush.bf16.msra.mxu0 %v1642
        %1652 = vmatmul.bf16.gmra.mxu0 %v1639
        %v1653 = vpop.f32.mrf.mxu0
        %v1654 = vadd.f32 0.0, %v1653
        %v1655 = vpop.f32.mrf.mxu0
        %1656 = vdwg.mxu0
        %v1657 = vadd.f32 %v1631, %v1654
        %v1658 = vld [vmem:[%s1605] sm:$0xf]
        %v1659 = vld [vmem:[%s1605 + $0x4] sm:$0x1]
        %v1660 = vld [vmem:[%s1 + $0x8] sm:$0xc]
        %v1663 = vunpack.c.l.b16 %v1658
        %v1664 = vunpack.c.l.b16 %v1659
        %v1665 = vpack.c.b16 %v1664, %v1663
        %v1667 = vshrl.u32 %v1665, 16
        %v1669 = vshll.u32 %v1665, 16
        %v1671 = vrot.slane %v1669, 1
        %v1672 = vor.u32 %v1667, %v1671
        %v1674 = vunpack.c.l.b16 %v1660
        %v1675 = vpack.c.b16 %v1674, %v1674
        %v1676 = vrot.slane %v1675, 2
        %v1678 = vsel %vm183, %v1672, 0
        %v1681 = vsel %vm187, %v1676, 0
        %1683 = vmatpush.bf16.msra.mxu0 0
        %1684 = vmatpush.bf16.msra.mxu0 0
        %1685 = vmatpush.bf16.msra.mxu0 0
        %1686 = vmatpush.bf16.msra.mxu0 0
        %1687 = vmatpush.bf16.msra.mxu0 0
        %1688 = vmatpush.bf16.msra.mxu0 0
        %1689 = vmatpush.bf16.msra.mxu0 0
        %1690 = vmatpush.bf16.msra.mxu0 %v1681
        %1691 = vmatmul.bf16.gmra.mxu0 %v1678
        %v1692 = vpop.f32.mrf.mxu0
        %v1693 = vadd.f32 0.0, %v1692
        %v1694 = vpop.f32.mrf.mxu0
        %1695 = vdwg.mxu0
        %v1696 = vadd.f32 %v1657, %v1693
        %s1697 = scalar_lea.vmem %s168, 96
        %v1698 = vld [vmem:[%s1697] sm:$0xf]
        %v1699 = vld [vmem:[%s1 + $0xc] sm:$0x3]
        %v1701 = vsel %vm183, %v1698, 0
        %v1704 = vsel %vm187, %v1699, 0
        %1706 = vmatpush.bf16.msra.mxu0 0
        %1707 = vmatpush.bf16.msra.mxu0 0
        %1708 = vmatpush.bf16.msra.mxu0 0
        %1709 = vmatpush.bf16.msra.mxu0 0
        %1710 = vmatpush.bf16.msra.mxu0 0
        %1711 = vmatpush.bf16.msra.mxu0 0
        %1712 = vmatpush.bf16.msra.mxu0 0
        %1713 = vmatpush.bf16.msra.mxu0 %v1704
        %1714 = vmatmul.bf16.gmra.mxu0 %v1701
        %v1715 = vpop.f32.mrf.mxu0
        %v1716 = vadd.f32 0.0, %v1715
        %v1717 = vpop.f32.mrf.mxu0
        %1718 = vdwg.mxu0
        %v1719 = vadd.f32 %v1696, %v1716
        %v1720 = vld [vmem:[%s1 + $0xc] sm:$0xc]
        %v1722 = vunpack.c.l.b16 %v1698
        %v1723 = vpack.c.b16 %v1722, %v1722
        %1724 = vrot.lane.b32.xlu0 %v1723, 124
        %v1725 = vpop.permute.xlu0 %1724
        %v1727 = vunpack.c.l.b16 %v1720
        %v1728 = vpack.c.b16 %v1727, %v1727
        %v1729 = vrot.slane %v1728, 2
        %v1731 = vsel %vm183, %v1725, 0
        %v1734 = vsel %vm187, %v1729, 0
        %1736 = vmatpush.bf16.msra.mxu0 0
        %1737 = vmatpush.bf16.msra.mxu0 0
        %1738 = vmatpush.bf16.msra.mxu0 0
        %1739 = vmatpush.bf16.msra.mxu0 0
        %1740 = vmatpush.bf16.msra.mxu0 0
        %1741 = vmatpush.bf16.msra.mxu0 0
        %1742 = vmatpush.bf16.msra.mxu0 0
        %1743 = vmatpush.bf16.msra.mxu0 %v1734
        %1744 = vmatmul.bf16.gmra.mxu0 %v1731
        %v1745 = vpop.f32.mrf.mxu0
        %v1746 = vadd.f32 0.0, %v1745
        %v1747 = vpop.f32.mrf.mxu0
        %1748 = vdwg.mxu0
        %v1749 = vadd.f32 %v1719, %v1746
        %v1750 = vld [vmem:[%s1697] sm:$0xf]
        %v1751 = vld [vmem:[%s1697 + $0x4] sm:$0x1]
        %v1752 = vld [vmem:[%s1 + $0x10] sm:$0x3]
        %v1755 = vunpack.c.l.b16 %v1750
        %v1756 = vunpack.c.l.b16 %v1751
        %v1757 = vpack.c.b16 %v1756, %v1755
        %v1759 = vshrl.u32 %v1757, 16
        %v1761 = vshll.u32 %v1757, 16
        %v1763 = vrot.slane %v1761, 1
        %v1764 = vor.u32 %v1759, %v1763
        %v1766 = vsel %vm183, %v1764, 0
        %v1769 = vsel %vm187, %v1752, 0
        %1771 = vmatpush.bf16.msra.mxu0 0
        %1772 = vmatpush.bf16.msra.mxu0 0
        %1773 = vmatpush.bf16.msra.mxu0 0
        %1774 = vmatpush.bf16.msra.mxu0 0
        %1775 = vmatpush.bf16.msra.mxu0 0
        %1776 = vmatpush.bf16.msra.mxu0 0
        %1777 = vmatpush.bf16.msra.mxu0 0
        %1778 = vmatpush.bf16.msra.mxu0 %v1769
        %1779 = vmatmul.bf16.gmra.mxu0 %v1766
        %v1780 = vpop.f32.mrf.mxu0
        %v1781 = vadd.f32 0.0, %v1780
        %v1782 = vpop.f32.mrf.mxu0
        %1783 = vdwg.mxu0
        %v1784 = vadd.f32 %v1749, %v1781
        %v1785 = vadd.f32 %v1784, %v439
        %v1786 = vmax.f32 %v1785, 0.0
        %s1787 = scalar_lea.vmem %s163, 40 [#allocation2]
        %1788 = vst [vmem:[%s1787] sm:$0xff] %v1786
        %v1789 = vld [vmem:[%s1697] sm:$0xf]
        %v1790 = vld [vmem:[%s1] sm:$0x3]
        %v1791 = vld [vmem:[%s1] sm:$0xc]
        %v1793 = vunpack.c.l.b16 %v1789
        %v1794 = vpack.c.b16 %v1793, %v1793
        %1795 = vrot.lane.b32.xlu0 %v1794, 124
        %v1796 = vpop.permute.xlu0 %1795
        %v1798 = vunpack.c.l.b16 %v1791
        %v1799 = vpack.c.b16 %v1798, %v1798
        %v1800 = vrot.slane %v1799, 2
        %v1802 = vsel %vm183, %v1796, 0
        %v1805 = vsel %vm187, %v1800, 0
        %1807 = vmatpush.bf16.msra.mxu0 0
        %1808 = vmatpush.bf16.msra.mxu0 0
        %1809 = vmatpush.bf16.msra.mxu0 0
        %1810 = vmatpush.bf16.msra.mxu0 0
        %1811 = vmatpush.bf16.msra.mxu0 0
        %1812 = vmatpush.bf16.msra.mxu0 0
        %1813 = vmatpush.bf16.msra.mxu0 0
        %1814 = vmatpush.bf16.msra.mxu0 %v1805
        %1815 = vmatmul.bf16.gmra.mxu0 %v1802
        %v1816 = vpop.f32.mrf.mxu0
        %v1817 = vadd.f32 0.0, %v1816
        %v1818 = vpop.f32.mrf.mxu0
        %1819 = vdwg.mxu0
        %v1821 = vsel %vm183, %v1789, 0
        %v1824 = vsel %vm187, %v1790, 0
        %1826 = vmatpush.bf16.msra.mxu0 0
        %1827 = vmatpush.bf16.msra.mxu0 0
        %1828 = vmatpush.bf16.msra.mxu0 0
        %1829 = vmatpush.bf16.msra.mxu0 0
        %1830 = vmatpush.bf16.msra.mxu0 0
        %1831 = vmatpush.bf16.msra.mxu0 0
        %1832 = vmatpush.bf16.msra.mxu0 0
        %1833 = vmatpush.bf16.msra.mxu0 %v1824
        %1834 = vmatmul.bf16.gmra.mxu0 %v1821
        %v1835 = vpop.f32.mrf.mxu0
        %v1836 = vadd.f32 %v1817, %v1835
        %v1837 = vpop.f32.mrf.mxu0
        %1838 = vdwg.mxu0
        %v1839 = vld [vmem:[%s1697] sm:$0xf]
        %v1840 = vld [vmem:[%s1697 + $0x4] sm:$0x1]
        %v1841 = vld [vmem:[%s1 + $0x4] sm:$0x3]
        %v1844 = vunpack.c.l.b16 %v1839
        %v1845 = vunpack.c.l.b16 %v1840
        %v1846 = vpack.c.b16 %v1845, %v1844
        %v1848 = vshrl.u32 %v1846, 16
        %v1850 = vshll.u32 %v1846, 16
        %v1852 = vrot.slane %v1850, 1
        %v1853 = vor.u32 %v1848, %v1852
        %v1855 = vsel %vm183, %v1853, 0
        %v1858 = vsel %vm187, %v1841, 0
        %1860 = vmatpush.bf16.msra.mxu0 0
        %1861 = vmatpush.bf16.msra.mxu0 0
        %1862 = vmatpush.bf16.msra.mxu0 0
        %1863 = vmatpush.bf16.msra.mxu0 0
        %1864 = vmatpush.bf16.msra.mxu0 0
        %1865 = vmatpush.bf16.msra.mxu0 0
        %1866 = vmatpush.bf16.msra.mxu0 0
        %1867 = vmatpush.bf16.msra.mxu0 %v1858
        %1868 = vmatmul.bf16.gmra.mxu0 %v1855
        %v1869 = vpop.f32.mrf.mxu0
        %v1870 = vadd.f32 0.0, %v1869
        %v1871 = vpop.f32.mrf.mxu0
        %1872 = vdwg.mxu0
        %v1873 = vadd.f32 %v1836, %v1870
        %s1874 = scalar_lea.vmem %s168, 104
        %v1875 = vld [vmem:[%s1874] sm:$0xf]
        %v1876 = vld [vmem:[%s1 + $0x4] sm:$0xc]
        %v1878 = vunpack.c.l.b16 %v1876
        %v1879 = vpack.c.b16 %v1878, %v1878
        %v1880 = vrot.slane %v1879, 2
        %v1882 = vsel %vm183, %v1875, 0
        %v1885 = vsel %vm187, %v1880, 0
        %1887 = vmatpush.bf16.msra.mxu0 0
        %1888 = vmatpush.bf16.msra.mxu0 0
        %1889 = vmatpush.bf16.msra.mxu0 0
        %1890 = vmatpush.bf16.msra.mxu0 0
        %1891 = vmatpush.bf16.msra.mxu0 0
        %1892 = vmatpush.bf16.msra.mxu0 0
        %1893 = vmatpush.bf16.msra.mxu0 0
        %1894 = vmatpush.bf16.msra.mxu0 %v1885
        %1895 = vmatmul.bf16.gmra.mxu0 %v1882
        %v1896 = vpop.f32.mrf.mxu0
        %v1897 = vadd.f32 0.0, %v1896
        %v1898 = vpop.f32.mrf.mxu0
        %1899 = vdwg.mxu0
        %v1900 = vadd.f32 %v1873, %v1897
        %v1901 = vld [vmem:[%s1 + $0x8] sm:$0x3]
        %v1903 = vunpack.c.l.b16 %v1875
        %v1904 = vpack.c.b16 %v1903, %v1903
        %1905 = vrot.lane.b32.xlu0 %v1904, 124
        %v1906 = vpop.permute.xlu0 %1905
        %v1908 = vsel %vm183, %v1906, 0
        %v1911 = vsel %vm187, %v1901, 0
        %1913 = vmatpush.bf16.msra.mxu0 0
        %1914 = vmatpush.bf16.msra.mxu0 0
        %1915 = vmatpush.bf16.msra.mxu0 0
        %1916 = vmatpush.bf16.msra.mxu0 0
        %1917 = vmatpush.bf16.msra.mxu0 0
        %1918 = vmatpush.bf16.msra.mxu0 0
        %1919 = vmatpush.bf16.msra.mxu0 0
        %1920 = vmatpush.bf16.msra.mxu0 %v1911
        %1921 = vmatmul.bf16.gmra.mxu0 %v1908
        %v1922 = vpop.f32.mrf.mxu0
        %v1923 = vadd.f32 0.0, %v1922
        %v1924 = vpop.f32.mrf.mxu0
        %1925 = vdwg.mxu0
        %v1926 = vadd.f32 %v1900, %v1923
        %v1927 = vld [vmem:[%s1874] sm:$0xf]
        %v1928 = vld [vmem:[%s1874 + $0x4] sm:$0x1]
        %v1929 = vld [vmem:[%s1 + $0x8] sm:$0xc]
        %v1932 = vunpack.c.l.b16 %v1927
        %v1933 = vunpack.c.l.b16 %v1928
        %v1934 = vpack.c.b16 %v1933, %v1932
        %v1936 = vshrl.u32 %v1934, 16
        %v1938 = vshll.u32 %v1934, 16
        %v1940 = vrot.slane %v1938, 1
        %v1941 = vor.u32 %v1936, %v1940
        %v1943 = vunpack.c.l.b16 %v1929
        %v1944 = vpack.c.b16 %v1943, %v1943
        %v1945 = vrot.slane %v1944, 2
        %v1947 = vsel %vm183, %v1941, 0
        %v1950 = vsel %vm187, %v1945, 0
        %1952 = vmatpush.bf16.msra.mxu0 0
        %1953 = vmatpush.bf16.msra.mxu0 0
        %1954 = vmatpush.bf16.msra.mxu0 0
        %1955 = vmatpush.bf16.msra.mxu0 0
        %1956 = vmatpush.bf16.msra.mxu0 0
        %1957 = vmatpush.bf16.msra.mxu0 0
        %1958 = vmatpush.bf16.msra.mxu0 0
        %1959 = vmatpush.bf16.msra.mxu0 %v1950
        %1960 = vmatmul.bf16.gmra.mxu0 %v1947
        %v1961 = vpop.f32.mrf.mxu0
        %v1962 = vadd.f32 0.0, %v1961
        %v1963 = vpop.f32.mrf.mxu0
        %1964 = vdwg.mxu0
        %v1965 = vadd.f32 %v1926, %v1962
        %s1966 = scalar_lea.vmem %s168, 112
        %v1967 = vld [vmem:[%s1966] sm:$0xf]
        %v1968 = vld [vmem:[%s1 + $0xc] sm:$0x3]
        %v1970 = vsel %vm183, %v1967, 0
        %v1973 = vsel %vm187, %v1968, 0
        %1975 = vmatpush.bf16.msra.mxu0 0
        %1976 = vmatpush.bf16.msra.mxu0 0
        %1977 = vmatpush.bf16.msra.mxu0 0
        %1978 = vmatpush.bf16.msra.mxu0 0
        %1979 = vmatpush.bf16.msra.mxu0 0
        %1980 = vmatpush.bf16.msra.mxu0 0
        %1981 = vmatpush.bf16.msra.mxu0 0
        %1982 = vmatpush.bf16.msra.mxu0 %v1973
        %1983 = vmatmul.bf16.gmra.mxu0 %v1970
        %v1984 = vpop.f32.mrf.mxu0
        %v1985 = vadd.f32 0.0, %v1984
        %v1986 = vpop.f32.mrf.mxu0
        %1987 = vdwg.mxu0
        %v1988 = vadd.f32 %v1965, %v1985
        %v1989 = vld [vmem:[%s1 + $0xc] sm:$0xc]
        %v1991 = vunpack.c.l.b16 %v1967
        %v1992 = vpack.c.b16 %v1991, %v1991
        %1993 = vrot.lane.b32.xlu0 %v1992, 124
        %v1994 = vpop.permute.xlu0 %1993
        %v1996 = vunpack.c.l.b16 %v1989
        %v1997 = vpack.c.b16 %v1996, %v1996
        %v1998 = vrot.slane %v1997, 2
        %v2000 = vsel %vm183, %v1994, 0
        %v2003 = vsel %vm187, %v1998, 0
        %2005 = vmatpush.bf16.msra.mxu0 0
        %2006 = vmatpush.bf16.msra.mxu0 0
        %2007 = vmatpush.bf16.msra.mxu0 0
        %2008 = vmatpush.bf16.msra.mxu0 0
        %2009 = vmatpush.bf16.msra.mxu0 0
        %2010 = vmatpush.bf16.msra.mxu0 0
        %2011 = vmatpush.bf16.msra.mxu0 0
        %2012 = vmatpush.bf16.msra.mxu0 %v2003
        %2013 = vmatmul.bf16.gmra.mxu0 %v2000
        %v2014 = vpop.f32.mrf.mxu0
        %v2015 = vadd.f32 0.0, %v2014
        %v2016 = vpop.f32.mrf.mxu0
        %2017 = vdwg.mxu0
        %v2018 = vadd.f32 %v1988, %v2015
        %v2019 = vld [vmem:[%s1966] sm:$0xf]
        %v2020 = vld [vmem:[%s1966 + $0x4] sm:$0x1]
        %v2021 = vld [vmem:[%s1 + $0x10] sm:$0x3]
        %v2024 = vunpack.c.l.b16 %v2019
        %v2025 = vunpack.c.l.b16 %v2020
        %v2026 = vpack.c.b16 %v2025, %v2024
        %v2028 = vshrl.u32 %v2026, 16
        %v2030 = vshll.u32 %v2026, 16
        %v2032 = vrot.slane %v2030, 1
        %v2033 = vor.u32 %v2028, %v2032
        %v2035 = vsel %vm183, %v2033, 0
        %v2038 = vsel %vm187, %v2021, 0
        %2040 = vmatpush.bf16.msra.mxu0 0
        %2041 = vmatpush.bf16.msra.mxu0 0
        %2042 = vmatpush.bf16.msra.mxu0 0
        %2043 = vmatpush.bf16.msra.mxu0 0
        %2044 = vmatpush.bf16.msra.mxu0 0
        %2045 = vmatpush.bf16.msra.mxu0 0
        %2046 = vmatpush.bf16.msra.mxu0 0
        %2047 = vmatpush.bf16.msra.mxu0 %v2038
        %2048 = vmatmul.bf16.gmra.mxu0 %v2035
        %v2049 = vpop.f32.mrf.mxu0
        %v2050 = vadd.f32 0.0, %v2049
        %v2051 = vpop.f32.mrf.mxu0
        %2052 = vdwg.mxu0
        %v2053 = vadd.f32 %v2018, %v2050
        %v2054 = vadd.f32 %v2053, %v439
        %v2055 = vmax.f32 %v2054, 0.0
        %s2056 = scalar_lea.vmem %s163, 48 [#allocation2]
        %2057 = vst [vmem:[%s2056] sm:$0xff] %v2055
        %v2058 = vld [vmem:[%s1966] sm:$0xf]
        %v2059 = vld [vmem:[%s1] sm:$0x3]
        %v2060 = vld [vmem:[%s1] sm:$0xc]
        %v2062 = vunpack.c.l.b16 %v2058
        %v2063 = vpack.c.b16 %v2062, %v2062
        %2064 = vrot.lane.b32.xlu0 %v2063, 124
        %v2065 = vpop.permute.xlu0 %2064
        %v2067 = vunpack.c.l.b16 %v2060
        %v2068 = vpack.c.b16 %v2067, %v2067
        %v2069 = vrot.slane %v2068, 2
        %v2071 = vsel %vm183, %v2065, 0
        %v2074 = vsel %vm187, %v2069, 0
        %2076 = vmatpush.bf16.msra.mxu0 0
        %2077 = vmatpush.bf16.msra.mxu0 0
        %2078 = vmatpush.bf16.msra.mxu0 0
        %2079 = vmatpush.bf16.msra.mxu0 0
        %2080 = vmatpush.bf16.msra.mxu0 0
        %2081 = vmatpush.bf16.msra.mxu0 0
        %2082 = vmatpush.bf16.msra.mxu0 0
        %2083 = vmatpush.bf16.msra.mxu0 %v2074
        %2084 = vmatmul.bf16.gmra.mxu0 %v2071
        %v2085 = vpop.f32.mrf.mxu0
        %v2086 = vadd.f32 0.0, %v2085
        %v2087 = vpop.f32.mrf.mxu0
        %2088 = vdwg.mxu0
        %v2090 = vsel %vm183, %v2058, 0
        %v2093 = vsel %vm187, %v2059, 0
        %2095 = vmatpush.bf16.msra.mxu0 0
        %2096 = vmatpush.bf16.msra.mxu0 0
        %2097 = vmatpush.bf16.msra.mxu0 0
        %2098 = vmatpush.bf16.msra.mxu0 0
        %2099 = vmatpush.bf16.msra.mxu0 0
        %2100 = vmatpush.bf16.msra.mxu0 0
        %2101 = vmatpush.bf16.msra.mxu0 0
        %2102 = vmatpush.bf16.msra.mxu0 %v2093
        %2103 = vmatmul.bf16.gmra.mxu0 %v2090
        %v2104 = vpop.f32.mrf.mxu0
        %v2105 = vadd.f32 %v2086, %v2104
        %v2106 = vpop.f32.mrf.mxu0
        %2107 = vdwg.mxu0
        %v2108 = vld [vmem:[%s1966] sm:$0xf]
        %v2109 = vld [vmem:[%s1966 + $0x4] sm:$0x1]
        %v2110 = vld [vmem:[%s1 + $0x4] sm:$0x3]
        %v2113 = vunpack.c.l.b16 %v2108
        %v2114 = vunpack.c.l.b16 %v2109
        %v2115 = vpack.c.b16 %v2114, %v2113
        %v2117 = vshrl.u32 %v2115, 16
        %v2119 = vshll.u32 %v2115, 16
        %v2121 = vrot.slane %v2119, 1
        %v2122 = vor.u32 %v2117, %v2121
        %v2124 = vsel %vm183, %v2122, 0
        %v2127 = vsel %vm187, %v2110, 0
        %2129 = vmatpush.bf16.msra.mxu0 0
        %2130 = vmatpush.bf16.msra.mxu0 0
        %2131 = vmatpush.bf16.msra.mxu0 0
        %2132 = vmatpush.bf16.msra.mxu0 0
        %2133 = vmatpush.bf16.msra.mxu0 0
        %2134 = vmatpush.bf16.msra.mxu0 0
        %2135 = vmatpush.bf16.msra.mxu0 0
        %2136 = vmatpush.bf16.msra.mxu0 %v2127
        %2137 = vmatmul.bf16.gmra.mxu0 %v2124
        %v2138 = vpop.f32.mrf.mxu0
        %v2139 = vadd.f32 0.0, %v2138
        %v2140 = vpop.f32.mrf.mxu0
        %2141 = vdwg.mxu0
        %v2142 = vadd.f32 %v2105, %v2139
        %s2143 = scalar_lea.vmem %s168, 120
        %v2144 = vld [vmem:[%s2143] sm:$0xf]
        %v2145 = vld [vmem:[%s1 + $0x4] sm:$0xc]
        %v2147 = vunpack.c.l.b16 %v2145
        %v2148 = vpack.c.b16 %v2147, %v2147
        %v2149 = vrot.slane %v2148, 2
        %v2151 = vsel %vm183, %v2144, 0
        %v2154 = vsel %vm187, %v2149, 0
        %2156 = vmatpush.bf16.msra.mxu0 0
        %2157 = vmatpush.bf16.msra.mxu0 0
        %2158 = vmatpush.bf16.msra.mxu0 0
        %2159 = vmatpush.bf16.msra.mxu0 0
        %2160 = vmatpush.bf16.msra.mxu0 0
        %2161 = vmatpush.bf16.msra.mxu0 0
        %2162 = vmatpush.bf16.msra.mxu0 0
        %2163 = vmatpush.bf16.msra.mxu0 %v2154
        %2164 = vmatmul.bf16.gmra.mxu0 %v2151
        %v2165 = vpop.f32.mrf.mxu0
        %v2166 = vadd.f32 0.0, %v2165
        %v2167 = vpop.f32.mrf.mxu0
        %2168 = vdwg.mxu0
        %v2169 = vadd.f32 %v2142, %v2166
        %v2170 = vld [vmem:[%s1 + $0x8] sm:$0x3]
        %v2172 = vunpack.c.l.b16 %v2144
        %v2173 = vpack.c.b16 %v2172, %v2172
        %2174 = vrot.lane.b32.xlu0 %v2173, 124
        %v2175 = vpop.permute.xlu0 %2174
        %v2177 = vsel %vm183, %v2175, 0
        %v2180 = vsel %vm187, %v2170, 0
        %2182 = vmatpush.bf16.msra.mxu0 0
        %2183 = vmatpush.bf16.msra.mxu0 0
        %2184 = vmatpush.bf16.msra.mxu0 0
        %2185 = vmatpush.bf16.msra.mxu0 0
        %2186 = vmatpush.bf16.msra.mxu0 0
        %2187 = vmatpush.bf16.msra.mxu0 0
        %2188 = vmatpush.bf16.msra.mxu0 0
        %2189 = vmatpush.bf16.msra.mxu0 %v2180
        %2190 = vmatmul.bf16.gmra.mxu0 %v2177
        %v2191 = vpop.f32.mrf.mxu0
        %v2192 = vadd.f32 0.0, %v2191
        %v2193 = vpop.f32.mrf.mxu0
        %2194 = vdwg.mxu0
        %v2195 = vadd.f32 %v2169, %v2192
        %v2196 = vld [vmem:[%s2143] sm:$0xf]
        %v2197 = vld [vmem:[%s2143 + $0x4] sm:$0x1]
        %v2198 = vld [vmem:[%s1 + $0x8] sm:$0xc]
        %v2201 = vunpack.c.l.b16 %v2196
        %v2202 = vunpack.c.l.b16 %v2197
        %v2203 = vpack.c.b16 %v2202, %v2201
        %v2205 = vshrl.u32 %v2203, 16
        %v2207 = vshll.u32 %v2203, 16
        %v2209 = vrot.slane %v2207, 1
        %v2210 = vor.u32 %v2205, %v2209
        %v2212 = vunpack.c.l.b16 %v2198
        %v2213 = vpack.c.b16 %v2212, %v2212
        %v2214 = vrot.slane %v2213, 2
        %v2216 = vsel %vm183, %v2210, 0
        %v2219 = vsel %vm187, %v2214, 0
        %2221 = vmatpush.bf16.msra.mxu0 0
        %2222 = vmatpush.bf16.msra.mxu0 0
        %2223 = vmatpush.bf16.msra.mxu0 0
        %2224 = vmatpush.bf16.msra.mxu0 0
        %2225 = vmatpush.bf16.msra.mxu0 0
        %2226 = vmatpush.bf16.msra.mxu0 0
        %2227 = vmatpush.bf16.msra.mxu0 0
        %2228 = vmatpush.bf16.msra.mxu0 %v2219
        %2229 = vmatmul.bf16.gmra.mxu0 %v2216
        %v2230 = vpop.f32.mrf.mxu0
        %v2231 = vadd.f32 0.0, %v2230
        %v2232 = vpop.f32.mrf.mxu0
        %2233 = vdwg.mxu0
        %v2234 = vadd.f32 %v2195, %v2231
        %s2235 = scalar_lea.vmem %s168, 128
        %v2236 = vld [vmem:[%s2235] sm:$0xf]
        %v2237 = vld [vmem:[%s1 + $0xc] sm:$0x3]
        %v2239 = vsel %vm183, %v2236, 0
        %v2242 = vsel %vm187, %v2237, 0
        %2244 = vmatpush.bf16.msra.mxu0 0
        %2245 = vmatpush.bf16.msra.mxu0 0
        %2246 = vmatpush.bf16.msra.mxu0 0
        %2247 = vmatpush.bf16.msra.mxu0 0
        %2248 = vmatpush.bf16.msra.mxu0 0
        %2249 = vmatpush.bf16.msra.mxu0 0
        %2250 = vmatpush.bf16.msra.mxu0 0
        %2251 = vmatpush.bf16.msra.mxu0 %v2242
        %2252 = vmatmul.bf16.gmra.mxu0 %v2239
        %v2253 = vpop.f32.mrf.mxu0
        %v2254 = vadd.f32 0.0, %v2253
        %v2255 = vpop.f32.mrf.mxu0
        %2256 = vdwg.mxu0
        %v2257 = vadd.f32 %v2234, %v2254
        %v2258 = vld [vmem:[%s1 + $0xc] sm:$0xc]
        %v2260 = vunpack.c.l.b16 %v2236
        %v2261 = vpack.c.b16 %v2260, %v2260
        %2262 = vrot.lane.b32.xlu0 %v2261, 124
        %v2263 = vpop.permute.xlu0 %2262
        %v2265 = vunpack.c.l.b16 %v2258
        %v2266 = vpack.c.b16 %v2265, %v2265
        %v2267 = vrot.slane %v2266, 2
        %v2269 = vsel %vm183, %v2263, 0
        %v2272 = vsel %vm187, %v2267, 0
        %2274 = vmatpush.bf16.msra.mxu0 0
        %2275 = vmatpush.bf16.msra.mxu0 0
        %2276 = vmatpush.bf16.msra.mxu0 0
        %2277 = vmatpush.bf16.msra.mxu0 0
        %2278 = vmatpush.bf16.msra.mxu0 0
        %2279 = vmatpush.bf16.msra.mxu0 0
        %2280 = vmatpush.bf16.msra.mxu0 0
        %2281 = vmatpush.bf16.msra.mxu0 %v2272
        %2282 = vmatmul.bf16.gmra.mxu0 %v2269
        %v2283 = vpop.f32.mrf.mxu0
        %v2284 = vadd.f32 0.0, %v2283
        %v2285 = vpop.f32.mrf.mxu0
        %2286 = vdwg.mxu0
        %v2287 = vadd.f32 %v2257, %v2284
        %v2288 = vld [vmem:[%s2235] sm:$0xf]
        %v2289 = vld [vmem:[%s2235 + $0x4] sm:$0x1]
        %v2290 = vld [vmem:[%s1 + $0x10] sm:$0x3]
        %v2293 = vunpack.c.l.b16 %v2288
        %v2294 = vunpack.c.l.b16 %v2289
        %v2295 = vpack.c.b16 %v2294, %v2293
        %v2297 = vshrl.u32 %v2295, 16
        %v2299 = vshll.u32 %v2295, 16
        %v2301 = vrot.slane %v2299, 1
        %v2302 = vor.u32 %v2297, %v2301
        %v2304 = vsel %vm183, %v2302, 0
        %v2307 = vsel %vm187, %v2290, 0
        %2309 = vmatpush.bf16.msra.mxu0 0
        %2310 = vmatpush.bf16.msra.mxu0 0
        %2311 = vmatpush.bf16.msra.mxu0 0
        %2312 = vmatpush.bf16.msra.mxu0 0
        %2313 = vmatpush.bf16.msra.mxu0 0
        %2314 = vmatpush.bf16.msra.mxu0 0
        %2315 = vmatpush.bf16.msra.mxu0 0
        %2316 = vmatpush.bf16.msra.mxu0 %v2307
        %2317 = vmatmul.bf16.gmra.mxu0 %v2304
        %v2318 = vpop.f32.mrf.mxu0
        %v2319 = vadd.f32 0.0, %v2318
        %v2320 = vpop.f32.mrf.mxu0
        %2321 = vdwg.mxu0
        %v2322 = vadd.f32 %v2287, %v2319
        %v2323 = vadd.f32 %v2322, %v439
        %v2324 = vmax.f32 %v2323, 0.0
        %s2325 = scalar_lea.vmem %s163, 56 [#allocation2]
        %2326 = vst [vmem:[%s2325] sm:$0xff] %v2324
        %s2327 = sand.u32 %s93, 1
        %s2328 = scalar_lea.sflag [#allocation3], %s2327
        %s2329 = sand.u32 %s93, 1
        %s2330 = smul.addr %s2329, 64
        %s2331 = scalar_lea.vmem [#allocation2], %s2330
        // Predicated region
        $region33: #{pipeline_forward.4} parent=31 // pred_check
          %p2332 = pneg %p103
        $region34: #{pipeline_forward.4} parent=31 // pred_check_branch
          %2334 = sbr.rel (%p2332) target = $region36
        $region35: #{pipeline_forward.4} parent=31 // pred_region
          %2336 = vsyncadd %s2328, 0
          %s2337 = smul.addr %s17, 8
          %s2338 = smul.addr %s2337, 8
          %s2339 = scalar_lea.hbm %s3, %s2338
          %s2340 = sshll.u32 %s2331, 4
          %s2341 = int_to_ptr.vmem [resolvable:$true] %s2340
          %s2342 = sshll.u32 %s2339, 4
          %s2343 = int_to_ptr.hbm [resolvable:$true] %s2342
          %2348 = dma.vmem_to_hbm [thread:$0]  %s2341, 1024, %s2343, %s2328, 128, 128, 8
        $region36: #{pipeline_forward.4} parent=31 // pred_fallthru
          _
      $region32: #{pipeline_forward.4} parent=5 // pred_fallthru
        _
      %p2349 = scmp.le.s32.totalorder 2, %s12
      // Predicated region
      $region37: #{pipeline_forward.4} parent=5 // pred_check
        %p2350 = pneg %p2349
      $region38: #{pipeline_forward.4} parent=5 // pred_check_branch
        %2352 = sbr.rel (%p2350) target = $region40
      $region39: #{pipeline_forward.4} parent=5 // pred_region
        %s2353 = ssub.s32 %s12, 2
        // Predicated region
        $region41: #{pipeline_forward.4} parent=39 // pred_check
          %p2354 = pneg %p109
        $region42: #{pipeline_forward.4} parent=39 // pred_check_branch
          %2356 = sbr.rel (%p2354) target = $region44
        $region43: #{pipeline_forward.4} parent=39 // pred_region
          %s2357 = sand.u32 %s94, 1
          %s2358 = scalar_lea.sflag [#allocation3], %s2357
          %s2359 = sand.u32 %s94, 1
          %s2360 = smul.addr %s2359, 64
          %s2361 = scalar_lea.vmem [#allocation2], %s2360
          %2363 = dma.done %s2358, 1024
        $region44: #{pipeline_forward.4} parent=39 // pred_fallthru
          _
      $region40: #{pipeline_forward.4} parent=5 // pred_fallthru
        _
    $region6: #{pipeline_forward.4} parent=1 // loop_footer
      %s16 = sadd.s32 1, %s12
    $region7: #{pipeline_forward.4} parent=1 // loop_footer_branch
      %11 = sbr.rel target = $region3
    $region8: #{pipeline_forward.4} parent=1 // loop_exit
      _
    %2364 = vsyncpa [#allocation3], 1
    %s2365 = scalar_lea.sflag [#allocation3], 1
    %2366 = vsyncpa %s2365, 1

// kernel: pipeline_forward.7
$region0: #{pipeline_forward.7}
  #allocation0 [shape = 'u32[]', space=smem, size = 0x4, offset = 0x4, fixed_abs, tag = 'smem constant byte address 0x4 - core index']
  #allocation1 [shape = 'u32[72,128]{1,0:T(1,128)}', space=vmem, size = 0x9000, scoped, tag = 'internal scratch']
  %s0 = inlined_call_operand.vmem [shape: bf16[2,1,16], index: 0, kind: input, shape index: {}]
  %s1 = inlined_call_operand.vmem [shape: bf16[16,16], index: 1, kind: input, shape index: {}]
  %s2 = inlined_call_operand.vmem [shape: bf16[16,16], index: 2, kind: input, shape index: {}]
  %s3 = inlined_call_operand.vmem [shape: f32[8,1], index: 3, kind: input, shape index: {}]
  %s4 = inlined_call_operand.vmem [shape: f32[2,32,16], index: 4, kind: output, shape index: {}]
  %s5 = sld [smem:[#allocation0]]
  $region49: #{pipeline_forward.7} parent=0
    _
  %s7 = ssub.s32 1, %s5
  %s8 = scalar_select 0, %s7, %s5
  loop: start=0, step=1, limit=4
  $region2: #{pipeline_forward.7} parent=0 // loop_pre_header
    _
  $region3: #{pipeline_forward.7} parent=0 // loop_header
    %s10 = sphi 0, %s14
    %p11 = scmp.ge.s32.totalorder %s10, 4
    %s20 = sphi 0, %s22
    %s23 = sphi 0, %s20
    %s24 = sphi 0, %s23
    %s40 = sphi 0, %s24
    %s44 = sphi 0, %s44
    %s46 = sphi 0, %s44
    %s47 = sphi 0, %s46
    %s61 = sphi 0, %s47
    %s65 = sphi 0, %s65
    %s67 = sphi 0, %s65
    %s68 = sphi 0, %s67
    %s82 = sphi 0, %s68
    %s86 = sphi 0, %s86
    %s88 = sphi 0, %s86
    %s89 = sphi 0, %s88
    %s103 = sphi 0, %s89
    %s109 = sphi 0, %s111
    %s112 = sphi 0, %s109
    %s113 = sphi 0, %s112
    %s129 = sphi 0, %s113
  $region4: #{pipeline_forward.7} parent=0 // loop_header_branch
    %13 = sbr.rel (%p11) target = $region8
  $region5: #{pipeline_forward.7} parent=0 // loop_body
    %s15 = ssub.s32 %s10, 1
    %s16 = ssub.s32 %s10, 2
    %s17 = sadd.s32 %s10, 1
    %s18 = ssub.s32 %s10, %s17
    %p19 = scmp.eq.s32.totalorder %s18, 0
    %s21 = sadd.s32 %s20, 1
    %s22 = scalar_select %p19, %s20, %s21
    %p25 = pneg %p19
    %p26 = scmp.eq.s32.totalorder %s10, 1
    %p27 = por %p25, %p26
    %p28 = scmp.ne.s32.totalorder %s20, %s23
    %p29 = scmp.eq.s32.totalorder %s10, 0
    %p30 = por %p28, %p29
    %p31 = scmp.ne.s32.totalorder %s20, %s23
    %p32 = scmp.eq.s32.totalorder %s15, 1
    %p33 = por %p31, %p32
    %p34 = scmp.ne.s32.totalorder %s23, %s24
    %p35 = scmp.eq.s32.totalorder %s15, 0
    %p36 = por %p34, %p35
    %p37 = scmp.ne.s32.totalorder %s23, %s24
    %p38 = scmp.eq.s32.totalorder %s16, 1
    %p39 = por %p37, %p38
    %p41 = scmp.ne.s32.totalorder %s24, %s40
    %p42 = scmp.eq.s32.totalorder %s16, 0
    %p43 = por %p41, %p42
    %s45 = sadd.s32 %s44, 1
    %p48 = scmp.eq.s32.totalorder %s10, 1
    %p49 = scmp.ne.s32.totalorder %s44, %s46
    %p50 = scmp.eq.s32.totalorder %s10, 0
    %p51 = por %p49, %p50
    %p52 = scmp.ne.s32.totalorder %s44, %s46
    %p53 = scmp.eq.s32.totalorder %s15, 1
    %p54 = por %p52, %p53
    %p55 = scmp.ne.s32.totalorder %s46, %s47
    %p56 = scmp.eq.s32.totalorder %s15, 0
    %p57 = por %p55, %p56
    %p58 = scmp.ne.s32.totalorder %s46, %s47
    %p59 = scmp.eq.s32.totalorder %s16, 1
    %p60 = por %p58, %p59
    %p62 = scmp.ne.s32.totalorder %s47, %s61
    %p63 = scmp.eq.s32.totalorder %s16, 0
    %p64 = por %p62, %p63
    %s66 = sadd.s32 %s65, 1
    %p69 = scmp.eq.s32.totalorder %s10, 1
    %p70 = scmp.ne.s32.totalorder %s65, %s67
    %p71 = scmp.eq.s32.totalorder %s10, 0
    %p72 = por %p70, %p71
    %p73 = scmp.ne.s32.totalorder %s65, %s67
    %p74 = scmp.eq.s32.totalorder %s15, 1
    %p75 = por %p73, %p74
    %p76 = scmp.ne.s32.totalorder %s67, %s68
    %p77 = scmp.eq.s32.totalorder %s15, 0
    %p78 = por %p76, %p77
    %p79 = scmp.ne.s32.totalorder %s67, %s68
    %p80 = scmp.eq.s32.totalorder %s16, 1
    %p81 = por %p79, %p80
    %p83 = scmp.ne.s32.totalorder %s68, %s82
    %p84 = scmp.eq.s32.totalorder %s16, 0
    %p85 = por %p83, %p84
    %s87 = sadd.s32 %s86, 1
    %p90 = scmp.eq.s32.totalorder %s10, 1
    %p91 = scmp.ne.s32.totalorder %s86, %s88
    %p92 = scmp.eq.s32.totalorder %s10, 0
    %p93 = por %p91, %p92
    %p94 = scmp.ne.s32.totalorder %s86, %s88
    %p95 = scmp.eq.s32.totalorder %s15, 1
    %p96 = por %p94, %p95
    %p97 = scmp.ne.s32.totalorder %s88, %s89
    %p98 = scmp.eq.s32.totalorder %s15, 0
    %p99 = por %p97, %p98
    %p100 = scmp.ne.s32.totalorder %s88, %s89
    %p101 = scmp.eq.s32.totalorder %s16, 1
    %p102 = por %p100, %p101
    %p104 = scmp.ne.s32.totalorder %s89, %s103
    %p105 = scmp.eq.s32.totalorder %s16, 0
    %p106 = por %p104, %p105
    %s107 = ssub.s32 %s10, %s17
    %p108 = scmp.eq.s32.totalorder %s107, 0
    %s110 = sadd.s32 %s109, 1
    %s111 = scalar_select %p108, %s109, %s110
    %p114 = pneg %p108
    %p115 = scmp.eq.s32.totalorder %s10, 1
    %p116 = por %p114, %p115
    %p117 = scmp.ne.s32.totalorder %s109, %s112
    %p118 = scmp.eq.s32.totalorder %s10, 0
    %p119 = por %p117, %p118
    %p120 = scmp.ne.s32.totalorder %s109, %s112
    %p121 = scmp.eq.s32.totalorder %s15, 1
    %p122 = por %p120, %p121
    %p123 = scmp.ne.s32.totalorder %s112, %s113
    %p124 = scmp.eq.s32.totalorder %s15, 0
    %p125 = por %p123, %p124
    %p126 = scmp.ne.s32.totalorder %s112, %s113
    %p127 = scmp.eq.s32.totalorder %s16, 1
    %p128 = por %p126, %p127
    %p130 = scmp.ne.s32.totalorder %s113, %s129
    %p131 = scmp.eq.s32.totalorder %s16, 0
    %p132 = por %p130, %p131
    %p133 = scmp.le.s32.totalorder 1, %s10
    %p134 = scmp.lt.s32.totalorder %s10, 3
    %p135 = pnand %p133, %p134
    %p136 = pneg %p135
    // Predicated region
    $region9: #{pipeline_forward.7} parent=5 // pred_check
      _
    $region10: #{pipeline_forward.7} parent=5 // pred_check_branch
      %138 = sbr.rel (%p135) target = $region12
    $region11: #{pipeline_forward.7} parent=5 // pred_region
      %s139 = ssub.s32 %s10, 1
      // Predicated region
      $region13: #{pipeline_forward.7} parent=11 // pred_check
        %p140 = pneg %p57
      $region14: #{pipeline_forward.7} parent=11 // pred_check_branch
        %142 = sbr.rel (%p140) target = $region16
      $region15: #{pipeline_forward.7} parent=11 // pred_region
        _
      $region16: #{pipeline_forward.7} parent=11 // pred_fallthru
        _
      // Predicated region
      $region17: #{pipeline_forward.7} parent=11 // pred_check
        %p143 = pneg %p78
      $region18: #{pipeline_forward.7} parent=11 // pred_check_branch
        %145 = sbr.rel (%p143) target = $region20
      $region19: #{pipeline_forward.7} parent=11 // pred_region
        _
      $region20: #{pipeline_forward.7} parent=11 // pred_fallthru
        _
      // Predicated region
      $region21: #{pipeline_forward.7} parent=11 // pred_check
        %p146 = pneg %p99
      $region22: #{pipeline_forward.7} parent=11 // pred_check_branch
        %148 = sbr.rel (%p146) target = $region24
      $region23: #{pipeline_forward.7} parent=11 // pred_region
        _
      $region24: #{pipeline_forward.7} parent=11 // pred_fallthru
        _
    $region12: #{pipeline_forward.7} parent=5 // pred_fallthru
      _
    %p149 = scmp.lt.s32.totalorder %s10, 2
    // Predicated region
    $region25: #{pipeline_forward.7} parent=5 // pred_check
      %p150 = pneg %p149
    $region26: #{pipeline_forward.7} parent=5 // pred_check_branch
      %152 = sbr.rel (%p150) target = $region28
    $region27: #{pipeline_forward.7} parent=5 // pred_region
      // Predicated region
      $region29: #{pipeline_forward.7} parent=27 // pred_check
        %p153 = pneg %p30
      $region30: #{pipeline_forward.7} parent=27 // pred_check_branch
        %155 = sbr.rel (%p153) target = $region32
      $region31: #{pipeline_forward.7} parent=27 // pred_region
        %p156 = scmp.lt.s32.totalorder %s10, 1
        %s157 = scalar_select %p156, %s10, 1
        %s158 = scalar_lea.vmem %s0, %s157
      $region32: #{pipeline_forward.7} parent=27 // pred_fallthru
        _
    $region28: #{pipeline_forward.7} parent=5 // pred_fallthru
      _
    %p159 = scmp.le.s32.totalorder 1, %s10
    %p160 = scmp.lt.s32.totalorder %s10, 3
    %p161 = pnand %p159, %p160
    %p162 = pneg %p161
    // Predicated region
    $region33: #{pipeline_forward.7} parent=5 // pred_check
      _
    $region34: #{pipeline_forward.7} parent=5 // pred_check_branch
      %164 = sbr.rel (%p161) target = $region36
    $region35: #{pipeline_forward.7} parent=5 // pred_region
      %s165 = ssub.s32 %s10, 1
      %p166 = scmp.lt.s32.totalorder %s15, 1
      %s167 = scalar_select %p166, %s15, 1
      %s168 = scalar_lea.vmem %s0, %s167
      %p169 = pneg %p36
      %p170 = pneg %p33
      %p171 = pneg %p57
      %p172 = pneg %p54
      %p173 = pneg %p78
      %p174 = pneg %p75
      %p175 = pneg %p99
      %p176 = pneg %p96
      %p177 = pneg %p125
      %p178 = pneg %p122
      %p179 = scmp.lt.s32.totalorder %s15, 1
      %s180 = scalar_select %p179, %s15, 1
      %s181 = smul.addr %s180, 4
      %s182 = smul.addr %s181, 8
      %s183 = scalar_lea.vmem %s4, %s182
      %p184 = scmp.lt.s32.totalorder %s15, 1
      %s185 = scalar_select %p184, %s15, 1
      %s186 = scalar_lea.vmem %s0, %s185
      %p187 = scmp.lt.s32.totalorder %s15, 1
      %s188 = scalar_select %p187, %s15, 1
      %s189 = smul.addr %s188, 4
      %s190 = smul.addr %s189, 8
      %s191 = scalar_lea.vmem %s4, %s190
      %v193 = vld [vmem:[%s186] sm:$0x1]
      %v194 = vld [vmem:[%s1] sm:$0xf]
      %v195 = vld [vmem:[%s1 + $0x4] sm:$0xf]
      %v198 = vunpack.c.l.b16 %v194
      %v199 = vunpack.c.l.b16 %v195
      %v200 = vpack.c.b16 %v199, %v198
      %vm202 = vcmask 130048
      %v204 = vsel %vm202, %v193, 0
      %206 = vmatpush.bf16.msra.mxu0 0
      %207 = vmatpush.bf16.msra.mxu0 0
      %208 = vmatpush.bf16.msra.mxu0 0
      %209 = vmatpush.bf16.msra.mxu0 0
      %210 = vmatpush.bf16.msra.mxu0 0
      %211 = vmatpush.bf16.msra.mxu0 0
      %212 = vmatpush.bf16.msra.mxu0 0
      %213 = vmatpush.bf16.msra.mxu0 %v200
      %214 = vmatmul.bf16.gmra.mxu0 %v204
      %v215 = vpop.f32.mrf.mxu0
      %v216 = vadd.f32 5000.0, %v215
      %v217 = vpop.f32.mrf.mxu0
      %218 = vdwg.mxu0
      %v219 = vld [vmem:[%s2] sm:$0xf]
      %v220 = vld [vmem:[%s2 + $0x4] sm:$0xf]
      %v223 = vunpack.c.l.b16 %v219
      %v224 = vunpack.c.l.b16 %v220
      %v225 = vpack.c.b16 %v224, %v223
      %227 = vmatpush.bf16.msra.mxu0 0
      %228 = vmatpush.bf16.msra.mxu0 0
      %229 = vmatpush.bf16.msra.mxu0 0
      %230 = vmatpush.bf16.msra.mxu0 0
      %231 = vmatpush.bf16.msra.mxu0 0
      %232 = vmatpush.bf16.msra.mxu0 0
      %233 = vmatpush.bf16.msra.mxu0 0
      %234 = vmatpush.bf16.msra.mxu0 %v225
      %235 = vmatmul.bf16.gmra.mxu0 %v204
      %v236 = vpop.f32.mrf.mxu0
      %v237 = vadd.f32 5000.0, %v236
      %v238 = vpop.f32.mrf.mxu0
      %239 = vdwg.mxu0
      %v240 = vld [vmem:[%s3] sm:$0xff]
      %242 = vset.pattern.permute.xlu0 0
      %243 = vperm.xlu0 %242, %v240
      %v244 = vpop.permute.xlu0 %243
      %v246 = vperm.slane %v216, 0
      %v247 = vmul.f32 %v244, %v246
      %v248 = vperm.slane %v237, 0
      %v249 = vmul.f32 %v244, %v248
      %v250 = vand.u32 2147483647, %v247
      %vm251 = vcmp.le.f32.partialorder %v250, 0.7853982
      %vm252 = vcmp.lt.s32.totalorder %v247, 0
      %v253 = vand.u32 %v247, 2139095040
      %v254 = vshrl.u32 %v253, 23
      %v255 = vsub.s32 %v254, 127
      %v256 = vand.u32 2147483647, %v247
      %v257 = vand.u32 %v256, 8388607
      %v258 = vor.u32 %v257, 8388608
      %v259 = vsub.s32 0, %v258
      %v260 = vadd.s32 %v255, 1
      %vm261 = vcmp.gt.s32.totalorder %v260, 0
      %v262 = vsel %vm261, %v260, 0
      %v263 = vshrl.u32 %v262, 5
      %v264 = vand.u32 %v262, 31
      %v265 = vsub.s32 32, %v264
      %v266 = vshrl.u32 683565275, %v265
      %v267 = vshll.u32 683565275, %v264
      %v268 = vshrl.u32 2475754826, %v265
      %v269 = vor.u32 %v267, %v268
      %v270 = vshll.u32 2475754826, %v264
      %v271 = vshrl.u32 2131351028, %v265
      %v272 = vor.u32 %v270, %v271
      %v273 = vshll.u32 2131351028, %v264
      %v274 = vshrl.u32 2102212464, %v265
      %v275 = vor.u32 %v273, %v274
      %v276 = vshll.u32 2102212464, %v264
      %v277 = vshrl.u32 920167782, %v265
      %v278 = vor.u32 %v276, %v277
      %v279 = vshll.u32 920167782, %v264
      %v280 = vshrl.u32 1326507024, %v265
      %v281 = vor.u32 %v279, %v280
      %vm282 = vcmp.lt.s32.totalorder %v263, 1
      %vm283 = vcmp.lt.s32.totalorder %v263, 2
      %vm284 = vcmp.lt.s32.totalorder %v263, 3
      %vm285 = vcmp.lt.s32.totalorder %v263, 4
      %v286 = vsel %vm282, %v266, %v269
      %v287 = vsel %vm285, %v275, 2102212464
      %v288 = vsel %vm284, %v272, %v287
      %v289 = vsel %vm283, %v286, %v288
      %v290 = vsel %vm282, %v269, %v272
      %v291 = vsel %vm285, %v278, 920167782
      %v292 = vsel %vm284, %v275, %v291
      %v293 = vsel %vm283, %v290, %v292
      %v294 = vsel %vm282, %v272, %v275
      %v295 = vsel %vm285, %v281, 1326507024
      %v296 = vsel %vm284, %v278, %v295
      %v297 = vsel %vm283, %v294, %v296
      %v298 = vshll.u32 %v258, 8
      %v299 = vand.u32 %v298, 65535
      %v300 = vshrl.u32 %v298, 16
      %v301 = vand.u32 %v297, 65535
      %v302 = vshrl.u32 %v297, 16
      %v303 = vmul.u32 %v299, %v301
      %v304 = vmul.u32 %v299, %v302
      %v305 = vmul.u32 %v300, %v301
      %v306 = vmul.u32 %v300, %v302
      %v307 = vshll.u32 %v304, 16
      %v308 = vshrl.u32 %v304, 16
      %v309 = vshll.u32 %v305, 16
      %v310 = vshrl.u32 %v305, 16
      %vm311 = vc.u32 %v303, %v307
      %v312 = vsel %vm311, 1, 0
      %v313 = vadd.s32 %v303, %v307
      %v314 = vadd.s32 %v306, %v312
      %vm315 = vc.u32 %v313, %v309
      %v316 = vsel %vm315, 1, 0
      %v317 = vadd.s32 %v313, %v309
      %v318 = vadd.s32 %v314, %v316
      %v319 = vadd.s32 %v318, %v308
      %v320 = vadd.s32 %v319, %v310
      %v321 = vand.u32 %v298, 65535
      %v322 = vshrl.u32 %v298, 16
      %v323 = vand.u32 %v293, 65535
      %v324 = vshrl.u32 %v293, 16
      %v325 = vmul.u32 %v321, %v323
      %v326 = vmul.u32 %v321, %v324
      %v327 = vmul.u32 %v322, %v323
      %v328 = vmul.u32 %v322, %v324
      %v329 = vshll.u32 %v326, 16
      %v330 = vshrl.u32 %v326, 16
      %v331 = vshll.u32 %v327, 16
      %v332 = vshrl.u32 %v327, 16
      %vm333 = vc.u32 %v325, %v329
      %v334 = vsel %vm333, 1, 0
      %v335 = vadd.s32 %v325, %v329
      %v336 = vadd.s32 %v328, %v334
      %vm337 = vc.u32 %v335, %v331
      %v338 = vsel %vm337, 1, 0
      %v339 = vadd.s32 %v335, %v331
      %v340 = vadd.s32 %v336, %v338
      %v341 = vadd.s32 %v340, %v330
      %v342 = vadd.s32 %v341, %v332
      %v343 = vmul.u32 %v298, %v289
      %v344 = vadd.s32 %v320, %v339
      %vm345 = vc.u32 %v320, %v339
      %v346 = vadd.s32 %v342, 1
      %v347 = vsel %vm345, %v346, %v342
      %v348 = vadd.s32 %v343, %v347
      %v349 = vadd.s32 %v348, 536870912
      %v350 = vshrl.u32 %v349, 30
      %v351 = vshll.u32 %v350, 30
      %v352 = vsub.s32 %v348, %v351
      %vm353 = vcmp.lt.s32.totalorder %v352, 0
      %v354 = vsub.s32 0, %v352
      %v355 = vsel %vm353, %v354, %v352
      %v356 = vclz %v355
      %v357 = vsub.s32 %v356, 2
      %vm358 = vcmp.gt.s32.totalorder 0, %v357
      %v359 = vsel %vm358, 0, %v357
      %v360 = vsub.s32 32, %v359
      %v361 = vshll.u32 %v352, %v359
      %v362 = vshrl.u32 %v344, %v360
      %v363 = vor.u32 %v361, %v362
      %v364 = vsub.s32 4294967266, %v359
      %v365 = vadd.s32 %v364, 127
      %v366 = vshll.u32 %v365, 23
      %v367 = vor.u32 4788187, %v366
      %v368 = vand.u32 2147483647, %v367
      %v370 = vcvt.s32.f32 %v363
      %v371 = vmul.f32 %v370, %v368
      %v372 = vxor.u32 %v371, 2147483648
      %v373 = vsel %vm252, %v372, %v371
      %v374 = vsub.s32 4, %v350
      %v375 = vsel %vm252, %v374, %v350
      %v376 = vsel %vm251, %v247, %v373
      %v377 = vsel %vm251, 0, %v375
      %v378 = vmul.f32 %v376, %v376
      %v379 = vmul.f32 %v378, -0.001358992
      %v380 = vadd.f32 %v379, 0.041655596
      %v381 = vmul.f32 %v378, %v380
      %v382 = vadd.f32 %v381, -0.4999988
      %v383 = vmul.f32 %v378, %v382
      %v384 = vadd.f32 1.0, %v383
      %v385 = vmul.f32 %v376, %v376
      %v386 = vmul.f32 %v385, -0.00019511016
      %v387 = vadd.f32 %v386, 0.008332121
      %v388 = vmul.f32 %v385, %v387
      %v389 = vadd.f32 %v388, -0.16666654
      %v390 = vmul.f32 %v385, %v389
      %v391 = vadd.f32 %v390, 1.0
      %v392 = vmul.f32 %v391, %v376
      %vm393 = vweird.f32 %v247
      %v394 = vadd.s32 %v377, 3
      %v395 = vand.u32 %v394, 3
      %vm396 = vcmp.lt.s32.totalorder %v395, 2
      %vm397 = vcmp.eq.s32.totalorder %v395, 0
      %v398 = vxor.u32 %v392, 2147483648
      %v399 = vsel %vm397, %v384, %v398
      %vm400 = vcmp.eq.s32.totalorder %v395, 2
      %v401 = vxor.u32 %v384, 2147483648
      %v402 = vsel %vm400, %v401, %v392
      %v403 = vsel %vm396, %v399, %v402
      %v404 = vsel %vm393, nan, %v403
      %405 = vst.msk [vmem:[%s191] sm:$0xff] %vm202, %v404
      %v406 = vand.u32 2147483647, %v247
      %vm407 = vcmp.le.f32.partialorder %v406, 0.7853982
      %vm408 = vcmp.lt.s32.totalorder %v247, 0
      %v409 = vand.u32 %v247, 2139095040
      %v410 = vshrl.u32 %v409, 23
      %v411 = vsub.s32 %v410, 127
      %v412 = vand.u32 2147483647, %v247
      %v413 = vand.u32 %v412, 8388607
      %v414 = vor.u32 %v413, 8388608
      %v415 = vsub.s32 0, %v414
      %v416 = vadd.s32 %v411, 1
      %vm417 = vcmp.gt.s32.totalorder %v416, 0
      %v418 = vsel %vm417, %v416, 0
      %v419 = vshrl.u32 %v418, 5
      %v420 = vand.u32 %v418, 31
      %v421 = vsub.s32 32, %v420
      %v422 = vshrl.u32 683565275, %v421
      %v423 = vshll.u32 683565275, %v420
      %v424 = vshrl.u32 2475754826, %v421
      %v425 = vor.u32 %v423, %v424
      %v426 = vshll.u32 2475754826, %v420
      %v427 = vshrl.u32 2131351028, %v421
      %v428 = vor.u32 %v426, %v427
      %v429 = vshll.u32 2131351028, %v420
      %v430 = vshrl.u32 2102212464, %v421
      %v431 = vor.u32 %v429, %v430
      %v432 = vshll.u32 2102212464, %v420
      %v433 = vshrl.u32 920167782, %v421
      %v434 = vor.u32 %v432, %v433
      %v435 = vshll.u32 920167782, %v420
      %v436 = vshrl.u32 1326507024, %v421
      %v437 = vor.u32 %v435, %v436
      %vm438 = vcmp.lt.s32.totalorder %v419, 1
      %vm439 = vcmp.lt.s32.totalorder %v419, 2
      %vm440 = vcmp.lt.s32.totalorder %v419, 3
      %vm441 = vcmp.lt.s32.totalorder %v419, 4
      %v442 = vsel %vm438, %v422, %v425
      %v443 = vsel %vm441, %v431, 2102212464
      %v444 = vsel %vm440, %v428, %v443
      %v445 = vsel %vm439, %v442, %v444
      %v446 = vsel %vm438, %v425, %v428
      %v447 = vsel %vm441, %v434, 920167782
      %v448 = vsel %vm440, %v431, %v447
      %v449 = vsel %vm439, %v446, %v448
      %v450 = vsel %vm438, %v428, %v431
      %v451 = vsel %vm441, %v437, 1326507024
      %v452 = vsel %vm440, %v434, %v451
      %v453 = vsel %vm439, %v450, %v452
      %v454 = vshll.u32 %v414, 8
      %v455 = vand.u32 %v454, 65535
      %v456 = vshrl.u32 %v454, 16
      %v457 = vand.u32 %v453, 65535
      %v458 = vshrl.u32 %v453, 16
      %v459 = vmul.u32 %v455, %v457
      %v460 = vmul.u32 %v455, %v458
      %v461 = vmul.u32 %v456, %v457
      %v462 = vmul.u32 %v456, %v458
      %v463 = vshll.u32 %v460, 16
      %v464 = vshrl.u32 %v460, 16
      %v465 = vshll.u32 %v461, 16
      %v466 = vshrl.u32 %v461, 16
      %vm467 = vc.u32 %v459, %v463
      %v468 = vsel %vm467, 1, 0
      %v469 = vadd.s32 %v459, %v463
      %v470 = vadd.s32 %v462, %v468
      %vm471 = vc.u32 %v469, %v465
      %v472 = vsel %vm471, 1, 0
      %v473 = vadd.s32 %v469, %v465
      %v474 = vadd.s32 %v470, %v472
      %v475 = vadd.s32 %v474, %v464
      %v476 = vadd.s32 %v475, %v466
      %v477 = vand.u32 %v454, 65535
      %v478 = vshrl.u32 %v454, 16
      %v479 = vand.u32 %v449, 65535
      %v480 = vshrl.u32 %v449, 16
      %v481 = vmul.u32 %v477, %v479
      %v482 = vmul.u32 %v477, %v480
      %v483 = vmul.u32 %v478, %v479
      %v484 = vmul.u32 %v478, %v480
      %v485 = vshll.u32 %v482, 16
      %v486 = vshrl.u32 %v482, 16
      %v487 = vshll.u32 %v483, 16
      %v488 = vshrl.u32 %v483, 16
      %vm489 = vc.u32 %v481, %v485
      %v490 = vsel %vm489, 1, 0
      %v491 = vadd.s32 %v481, %v485
      %v492 = vadd.s32 %v484, %v490
      %vm493 = vc.u32 %v491, %v487
      %v494 = vsel %vm493, 1, 0
      %v495 = vadd.s32 %v491, %v487
      %v496 = vadd.s32 %v492, %v494
      %v497 = vadd.s32 %v496, %v486
      %v498 = vadd.s32 %v497, %v488
      %v499 = vmul.u32 %v454, %v445
      %v500 = vadd.s32 %v476, %v495
      %vm501 = vc.u32 %v476, %v495
      %v502 = vadd.s32 %v498, 1
      %v503 = vsel %vm501, %v502, %v498
      %v504 = vadd.s32 %v499, %v503
      %v505 = vadd.s32 %v504, 536870912
      %v506 = vshrl.u32 %v505, 30
      %v507 = vshll.u32 %v506, 30
      %v508 = vsub.s32 %v504, %v507
      %vm509 = vcmp.lt.s32.totalorder %v508, 0
      %v510 = vsub.s32 0, %v508
      %v511 = vsel %vm509, %v510, %v508
      %v512 = vclz %v511
      %v513 = vsub.s32 %v512, 2
      %vm514 = vcmp.gt.s32.totalorder 0, %v513
      %v515 = vsel %vm514, 0, %v513
      %v516 = vsub.s32 32, %v515
      %v517 = vshll.u32 %v508, %v515
      %v518 = vshrl.u32 %v500, %v516
      %v519 = vor.u32 %v517, %v518
      %v520 = vsub.s32 4294967266, %v515
      %v521 = vadd.s32 %v520, 127
      %v522 = vshll.u32 %v521, 23
      %v523 = vor.u32 4788187, %v522
      %v524 = vand.u32 2147483647, %v523
      %v526 = vcvt.s32.f32 %v519
      %v527 = vmul.f32 %v526, %v524
      %v528 = vxor.u32 %v527, 2147483648
      %v529 = vsel %vm408, %v528, %v527
      %v530 = vsub.s32 4, %v506
      %v531 = vsel %vm408, %v530, %v506
      %v532 = vsel %vm407, %v247, %v529
      %v533 = vsel %vm407, 0, %v531
      %v534 = vmul.f32 %v532, %v532
      %v535 = vmul.f32 %v534, -0.001358992
      %v536 = vadd.f32 %v535, 0.041655596
      %v537 = vmul.f32 %v534, %v536
      %v538 = vadd.f32 %v537, -0.4999988
      %v539 = vmul.f32 %v534, %v538
      %v540 = vadd.f32 1.0, %v539
      %v541 = vmul.f32 %v532, %v532
      %v542 = vmul.f32 %v541, -0.00019511016
      %v543 = vadd.f32 %v542, 0.008332121
      %v544 = vmul.f32 %v541, %v543
      %v545 = vadd.f32 %v544, -0.16666654
      %v546 = vmul.f32 %v541, %v545
      %v547 = vadd.f32 %v546, 1.0
      %v548 = vmul.f32 %v547, %v532
      %vm549 = vweird.f32 %v247
      %v550 = vand.u32 %v533, 3
      %vm551 = vcmp.lt.s32.totalorder %v550, 2
      %vm552 = vcmp.eq.s32.totalorder %v550, 0
      %v553 = vxor.u32 %v548, 2147483648
      %v554 = vsel %vm552, %v540, %v553
      %vm555 = vcmp.eq.s32.totalorder %v550, 2
      %v556 = vxor.u32 %v540, 2147483648
      %v557 = vsel %vm555, %v556, %v548
      %v558 = vsel %vm551, %v554, %v557
      %v559 = vsel %vm549, nan, %v558
      %560 = vst.msk [vmem:[%s191 + $0x8] sm:$0xff] %vm202, %v559
      %v561 = vand.u32 2147483647, %v249
      %vm562 = vcmp.le.f32.partialorder %v561, 0.7853982
      %vm563 = vcmp.lt.s32.totalorder %v249, 0
      %v564 = vand.u32 %v249, 2139095040
      %v565 = vshrl.u32 %v564, 23
      %v566 = vsub.s32 %v565, 127
      %v567 = vand.u32 2147483647, %v249
      %v568 = vand.u32 %v567, 8388607
      %v569 = vor.u32 %v568, 8388608
      %v570 = vsub.s32 0, %v569
      %v571 = vadd.s32 %v566, 1
      %vm572 = vcmp.gt.s32.totalorder %v571, 0
      %v573 = vsel %vm572, %v571, 0
      %v574 = vshrl.u32 %v573, 5
      %v575 = vand.u32 %v573, 31
      %v576 = vsub.s32 32, %v575
      %v577 = vshrl.u32 683565275, %v576
      %v578 = vshll.u32 683565275, %v575
      %v579 = vshrl.u32 2475754826, %v576
      %v580 = vor.u32 %v578, %v579
      %v581 = vshll.u32 2475754826, %v575
      %v582 = vshrl.u32 2131351028, %v576
      %v583 = vor.u32 %v581, %v582
      %v584 = vshll.u32 2131351028, %v575
      %v585 = vshrl.u32 2102212464, %v576
      %v586 = vor.u32 %v584, %v585
      %v587 = vshll.u32 2102212464, %v575
      %v588 = vshrl.u32 920167782, %v576
      %v589 = vor.u32 %v587, %v588
      %v590 = vshll.u32 920167782, %v575
      %v591 = vshrl.u32 1326507024, %v576
      %v592 = vor.u32 %v590, %v591
      %vm593 = vcmp.lt.s32.totalorder %v574, 1
      %vm594 = vcmp.lt.s32.totalorder %v574, 2
      %vm595 = vcmp.lt.s32.totalorder %v574, 3
      %vm596 = vcmp.lt.s32.totalorder %v574, 4
      %v597 = vsel %vm593, %v577, %v580
      %v598 = vsel %vm596, %v586, 2102212464
      %v599 = vsel %vm595, %v583, %v598
      %v600 = vsel %vm594, %v597, %v599
      %v601 = vsel %vm593, %v580, %v583
      %v602 = vsel %vm596, %v589, 920167782
      %v603 = vsel %vm595, %v586, %v602
      %v604 = vsel %vm594, %v601, %v603
      %v605 = vsel %vm593, %v583, %v586
      %v606 = vsel %vm596, %v592, 1326507024
      %v607 = vsel %vm595, %v589, %v606
      %v608 = vsel %vm594, %v605, %v607
      %v609 = vshll.u32 %v569, 8
      %v610 = vand.u32 %v609, 65535
      %v611 = vshrl.u32 %v609, 16
      %v612 = vand.u32 %v608, 65535
      %v613 = vshrl.u32 %v608, 16
      %v614 = vmul.u32 %v610, %v612
      %v615 = vmul.u32 %v610, %v613
      %v616 = vmul.u32 %v611, %v612
      %v617 = vmul.u32 %v611, %v613
      %v618 = vshll.u32 %v615, 16
      %v619 = vshrl.u32 %v615, 16
      %v620 = vshll.u32 %v616, 16
      %v621 = vshrl.u32 %v616, 16
      %vm622 = vc.u32 %v614, %v618
      %v623 = vsel %vm622, 1, 0
      %v624 = vadd.s32 %v614, %v618
      %v625 = vadd.s32 %v617, %v623
      %vm626 = vc.u32 %v624, %v620
      %v627 = vsel %vm626, 1, 0
      %v628 = vadd.s32 %v624, %v620
      %v629 = vadd.s32 %v625, %v627
      %v630 = vadd.s32 %v629, %v619
      %v631 = vadd.s32 %v630, %v621
      %v632 = vand.u32 %v609, 65535
      %v633 = vshrl.u32 %v609, 16
      %v634 = vand.u32 %v604, 65535
      %v635 = vshrl.u32 %v604, 16
      %v636 = vmul.u32 %v632, %v634
      %v637 = vmul.u32 %v632, %v635
      %v638 = vmul.u32 %v633, %v634
      %v639 = vmul.u32 %v633, %v635
      %v640 = vshll.u32 %v637, 16
      %v641 = vshrl.u32 %v637, 16
      %v642 = vshll.u32 %v638, 16
      %v643 = vshrl.u32 %v638, 16
      %vm644 = vc.u32 %v636, %v640
      %v645 = vsel %vm644, 1, 0
      %v646 = vadd.s32 %v636, %v640
      %v647 = vadd.s32 %v639, %v645
      %vm648 = vc.u32 %v646, %v642
      %v649 = vsel %vm648, 1, 0
      %v650 = vadd.s32 %v646, %v642
      %v651 = vadd.s32 %v647, %v649
      %v652 = vadd.s32 %v651, %v641
      %v653 = vadd.s32 %v652, %v643
      %v654 = vmul.u32 %v609, %v600
      %v655 = vadd.s32 %v631, %v650
      %vm656 = vc.u32 %v631, %v650
      %v657 = vadd.s32 %v653, 1
      %v658 = vsel %vm656, %v657, %v653
      %v659 = vadd.s32 %v654, %v658
      %v660 = vadd.s32 %v659, 536870912
      %v661 = vshrl.u32 %v660, 30
      %v662 = vshll.u32 %v661, 30
      %v663 = vsub.s32 %v659, %v662
      %vm664 = vcmp.lt.s32.totalorder %v663, 0
      %v665 = vsub.s32 0, %v663
      %v666 = vsel %vm664, %v665, %v663
      %v667 = vclz %v666
      %v668 = vsub.s32 %v667, 2
      %vm669 = vcmp.gt.s32.totalorder 0, %v668
      %v670 = vsel %vm669, 0, %v668
      %v671 = vsub.s32 32, %v670
      %v672 = vshll.u32 %v663, %v670
      %v673 = vshrl.u32 %v655, %v671
      %v674 = vor.u32 %v672, %v673
      %v675 = vsub.s32 4294967266, %v670
      %v676 = vadd.s32 %v675, 127
      %v677 = vshll.u32 %v676, 23
      %v678 = vor.u32 4788187, %v677
      %v679 = vand.u32 2147483647, %v678
      %v681 = vcvt.s32.f32 %v674
      %v682 = vmul.f32 %v681, %v679
      %v683 = vxor.u32 %v682, 2147483648
      %v684 = vsel %vm563, %v683, %v682
      %v685 = vsub.s32 4, %v661
      %v686 = vsel %vm563, %v685, %v661
      %v687 = vsel %vm562, %v249, %v684
      %v688 = vsel %vm562, 0, %v686
      %v689 = vmul.f32 %v687, %v687
      %v690 = vmul.f32 %v689, -0.001358992
      %v691 = vadd.f32 %v690, 0.041655596
      %v692 = vmul.f32 %v689, %v691
      %v693 = vadd.f32 %v692, -0.4999988
      %v694 = vmul.f32 %v689, %v693
      %v695 = vadd.f32 1.0, %v694
      %v696 = vmul.f32 %v687, %v687
      %v697 = vmul.f32 %v696, -0.00019511016
      %v698 = vadd.f32 %v697, 0.008332121
      %v699 = vmul.f32 %v696, %v698
      %v700 = vadd.f32 %v699, -0.16666654
      %v701 = vmul.f32 %v696, %v700
      %v702 = vadd.f32 %v701, 1.0
      %v703 = vmul.f32 %v702, %v687
      %vm704 = vweird.f32 %v249
      %v705 = vadd.s32 %v688, 3
      %v706 = vand.u32 %v705, 3
      %vm707 = vcmp.lt.s32.totalorder %v706, 2
      %vm708 = vcmp.eq.s32.totalorder %v706, 0
      %v709 = vxor.u32 %v703, 2147483648
      %v710 = vsel %vm708, %v695, %v709
      %vm711 = vcmp.eq.s32.totalorder %v706, 2
      %v712 = vxor.u32 %v695, 2147483648
      %v713 = vsel %vm711, %v712, %v703
      %v714 = vsel %vm707, %v710, %v713
      %v715 = vsel %vm704, nan, %v714
      %716 = vst.msk [vmem:[%s191 + $0x10] sm:$0xff] %vm202, %v715
      %v717 = vand.u32 2147483647, %v249
      %vm718 = vcmp.le.f32.partialorder %v717, 0.7853982
      %vm719 = vcmp.lt.s32.totalorder %v249, 0
      %v720 = vand.u32 %v249, 2139095040
      %v721 = vshrl.u32 %v720, 23
      %v722 = vsub.s32 %v721, 127
      %v723 = vand.u32 2147483647, %v249
      %v724 = vand.u32 %v723, 8388607
      %v725 = vor.u32 %v724, 8388608
      %v726 = vsub.s32 0, %v725
      %v727 = vadd.s32 %v722, 1
      %vm728 = vcmp.gt.s32.totalorder %v727, 0
      %v729 = vsel %vm728, %v727, 0
      %v730 = vshrl.u32 %v729, 5
      %v731 = vand.u32 %v729, 31
      %v732 = vsub.s32 32, %v731
      %v733 = vshrl.u32 683565275, %v732
      %v734 = vshll.u32 683565275, %v731
      %v735 = vshrl.u32 2475754826, %v732
      %v736 = vor.u32 %v734, %v735
      %v737 = vshll.u32 2475754826, %v731
      %v738 = vshrl.u32 2131351028, %v732
      %v739 = vor.u32 %v737, %v738
      %v740 = vshll.u32 2131351028, %v731
      %v741 = vshrl.u32 2102212464, %v732
      %v742 = vor.u32 %v740, %v741
      %v743 = vshll.u32 2102212464, %v731
      %v744 = vshrl.u32 920167782, %v732
      %v745 = vor.u32 %v743, %v744
      %v746 = vshll.u32 920167782, %v731
      %v747 = vshrl.u32 1326507024, %v732
      %v748 = vor.u32 %v746, %v747
      %vm749 = vcmp.lt.s32.totalorder %v730, 1
      %vm750 = vcmp.lt.s32.totalorder %v730, 2
      %vm751 = vcmp.lt.s32.totalorder %v730, 3
      %vm752 = vcmp.lt.s32.totalorder %v730, 4
      %v753 = vsel %vm749, %v733, %v736
      %v754 = vsel %vm752, %v742, 2102212464
      %v755 = vsel %vm751, %v739, %v754
      %v756 = vsel %vm750, %v753, %v755
      %v757 = vsel %vm749, %v736, %v739
      %v758 = vsel %vm752, %v745, 920167782
      %v759 = vsel %vm751, %v742, %v758
      %v760 = vsel %vm750, %v757, %v759
      %v761 = vsel %vm749, %v739, %v742
      %v762 = vsel %vm752, %v748, 1326507024
      %v763 = vsel %vm751, %v745, %v762
      %v764 = vsel %vm750, %v761, %v763
      %v765 = vshll.u32 %v725, 8
      %v766 = vand.u32 %v765, 65535
      %v767 = vshrl.u32 %v765, 16
      %v768 = vand.u32 %v764, 65535
      %v769 = vshrl.u32 %v764, 16
      %v770 = vmul.u32 %v766, %v768
      %v771 = vmul.u32 %v766, %v769
      %v772 = vmul.u32 %v767, %v768
      %v773 = vmul.u32 %v767, %v769
      %v774 = vshll.u32 %v771, 16
      %v775 = vshrl.u32 %v771, 16
      %v776 = vshll.u32 %v772, 16
      %v777 = vshrl.u32 %v772, 16
      %vm778 = vc.u32 %v770, %v774
      %v779 = vsel %vm778, 1, 0
      %v780 = vadd.s32 %v770, %v774
      %v781 = vadd.s32 %v773, %v779
      %vm782 = vc.u32 %v780, %v776
      %v783 = vsel %vm782, 1, 0
      %v784 = vadd.s32 %v780, %v776
      %v785 = vadd.s32 %v781, %v783
      %v786 = vadd.s32 %v785, %v775
      %v787 = vadd.s32 %v786, %v777
      %v788 = vand.u32 %v765, 65535
      %v789 = vshrl.u32 %v765, 16
      %v790 = vand.u32 %v760, 65535
      %v791 = vshrl.u32 %v760, 16
      %v792 = vmul.u32 %v788, %v790
      %v793 = vmul.u32 %v788, %v791
      %v794 = vmul.u32 %v789, %v790
      %v795 = vmul.u32 %v789, %v791
      %v796 = vshll.u32 %v793, 16
      %v797 = vshrl.u32 %v793, 16
      %v798 = vshll.u32 %v794, 16
      %v799 = vshrl.u32 %v794, 16
      %vm800 = vc.u32 %v792, %v796
      %v801 = vsel %vm800, 1, 0
      %v802 = vadd.s32 %v792, %v796
      %v803 = vadd.s32 %v795, %v801
      %vm804 = vc.u32 %v802, %v798
      %v805 = vsel %vm804, 1, 0
      %v806 = vadd.s32 %v802, %v798
      %v807 = vadd.s32 %v803, %v805
      %v808 = vadd.s32 %v807, %v797
      %v809 = vadd.s32 %v808, %v799
      %v810 = vmul.u32 %v765, %v756
      %v811 = vadd.s32 %v787, %v806
      %vm812 = vc.u32 %v787, %v806
      %v813 = vadd.s32 %v809, 1
      %v814 = vsel %vm812, %v813, %v809
      %v815 = vadd.s32 %v810, %v814
      %v816 = vadd.s32 %v815, 536870912
      %v817 = vshrl.u32 %v816, 30
      %v818 = vshll.u32 %v817, 30
      %v819 = vsub.s32 %v815, %v818
      %vm820 = vcmp.lt.s32.totalorder %v819, 0
      %v821 = vsub.s32 0, %v819
      %v822 = vsel %vm820, %v821, %v819
      %v823 = vclz %v822
      %v824 = vsub.s32 %v823, 2
      %vm825 = vcmp.gt.s32.totalorder 0, %v824
      %v826 = vsel %vm825, 0, %v824
      %v827 = vsub.s32 32, %v826
      %v828 = vshll.u32 %v819, %v826
      %v829 = vshrl.u32 %v811, %v827
      %v830 = vor.u32 %v828, %v829
      %v831 = vsub.s32 4294967266, %v826
      %v832 = vadd.s32 %v831, 127
      %v833 = vshll.u32 %v832, 23
      %v834 = vor.u32 4788187, %v833
      %v835 = vand.u32 2147483647, %v834
      %v837 = vcvt.s32.f32 %v830
      %v838 = vmul.f32 %v837, %v835
      %v839 = vxor.u32 %v838, 2147483648
      %v840 = vsel %vm719, %v839, %v838
      %v841 = vsub.s32 4, %v817
      %v842 = vsel %vm719, %v841, %v817
      %v843 = vsel %vm718, %v249, %v840
      %v844 = vsel %vm718, 0, %v842
      %v845 = vmul.f32 %v843, %v843
      %v846 = vmul.f32 %v845, -0.001358992
      %v847 = vadd.f32 %v846, 0.041655596
      %v848 = vmul.f32 %v845, %v847
      %v849 = vadd.f32 %v848, -0.4999988
      %v850 = vmul.f32 %v845, %v849
      %v851 = vadd.f32 1.0, %v850
      %v852 = vmul.f32 %v843, %v843
      %v853 = vmul.f32 %v852, -0.00019511016
      %v854 = vadd.f32 %v853, 0.008332121
      %v855 = vmul.f32 %v852, %v854
      %v856 = vadd.f32 %v855, -0.16666654
      %v857 = vmul.f32 %v852, %v856
      %v858 = vadd.f32 %v857, 1.0
      %v859 = vmul.f32 %v858, %v843
      %vm860 = vweird.f32 %v249
      %v861 = vand.u32 %v844, 3
      %vm862 = vcmp.lt.s32.totalorder %v861, 2
      %vm863 = vcmp.eq.s32.totalorder %v861, 0
      %v864 = vxor.u32 %v859, 2147483648
      %v865 = vsel %vm863, %v851, %v864
      %vm866 = vcmp.eq.s32.totalorder %v861, 2
      %v867 = vxor.u32 %v851, 2147483648
      %v868 = vsel %vm866, %v867, %v859
      %v869 = vsel %vm862, %v865, %v868
      %v870 = vsel %vm860, nan, %v869
      %871 = vst.msk [vmem:[%s191 + $0x18] sm:$0xff] %vm202, %v870
      %p872 = scmp.lt.s32.totalorder %s15, 1
      %s873 = scalar_select %p872, %s15, 1
      %s874 = smul.addr %s873, 4
      %s875 = smul.addr %s874, 8
      %s876 = scalar_lea.vmem %s4, %s875
      // Predicated region
      $region37: #{pipeline_forward.7} parent=35 // pred_check
        %p877 = pneg %p122
      $region38: #{pipeline_forward.7} parent=35 // pred_check_branch
        %879 = sbr.rel (%p877) target = $region40
      $region39: #{pipeline_forward.7} parent=35 // pred_region
        _
      $region40: #{pipeline_forward.7} parent=35 // pred_fallthru
        _
    $region36: #{pipeline_forward.7} parent=5 // pred_fallthru
      _
    %p880 = scmp.le.s32.totalorder 2, %s10
    // Predicated region
    $region41: #{pipeline_forward.7} parent=5 // pred_check
      %p881 = pneg %p880
    $region42: #{pipeline_forward.7} parent=5 // pred_check_branch
      %883 = sbr.rel (%p881) target = $region44
    $region43: #{pipeline_forward.7} parent=5 // pred_region
      %s884 = ssub.s32 %s10, 2
      // Predicated region
      $region45: #{pipeline_forward.7} parent=43 // pred_check
        %p885 = pneg %p128
      $region46: #{pipeline_forward.7} parent=43 // pred_check_branch
        %887 = sbr.rel (%p885) target = $region48
      $region47: #{pipeline_forward.7} parent=43 // pred_region
        %p888 = scmp.lt.s32.totalorder %s16, 1
        %s889 = scalar_select %p888, %s16, 1
        %s890 = smul.addr %s889, 4
        %s891 = smul.addr %s890, 8
        %s892 = scalar_lea.vmem %s4, %s891
      $region48: #{pipeline_forward.7} parent=43 // pred_fallthru
        _
    $region44: #{pipeline_forward.7} parent=5 // pred_fallthru
      _
  $region6: #{pipeline_forward.7} parent=0 // loop_footer
    %s14 = sadd.s32 1, %s10
  $region7: #{pipeline_forward.7} parent=0 // loop_footer_branch
    %9 = sbr.rel target = $region3
  $region8: #{pipeline_forward.7} parent=0 // loop_exit
    _

// kernel: pipeline_forward.5
$region0: #{pipeline_forward.5}
  #allocation0 [shape = 'u32[]', space=smem, size = 0x4, offset = 0x4, fixed_abs, tag = 'smem constant byte address 0x4 - core index']
  #allocation1 [shape = 'u32[72,128]{1,0:T(1,128)}', space=vmem, size = 0x9000, scoped, tag = 'internal scratch']
  %s0 = inlined_call_operand.vmem [shape: bf16[2,5,2,5,8], index: 0, kind: input, shape index: {}]
  %s1 = inlined_call_operand.vmem [shape: bf16[36,128], index: 1, kind: input, shape index: {}]
  %s2 = inlined_call_operand.vmem [shape: f32[1,128], index: 2, kind: input, shape index: {}]
  %s3 = inlined_call_operand.hbm [shape: f32[2,4,4,128], index: 3, kind: output, shape index: {}]
  %s4 = sld [smem:[#allocation0]]
  $region45: #{pipeline_forward.5} parent=0
    _
  %s6 = ssub.s32 1, %s4
  %s7 = scalar_select 0, %s6, %s4
  $region1: #{pipeline_forward.5} parent=0
    #allocation2 [shape = 'u8[16384]{0}', space=vmem, size = 0x4000, scoped, tag = 'output window, operand 0']
    #allocation3 [shape = 's32[2]{0}', space=sflag, size = 0x8, scoped, tag = 'scoped memory for pipeline_forward.5']
    %8 = vsyncpa [#allocation3], 0
    %s9 = scalar_lea.sflag [#allocation3], 1
    %10 = vsyncpa %s9, 0
    loop: start=0, step=1, limit=4
    $region2: #{pipeline_forward.5} parent=1 // loop_pre_header
      _
    $region3: #{pipeline_forward.5} parent=1 // loop_header
      %s12 = sphi 0, %s16
      %p13 = scmp.ge.s32.totalorder %s12, 4
      %s22 = sphi 0, %s24
      %s25 = sphi 0, %s22
      %s26 = sphi 0, %s25
      %s42 = sphi 0, %s26
      %s46 = sphi 0, %s46
      %s48 = sphi 0, %s46
      %s49 = sphi 0, %s48
      %s63 = sphi 0, %s49
      %s67 = sphi 0, %s67
      %s69 = sphi 0, %s67
      %s70 = sphi 0, %s69
      %s84 = sphi 0, %s70
      %s90 = sphi 0, %s92
      %s93 = sphi 0, %s90
      %s94 = sphi 0, %s93
      %s110 = sphi 0, %s94
    $region4: #{pipeline_forward.5} parent=1 // loop_header_branch
      %15 = sbr.rel (%p13) target = $region8
    $region5: #{pipeline_forward.5} parent=1 // loop_body
      %s17 = ssub.s32 %s12, 1
      %s18 = ssub.s32 %s12, 2
      %s19 = sadd.s32 %s12, 1
      %s20 = ssub.s32 %s12, %s19
      %p21 = scmp.eq.s32.totalorder %s20, 0
      %s23 = sadd.s32 %s22, 1
      %s24 = scalar_select %p21, %s22, %s23
      %p27 = pneg %p21
      %p28 = scmp.eq.s32.totalorder %s12, 1
      %p29 = por %p27, %p28
      %p30 = scmp.ne.s32.totalorder %s22, %s25
      %p31 = scmp.eq.s32.totalorder %s12, 0
      %p32 = por %p30, %p31
      %p33 = scmp.ne.s32.totalorder %s22, %s25
      %p34 = scmp.eq.s32.totalorder %s17, 1
      %p35 = por %p33, %p34
      %p36 = scmp.ne.s32.totalorder %s25, %s26
      %p37 = scmp.eq.s32.totalorder %s17, 0
      %p38 = por %p36, %p37
      %p39 = scmp.ne.s32.totalorder %s25, %s26
      %p40 = scmp.eq.s32.totalorder %s18, 1
      %p41 = por %p39, %p40
      %p43 = scmp.ne.s32.totalorder %s26, %s42
      %p44 = scmp.eq.s32.totalorder %s18, 0
      %p45 = por %p43, %p44
      %s47 = sadd.s32 %s46, 1
      %p50 = scmp.eq.s32.totalorder %s12, 1
      %p51 = scmp.ne.s32.totalorder %s46, %s48
      %p52 = scmp.eq.s32.totalorder %s12, 0
      %p53 = por %p51, %p52
      %p54 = scmp.ne.s32.totalorder %s46, %s48
      %p55 = scmp.eq.s32.totalorder %s17, 1
      %p56 = por %p54, %p55
      %p57 = scmp.ne.s32.totalorder %s48, %s49
      %p58 = scmp.eq.s32.totalorder %s17, 0
      %p59 = por %p57, %p58
      %p60 = scmp.ne.s32.totalorder %s48, %s49
      %p61 = scmp.eq.s32.totalorder %s18, 1
      %p62 = por %p60, %p61
      %p64 = scmp.ne.s32.totalorder %s49, %s63
      %p65 = scmp.eq.s32.totalorder %s18, 0
      %p66 = por %p64, %p65
      %s68 = sadd.s32 %s67, 1
      %p71 = scmp.eq.s32.totalorder %s12, 1
      %p72 = scmp.ne.s32.totalorder %s67, %s69
      %p73 = scmp.eq.s32.totalorder %s12, 0
      %p74 = por %p72, %p73
      %p75 = scmp.ne.s32.totalorder %s67, %s69
      %p76 = scmp.eq.s32.totalorder %s17, 1
      %p77 = por %p75, %p76
      %p78 = scmp.ne.s32.totalorder %s69, %s70
      %p79 = scmp.eq.s32.totalorder %s17, 0
      %p80 = por %p78, %p79
      %p81 = scmp.ne.s32.totalorder %s69, %s70
      %p82 = scmp.eq.s32.totalorder %s18, 1
      %p83 = por %p81, %p82
      %p85 = scmp.ne.s32.totalorder %s70, %s84
      %p86 = scmp.eq.s32.totalorder %s18, 0
      %p87 = por %p85, %p86
      %s88 = ssub.s32 %s12, %s19
      %p89 = scmp.eq.s32.totalorder %s88, 0
      %s91 = sadd.s32 %s90, 1
      %s92 = scalar_select %p89, %s90, %s91
      %p95 = pneg %p89
      %p96 = scmp.eq.s32.totalorder %s12, 1
      %p97 = por %p95, %p96
      %p98 = scmp.ne.s32.totalorder %s90, %s93
      %p99 = scmp.eq.s32.totalorder %s12, 0
      %p100 = por %p98, %p99
      %p101 = scmp.ne.s32.totalorder %s90, %s93
      %p102 = scmp.eq.s32.totalorder %s17, 1
      %p103 = por %p101, %p102
      %p104 = scmp.ne.s32.totalorder %s93, %s94
      %p105 = scmp.eq.s32.totalorder %s17, 0
      %p106 = por %p104, %p105
      %p107 = scmp.ne.s32.totalorder %s93, %s94
      %p108 = scmp.eq.s32.totalorder %s18, 1
      %p109 = por %p107, %p108
      %p111 = scmp.ne.s32.totalorder %s94, %s110
      %p112 = scmp.eq.s32.totalorder %s18, 0
      %p113 = por %p111, %p112
      %p114 = scmp.le.s32.totalorder 1, %s12
      %p115 = scmp.lt.s32.totalorder %s12, 3
      %p116 = pnand %p114, %p115
      %p117 = pneg %p116
      // Predicated region
      $region9: #{pipeline_forward.5} parent=5 // pred_check
        _
      $region10: #{pipeline_forward.5} parent=5 // pred_check_branch
        %119 = sbr.rel (%p116) target = $region12
      $region11: #{pipeline_forward.5} parent=5 // pred_region
        %s120 = ssub.s32 %s12, 1
        // Predicated region
        $region13: #{pipeline_forward.5} parent=11 // pred_check
          %p121 = pneg %p59
        $region14: #{pipeline_forward.5} parent=11 // pred_check_branch
          %123 = sbr.rel (%p121) target = $region16
        $region15: #{pipeline_forward.5} parent=11 // pred_region
          _
        $region16: #{pipeline_forward.5} parent=11 // pred_fallthru
          _
        // Predicated region
        $region17: #{pipeline_forward.5} parent=11 // pred_check
          %p124 = pneg %p80
        $region18: #{pipeline_forward.5} parent=11 // pred_check_branch
          %126 = sbr.rel (%p124) target = $region20
        $region19: #{pipeline_forward.5} parent=11 // pred_region
          _
        $region20: #{pipeline_forward.5} parent=11 // pred_fallthru
          _
      $region12: #{pipeline_forward.5} parent=5 // pred_fallthru
        _
      %p127 = scmp.lt.s32.totalorder %s12, 2
      // Predicated region
      $region21: #{pipeline_forward.5} parent=5 // pred_check
        %p128 = pneg %p127
      $region22: #{pipeline_forward.5} parent=5 // pred_check_branch
        %130 = sbr.rel (%p128) target = $region24
      $region23: #{pipeline_forward.5} parent=5 // pred_region
        // Predicated region
        $region25: #{pipeline_forward.5} parent=23 // pred_check
          %p131 = pneg %p32
        $region26: #{pipeline_forward.5} parent=23 // pred_check_branch
          %133 = sbr.rel (%p131) target = $region28
        $region27: #{pipeline_forward.5} parent=23 // pred_region
          %p134 = scmp.lt.s32.totalorder %s12, 1
          %s135 = scalar_select %p134, %s12, 1
          %s136 = smul.addr %s135, 10
          %s137 = smul.addr %s136, 4
          %s138 = scalar_lea.vmem %s0, %s137
        $region28: #{pipeline_forward.5} parent=23 // pred_fallthru
          _
      $region24: #{pipeline_forward.5} parent=5 // pred_fallthru
        _
      %p139 = scmp.le.s32.totalorder 1, %s12
      %p140 = scmp.lt.s32.totalorder %s12, 3
      %p141 = pnand %p139, %p140
      %p142 = pneg %p141
      // Predicated region
      $region29: #{pipeline_forward.5} parent=5 // pred_check
        _
      $region30: #{pipeline_forward.5} parent=5 // pred_check_branch
        %144 = sbr.rel (%p141) target = $region32
      $region31: #{pipeline_forward.5} parent=5 // pred_region
        %s145 = ssub.s32 %s12, 1
        %p146 = scmp.lt.s32.totalorder %s17, 1
        %s147 = scalar_select %p146, %s17, 1
        %s148 = smul.addr %s147, 10
        %s149 = smul.addr %s148, 4
        %s150 = scalar_lea.vmem %s0, %s149
        %p151 = pneg %p38
        %p152 = pneg %p35
        %p153 = pneg %p59
        %p154 = pneg %p56
        %p155 = pneg %p80
        %p156 = pneg %p77
        %p157 = pneg %p106
        %p158 = pneg %p103
        %s159 = sand.u32 %s93, 1
        %s160 = scalar_lea.sflag [#allocation3], %s159
        %s161 = sand.u32 %s93, 1
        %s162 = smul.addr %s161, 16
        %s163 = scalar_lea.vmem [#allocation2], %s162
        %p164 = scmp.lt.s32.totalorder %s17, 1
        %s165 = scalar_select %p164, %s17, 1
        %s166 = smul.addr %s165, 10
        %s167 = smul.addr %s166, 4
        %s168 = scalar_lea.vmem %s0, %s167
        %v170 = vld [vmem:[%s2] sm:$0x1]
        %v171 = vld [vmem:[%s168] sm:$0x3]
        %v172 = vld [vmem:[%s1] sm:$0x3]
        %v173 = vld [vmem:[%s1] sm:$0xc]
        %v175 = vunpack.c.l.b16 %v171
        %v176 = vpack.c.b16 %v175, %v175
        %177 = vrot.lane.b32.xlu0 %v176, 124
        %v178 = vpop.permute.xlu0 %177
        %v180 = vunpack.c.l.b16 %v173
        %v181 = vpack.c.b16 %v180, %v180
        %v182 = vrot.slane %v181, 2
        %vm183 = vcmask 31744
        %v185 = vsel %vm183, %v178, 0
        %vm187 = vcmask 1041408
        %v189 = vsel %vm187, %v182, 0
        %191 = vmatpush.bf16.msra.mxu0 0
        %192 = vmatpush.bf16.msra.mxu0 0
        %193 = vmatpush.bf16.msra.mxu0 0
        %194 = vmatpush.bf16.msra.mxu0 0
        %195 = vmatpush.bf16.msra.mxu0 0
        %196 = vmatpush.bf16.msra.mxu0 0
        %197 = vmatpush.bf16.msra.mxu0 0
        %198 = vmatpush.bf16.msra.mxu0 %v189
        %199 = vmatmul.bf16.gmra.mxu0 %v185
        %v200 = vpop.f32.mrf.mxu0
        %v201 = vadd.f32 0.0, %v200
        %v202 = vpop.f32.mrf.mxu0
        %203 = vdwg.mxu0
        %v205 = vsel %vm183, %v171, 0
        %v208 = vsel %vm187, %v172, 0
        %210 = vmatpush.bf16.msra.mxu0 0
        %211 = vmatpush.bf16.msra.mxu0 0
        %212 = vmatpush.bf16.msra.mxu0 0
        %213 = vmatpush.bf16.msra.mxu0 0
        %214 = vmatpush.bf16.msra.mxu0 0
        %215 = vmatpush.bf16.msra.mxu0 0
        %216 = vmatpush.bf16.msra.mxu0 0
        %217 = vmatpush.bf16.msra.mxu0 %v208
        %218 = vmatmul.bf16.gmra.mxu0 %v205
        %v219 = vpop.f32.mrf.mxu0
        %v220 = vadd.f32 %v201, %v219
        %v221 = vpop.f32.mrf.mxu0
        %222 = vdwg.mxu0
        %v223 = vld [vmem:[%s168] sm:$0x7]
        %v224 = vld [vmem:[%s1 + $0x4] sm:$0x3]
        %v226 = vunpack.c.l.b16 %v223
        %v227 = vpack.c.b16 %v226, %v226
        %v229 = vshrl.u32 %v227, 16
        %v231 = vshll.u32 %v227, 16
        %v233 = vrot.slane %v231, 1
        %v234 = vor.u32 %v229, %v233
        %v236 = vsel %vm183, %v234, 0
        %v239 = vsel %vm187, %v224, 0
        %241 = vmatpush.bf16.msra.mxu0 0
        %242 = vmatpush.bf16.msra.mxu0 0
        %243 = vmatpush.bf16.msra.mxu0 0
        %244 = vmatpush.bf16.msra.mxu0 0
        %245 = vmatpush.bf16.msra.mxu0 0
        %246 = vmatpush.bf16.msra.mxu0 0
        %247 = vmatpush.bf16.msra.mxu0 0
        %248 = vmatpush.bf16.msra.mxu0 %v239
        %249 = vmatmul.bf16.gmra.mxu0 %v236
        %v250 = vpop.f32.mrf.mxu0
        %v251 = vadd.f32 0.0, %v250
        %v252 = vpop.f32.mrf.mxu0
        %253 = vdwg.mxu0
        %v254 = vadd.f32 %v220, %v251
        %s255 = scalar_lea.vmem %s168, 4
        %v256 = vld [vmem:[%s255] sm:$0x3]
        %v257 = vld [vmem:[%s1 + $0x4] sm:$0xc]
        %v259 = vunpack.c.l.b16 %v257
        %v260 = vpack.c.b16 %v259, %v259
        %v261 = vrot.slane %v260, 2
        %v263 = vsel %vm183, %v256, 0
        %v266 = vsel %vm187, %v261, 0
        %268 = vmatpush.bf16.msra.mxu0 0
        %269 = vmatpush.bf16.msra.mxu0 0
        %270 = vmatpush.bf16.msra.mxu0 0
        %271 = vmatpush.bf16.msra.mxu0 0
        %272 = vmatpush.bf16.msra.mxu0 0
        %273 = vmatpush.bf16.msra.mxu0 0
        %274 = vmatpush.bf16.msra.mxu0 0
        %275 = vmatpush.bf16.msra.mxu0 %v266
        %276 = vmatmul.bf16.gmra.mxu0 %v263
        %v277 = vpop.f32.mrf.mxu0
        %v278 = vadd.f32 0.0, %v277
        %v279 = vpop.f32.mrf.mxu0
        %280 = vdwg.mxu0
        %v281 = vadd.f32 %v254, %v278
        %v282 = vld [vmem:[%s1 + $0x8] sm:$0x3]
        %v284 = vunpack.c.l.b16 %v256
        %v285 = vpack.c.b16 %v284, %v284
        %286 = vrot.lane.b32.xlu0 %v285, 124
        %v287 = vpop.permute.xlu0 %286
        %v289 = vsel %vm183, %v287, 0
        %v292 = vsel %vm187, %v282, 0
        %294 = vmatpush.bf16.msra.mxu0 0
        %295 = vmatpush.bf16.msra.mxu0 0
        %296 = vmatpush.bf16.msra.mxu0 0
        %297 = vmatpush.bf16.msra.mxu0 0
        %298 = vmatpush.bf16.msra.mxu0 0
        %299 = vmatpush.bf16.msra.mxu0 0
        %300 = vmatpush.bf16.msra.mxu0 0
        %301 = vmatpush.bf16.msra.mxu0 %v292
        %302 = vmatmul.bf16.gmra.mxu0 %v289
        %v303 = vpop.f32.mrf.mxu0
        %v304 = vadd.f32 0.0, %v303
        %v305 = vpop.f32.mrf.mxu0
        %306 = vdwg.mxu0
        %v307 = vadd.f32 %v281, %v304
        %v308 = vld [vmem:[%s255] sm:$0x7]
        %v309 = vld [vmem:[%s1 + $0x8] sm:$0xc]
        %v311 = vunpack.c.l.b16 %v308
        %v312 = vpack.c.b16 %v311, %v311
        %v314 = vshrl.u32 %v312, 16
        %v316 = vshll.u32 %v312, 16
        %v318 = vrot.slane %v316, 1
        %v319 = vor.u32 %v314, %v318
        %v321 = vunpack.c.l.b16 %v309
        %v322 = vpack.c.b16 %v321, %v321
        %v323 = vrot.slane %v322, 2
        %v325 = vsel %vm183, %v319, 0
        %v328 = vsel %vm187, %v323, 0
        %330 = vmatpush.bf16.msra.mxu0 0
        %331 = vmatpush.bf16.msra.mxu0 0
        %332 = vmatpush.bf16.msra.mxu0 0
        %333 = vmatpush.bf16.msra.mxu0 0
        %334 = vmatpush.bf16.msra.mxu0 0
        %335 = vmatpush.bf16.msra.mxu0 0
        %336 = vmatpush.bf16.msra.mxu0 0
        %337 = vmatpush.bf16.msra.mxu0 %v328
        %338 = vmatmul.bf16.gmra.mxu0 %v325
        %v339 = vpop.f32.mrf.mxu0
        %v340 = vadd.f32 0.0, %v339
        %v341 = vpop.f32.mrf.mxu0
        %342 = vdwg.mxu0
        %v343 = vadd.f32 %v307, %v340
        %s344 = scalar_lea.vmem %s168, 8
        %v345 = vld [vmem:[%s344] sm:$0x3]
        %v346 = vld [vmem:[%s1 + $0xc] sm:$0x3]
        %v348 = vsel %vm183, %v345, 0
        %v351 = vsel %vm187, %v346, 0
        %353 = vmatpush.bf16.msra.mxu0 0
        %354 = vmatpush.bf16.msra.mxu0 0
        %355 = vmatpush.bf16.msra.mxu0 0
        %356 = vmatpush.bf16.msra.mxu0 0
        %357 = vmatpush.bf16.msra.mxu0 0
        %358 = vmatpush.bf16.msra.mxu0 0
        %359 = vmatpush.bf16.msra.mxu0 0
        %360 = vmatpush.bf16.msra.mxu0 %v351
        %361 = vmatmul.bf16.gmra.mxu0 %v348
        %v362 = vpop.f32.mrf.mxu0
        %v363 = vadd.f32 0.0, %v362
        %v364 = vpop.f32.mrf.mxu0
        %365 = vdwg.mxu0
        %v366 = vadd.f32 %v343, %v363
        %v367 = vld [vmem:[%s1 + $0xc] sm:$0xc]
        %v369 = vunpack.c.l.b16 %v345
        %v370 = vpack.c.b16 %v369, %v369
        %371 = vrot.lane.b32.xlu0 %v370, 124
        %v372 = vpop.permute.xlu0 %371
        %v374 = vunpack.c.l.b16 %v367
        %v375 = vpack.c.b16 %v374, %v374
        %v376 = vrot.slane %v375, 2
        %v378 = vsel %vm183, %v372, 0
        %v381 = vsel %vm187, %v376, 0
        %383 = vmatpush.bf16.msra.mxu0 0
        %384 = vmatpush.bf16.msra.mxu0 0
        %385 = vmatpush.bf16.msra.mxu0 0
        %386 = vmatpush.bf16.msra.mxu0 0
        %387 = vmatpush.bf16.msra.mxu0 0
        %388 = vmatpush.bf16.msra.mxu0 0
        %389 = vmatpush.bf16.msra.mxu0 0
        %390 = vmatpush.bf16.msra.mxu0 %v381
        %391 = vmatmul.bf16.gmra.mxu0 %v378
        %v392 = vpop.f32.mrf.mxu0
        %v393 = vadd.f32 0.0, %v392
        %v394 = vpop.f32.mrf.mxu0
        %395 = vdwg.mxu0
        %v396 = vadd.f32 %v366, %v393
        %v397 = vld [vmem:[%s344] sm:$0x7]
        %v398 = vld [vmem:[%s1 + $0x10] sm:$0x3]
        %v400 = vunpack.c.l.b16 %v397
        %v401 = vpack.c.b16 %v400, %v400
        %v403 = vshrl.u32 %v401, 16
        %v405 = vshll.u32 %v401, 16
        %v407 = vrot.slane %v405, 1
        %v408 = vor.u32 %v403, %v407
        %v410 = vsel %vm183, %v408, 0
        %v413 = vsel %vm187, %v398, 0
        %415 = vmatpush.bf16.msra.mxu0 0
        %416 = vmatpush.bf16.msra.mxu0 0
        %417 = vmatpush.bf16.msra.mxu0 0
        %418 = vmatpush.bf16.msra.mxu0 0
        %419 = vmatpush.bf16.msra.mxu0 0
        %420 = vmatpush.bf16.msra.mxu0 0
        %421 = vmatpush.bf16.msra.mxu0 0
        %422 = vmatpush.bf16.msra.mxu0 %v413
        %423 = vmatmul.bf16.gmra.mxu0 %v410
        %v424 = vpop.f32.mrf.mxu0
        %v425 = vadd.f32 0.0, %v424
        %v426 = vpop.f32.mrf.mxu0
        %427 = vdwg.mxu0
        %v428 = vadd.f32 %v396, %v425
        %v430 = vperm.slane %v170, 0
        %v432 = vadd.f32 %v428, %v430
        %v433 = vmax.f32 %v432, 0.0
        %434 = vst [vmem:[%s163] sm:$0xf] %v433
        %v435 = vld [vmem:[%s344] sm:$0x3]
        %v436 = vld [vmem:[%s1] sm:$0x3]
        %v437 = vld [vmem:[%s1] sm:$0xc]
        %v439 = vunpack.c.l.b16 %v435
        %v440 = vpack.c.b16 %v439, %v439
        %441 = vrot.lane.b32.xlu0 %v440, 124
        %v442 = vpop.permute.xlu0 %441
        %v444 = vunpack.c.l.b16 %v437
        %v445 = vpack.c.b16 %v444, %v444
        %v446 = vrot.slane %v445, 2
        %v448 = vsel %vm183, %v442, 0
        %v451 = vsel %vm187, %v446, 0
        %453 = vmatpush.bf16.msra.mxu0 0
        %454 = vmatpush.bf16.msra.mxu0 0
        %455 = vmatpush.bf16.msra.mxu0 0
        %456 = vmatpush.bf16.msra.mxu0 0
        %457 = vmatpush.bf16.msra.mxu0 0
        %458 = vmatpush.bf16.msra.mxu0 0
        %459 = vmatpush.bf16.msra.mxu0 0
        %460 = vmatpush.bf16.msra.mxu0 %v451
        %461 = vmatmul.bf16.gmra.mxu0 %v448
        %v462 = vpop.f32.mrf.mxu0
        %v463 = vadd.f32 0.0, %v462
        %v464 = vpop.f32.mrf.mxu0
        %465 = vdwg.mxu0
        %v467 = vsel %vm183, %v435, 0
        %v470 = vsel %vm187, %v436, 0
        %472 = vmatpush.bf16.msra.mxu0 0
        %473 = vmatpush.bf16.msra.mxu0 0
        %474 = vmatpush.bf16.msra.mxu0 0
        %475 = vmatpush.bf16.msra.mxu0 0
        %476 = vmatpush.bf16.msra.mxu0 0
        %477 = vmatpush.bf16.msra.mxu0 0
        %478 = vmatpush.bf16.msra.mxu0 0
        %479 = vmatpush.bf16.msra.mxu0 %v470
        %480 = vmatmul.bf16.gmra.mxu0 %v467
        %v481 = vpop.f32.mrf.mxu0
        %v482 = vadd.f32 %v463, %v481
        %v483 = vpop.f32.mrf.mxu0
        %484 = vdwg.mxu0
        %v485 = vld [vmem:[%s344] sm:$0x7]
        %v486 = vld [vmem:[%s1 + $0x4] sm:$0x3]
        %v488 = vunpack.c.l.b16 %v485
        %v489 = vpack.c.b16 %v488, %v488
        %v491 = vshrl.u32 %v489, 16
        %v493 = vshll.u32 %v489, 16
        %v495 = vrot.slane %v493, 1
        %v496 = vor.u32 %v491, %v495
        %v498 = vsel %vm183, %v496, 0
        %v501 = vsel %vm187, %v486, 0
        %503 = vmatpush.bf16.msra.mxu0 0
        %504 = vmatpush.bf16.msra.mxu0 0
        %505 = vmatpush.bf16.msra.mxu0 0
        %506 = vmatpush.bf16.msra.mxu0 0
        %507 = vmatpush.bf16.msra.mxu0 0
        %508 = vmatpush.bf16.msra.mxu0 0
        %509 = vmatpush.bf16.msra.mxu0 0
        %510 = vmatpush.bf16.msra.mxu0 %v501
        %511 = vmatmul.bf16.gmra.mxu0 %v498
        %v512 = vpop.f32.mrf.mxu0
        %v513 = vadd.f32 0.0, %v512
        %v514 = vpop.f32.mrf.mxu0
        %515 = vdwg.mxu0
        %v516 = vadd.f32 %v482, %v513
        %s517 = scalar_lea.vmem %s168, 12
        %v518 = vld [vmem:[%s517] sm:$0x3]
        %v519 = vld [vmem:[%s1 + $0x4] sm:$0xc]
        %v521 = vunpack.c.l.b16 %v519
        %v522 = vpack.c.b16 %v521, %v521
        %v523 = vrot.slane %v522, 2
        %v525 = vsel %vm183, %v518, 0
        %v528 = vsel %vm187, %v523, 0
        %530 = vmatpush.bf16.msra.mxu0 0
        %531 = vmatpush.bf16.msra.mxu0 0
        %532 = vmatpush.bf16.msra.mxu0 0
        %533 = vmatpush.bf16.msra.mxu0 0
        %534 = vmatpush.bf16.msra.mxu0 0
        %535 = vmatpush.bf16.msra.mxu0 0
        %536 = vmatpush.bf16.msra.mxu0 0
        %537 = vmatpush.bf16.msra.mxu0 %v528
        %538 = vmatmul.bf16.gmra.mxu0 %v525
        %v539 = vpop.f32.mrf.mxu0
        %v540 = vadd.f32 0.0, %v539
        %v541 = vpop.f32.mrf.mxu0
        %542 = vdwg.mxu0
        %v543 = vadd.f32 %v516, %v540
        %v544 = vld [vmem:[%s1 + $0x8] sm:$0x3]
        %v546 = vunpack.c.l.b16 %v518
        %v547 = vpack.c.b16 %v546, %v546
        %548 = vrot.lane.b32.xlu0 %v547, 124
        %v549 = vpop.permute.xlu0 %548
        %v551 = vsel %vm183, %v549, 0
        %v554 = vsel %vm187, %v544, 0
        %556 = vmatpush.bf16.msra.mxu0 0
        %557 = vmatpush.bf16.msra.mxu0 0
        %558 = vmatpush.bf16.msra.mxu0 0
        %559 = vmatpush.bf16.msra.mxu0 0
        %560 = vmatpush.bf16.msra.mxu0 0
        %561 = vmatpush.bf16.msra.mxu0 0
        %562 = vmatpush.bf16.msra.mxu0 0
        %563 = vmatpush.bf16.msra.mxu0 %v554
        %564 = vmatmul.bf16.gmra.mxu0 %v551
        %v565 = vpop.f32.mrf.mxu0
        %v566 = vadd.f32 0.0, %v565
        %v567 = vpop.f32.mrf.mxu0
        %568 = vdwg.mxu0
        %v569 = vadd.f32 %v543, %v566
        %v570 = vld [vmem:[%s517] sm:$0x7]
        %v571 = vld [vmem:[%s1 + $0x8] sm:$0xc]
        %v573 = vunpack.c.l.b16 %v570
        %v574 = vpack.c.b16 %v573, %v573
        %v576 = vshrl.u32 %v574, 16
        %v578 = vshll.u32 %v574, 16
        %v580 = vrot.slane %v578, 1
        %v581 = vor.u32 %v576, %v580
        %v583 = vunpack.c.l.b16 %v571
        %v584 = vpack.c.b16 %v583, %v583
        %v585 = vrot.slane %v584, 2
        %v587 = vsel %vm183, %v581, 0
        %v590 = vsel %vm187, %v585, 0
        %592 = vmatpush.bf16.msra.mxu0 0
        %593 = vmatpush.bf16.msra.mxu0 0
        %594 = vmatpush.bf16.msra.mxu0 0
        %595 = vmatpush.bf16.msra.mxu0 0
        %596 = vmatpush.bf16.msra.mxu0 0
        %597 = vmatpush.bf16.msra.mxu0 0
        %598 = vmatpush.bf16.msra.mxu0 0
        %599 = vmatpush.bf16.msra.mxu0 %v590
        %600 = vmatmul.bf16.gmra.mxu0 %v587
        %v601 = vpop.f32.mrf.mxu0
        %v602 = vadd.f32 0.0, %v601
        %v603 = vpop.f32.mrf.mxu0
        %604 = vdwg.mxu0
        %v605 = vadd.f32 %v569, %v602
        %s606 = scalar_lea.vmem %s168, 16
        %v607 = vld [vmem:[%s606] sm:$0x3]
        %v608 = vld [vmem:[%s1 + $0xc] sm:$0x3]
        %v610 = vsel %vm183, %v607, 0
        %v613 = vsel %vm187, %v608, 0
        %615 = vmatpush.bf16.msra.mxu0 0
        %616 = vmatpush.bf16.msra.mxu0 0
        %617 = vmatpush.bf16.msra.mxu0 0
        %618 = vmatpush.bf16.msra.mxu0 0
        %619 = vmatpush.bf16.msra.mxu0 0
        %620 = vmatpush.bf16.msra.mxu0 0
        %621 = vmatpush.bf16.msra.mxu0 0
        %622 = vmatpush.bf16.msra.mxu0 %v613
        %623 = vmatmul.bf16.gmra.mxu0 %v610
        %v624 = vpop.f32.mrf.mxu0
        %v625 = vadd.f32 0.0, %v624
        %v626 = vpop.f32.mrf.mxu0
        %627 = vdwg.mxu0
        %v628 = vadd.f32 %v605, %v625
        %v629 = vld [vmem:[%s1 + $0xc] sm:$0xc]
        %v631 = vunpack.c.l.b16 %v607
        %v632 = vpack.c.b16 %v631, %v631
        %633 = vrot.lane.b32.xlu0 %v632, 124
        %v634 = vpop.permute.xlu0 %633
        %v636 = vunpack.c.l.b16 %v629
        %v637 = vpack.c.b16 %v636, %v636
        %v638 = vrot.slane %v637, 2
        %v640 = vsel %vm183, %v634, 0
        %v643 = vsel %vm187, %v638, 0
        %645 = vmatpush.bf16.msra.mxu0 0
        %646 = vmatpush.bf16.msra.mxu0 0
        %647 = vmatpush.bf16.msra.mxu0 0
        %648 = vmatpush.bf16.msra.mxu0 0
        %649 = vmatpush.bf16.msra.mxu0 0
        %650 = vmatpush.bf16.msra.mxu0 0
        %651 = vmatpush.bf16.msra.mxu0 0
        %652 = vmatpush.bf16.msra.mxu0 %v643
        %653 = vmatmul.bf16.gmra.mxu0 %v640
        %v654 = vpop.f32.mrf.mxu0
        %v655 = vadd.f32 0.0, %v654
        %v656 = vpop.f32.mrf.mxu0
        %657 = vdwg.mxu0
        %v658 = vadd.f32 %v628, %v655
        %v659 = vld [vmem:[%s606] sm:$0x7]
        %v660 = vld [vmem:[%s1 + $0x10] sm:$0x3]
        %v662 = vunpack.c.l.b16 %v659
        %v663 = vpack.c.b16 %v662, %v662
        %v665 = vshrl.u32 %v663, 16
        %v667 = vshll.u32 %v663, 16
        %v669 = vrot.slane %v667, 1
        %v670 = vor.u32 %v665, %v669
        %v672 = vsel %vm183, %v670, 0
        %v675 = vsel %vm187, %v660, 0
        %677 = vmatpush.bf16.msra.mxu0 0
        %678 = vmatpush.bf16.msra.mxu0 0
        %679 = vmatpush.bf16.msra.mxu0 0
        %680 = vmatpush.bf16.msra.mxu0 0
        %681 = vmatpush.bf16.msra.mxu0 0
        %682 = vmatpush.bf16.msra.mxu0 0
        %683 = vmatpush.bf16.msra.mxu0 0
        %684 = vmatpush.bf16.msra.mxu0 %v675
        %685 = vmatmul.bf16.gmra.mxu0 %v672
        %v686 = vpop.f32.mrf.mxu0
        %v687 = vadd.f32 0.0, %v686
        %v688 = vpop.f32.mrf.mxu0
        %689 = vdwg.mxu0
        %v690 = vadd.f32 %v658, %v687
        %v691 = vadd.f32 %v690, %v430
        %v692 = vmax.f32 %v691, 0.0
        %s693 = scalar_lea.vmem %s163, 4 [#allocation2]
        %694 = vst [vmem:[%s693] sm:$0xf] %v692
        %v695 = vld [vmem:[%s606] sm:$0x3]
        %v696 = vld [vmem:[%s1] sm:$0x3]
        %v697 = vld [vmem:[%s1] sm:$0xc]
        %v699 = vunpack.c.l.b16 %v695
        %v700 = vpack.c.b16 %v699, %v699
        %701 = vrot.lane.b32.xlu0 %v700, 124
        %v702 = vpop.permute.xlu0 %701
        %v704 = vunpack.c.l.b16 %v697
        %v705 = vpack.c.b16 %v704, %v704
        %v706 = vrot.slane %v705, 2
        %v708 = vsel %vm183, %v702, 0
        %v711 = vsel %vm187, %v706, 0
        %713 = vmatpush.bf16.msra.mxu0 0
        %714 = vmatpush.bf16.msra.mxu0 0
        %715 = vmatpush.bf16.msra.mxu0 0
        %716 = vmatpush.bf16.msra.mxu0 0
        %717 = vmatpush.bf16.msra.mxu0 0
        %718 = vmatpush.bf16.msra.mxu0 0
        %719 = vmatpush.bf16.msra.mxu0 0
        %720 = vmatpush.bf16.msra.mxu0 %v711
        %721 = vmatmul.bf16.gmra.mxu0 %v708
        %v722 = vpop.f32.mrf.mxu0
        %v723 = vadd.f32 0.0, %v722
        %v724 = vpop.f32.mrf.mxu0
        %725 = vdwg.mxu0
        %v727 = vsel %vm183, %v695, 0
        %v730 = vsel %vm187, %v696, 0
        %732 = vmatpush.bf16.msra.mxu0 0
        %733 = vmatpush.bf16.msra.mxu0 0
        %734 = vmatpush.bf16.msra.mxu0 0
        %735 = vmatpush.bf16.msra.mxu0 0
        %736 = vmatpush.bf16.msra.mxu0 0
        %737 = vmatpush.bf16.msra.mxu0 0
        %738 = vmatpush.bf16.msra.mxu0 0
        %739 = vmatpush.bf16.msra.mxu0 %v730
        %740 = vmatmul.bf16.gmra.mxu0 %v727
        %v741 = vpop.f32.mrf.mxu0
        %v742 = vadd.f32 %v723, %v741
        %v743 = vpop.f32.mrf.mxu0
        %744 = vdwg.mxu0
        %v745 = vld [vmem:[%s606] sm:$0x7]
        %v746 = vld [vmem:[%s1 + $0x4] sm:$0x3]
        %v748 = vunpack.c.l.b16 %v745
        %v749 = vpack.c.b16 %v748, %v748
        %v751 = vshrl.u32 %v749, 16
        %v753 = vshll.u32 %v749, 16
        %v755 = vrot.slane %v753, 1
        %v756 = vor.u32 %v751, %v755
        %v758 = vsel %vm183, %v756, 0
        %v761 = vsel %vm187, %v746, 0
        %763 = vmatpush.bf16.msra.mxu0 0
        %764 = vmatpush.bf16.msra.mxu0 0
        %765 = vmatpush.bf16.msra.mxu0 0
        %766 = vmatpush.bf16.msra.mxu0 0
        %767 = vmatpush.bf16.msra.mxu0 0
        %768 = vmatpush.bf16.msra.mxu0 0
        %769 = vmatpush.bf16.msra.mxu0 0
        %770 = vmatpush.bf16.msra.mxu0 %v761
        %771 = vmatmul.bf16.gmra.mxu0 %v758
        %v772 = vpop.f32.mrf.mxu0
        %v773 = vadd.f32 0.0, %v772
        %v774 = vpop.f32.mrf.mxu0
        %775 = vdwg.mxu0
        %v776 = vadd.f32 %v742, %v773
        %s777 = scalar_lea.vmem %s168, 20
        %v778 = vld [vmem:[%s777] sm:$0x3]
        %v779 = vld [vmem:[%s1 + $0x4] sm:$0xc]
        %v781 = vunpack.c.l.b16 %v779
        %v782 = vpack.c.b16 %v781, %v781
        %v783 = vrot.slane %v782, 2
        %v785 = vsel %vm183, %v778, 0
        %v788 = vsel %vm187, %v783, 0
        %790 = vmatpush.bf16.msra.mxu0 0
        %791 = vmatpush.bf16.msra.mxu0 0
        %792 = vmatpush.bf16.msra.mxu0 0
        %793 = vmatpush.bf16.msra.mxu0 0
        %794 = vmatpush.bf16.msra.mxu0 0
        %795 = vmatpush.bf16.msra.mxu0 0
        %796 = vmatpush.bf16.msra.mxu0 0
        %797 = vmatpush.bf16.msra.mxu0 %v788
        %798 = vmatmul.bf16.gmra.mxu0 %v785
        %v799 = vpop.f32.mrf.mxu0
        %v800 = vadd.f32 0.0, %v799
        %v801 = vpop.f32.mrf.mxu0
        %802 = vdwg.mxu0
        %v803 = vadd.f32 %v776, %v800
        %v804 = vld [vmem:[%s1 + $0x8] sm:$0x3]
        %v806 = vunpack.c.l.b16 %v778
        %v807 = vpack.c.b16 %v806, %v806
        %808 = vrot.lane.b32.xlu0 %v807, 124
        %v809 = vpop.permute.xlu0 %808
        %v811 = vsel %vm183, %v809, 0
        %v814 = vsel %vm187, %v804, 0
        %816 = vmatpush.bf16.msra.mxu0 0
        %817 = vmatpush.bf16.msra.mxu0 0
        %818 = vmatpush.bf16.msra.mxu0 0
        %819 = vmatpush.bf16.msra.mxu0 0
        %820 = vmatpush.bf16.msra.mxu0 0
        %821 = vmatpush.bf16.msra.mxu0 0
        %822 = vmatpush.bf16.msra.mxu0 0
        %823 = vmatpush.bf16.msra.mxu0 %v814
        %824 = vmatmul.bf16.gmra.mxu0 %v811
        %v825 = vpop.f32.mrf.mxu0
        %v826 = vadd.f32 0.0, %v825
        %v827 = vpop.f32.mrf.mxu0
        %828 = vdwg.mxu0
        %v829 = vadd.f32 %v803, %v826
        %v830 = vld [vmem:[%s777] sm:$0x7]
        %v831 = vld [vmem:[%s1 + $0x8] sm:$0xc]
        %v833 = vunpack.c.l.b16 %v830
        %v834 = vpack.c.b16 %v833, %v833
        %v836 = vshrl.u32 %v834, 16
        %v838 = vshll.u32 %v834, 16
        %v840 = vrot.slane %v838, 1
        %v841 = vor.u32 %v836, %v840
        %v843 = vunpack.c.l.b16 %v831
        %v844 = vpack.c.b16 %v843, %v843
        %v845 = vrot.slane %v844, 2
        %v847 = vsel %vm183, %v841, 0
        %v850 = vsel %vm187, %v845, 0
        %852 = vmatpush.bf16.msra.mxu0 0
        %853 = vmatpush.bf16.msra.mxu0 0
        %854 = vmatpush.bf16.msra.mxu0 0
        %855 = vmatpush.bf16.msra.mxu0 0
        %856 = vmatpush.bf16.msra.mxu0 0
        %857 = vmatpush.bf16.msra.mxu0 0
        %858 = vmatpush.bf16.msra.mxu0 0
        %859 = vmatpush.bf16.msra.mxu0 %v850
        %860 = vmatmul.bf16.gmra.mxu0 %v847
        %v861 = vpop.f32.mrf.mxu0
        %v862 = vadd.f32 0.0, %v861
        %v863 = vpop.f32.mrf.mxu0
        %864 = vdwg.mxu0
        %v865 = vadd.f32 %v829, %v862
        %s866 = scalar_lea.vmem %s168, 24
        %v867 = vld [vmem:[%s866] sm:$0x3]
        %v868 = vld [vmem:[%s1 + $0xc] sm:$0x3]
        %v870 = vsel %vm183, %v867, 0
        %v873 = vsel %vm187, %v868, 0
        %875 = vmatpush.bf16.msra.mxu0 0
        %876 = vmatpush.bf16.msra.mxu0 0
        %877 = vmatpush.bf16.msra.mxu0 0
        %878 = vmatpush.bf16.msra.mxu0 0
        %879 = vmatpush.bf16.msra.mxu0 0
        %880 = vmatpush.bf16.msra.mxu0 0
        %881 = vmatpush.bf16.msra.mxu0 0
        %882 = vmatpush.bf16.msra.mxu0 %v873
        %883 = vmatmul.bf16.gmra.mxu0 %v870
        %v884 = vpop.f32.mrf.mxu0
        %v885 = vadd.f32 0.0, %v884
        %v886 = vpop.f32.mrf.mxu0
        %887 = vdwg.mxu0
        %v888 = vadd.f32 %v865, %v885
        %v889 = vld [vmem:[%s1 + $0xc] sm:$0xc]
        %v891 = vunpack.c.l.b16 %v867
        %v892 = vpack.c.b16 %v891, %v891
        %893 = vrot.lane.b32.xlu0 %v892, 124
        %v894 = vpop.permute.xlu0 %893
        %v896 = vunpack.c.l.b16 %v889
        %v897 = vpack.c.b16 %v896, %v896
        %v898 = vrot.slane %v897, 2
        %v900 = vsel %vm183, %v894, 0
        %v903 = vsel %vm187, %v898, 0
        %905 = vmatpush.bf16.msra.mxu0 0
        %906 = vmatpush.bf16.msra.mxu0 0
        %907 = vmatpush.bf16.msra.mxu0 0
        %908 = vmatpush.bf16.msra.mxu0 0
        %909 = vmatpush.bf16.msra.mxu0 0
        %910 = vmatpush.bf16.msra.mxu0 0
        %911 = vmatpush.bf16.msra.mxu0 0
        %912 = vmatpush.bf16.msra.mxu0 %v903
        %913 = vmatmul.bf16.gmra.mxu0 %v900
        %v914 = vpop.f32.mrf.mxu0
        %v915 = vadd.f32 0.0, %v914
        %v916 = vpop.f32.mrf.mxu0
        %917 = vdwg.mxu0
        %v918 = vadd.f32 %v888, %v915
        %v919 = vld [vmem:[%s866] sm:$0x7]
        %v920 = vld [vmem:[%s1 + $0x10] sm:$0x3]
        %v922 = vunpack.c.l.b16 %v919
        %v923 = vpack.c.b16 %v922, %v922
        %v925 = vshrl.u32 %v923, 16
        %v927 = vshll.u32 %v923, 16
        %v929 = vrot.slane %v927, 1
        %v930 = vor.u32 %v925, %v929
        %v932 = vsel %vm183, %v930, 0
        %v935 = vsel %vm187, %v920, 0
        %937 = vmatpush.bf16.msra.mxu0 0
        %938 = vmatpush.bf16.msra.mxu0 0
        %939 = vmatpush.bf16.msra.mxu0 0
        %940 = vmatpush.bf16.msra.mxu0 0
        %941 = vmatpush.bf16.msra.mxu0 0
        %942 = vmatpush.bf16.msra.mxu0 0
        %943 = vmatpush.bf16.msra.mxu0 0
        %944 = vmatpush.bf16.msra.mxu0 %v935
        %945 = vmatmul.bf16.gmra.mxu0 %v932
        %v946 = vpop.f32.mrf.mxu0
        %v947 = vadd.f32 0.0, %v946
        %v948 = vpop.f32.mrf.mxu0
        %949 = vdwg.mxu0
        %v950 = vadd.f32 %v918, %v947
        %v951 = vadd.f32 %v950, %v430
        %v952 = vmax.f32 %v951, 0.0
        %s953 = scalar_lea.vmem %s163, 8 [#allocation2]
        %954 = vst [vmem:[%s953] sm:$0xf] %v952
        %v955 = vld [vmem:[%s866] sm:$0x3]
        %v956 = vld [vmem:[%s1] sm:$0x3]
        %v957 = vld [vmem:[%s1] sm:$0xc]
        %v959 = vunpack.c.l.b16 %v955
        %v960 = vpack.c.b16 %v959, %v959
        %961 = vrot.lane.b32.xlu0 %v960, 124
        %v962 = vpop.permute.xlu0 %961
        %v964 = vunpack.c.l.b16 %v957
        %v965 = vpack.c.b16 %v964, %v964
        %v966 = vrot.slane %v965, 2
        %v968 = vsel %vm183, %v962, 0
        %v971 = vsel %vm187, %v966, 0
        %973 = vmatpush.bf16.msra.mxu0 0
        %974 = vmatpush.bf16.msra.mxu0 0
        %975 = vmatpush.bf16.msra.mxu0 0
        %976 = vmatpush.bf16.msra.mxu0 0
        %977 = vmatpush.bf16.msra.mxu0 0
        %978 = vmatpush.bf16.msra.mxu0 0
        %979 = vmatpush.bf16.msra.mxu0 0
        %980 = vmatpush.bf16.msra.mxu0 %v971
        %981 = vmatmul.bf16.gmra.mxu0 %v968
        %v982 = vpop.f32.mrf.mxu0
        %v983 = vadd.f32 0.0, %v982
        %v984 = vpop.f32.mrf.mxu0
        %985 = vdwg.mxu0
        %v987 = vsel %vm183, %v955, 0
        %v990 = vsel %vm187, %v956, 0
        %992 = vmatpush.bf16.msra.mxu0 0
        %993 = vmatpush.bf16.msra.mxu0 0
        %994 = vmatpush.bf16.msra.mxu0 0
        %995 = vmatpush.bf16.msra.mxu0 0
        %996 = vmatpush.bf16.msra.mxu0 0
        %997 = vmatpush.bf16.msra.mxu0 0
        %998 = vmatpush.bf16.msra.mxu0 0
        %999 = vmatpush.bf16.msra.mxu0 %v990
        %1000 = vmatmul.bf16.gmra.mxu0 %v987
        %v1001 = vpop.f32.mrf.mxu0
        %v1002 = vadd.f32 %v983, %v1001
        %v1003 = vpop.f32.mrf.mxu0
        %1004 = vdwg.mxu0
        %v1005 = vld [vmem:[%s866] sm:$0x7]
        %v1006 = vld [vmem:[%s1 + $0x4] sm:$0x3]
        %v1008 = vunpack.c.l.b16 %v1005
        %v1009 = vpack.c.b16 %v1008, %v1008
        %v1011 = vshrl.u32 %v1009, 16
        %v1013 = vshll.u32 %v1009, 16
        %v1015 = vrot.slane %v1013, 1
        %v1016 = vor.u32 %v1011, %v1015
        %v1018 = vsel %vm183, %v1016, 0
        %v1021 = vsel %vm187, %v1006, 0
        %1023 = vmatpush.bf16.msra.mxu0 0
        %1024 = vmatpush.bf16.msra.mxu0 0
        %1025 = vmatpush.bf16.msra.mxu0 0
        %1026 = vmatpush.bf16.msra.mxu0 0
        %1027 = vmatpush.bf16.msra.mxu0 0
        %1028 = vmatpush.bf16.msra.mxu0 0
        %1029 = vmatpush.bf16.msra.mxu0 0
        %1030 = vmatpush.bf16.msra.mxu0 %v1021
        %1031 = vmatmul.bf16.gmra.mxu0 %v1018
        %v1032 = vpop.f32.mrf.mxu0
        %v1033 = vadd.f32 0.0, %v1032
        %v1034 = vpop.f32.mrf.mxu0
        %1035 = vdwg.mxu0
        %v1036 = vadd.f32 %v1002, %v1033
        %s1037 = scalar_lea.vmem %s168, 28
        %v1038 = vld [vmem:[%s1037] sm:$0x3]
        %v1039 = vld [vmem:[%s1 + $0x4] sm:$0xc]
        %v1041 = vunpack.c.l.b16 %v1039
        %v1042 = vpack.c.b16 %v1041, %v1041
        %v1043 = vrot.slane %v1042, 2
        %v1045 = vsel %vm183, %v1038, 0
        %v1048 = vsel %vm187, %v1043, 0
        %1050 = vmatpush.bf16.msra.mxu0 0
        %1051 = vmatpush.bf16.msra.mxu0 0
        %1052 = vmatpush.bf16.msra.mxu0 0
        %1053 = vmatpush.bf16.msra.mxu0 0
        %1054 = vmatpush.bf16.msra.mxu0 0
        %1055 = vmatpush.bf16.msra.mxu0 0
        %1056 = vmatpush.bf16.msra.mxu0 0
        %1057 = vmatpush.bf16.msra.mxu0 %v1048
        %1058 = vmatmul.bf16.gmra.mxu0 %v1045
        %v1059 = vpop.f32.mrf.mxu0
        %v1060 = vadd.f32 0.0, %v1059
        %v1061 = vpop.f32.mrf.mxu0
        %1062 = vdwg.mxu0
        %v1063 = vadd.f32 %v1036, %v1060
        %v1064 = vld [vmem:[%s1 + $0x8] sm:$0x3]
        %v1066 = vunpack.c.l.b16 %v1038
        %v1067 = vpack.c.b16 %v1066, %v1066
        %1068 = vrot.lane.b32.xlu0 %v1067, 124
        %v1069 = vpop.permute.xlu0 %1068
        %v1071 = vsel %vm183, %v1069, 0
        %v1074 = vsel %vm187, %v1064, 0
        %1076 = vmatpush.bf16.msra.mxu0 0
        %1077 = vmatpush.bf16.msra.mxu0 0
        %1078 = vmatpush.bf16.msra.mxu0 0
        %1079 = vmatpush.bf16.msra.mxu0 0
        %1080 = vmatpush.bf16.msra.mxu0 0
        %1081 = vmatpush.bf16.msra.mxu0 0
        %1082 = vmatpush.bf16.msra.mxu0 0
        %1083 = vmatpush.bf16.msra.mxu0 %v1074
        %1084 = vmatmul.bf16.gmra.mxu0 %v1071
        %v1085 = vpop.f32.mrf.mxu0
        %v1086 = vadd.f32 0.0, %v1085
        %v1087 = vpop.f32.mrf.mxu0
        %1088 = vdwg.mxu0
        %v1089 = vadd.f32 %v1063, %v1086
        %v1090 = vld [vmem:[%s1037] sm:$0x7]
        %v1091 = vld [vmem:[%s1 + $0x8] sm:$0xc]
        %v1093 = vunpack.c.l.b16 %v1090
        %v1094 = vpack.c.b16 %v1093, %v1093
        %v1096 = vshrl.u32 %v1094, 16
        %v1098 = vshll.u32 %v1094, 16
        %v1100 = vrot.slane %v1098, 1
        %v1101 = vor.u32 %v1096, %v1100
        %v1103 = vunpack.c.l.b16 %v1091
        %v1104 = vpack.c.b16 %v1103, %v1103
        %v1105 = vrot.slane %v1104, 2
        %v1107 = vsel %vm183, %v1101, 0
        %v1110 = vsel %vm187, %v1105, 0
        %1112 = vmatpush.bf16.msra.mxu0 0
        %1113 = vmatpush.bf16.msra.mxu0 0
        %1114 = vmatpush.bf16.msra.mxu0 0
        %1115 = vmatpush.bf16.msra.mxu0 0
        %1116 = vmatpush.bf16.msra.mxu0 0
        %1117 = vmatpush.bf16.msra.mxu0 0
        %1118 = vmatpush.bf16.msra.mxu0 0
        %1119 = vmatpush.bf16.msra.mxu0 %v1110
        %1120 = vmatmul.bf16.gmra.mxu0 %v1107
        %v1121 = vpop.f32.mrf.mxu0
        %v1122 = vadd.f32 0.0, %v1121
        %v1123 = vpop.f32.mrf.mxu0
        %1124 = vdwg.mxu0
        %v1125 = vadd.f32 %v1089, %v1122
        %s1126 = scalar_lea.vmem %s168, 32
        %v1127 = vld [vmem:[%s1126] sm:$0x3]
        %v1128 = vld [vmem:[%s1 + $0xc] sm:$0x3]
        %v1130 = vsel %vm183, %v1127, 0
        %v1133 = vsel %vm187, %v1128, 0
        %1135 = vmatpush.bf16.msra.mxu0 0
        %1136 = vmatpush.bf16.msra.mxu0 0
        %1137 = vmatpush.bf16.msra.mxu0 0
        %1138 = vmatpush.bf16.msra.mxu0 0
        %1139 = vmatpush.bf16.msra.mxu0 0
        %1140 = vmatpush.bf16.msra.mxu0 0
        %1141 = vmatpush.bf16.msra.mxu0 0
        %1142 = vmatpush.bf16.msra.mxu0 %v1133
        %1143 = vmatmul.bf16.gmra.mxu0 %v1130
        %v1144 = vpop.f32.mrf.mxu0
        %v1145 = vadd.f32 0.0, %v1144
        %v1146 = vpop.f32.mrf.mxu0
        %1147 = vdwg.mxu0
        %v1148 = vadd.f32 %v1125, %v1145
        %v1149 = vld [vmem:[%s1 + $0xc] sm:$0xc]
        %v1151 = vunpack.c.l.b16 %v1127
        %v1152 = vpack.c.b16 %v1151, %v1151
        %1153 = vrot.lane.b32.xlu0 %v1152, 124
        %v1154 = vpop.permute.xlu0 %1153
        %v1156 = vunpack.c.l.b16 %v1149
        %v1157 = vpack.c.b16 %v1156, %v1156
        %v1158 = vrot.slane %v1157, 2
        %v1160 = vsel %vm183, %v1154, 0
        %v1163 = vsel %vm187, %v1158, 0
        %1165 = vmatpush.bf16.msra.mxu0 0
        %1166 = vmatpush.bf16.msra.mxu0 0
        %1167 = vmatpush.bf16.msra.mxu0 0
        %1168 = vmatpush.bf16.msra.mxu0 0
        %1169 = vmatpush.bf16.msra.mxu0 0
        %1170 = vmatpush.bf16.msra.mxu0 0
        %1171 = vmatpush.bf16.msra.mxu0 0
        %1172 = vmatpush.bf16.msra.mxu0 %v1163
        %1173 = vmatmul.bf16.gmra.mxu0 %v1160
        %v1174 = vpop.f32.mrf.mxu0
        %v1175 = vadd.f32 0.0, %v1174
        %v1176 = vpop.f32.mrf.mxu0
        %1177 = vdwg.mxu0
        %v1178 = vadd.f32 %v1148, %v1175
        %v1179 = vld [vmem:[%s1126] sm:$0x7]
        %v1180 = vld [vmem:[%s1 + $0x10] sm:$0x3]
        %v1182 = vunpack.c.l.b16 %v1179
        %v1183 = vpack.c.b16 %v1182, %v1182
        %v1185 = vshrl.u32 %v1183, 16
        %v1187 = vshll.u32 %v1183, 16
        %v1189 = vrot.slane %v1187, 1
        %v1190 = vor.u32 %v1185, %v1189
        %v1192 = vsel %vm183, %v1190, 0
        %v1195 = vsel %vm187, %v1180, 0
        %1197 = vmatpush.bf16.msra.mxu0 0
        %1198 = vmatpush.bf16.msra.mxu0 0
        %1199 = vmatpush.bf16.msra.mxu0 0
        %1200 = vmatpush.bf16.msra.mxu0 0
        %1201 = vmatpush.bf16.msra.mxu0 0
        %1202 = vmatpush.bf16.msra.mxu0 0
        %1203 = vmatpush.bf16.msra.mxu0 0
        %1204 = vmatpush.bf16.msra.mxu0 %v1195
        %1205 = vmatmul.bf16.gmra.mxu0 %v1192
        %v1206 = vpop.f32.mrf.mxu0
        %v1207 = vadd.f32 0.0, %v1206
        %v1208 = vpop.f32.mrf.mxu0
        %1209 = vdwg.mxu0
        %v1210 = vadd.f32 %v1178, %v1207
        %v1211 = vadd.f32 %v1210, %v430
        %v1212 = vmax.f32 %v1211, 0.0
        %s1213 = scalar_lea.vmem %s163, 12 [#allocation2]
        %1214 = vst [vmem:[%s1213] sm:$0xf] %v1212
        %s1215 = sand.u32 %s93, 1
        %s1216 = scalar_lea.sflag [#allocation3], %s1215
        %s1217 = sand.u32 %s93, 1
        %s1218 = smul.addr %s1217, 16
        %s1219 = scalar_lea.vmem [#allocation2], %s1218
        // Predicated region
        $region33: #{pipeline_forward.5} parent=31 // pred_check
          %p1220 = pneg %p103
        $region34: #{pipeline_forward.5} parent=31 // pred_check_branch
          %1222 = sbr.rel (%p1220) target = $region36
        $region35: #{pipeline_forward.5} parent=31 // pred_region
          %1224 = vsyncadd %s1216, 0
          %s1225 = smul.addr %s17, 4
          %s1226 = smul.addr %s1225, 4
          %s1227 = scalar_lea.hbm %s3, %s1226
          %s1228 = sshll.u32 %s1219, 4
          %s1229 = int_to_ptr.vmem [resolvable:$true] %s1228
          %s1230 = sshll.u32 %s1227, 4
          %s1231 = int_to_ptr.hbm [resolvable:$true] %s1230
          %1236 = dma.vmem_to_hbm [thread:$0]  %s1229, 256, %s1231, %s1216, 64, 64, 4
        $region36: #{pipeline_forward.5} parent=31 // pred_fallthru
          _
      $region32: #{pipeline_forward.5} parent=5 // pred_fallthru
        _
      %p1237 = scmp.le.s32.totalorder 2, %s12
      // Predicated region
      $region37: #{pipeline_forward.5} parent=5 // pred_check
        %p1238 = pneg %p1237
      $region38: #{pipeline_forward.5} parent=5 // pred_check_branch
        %1240 = sbr.rel (%p1238) target = $region40
      $region39: #{pipeline_forward.5} parent=5 // pred_region
        %s1241 = ssub.s32 %s12, 2
        // Predicated region
        $region41: #{pipeline_forward.5} parent=39 // pred_check
          %p1242 = pneg %p109
        $region42: #{pipeline_forward.5} parent=39 // pred_check_branch
          %1244 = sbr.rel (%p1242) target = $region44
        $region43: #{pipeline_forward.5} parent=39 // pred_region
          %s1245 = sand.u32 %s94, 1
          %s1246 = scalar_lea.sflag [#allocation3], %s1245
          %s1247 = sand.u32 %s94, 1
          %s1248 = smul.addr %s1247, 16
          %s1249 = scalar_lea.vmem [#allocation2], %s1248
          %1251 = dma.done %s1246, 256
        $region44: #{pipeline_forward.5} parent=39 // pred_fallthru
          _
      $region40: #{pipeline_forward.5} parent=5 // pred_fallthru
        _
    $region6: #{pipeline_forward.5} parent=1 // loop_footer
      %s16 = sadd.s32 1, %s12
    $region7: #{pipeline_forward.5} parent=1 // loop_footer_branch
      %11 = sbr.rel target = $region3
    $region8: #{pipeline_forward.5} parent=1 // loop_exit
      _
    %1252 = vsyncpa [#allocation3], 1
    %s1253 = scalar_lea.sflag [#allocation3], 1
    %1254 = vsyncpa %s1253, 1

</llo_original>
